<compile_context>
chip_gen: v5e
topology: v5e:2x2
jax: 0.10.0
libtpu: 0.0.40
codegen_flags: <defaults>
</compile_context>

<pallas_src>
import functools

import jax
import jax.numpy as jnp
import numpy as np
from jax.experimental import pallas as pl
from jax.experimental.pallas import tpu as pltpu


def _resblock_kernel(x_ref, top_ref, bot_ref, w1_ref, w2_ref, b1_ref, b2_ref,
                     o_ref, slab_ref, mid_ref, *, H, tile_h, slope):
    """One (batch n, row-tile h) step of the fused residual block.

    x_ref    : (1, tile_h, W, Cin)      main input tile (also the residual)
    top_ref  : (1, 2, W, Cin)           2 rows above the tile (clamped fetch, masked here)
    bot_ref  : (1, 2, W, Cin)           2 rows below the tile (clamped fetch, masked here)
    w1_ref   : (9, Cin,  Cout)          conv1 taps (BN1 scale folded in), tap = kh*3+kw
    w2_ref   : (9, Cout, Cout)          conv2 taps (BN2 scale folded in)
    b*_ref   : (1, Cout)                folded BN shifts
    o_ref    : (1, tile_h, W, Cout)     output tile
    slab_ref : (tile_h+4, W+4, Cin)     VMEM staging: row halo + zero column frame
    mid_ref  : (tile_h+2, W+2, Cout)    VMEM staging: conv1 output with 1-pixel halo frame
    """
    h = pl.program_id(1)
    n_h = pl.num_programs(1)
    W = o_ref.shape[2]
    Cin = x_ref.shape[3]
    Cout = o_ref.shape[3]
    R1 = tile_h + 2          # conv1 output rows needed (1-row halo for conv2)
    Wp = W + 2               # conv1 output cols (image cols -1 .. W)
    in_dt = slab_ref.dtype

    # ---- stage input tile + 2-row halos into a zero-framed slab -------------------------
    # Halo rows that lie outside the image are zeroed -> emulates conv zero padding in H.
    zcol = jnp.zeros((tile_h + 4, 2, Cin), in_dt)
    slab_ref[:, 0:2, :] = zcol                    # image cols -2, -1
    slab_ref[:, W + 2:W + 4, :] = zcol            # image cols  W, W+1
    top = top_ref[0] * (h > 0).astype(in_dt)
    bot = bot_ref[0] * (h < n_h - 1).astype(in_dt)
    slab_ref[0:2, 2:W + 2, :] = top
    slab_ref[2:tile_h + 2, 2:W + 2, :] = x_ref[0]
    slab_ref[tile_h + 2:tile_h + 4, 2:W + 2, :] = bot

    # ---- conv1 (3x3, BN scale folded) + BN shift + LeakyReLU(0.1) ------------------------
    acc1 = None
    for kh in range(3):
        for kw in range(3):
            patch = slab_ref[kh:kh + R1, kw:kw + Wp, :].reshape(R1 * Wp, Cin)
            d = jnp.dot(patch, w1_ref[kh * 3 + kw], preferred_element_type=jnp.float32)
            acc1 = d if acc1 is None else acc1 + d
    y = acc1 + b1_ref[...]
    y = jnp.where(y > 0, y, slope * y)
    y = y.reshape(R1, Wp, Cout)

    # Zero the 1-pixel frame that lies outside the image: conv2 must see zero padding there,
    # not conv1 applied to padding.
    row = jax.lax.broadcasted_iota(jnp.int32, (R1, 1, 1), 0)
    grow = h * tile_h - 1 + row
    col = jax.lax.broadcasted_iota(jnp.int32, (1, Wp, 1), 1)
    valid = (grow >= 0) & (grow < H) & (col >= 1) & (col <= W)
    y = jnp.where(valid, y, 0.0)
    mid_ref[...] = y.astype(mid_ref.dtype)

    # ---- conv2 (3x3, BN scale folded) + BN shift + residual add --------------------------
    acc2 = None
    for kh in range(3):
        for kw in range(3):
            patch = mid_ref[kh:kh + tile_h, kw:kw + W, :].reshape(tile_h * W, Cout)
            d = jnp.dot(patch, w2_ref[kh * 3 + kw], preferred_element_type=jnp.float32)
            acc2 = d if acc2 is None else acc2 + d
    z = acc2 + b2_ref[...]
    z = z.reshape(tile_h, W, Cout) + x_ref[0].astype(jnp.float32)
    # NOTE: the PyTorch forward never applies self.relu -> no final activation.
    o_ref[0] = z.astype(o_ref.dtype)


def _vmem_bytes_estimate(tile_h, W, Cin, Cout, in_bytes, cdt_bytes):
    slab = (tile_h + 4) * (W + 4) * Cin * in_bytes
    mid = (tile_h + 2) * (W + 2) * Cout * cdt_bytes
    acc = 2 * (tile_h + 2) * (W + 2) * max(Cin, Cout) * 4        # f32 accumulators / temps
    io = 2 * ((tile_h + 4) * W * Cin * in_bytes + tile_h * W * Cout * in_bytes)  # dbl-buffered blocks
    wts = 9 * (Cin + Cout) * Cout * cdt_bytes + 8 * Cout
    return slab + mid + acc + io + wts


def _pick_tile_h(H, W, Cin, Cout, itemsize, budget_bytes=8 * 1024 * 1024):
    best = None
    for t in range(2, H + 1, 2):
        if H % t:
            continue
        if _vmem_bytes_estimate(t, W, Cin, Cout, itemsize, itemsize) <= budget_bytes:
            best = t
    return best if best is not None else 2


def residual_block(x_nchw, w1, g1, beta1, m1, v1, w2, g2, beta2, m2, v2,
                   *, eps=1e-5, slope=0.1, tile_h=None):
    N, Cin, H, W = x_nchw.shape
    Cout = w1.shape[0]
    assert Cin == Cout, "downsample=None requires in_channels == n_filters"
    assert H % 2 == 0, "even H required"  # TODO(synk): odd-H row tiling

    x = jnp.transpose(x_nchw, (0, 2, 3, 1))          # NCHW -> NHWC (channels on lanes)
    cdt = x.dtype                                     # MXU operand dtype follows the input dtype

    if tile_h is None:
        tile_h = _pick_tile_h(H, W, Cin, Cout, jnp.dtype(cdt).itemsize)
    assert H % tile_h == 0 and tile_h % 2 == 0 and tile_h >= 2

    # Fold inference-mode BN scale into the conv weights; keep only a per-channel shift.
    inv1 = (g1 / jnp.sqrt(v1 + eps)).astype(jnp.float32)
    inv2 = (g2 / jnp.sqrt(v2 + eps)).astype(jnp.float32)
    w1_t = jnp.transpose(w1, (2, 3, 1, 0)).reshape(9, Cin, Cout).astype(jnp.float32)
    w2_t = jnp.transpose(w2, (2, 3, 1, 0)).reshape(9, Cout, Cout).astype(jnp.float32)
    w1_t = (w1_t * inv1[None, None, :]).astype(cdt)
    w2_t = (w2_t * inv2[None, None, :]).astype(cdt)
    b1 = (beta1 - m1 * inv1).reshape(1, Cout).astype(jnp.float32)
    b2 = (beta2 - m2 * inv2).reshape(1, Cout).astype(jnp.float32)

    n_h = H // tile_h
    hh = tile_h // 2          # halo blocks tile the H axis in chunks of 2 rows
    kernel = functools.partial(_resblock_kernel, H=H, tile_h=tile_h, slope=slope)

    est = _vmem_bytes_estimate(tile_h, W, Cin, Cout,
                               jnp.dtype(x.dtype).itemsize, jnp.dtype(cdt).itemsize)
    vmem_limit = int(min(max(4 * est, 16 * 1024 * 1024), 48 * 1024 * 1024))

    out_nhwc = pl.pallas_call(
        kernel,
        out_shape=jax.ShapeDtypeStruct((N, H, W, Cout), x.dtype),
        grid=(N, n_h),
        in_specs=[
            # main row tile (also serves as the residual — fetched exactly once)
            pl.BlockSpec((1, tile_h, W, Cin), lambda n, h: (n, h, 0, 0)),
            # 2-row halo above (block index clamped; invalid rows masked in-kernel)
            pl.BlockSpec((1, 2, W, Cin),
                         lambda n, h: (n, jnp.maximum(h * hh - 1, 0), 0, 0)),
            # 2-row halo below
            pl.BlockSpec((1, 2, W, Cin),
                         lambda n, h: (n, jnp.minimum((h + 1) * hh, H // 2 - 1), 0, 0)),
            # weights / shifts: constant index maps -> effectively fetched once
            pl.BlockSpec((9, Cin, Cout), lambda n, h: (0, 0, 0)),
            pl.BlockSpec((9, Cout, Cout), lambda n, h: (0, 0, 0)),
            pl.BlockSpec((1, Cout), lambda n, h: (0, 0)),
            pl.BlockSpec((1, Cout), lambda n, h: (0, 0)),
        ],
        out_specs=pl.BlockSpec((1, tile_h, W, Cout), lambda n, h: (n, h, 0, 0)),
        scratch_shapes=[
            pltpu.VMEM((tile_h + 4, W + 4, Cin), x.dtype),   # zero-framed input slab
            pltpu.VMEM((tile_h + 2, W + 2, Cout), cdt),      # conv1 output (+1 halo frame)
        ],
        compiler_params=pltpu.CompilerParams(
            dimension_semantics=("parallel", "parallel"),
            vmem_limit_bytes=vmem_limit,
        ),
    )(x, x, x, w1_t, w2_t, b1, b2)

    return jnp.transpose(out_nhwc, (0, 3, 1, 2))     # back to NCHW


def _reference(x_nchw, w1, g1, beta1, m1, v1, w2, g2, beta2, m2, v2,
               *, eps=1e-5, slope=0.1):
    def conv(x, w):
        return jax.lax.conv_general_dilated(
            x, w, window_strides=(1, 1), padding=((1, 1), (1, 1)),
            dimension_numbers=("NCHW", "OIHW", "NCHW"))

    def bn(x, g, b, m, v):
        g, b, m, v = (a[None, :, None, None] for a in (g, b, m, v))
        return (x - m) / jnp.sqrt(v + eps) * g + b

    out = conv(x_nchw, w1)
    out = bn(out, g1, beta1, m1, v1)
    out = jnp.where(out > 0, out, slope * out)
    out = conv(out, w2)
    out = bn(out, g2, beta2, m2, v2)
    return out + x_nchw


if __name__ == "__main__":
    key = jax.random.PRNGKey(0)
    N, C, H, W = 2, 4, 16, 16     # in_channels == n_filters == 4, stride=1, dilation=1

    k_x, k_w1, k_w2 = jax.random.split(key, 3)
    x = jax.random.normal(k_x, (N, C, H, W), jnp.float32)
    w1 = jax.random.normal(k_w1, (C, C, 3, 3), jnp.float32) * 0.1
    w2 = jax.random.normal(k_w2, (C, C, 3, 3), jnp.float32) * 0.1

    # Deterministic BatchNorm parameters / running stats
    g1 = 1.0 + 0.10 * jnp.arange(C, dtype=jnp.float32)
    b1 = 0.05 * jnp.arange(C, dtype=jnp.float32)
    m1 = 0.02 * jnp.arange(C, dtype=jnp.float32)
    v1 = 1.0 + 0.10 * jnp.arange(C, dtype=jnp.float32)
    g2 = 1.0 - 0.05 * jnp.arange(C, dtype=jnp.float32)
    b2 = -0.03 * jnp.arange(C, dtype=jnp.float32)
    m2 = -0.01 * jnp.arange(C, dtype=jnp.float32)
    v2 = 1.5 + 0.20 * jnp.arange(C, dtype=jnp.float32)

    ref = _reference(x, w1, g1, b1, m1, v1, w2, g2, b2, m2, v2)

    # multi-tile path (grid = (2, 2): exercises interior + boundary halos)
    out = residual_block(x, w1, g1, b1, m1, v1, w2, g2, b2, m2, v2, tile_h=8)
    out = jax.block_until_ready(out)
    assert out.shape == (N, C, H, W)
    np.testing.assert_allclose(np.asarray(out), np.asarray(ref), rtol=1e-4, atol=1e-4)

    # auto-picked tile path (single H tile here)
    out2 = residual_block(x, w1, g1, b1, m1, v1, w2, g2, b2, m2, v2)
    out2 = jax.block_until_ready(out2)
    np.testing.assert_allclose(np.asarray(out2), np.asarray(ref), rtol=1e-4, atol=1e-4)

    print("KERNEL_OK")
</pallas_src>

<mosaic_0001>
module attributes {stable_mosaic.version = 11 : i64} {
  func.func @_resblock_kernel(%arg0: i32, %arg1: i32, %arg2: memref<1x8x16x4xf32, #tpu.memory_space<vmem>>, %arg3: memref<1x2x16x4xf32, #tpu.memory_space<vmem>>, %arg4: memref<1x2x16x4xf32, #tpu.memory_space<vmem>>, %arg5: memref<9x4x4xf32, #tpu.memory_space<vmem>>, %arg6: memref<9x4x4xf32, #tpu.memory_space<vmem>>, %arg7: memref<1x4xf32, #tpu.memory_space<vmem>>, %arg8: memref<1x4xf32, #tpu.memory_space<vmem>>, %arg9: memref<1x8x16x4xf32, #tpu.memory_space<vmem>>, %arg10: memref<12x20x4xf32, #tpu.memory_space<vmem>>, %arg11: memref<10x18x4xf32, #tpu.memory_space<vmem>>) attributes {dimension_semantics = [#tpu.dimension_semantics<parallel>, #tpu.dimension_semantics<parallel>], iteration_bounds = array<i64: 2, 2>, scalar_prefetch = 0 : i64, scratch_operands = 2 : i64, tpu.core_type = #tpu.core_type<tc>, window_params = [{transform_indices = @transform_0, window_bounds = array<i64: 1, 8, 16, 4>}, {transform_indices = @transform_1, window_bounds = array<i64: 1, 2, 16, 4>}, {transform_indices = @transform_2, window_bounds = array<i64: 1, 2, 16, 4>}, {pipeline_mode = #tpu.pipeline_mode<synchronous>, transform_indices = @transform_3, window_bounds = array<i64: 9, 4, 4>}, {pipeline_mode = #tpu.pipeline_mode<synchronous>, transform_indices = @transform_4, window_bounds = array<i64: 9, 4, 4>}, {pipeline_mode = #tpu.pipeline_mode<synchronous>, transform_indices = @transform_5, window_bounds = array<i64: 1, 4>}, {pipeline_mode = #tpu.pipeline_mode<synchronous>, transform_indices = @transform_6, window_bounds = array<i64: 1, 4>}, {transform_indices = @transform_7, window_bounds = array<i64: 1, 8, 16, 4>}]} {
    %cst = arith.constant 0.000000e+00 : f32
    %0 = vector.broadcast %cst : f32 to vector<12x2x4xf32>
    %c0 = arith.constant 0 : index
    %c0_0 = arith.constant 0 : index
    %c0_1 = arith.constant 0 : index
    %1 = vector.load %arg10[%c0, %c0_0, %c0_1] : memref<12x20x4xf32, #tpu.memory_space<vmem>>, vector<12x2x4xf32>
    tpu.vector_store %arg10[%c0, %c0_0, %c0_1], %0 {strides = array<i32>} : memref<12x20x4xf32, #tpu.memory_space<vmem>>, vector<12x2x4xf32>,
    %c0_2 = arith.constant 0 : index
    %c18 = arith.constant 18 : index
    %c0_3 = arith.constant 0 : index
    %2 = vector.load %arg10[%c0_2, %c18, %c0_3] : memref<12x20x4xf32, #tpu.memory_space<vmem>>, vector<12x2x4xf32>
    tpu.vector_store %arg10[%c0_2, %c18, %c0_3], %0 {strides = array<i32>} : memref<12x20x4xf32, #tpu.memory_space<vmem>>, vector<12x2x4xf32>,
    %c0_4 = arith.constant 0 : index
    %c0_5 = arith.constant 0 : index
    %c0_6 = arith.constant 0 : index
    %c0_7 = arith.constant 0 : index
    %3 = vector.load %arg3[%c0_4, %c0_5, %c0_6, %c0_7] : memref<1x2x16x4xf32, #tpu.memory_space<vmem>>, vector<1x2x16x4xf32>
    %4 = vector.shape_cast %3 : vector<1x2x16x4xf32> to vector<2x16x4xf32>
    %c0_i32 = arith.constant 0 : i32
    %5 = arith.cmpi sgt, %arg1, %c0_i32 : i32
    %6 = arith.extui %5 : i1 to i32
    %7 = arith.sitofp %6 : i32 to f32
    %8 = vector.broadcast %7 : f32 to vector<2x16x4xf32>
    %9 = arith.mulf %4, %8 : vector<2x16x4xf32>
    %c0_8 = arith.constant 0 : index
    %c0_9 = arith.constant 0 : index
    %c0_10 = arith.constant 0 : index
    %c0_11 = arith.constant 0 : index
    %10 = vector.load %arg4[%c0_8, %c0_9, %c0_10, %c0_11] : memref<1x2x16x4xf32, #tpu.memory_space<vmem>>, vector<1x2x16x4xf32>
    %11 = vector.shape_cast %10 : vector<1x2x16x4xf32> to vector<2x16x4xf32>
    %c1_i32 = arith.constant 1 : i32
    %12 = arith.cmpi slt, %arg1, %c1_i32 : i32
    %13 = arith.extui %12 : i1 to i32
    %14 = arith.sitofp %13 : i32 to f32
    %15 = vector.broadcast %14 : f32 to vector<2x16x4xf32>
    %16 = arith.mulf %11, %15 : vector<2x16x4xf32>
    %c0_12 = arith.constant 0 : index
    %c2 = arith.constant 2 : index
    %c0_13 = arith.constant 0 : index
    %17 = vector.load %arg10[%c0_12, %c2, %c0_13] : memref<12x20x4xf32, #tpu.memory_space<vmem>>, vector<2x16x4xf32>
    tpu.vector_store %arg10[%c0_12, %c2, %c0_13], %9 {strides = array<i32>} : memref<12x20x4xf32, #tpu.memory_space<vmem>>, vector<2x16x4xf32>,
    %c0_14 = arith.constant 0 : index
    %c0_15 = arith.constant 0 : index
    %c0_16 = arith.constant 0 : index
    %c0_17 = arith.constant 0 : index
    %18 = vector.load %arg2[%c0_14, %c0_15, %c0_16, %c0_17] : memref<1x8x16x4xf32, #tpu.memory_space<vmem>>, vector<1x8x16x4xf32>
    %19 = vector.shape_cast %18 : vector<1x8x16x4xf32> to vector<8x16x4xf32>
    %c2_18 = arith.constant 2 : index
    %c2_19 = arith.constant 2 : index
    %c0_20 = arith.constant 0 : index
    %20 = vector.load %arg10[%c2_18, %c2_19, %c0_20] : memref<12x20x4xf32, #tpu.memory_space<vmem>>, vector<8x16x4xf32>
    tpu.vector_store %arg10[%c2_18, %c2_19, %c0_20], %19 {strides = array<i32>} : memref<12x20x4xf32, #tpu.memory_space<vmem>>, vector<8x16x4xf32>,
    %c10 = arith.constant 10 : index
    %c2_21 = arith.constant 2 : index
    %c0_22 = arith.constant 0 : index
    %21 = vector.load %arg10[%c10, %c2_21, %c0_22] : memref<12x20x4xf32, #tpu.memory_space<vmem>>, vector<2x16x4xf32>
    tpu.vector_store %arg10[%c10, %c2_21, %c0_22], %16 {strides = array<i32>} : memref<12x20x4xf32, #tpu.memory_space<vmem>>, vector<2x16x4xf32>,
    %c0_23 = arith.constant 0 : index
    %c0_24 = arith.constant 0 : index
    %c0_25 = arith.constant 0 : index
    %22 = vector.load %arg10[%c0_23, %c0_24, %c0_25] : memref<12x20x4xf32, #tpu.memory_space<vmem>>, vector<10x18x4xf32>
    %23 = vector.shape_cast %22 : vector<10x18x4xf32> to vector<180x4xf32>
    %c0_26 = arith.constant 0 : index
    %c0_27 = arith.constant 0 : index
    %c0_28 = arith.constant 0 : index
    %24 = vector.load %arg5[%c0_26, %c0_27, %c0_28] : memref<9x4x4xf32, #tpu.memory_space<vmem>>, vector<1x4x4xf32>
    %25 = vector.shape_cast %24 : vector<1x4x4xf32> to vector<4x4xf32>
    %cst_29 = arith.constant dense<0.000000e+00> : vector<180x4xf32>
    %26 = tpu.matmul %23, %25, %cst_29 {dimension_numbers = #tpu.dot_dimension_numbers<[1], [0], [0], [1], [0, 0, 1, 1], [], []>} : vector<180x4xf32>, vector<4x4xf32>, vector<180x4xf32> -> vector<180x4xf32>
    %c0_30 = arith.constant 0 : index
    %c1 = arith.constant 1 : index
    %c0_31 = arith.constant 0 : index
    %27 = vector.load %arg10[%c0_30, %c1, %c0_31] : memref<12x20x4xf32, #tpu.memory_space<vmem>>, vector<10x18x4xf32>
    %28 = vector.shape_cast %27 : vector<10x18x4xf32> to vector<180x4xf32>
    %c1_32 = arith.constant 1 : index
    %c0_33 = arith.constant 0 : index
    %c0_34 = arith.constant 0 : index
    %29 = vector.load %arg5[%c1_32, %c0_33, %c0_34] : memref<9x4x4xf32, #tpu.memory_space<vmem>>, vector<1x4x4xf32>
    %30 = vector.shape_cast %29 : vector<1x4x4xf32> to vector<4x4xf32>
    %cst_35 = arith.constant dense<0.000000e+00> : vector<180x4xf32>
    %31 = tpu.matmul %28, %30, %cst_35 {dimension_numbers = #tpu.dot_dimension_numbers<[1], [0], [0], [1], [0, 0, 1, 1], [], []>} : vector<180x4xf32>, vector<4x4xf32>, vector<180x4xf32> -> vector<180x4xf32>
    %32 = arith.addf %26, %31 : vector<180x4xf32>
    %c0_36 = arith.constant 0 : index
    %c2_37 = arith.constant 2 : index
    %c0_38 = arith.constant 0 : index
    %33 = vector.load %arg10[%c0_36, %c2_37, %c0_38] : memref<12x20x4xf32, #tpu.memory_space<vmem>>, vector<10x18x4xf32>
    %34 = vector.shape_cast %33 : vector<10x18x4xf32> to vector<180x4xf32>
    %c2_39 = arith.constant 2 : index
    %c0_40 = arith.constant 0 : index
    %c0_41 = arith.constant 0 : index
    %35 = vector.load %arg5[%c2_39, %c0_40, %c0_41] : memref<9x4x4xf32, #tpu.memory_space<vmem>>, vector<1x4x4xf32>
    %36 = vector.shape_cast %35 : vector<1x4x4xf32> to vector<4x4xf32>
    %cst_42 = arith.constant dense<0.000000e+00> : vector<180x4xf32>
    %37 = tpu.matmul %34, %36, %cst_42 {dimension_numbers = #tpu.dot_dimension_numbers<[1], [0], [0], [1], [0, 0, 1, 1], [], []>} : vector<180x4xf32>, vector<4x4xf32>, vector<180x4xf32> -> vector<180x4xf32>
    %38 = arith.addf %32, %37 : vector<180x4xf32>
    %c1_43 = arith.constant 1 : index
    %c0_44 = arith.constant 0 : index
    %c0_45 = arith.constant 0 : index
    %39 = vector.load %arg10[%c1_43, %c0_44, %c0_45] : memref<12x20x4xf32, #tpu.memory_space<vmem>>, vector<10x18x4xf32>
    %40 = vector.shape_cast %39 : vector<10x18x4xf32> to vector<180x4xf32>
    %c3 = arith.constant 3 : index
    %c0_46 = arith.constant 0 : index
    %c0_47 = arith.constant 0 : index
    %41 = vector.load %arg5[%c3, %c0_46, %c0_47] : memref<9x4x4xf32, #tpu.memory_space<vmem>>, vector<1x4x4xf32>
    %42 = vector.shape_cast %41 : vector<1x4x4xf32> to vector<4x4xf32>
    %cst_48 = arith.constant dense<0.000000e+00> : vector<180x4xf32>
    %43 = tpu.matmul %40, %42, %cst_48 {dimension_numbers = #tpu.dot_dimension_numbers<[1], [0], [0], [1], [0, 0, 1, 1], [], []>} : vector<180x4xf32>, vector<4x4xf32>, vector<180x4xf32> -> vector<180x4xf32>
    %44 = arith.addf %38, %43 : vector<180x4xf32>
    %c1_49 = arith.constant 1 : index
    %c1_50 = arith.constant 1 : index
    %c0_51 = arith.constant 0 : index
    %45 = vector.load %arg10[%c1_49, %c1_50, %c0_51] : memref<12x20x4xf32, #tpu.memory_space<vmem>>, vector<10x18x4xf32>
    %46 = vector.shape_cast %45 : vector<10x18x4xf32> to vector<180x4xf32>
    %c4 = arith.constant 4 : index
    %c0_52 = arith.constant 0 : index
    %c0_53 = arith.constant 0 : index
    %47 = vector.load %arg5[%c4, %c0_52, %c0_53] : memref<9x4x4xf32, #tpu.memory_space<vmem>>, vector<1x4x4xf32>
    %48 = vector.shape_cast %47 : vector<1x4x4xf32> to vector<4x4xf32>
    %cst_54 = arith.constant dense<0.000000e+00> : vector<180x4xf32>
    %49 = tpu.matmul %46, %48, %cst_54 {dimension_numbers = #tpu.dot_dimension_numbers<[1], [0], [0], [1], [0, 0, 1, 1], [], []>} : vector<180x4xf32>, vector<4x4xf32>, vector<180x4xf32> -> vector<180x4xf32>
    %50 = arith.addf %44, %49 : vector<180x4xf32>
    %c1_55 = arith.constant 1 : index
    %c2_56 = arith.constant 2 : index
    %c0_57 = arith.constant 0 : index
    %51 = vector.load %arg10[%c1_55, %c2_56, %c0_57] : memref<12x20x4xf32, #tpu.memory_space<vmem>>, vector<10x18x4xf32>
    %52 = vector.shape_cast %51 : vector<10x18x4xf32> to vector<180x4xf32>
    %c5 = arith.constant 5 : index
    %c0_58 = arith.constant 0 : index
    %c0_59 = arith.constant 0 : index
    %53 = vector.load %arg5[%c5, %c0_58, %c0_59] : memref<9x4x4xf32, #tpu.memory_space<vmem>>, vector<1x4x4xf32>
    %54 = vector.shape_cast %53 : vector<1x4x4xf32> to vector<4x4xf32>
    %cst_60 = arith.constant dense<0.000000e+00> : vector<180x4xf32>
    %55 = tpu.matmul %52, %54, %cst_60 {dimension_numbers = #tpu.dot_dimension_numbers<[1], [0], [0], [1], [0, 0, 1, 1], [], []>} : vector<180x4xf32>, vector<4x4xf32>, vector<180x4xf32> -> vector<180x4xf32>
    %56 = arith.addf %50, %55 : vector<180x4xf32>
    %c2_61 = arith.constant 2 : index
    %c0_62 = arith.constant 0 : index
    %c0_63 = arith.constant 0 : index
    %57 = vector.load %arg10[%c2_61, %c0_62, %c0_63] : memref<12x20x4xf32, #tpu.memory_space<vmem>>, vector<10x18x4xf32>
    %58 = vector.shape_cast %57 : vector<10x18x4xf32> to vector<180x4xf32>
    %c6 = arith.constant 6 : index
    %c0_64 = arith.constant 0 : index
    %c0_65 = arith.constant 0 : index
    %59 = vector.load %arg5[%c6, %c0_64, %c0_65] : memref<9x4x4xf32, #tpu.memory_space<vmem>>, vector<1x4x4xf32>
    %60 = vector.shape_cast %59 : vector<1x4x4xf32> to vector<4x4xf32>
    %cst_66 = arith.constant dense<0.000000e+00> : vector<180x4xf32>
    %61 = tpu.matmul %58, %60, %cst_66 {dimension_numbers = #tpu.dot_dimension_numbers<[1], [0], [0], [1], [0, 0, 1, 1], [], []>} : vector<180x4xf32>, vector<4x4xf32>, vector<180x4xf32> -> vector<180x4xf32>
    %62 = arith.addf %56, %61 : vector<180x4xf32>
    %c2_67 = arith.constant 2 : index
    %c1_68 = arith.constant 1 : index
    %c0_69 = arith.constant 0 : index
    %63 = vector.load %arg10[%c2_67, %c1_68, %c0_69] : memref<12x20x4xf32, #tpu.memory_space<vmem>>, vector<10x18x4xf32>
    %64 = vector.shape_cast %63 : vector<10x18x4xf32> to vector<180x4xf32>
    %c7 = arith.constant 7 : index
    %c0_70 = arith.constant 0 : index
    %c0_71 = arith.constant 0 : index
    %65 = vector.load %arg5[%c7, %c0_70, %c0_71] : memref<9x4x4xf32, #tpu.memory_space<vmem>>, vector<1x4x4xf32>
    %66 = vector.shape_cast %65 : vector<1x4x4xf32> to vector<4x4xf32>
    %cst_72 = arith.constant dense<0.000000e+00> : vector<180x4xf32>
    %67 = tpu.matmul %64, %66, %cst_72 {dimension_numbers = #tpu.dot_dimension_numbers<[1], [0], [0], [1], [0, 0, 1, 1], [], []>} : vector<180x4xf32>, vector<4x4xf32>, vector<180x4xf32> -> vector<180x4xf32>
    %68 = arith.addf %62, %67 : vector<180x4xf32>
    %c2_73 = arith.constant 2 : index
    %c2_74 = arith.constant 2 : index
    %c0_75 = arith.constant 0 : index
    %69 = vector.load %arg10[%c2_73, %c2_74, %c0_75] : memref<12x20x4xf32, #tpu.memory_space<vmem>>, vector<10x18x4xf32>
    %70 = vector.shape_cast %69 : vector<10x18x4xf32> to vector<180x4xf32>
    %c8 = arith.constant 8 : index
    %c0_76 = arith.constant 0 : index
    %c0_77 = arith.constant 0 : index
    %71 = vector.load %arg5[%c8, %c0_76, %c0_77] : memref<9x4x4xf32, #tpu.memory_space<vmem>>, vector<1x4x4xf32>
    %72 = vector.shape_cast %71 : vector<1x4x4xf32> to vector<4x4xf32>
    %cst_78 = arith.constant dense<0.000000e+00> : vector<180x4xf32>
    %73 = tpu.matmul %70, %72, %cst_78 {dimension_numbers = #tpu.dot_dimension_numbers<[1], [0], [0], [1], [0, 0, 1, 1], [], []>} : vector<180x4xf32>, vector<4x4xf32>, vector<180x4xf32> -> vector<180x4xf32>
    %74 = arith.addf %68, %73 : vector<180x4xf32>
    %c0_79 = arith.constant 0 : index
    %c0_80 = arith.constant 0 : index
    %75 = vector.load %arg7[%c0_79, %c0_80] : memref<1x4xf32, #tpu.memory_space<vmem>>, vector<1x4xf32>
    %76 = vector.broadcast %75 : vector<1x4xf32> to vector<180x4xf32>
    %77 = arith.addf %74, %76 : vector<180x4xf32>
    %cst_81 = arith.constant 0.000000e+00 : f32
    %78 = vector.broadcast %cst_81 : f32 to vector<180x4xf32>
    %79 = arith.cmpf ogt, %77, %78 : vector<180x4xf32>
    %cst_82 = arith.constant 1.000000e-01 : f32
    %80 = vector.broadcast %cst_82 : f32 to vector<180x4xf32>
    %81 = arith.mulf %80, %77 : vector<180x4xf32>
    %82 = arith.select %79, %77, %81 : vector<180x4xi1>, vector<180x4xf32>
    %83 = vector.shape_cast %82 : vector<180x4xf32> to vector<10x18x4xf32>
    %84 = tpu.iota {dimensions = array<i32: 0>} : vector<10x1x1xi32>
    %c8_i32 = arith.constant 8 : i32
    %85 = arith.muli %arg1, %c8_i32 : i32
    %c1_i32_83 = arith.constant 1 : i32
    %86 = arith.subi %85, %c1_i32_83 : i32
    %87 = vector.broadcast %86 : i32 to vector<10x1x1xi32>
    %88 = arith.addi %87, %84 : vector<10x1x1xi32>
    %89 = tpu.iota {dimensions = array<i32: 1>} : vector<1x18x1xi32>
    %c0_i32_84 = arith.constant 0 : i32
    %90 = vector.broadcast %c0_i32_84 : i32 to vector<10x1x1xi32>
    %91 = arith.cmpi sge, %88, %90 : vector<10x1x1xi32>
    %c16_i32 = arith.constant 16 : i32
    %92 = vector.broadcast %c16_i32 : i32 to vector<10x1x1xi32>
    %93 = arith.cmpi slt, %88, %92 : vector<10x1x1xi32>
    %94 = arith.andi %91, %93 : vector<10x1x1xi1>
    %c1_i32_85 = arith.constant 1 : i32
    %95 = vector.broadcast %c1_i32_85 : i32 to vector<1x18x1xi32>
    %96 = arith.cmpi sge, %89, %95 : vector<1x18x1xi32>
    %97 = vector.broadcast %94 : vector<10x1x1xi1> to vector<10x18x1xi1>
    %98 = vector.broadcast %96 : vector<1x18x1xi1> to vector<10x18x1xi1>
    %99 = arith.andi %97, %98 : vector<10x18x1xi1>
    %c16_i32_86 = arith.constant 16 : i32
    %100 = vector.broadcast %c16_i32_86 : i32 to vector<1x18x1xi32>
    %101 = arith.cmpi sle, %89, %100 : vector<1x18x1xi32>
    %102 = vector.broadcast %101 : vector<1x18x1xi1> to vector<10x18x1xi1>
    %103 = arith.andi %99, %102 : vector<10x18x1xi1>
    %cst_87 = arith.constant 0.000000e+00 : f32
    %104 = vector.shape_cast %103 : vector<10x18x1xi1> to vector<10x18x1xi1>
    %105 = vector.broadcast %104 : vector<10x18x1xi1> to vector<10x18x4xi1>
    %106 = vector.broadcast %cst_87 : f32 to vector<10x18x4xf32>
    %107 = arith.select %105, %83, %106 : vector<10x18x4xi1>, vector<10x18x4xf32>
    %c0_88 = arith.constant 0 : index
    %c0_89 = arith.constant 0 : index
    %c0_90 = arith.constant 0 : index
    %108 = vector.load %arg11[%c0_88, %c0_89, %c0_90] : memref<10x18x4xf32, #tpu.memory_space<vmem>>, vector<10x18x4xf32>
    tpu.vector_store %arg11[%c0_88, %c0_89, %c0_90], %107 {strides = array<i32>} : memref<10x18x4xf32, #tpu.memory_space<vmem>>, vector<10x18x4xf32>,
    %c0_91 = arith.constant 0 : index
    %c0_92 = arith.constant 0 : index
    %c0_93 = arith.constant 0 : index
    %109 = vector.load %arg11[%c0_91, %c0_92, %c0_93] : memref<10x18x4xf32, #tpu.memory_space<vmem>>, vector<8x16x4xf32>
    %110 = vector.shape_cast %109 : vector<8x16x4xf32> to vector<128x4xf32>
    %c0_94 = arith.constant 0 : index
    %c0_95 = arith.constant 0 : index
    %c0_96 = arith.constant 0 : index
    %111 = vector.load %arg6[%c0_94, %c0_95, %c0_96] : memref<9x4x4xf32, #tpu.memory_space<vmem>>, vector<1x4x4xf32>
    %112 = vector.shape_cast %111 : vector<1x4x4xf32> to vector<4x4xf32>
    %cst_97 = arith.constant dense<0.000000e+00> : vector<128x4xf32>
    %113 = tpu.matmul %110, %112, %cst_97 {dimension_numbers = #tpu.dot_dimension_numbers<[1], [0], [0], [1], [0, 0, 1, 1], [], []>} : vector<128x4xf32>, vector<4x4xf32>, vector<128x4xf32> -> vector<128x4xf32>
    %c0_98 = arith.constant 0 : index
    %c1_99 = arith.constant 1 : index
    %c0_100 = arith.constant 0 : index
    %114 = vector.load %arg11[%c0_98, %c1_99, %c0_100] : memref<10x18x4xf32, #tpu.memory_space<vmem>>, vector<8x16x4xf32>
    %115 = vector.shape_cast %114 : vector<8x16x4xf32> to vector<128x4xf32>
    %c1_101 = arith.constant 1 : index
    %c0_102 = arith.constant 0 : index
    %c0_103 = arith.constant 0 : index
    %116 = vector.load %arg6[%c1_101, %c0_102, %c0_103] : memref<9x4x4xf32, #tpu.memory_space<vmem>>, vector<1x4x4xf32>
    %117 = vector.shape_cast %116 : vector<1x4x4xf32> to vector<4x4xf32>
    %cst_104 = arith.constant dense<0.000000e+00> : vector<128x4xf32>
    %118 = tpu.matmul %115, %117, %cst_104 {dimension_numbers = #tpu.dot_dimension_numbers<[1], [0], [0], [1], [0, 0, 1, 1], [], []>} : vector<128x4xf32>, vector<4x4xf32>, vector<128x4xf32> -> vector<128x4xf32>
    %119 = arith.addf %113, %118 : vector<128x4xf32>
    %c0_105 = arith.constant 0 : index
    %c2_106 = arith.constant 2 : index
    %c0_107 = arith.constant 0 : index
    %120 = vector.load %arg11[%c0_105, %c2_106, %c0_107] : memref<10x18x4xf32, #tpu.memory_space<vmem>>, vector<8x16x4xf32>
    %121 = vector.shape_cast %120 : vector<8x16x4xf32> to vector<128x4xf32>
    %c2_108 = arith.constant 2 : index
    %c0_109 = arith.constant 0 : index
    %c0_110 = arith.constant 0 : index
    %122 = vector.load %arg6[%c2_108, %c0_109, %c0_110] : memref<9x4x4xf32, #tpu.memory_space<vmem>>, vector<1x4x4xf32>
    %123 = vector.shape_cast %122 : vector<1x4x4xf32> to vector<4x4xf32>
    %cst_111 = arith.constant dense<0.000000e+00> : vector<128x4xf32>
    %124 = tpu.matmul %121, %123, %cst_111 {dimension_numbers = #tpu.dot_dimension_numbers<[1], [0], [0], [1], [0, 0, 1, 1], [], []>} : vector<128x4xf32>, vector<4x4xf32>, vector<128x4xf32> -> vector<128x4xf32>
    %125 = arith.addf %119, %124 : vector<128x4xf32>
    %c1_112 = arith.constant 1 : index
    %c0_113 = arith.constant 0 : index
    %c0_114 = arith.constant 0 : index
    %126 = vector.load %arg11[%c1_112, %c0_113, %c0_114] : memref<10x18x4xf32, #tpu.memory_space<vmem>>, vector<8x16x4xf32>
    %127 = vector.shape_cast %126 : vector<8x16x4xf32> to vector<128x4xf32>
    %c3_115 = arith.constant 3 : index
    %c0_116 = arith.constant 0 : index
    %c0_117 = arith.constant 0 : index
    %128 = vector.load %arg6[%c3_115, %c0_116, %c0_117] : memref<9x4x4xf32, #tpu.memory_space<vmem>>, vector<1x4x4xf32>
    %129 = vector.shape_cast %128 : vector<1x4x4xf32> to vector<4x4xf32>
    %cst_118 = arith.constant dense<0.000000e+00> : vector<128x4xf32>
    %130 = tpu.matmul %127, %129, %cst_118 {dimension_numbers = #tpu.dot_dimension_numbers<[1], [0], [0], [1], [0, 0, 1, 1], [], []>} : vector<128x4xf32>, vector<4x4xf32>, vector<128x4xf32> -> vector<128x4xf32>
    %131 = arith.addf %125, %130 : vector<128x4xf32>
    %c1_119 = arith.constant 1 : index
    %c1_120 = arith.constant 1 : index
    %c0_121 = arith.constant 0 : index
    %132 = vector.load %arg11[%c1_119, %c1_120, %c0_121] : memref<10x18x4xf32, #tpu.memory_space<vmem>>, vector<8x16x4xf32>
    %133 = vector.shape_cast %132 : vector<8x16x4xf32> to vector<128x4xf32>
    %c4_122 = arith.constant 4 : index
    %c0_123 = arith.constant 0 : index
    %c0_124 = arith.constant 0 : index
    %134 = vector.load %arg6[%c4_122, %c0_123, %c0_124] : memref<9x4x4xf32, #tpu.memory_space<vmem>>, vector<1x4x4xf32>
    %135 = vector.shape_cast %134 : vector<1x4x4xf32> to vector<4x4xf32>
    %cst_125 = arith.constant dense<0.000000e+00> : vector<128x4xf32>
    %136 = tpu.matmul %133, %135, %cst_125 {dimension_numbers = #tpu.dot_dimension_numbers<[1], [0], [0], [1], [0, 0, 1, 1], [], []>} : vector<128x4xf32>, vector<4x4xf32>, vector<128x4xf32> -> vector<128x4xf32>
    %137 = arith.addf %131, %136 : vector<128x4xf32>
    %c1_126 = arith.constant 1 : index
    %c2_127 = arith.constant 2 : index
    %c0_128 = arith.constant 0 : index
    %138 = vector.load %arg11[%c1_126, %c2_127, %c0_128] : memref<10x18x4xf32, #tpu.memory_space<vmem>>, vector<8x16x4xf32>
    %139 = vector.shape_cast %138 : vector<8x16x4xf32> to vector<128x4xf32>
    %c5_129 = arith.constant 5 : index
    %c0_130 = arith.constant 0 : index
    %c0_131 = arith.constant 0 : index
    %140 = vector.load %arg6[%c5_129, %c0_130, %c0_131] : memref<9x4x4xf32, #tpu.memory_space<vmem>>, vector<1x4x4xf32>
    %141 = vector.shape_cast %140 : vector<1x4x4xf32> to vector<4x4xf32>
    %cst_132 = arith.constant dense<0.000000e+00> : vector<128x4xf32>
    %142 = tpu.matmul %139, %141, %cst_132 {dimension_numbers = #tpu.dot_dimension_numbers<[1], [0], [0], [1], [0, 0, 1, 1], [], []>} : vector<128x4xf32>, vector<4x4xf32>, vector<128x4xf32> -> vector<128x4xf32>
    %143 = arith.addf %137, %142 : vector<128x4xf32>
    %c2_133 = arith.constant 2 : index
    %c0_134 = arith.constant 0 : index
    %c0_135 = arith.constant 0 : index
    %144 = vector.load %arg11[%c2_133, %c0_134, %c0_135] : memref<10x18x4xf32, #tpu.memory_space<vmem>>, vector<8x16x4xf32>
    %145 = vector.shape_cast %144 : vector<8x16x4xf32> to vector<128x4xf32>
    %c6_136 = arith.constant 6 : index
    %c0_137 = arith.constant 0 : index
    %c0_138 = arith.constant 0 : index
    %146 = vector.load %arg6[%c6_136, %c0_137, %c0_138] : memref<9x4x4xf32, #tpu.memory_space<vmem>>, vector<1x4x4xf32>
    %147 = vector.shape_cast %146 : vector<1x4x4xf32> to vector<4x4xf32>
    %cst_139 = arith.constant dense<0.000000e+00> : vector<128x4xf32>
    %148 = tpu.matmul %145, %147, %cst_139 {dimension_numbers = #tpu.dot_dimension_numbers<[1], [0], [0], [1], [0, 0, 1, 1], [], []>} : vector<128x4xf32>, vector<4x4xf32>, vector<128x4xf32> -> vector<128x4xf32>
    %149 = arith.addf %143, %148 : vector<128x4xf32>
    %c2_140 = arith.constant 2 : index
    %c1_141 = arith.constant 1 : index
    %c0_142 = arith.constant 0 : index
    %150 = vector.load %arg11[%c2_140, %c1_141, %c0_142] : memref<10x18x4xf32, #tpu.memory_space<vmem>>, vector<8x16x4xf32>
    %151 = vector.shape_cast %150 : vector<8x16x4xf32> to vector<128x4xf32>
    %c7_143 = arith.constant 7 : index
    %c0_144 = arith.constant 0 : index
    %c0_145 = arith.constant 0 : index
    %152 = vector.load %arg6[%c7_143, %c0_144, %c0_145] : memref<9x4x4xf32, #tpu.memory_space<vmem>>, vector<1x4x4xf32>
    %153 = vector.shape_cast %152 : vector<1x4x4xf32> to vector<4x4xf32>
    %cst_146 = arith.constant dense<0.000000e+00> : vector<128x4xf32>
    %154 = tpu.matmul %151, %153, %cst_146 {dimension_numbers = #tpu.dot_dimension_numbers<[1], [0], [0], [1], [0, 0, 1, 1], [], []>} : vector<128x4xf32>, vector<4x4xf32>, vector<128x4xf32> -> vector<128x4xf32>
    %155 = arith.addf %149, %154 : vector<128x4xf32>
    %c2_147 = arith.constant 2 : index
    %c2_148 = arith.constant 2 : index
    %c0_149 = arith.constant 0 : index
    %156 = vector.load %arg11[%c2_147, %c2_148, %c0_149] : memref<10x18x4xf32, #tpu.memory_space<vmem>>, vector<8x16x4xf32>
    %157 = vector.shape_cast %156 : vector<8x16x4xf32> to vector<128x4xf32>
    %c8_150 = arith.constant 8 : index
    %c0_151 = arith.constant 0 : index
    %c0_152 = arith.constant 0 : index
    %158 = vector.load %arg6[%c8_150, %c0_151, %c0_152] : memref<9x4x4xf32, #tpu.memory_space<vmem>>, vector<1x4x4xf32>
    %159 = vector.shape_cast %158 : vector<1x4x4xf32> to vector<4x4xf32>
    %cst_153 = arith.constant dense<0.000000e+00> : vector<128x4xf32>
    %160 = tpu.matmul %157, %159, %cst_153 {dimension_numbers = #tpu.dot_dimension_numbers<[1], [0], [0], [1], [0, 0, 1, 1], [], []>} : vector<128x4xf32>, vector<4x4xf32>, vector<128x4xf32> -> vector<128x4xf32>
    %161 = arith.addf %155, %160 : vector<128x4xf32>
    %c0_154 = arith.constant 0 : index
    %c0_155 = arith.constant 0 : index
    %162 = vector.load %arg8[%c0_154, %c0_155] : memref<1x4xf32, #tpu.memory_space<vmem>>, vector<1x4xf32>
    %163 = vector.broadcast %162 : vector<1x4xf32> to vector<128x4xf32>
    %164 = arith.addf %161, %163 : vector<128x4xf32>
    %165 = vector.shape_cast %164 : vector<128x4xf32> to vector<8x16x4xf32>
    %c0_156 = arith.constant 0 : index
    %c0_157 = arith.constant 0 : index
    %c0_158 = arith.constant 0 : index
    %c0_159 = arith.constant 0 : index
    %166 = vector.load %arg2[%c0_156, %c0_157, %c0_158, %c0_159] : memref<1x8x16x4xf32, #tpu.memory_space<vmem>>, vector<1x8x16x4xf32>
    %167 = vector.shape_cast %166 : vector<1x8x16x4xf32> to vector<8x16x4xf32>
    %168 = arith.addf %165, %167 : vector<8x16x4xf32>
    %c0_160 = arith.constant 0 : index
    %c0_161 = arith.constant 0 : index
    %c0_162 = arith.constant 0 : index
    %c0_163 = arith.constant 0 : index
    %169 = vector.load %arg9[%c0_160, %c0_161, %c0_162, %c0_163] : memref<1x8x16x4xf32, #tpu.memory_space<vmem>>, vector<1x8x16x4xf32>
    %170 = vector.shape_cast %169 : vector<1x8x16x4xf32> to vector<8x16x4xf32>
    %171 = vector.shape_cast %168 : vector<8x16x4xf32> to vector<1x8x16x4xf32>
    tpu.vector_store %arg9[%c0_160, %c0_161, %c0_162, %c0_163], %171 {strides = array<i32>} : memref<1x8x16x4xf32, #tpu.memory_space<vmem>>, vector<1x8x16x4xf32>,
    return
  }
  func.func @transform_0(%arg0: i32, %arg1: i32) -> (i32, i32, i32, i32) {
    %c0_i32 = arith.constant 0 : i32
    %c0_i32_0 = arith.constant 0 : i32
    %c0_i32_1 = arith.constant 0 : i32
    return %arg0, %arg1, %c0_i32, %c0_i32_0 : i32, i32, i32, i32
  }
  func.func @transform_1(%arg0: i32, %arg1: i32) -> (i32, i32, i32, i32) {
    %c4_i32 = arith.constant 4 : i32
    %0 = arith.muli %arg1, %c4_i32 : i32
    %c1_i32 = arith.constant 1 : i32
    %1 = arith.subi %0, %c1_i32 : i32
    %c0_i32 = arith.constant 0 : i32
    %2 = arith.maxsi %1, %c0_i32 : i32
    %c0_i32_0 = arith.constant 0 : i32
    %c0_i32_1 = arith.constant 0 : i32
    %c0_i32_2 = arith.constant 0 : i32
    return %arg0, %2, %c0_i32_0, %c0_i32_1 : i32, i32, i32, i32
  }
  func.func @transform_2(%arg0: i32, %arg1: i32) -> (i32, i32, i32, i32) {
    %c1_i32 = arith.constant 1 : i32
    %0 = arith.addi %arg1, %c1_i32 : i32
    %c4_i32 = arith.constant 4 : i32
    %1 = arith.muli %0, %c4_i32 : i32
    %c7_i32 = arith.constant 7 : i32
    %2 = arith.minsi %1, %c7_i32 : i32
    %c0_i32 = arith.constant 0 : i32
    %c0_i32_0 = arith.constant 0 : i32
    %c0_i32_1 = arith.constant 0 : i32
    return %arg0, %2, %c0_i32, %c0_i32_0 : i32, i32, i32, i32
  }
  func.func @transform_3(%arg0: i32, %arg1: i32) -> (i32, i32, i32) {
    %c0_i32 = arith.constant 0 : i32
    %c0_i32_0 = arith.constant 0 : i32
    %c0_i32_1 = arith.constant 0 : i32
    %c0_i32_2 = arith.constant 0 : i32
    return %c0_i32, %c0_i32_0, %c0_i32_1 : i32, i32, i32
  }
  func.func @transform_4(%arg0: i32, %arg1: i32) -> (i32, i32, i32) {
    %c0_i32 = arith.constant 0 : i32
    %c0_i32_0 = arith.constant 0 : i32
    %c0_i32_1 = arith.constant 0 : i32
    %c0_i32_2 = arith.constant 0 : i32
    return %c0_i32, %c0_i32_0, %c0_i32_1 : i32, i32, i32
  }
  func.func @transform_5(%arg0: i32, %arg1: i32) -> (i32, i32) {
    %c0_i32 = arith.constant 0 : i32
    %c0_i32_0 = arith.constant 0 : i32
    %c0_i32_1 = arith.constant 0 : i32
    return %c0_i32, %c0_i32_0 : i32, i32
  }
  func.func @transform_6(%arg0: i32, %arg1: i32) -> (i32, i32) {
    %c0_i32 = arith.constant 0 : i32
    %c0_i32_0 = arith.constant 0 : i32
    %c0_i32_1 = arith.constant 0 : i32
    return %c0_i32, %c0_i32_0 : i32, i32
  }
  func.func @transform_7(%arg0: i32, %arg1: i32) -> (i32, i32, i32, i32) {
    %c0_i32 = arith.constant 0 : i32
    %c0_i32_0 = arith.constant 0 : i32
    %c0_i32_1 = arith.constant 0 : i32
    return %arg0, %arg1, %c0_i32, %c0_i32_0 : i32, i32, i32, i32
  }
}

</mosaic_0001>

<llo_original>
// kernel: tpu_custom_call.1
$region0: #{tpu_custom_call.1}
  #allocation0 [shape = 'u32[]', space=smem, size = 0x4, offset = 0x4, fixed_abs, tag = 'smem constant byte address 0x4 - core index']
  #allocation1 [shape = 'u32[72,128]{1,0:T(1,128)}', space=vmem, size = 0x9000, scoped, tag = 'internal scratch']
  #allocation2 [shape = 'f32[12,20,4]{2,1,0:T(8,128)}', space=vmem, size = 0x24000, scoped, tag = 'scratch operand']
  #allocation3 [shape = 'f32[10,18,4]{2,1,0:T(8,128)}', space=vmem, size = 0x1e000, scoped, tag = 'scratch operand']
  %s0 = inlined_call_operand.vmem [shape: f32[2,16,16,4], index: 0, kind: input, shape index: {}]
  %s1 = inlined_call_operand.vmem [shape: f32[2,16,16,4], index: 1, kind: input, shape index: {}]
  %s2 = inlined_call_operand.vmem [shape: f32[2,16,16,4], index: 2, kind: input, shape index: {}]
  %s3 = inlined_call_operand.vmem [shape: f32[9,4,4], index: 3, kind: input, shape index: {}]
  %s4 = inlined_call_operand.vmem [shape: f32[9,4,4], index: 4, kind: input, shape index: {}]
  %s5 = inlined_call_operand.vmem [shape: f32[1,4], index: 5, kind: input, shape index: {}]
  %s6 = inlined_call_operand.vmem [shape: f32[1,4], index: 6, kind: input, shape index: {}]
  %s7 = inlined_call_operand.vmem [shape: f32[2,16,16,4], index: 7, kind: output, shape index: {}]
  %s8 = sld [smem:[#allocation0]]
  $region61: #{tpu_custom_call.1} parent=0
    _
  %s10 = ssub.s32 1, %s8
  %s11 = scalar_select 0, %s10, %s8
  loop: start=0, step=1, limit=6
  $region2: #{tpu_custom_call.1} parent=0 // loop_pre_header
    _
  $region3: #{tpu_custom_call.1} parent=0 // loop_header
    %s13 = sphi 0, %s17
    %p14 = scmp.ge.s32.totalorder %s13, 6
    %s20 = sphi 0, %s32
    %s21 = sphi 0, %s28
    %s22 = sphi 0, %s20
    %s23 = sphi 0, %s21
    %s24 = sphi 0, %s22
    %s25 = sphi 0, %s23
    %s37 = sphi 0, %s39
    %s40 = sphi 0, %s37
    %s41 = sphi 0, %s40
    %s57 = sphi 0, %s41
    %s73 = sphi 0, %s75
    %s76 = sphi 0, %s73
    %s77 = sphi 0, %s76
    %s93 = sphi 0, %s77
    %s109 = sphi 0, %s111
    %s112 = sphi 0, %s109
    %s113 = sphi 0, %s112
    %s129 = sphi 0, %s113
    %s133 = sphi 0, %s133
    %s135 = sphi 0, %s133
    %s136 = sphi 0, %s135
    %s150 = sphi 0, %s136
    %s154 = sphi 0, %s154
    %s156 = sphi 0, %s154
    %s157 = sphi 0, %s156
    %s171 = sphi 0, %s157
    %s175 = sphi 0, %s175
    %s177 = sphi 0, %s175
    %s178 = sphi 0, %s177
    %s192 = sphi 0, %s178
    %s196 = sphi 0, %s196
    %s198 = sphi 0, %s196
    %s199 = sphi 0, %s198
    %s213 = sphi 0, %s199
    %s221 = sphi 0, %s223
    %s224 = sphi 0, %s221
    %s225 = sphi 0, %s224
    %s241 = sphi 0, %s225
  $region4: #{tpu_custom_call.1} parent=0 // loop_header_branch
    %16 = sbr.rel (%p14) target = $region8
  $region5: #{tpu_custom_call.1} parent=0 // loop_body
    %s18 = ssub.s32 %s13, 1
    %s19 = ssub.s32 %s13, 2
    %s26 = sadd.s32 1, %s21
    %p27 = scmp.ge.s32.totalorder %s26, 2
    %s28 = scalar_select %p27, 0, %s26
    %s29 = sadd.s32 1, %s20
    %s30 = scalar_select %p27, %s29, %s20
    %p31 = scmp.ge.s32.totalorder %s30, 2
    %s32 = scalar_select %p31, 0, %s30
    %s33 = ssub.s32 %s20, %s32
    %s34 = ssub.s32 %s21, %s28
    %s35 = sor.u32 %s33, %s34
    %p36 = scmp.eq.s32.totalorder %s35, 0
    %s38 = sadd.s32 %s37, 1
    %s39 = scalar_select %p36, %s37, %s38
    %p42 = pneg %p36
    %p43 = scmp.eq.s32.totalorder %s13, 3
    %p44 = por %p42, %p43
    %p45 = scmp.ne.s32.totalorder %s37, %s40
    %p46 = scmp.eq.s32.totalorder %s13, 0
    %p47 = por %p45, %p46
    %p48 = scmp.ne.s32.totalorder %s37, %s40
    %p49 = scmp.eq.s32.totalorder %s18, 3
    %p50 = por %p48, %p49
    %p51 = scmp.ne.s32.totalorder %s40, %s41
    %p52 = scmp.eq.s32.totalorder %s18, 0
    %p53 = por %p51, %p52
    %p54 = scmp.ne.s32.totalorder %s40, %s41
    %p55 = scmp.eq.s32.totalorder %s19, 3
    %p56 = por %p54, %p55
    %p58 = scmp.ne.s32.totalorder %s41, %s57
    %p59 = scmp.eq.s32.totalorder %s19, 0
    %p60 = por %p58, %p59
    %s61 = smul.u32 %s21, 4
    %s62 = ssub.s32 %s61, 1
    %p63 = scmp.gt.s32.totalorder %s62, 0
    %s64 = scalar_select %p63, %s62, 0
    %s65 = smul.u32 %s28, 4
    %s66 = ssub.s32 %s65, 1
    %p67 = scmp.gt.s32.totalorder %s66, 0
    %s68 = scalar_select %p67, %s66, 0
    %s69 = ssub.s32 %s20, %s32
    %s70 = ssub.s32 %s64, %s68
    %s71 = sor.u32 %s69, %s70
    %p72 = scmp.eq.s32.totalorder %s71, 0
    %s74 = sadd.s32 %s73, 1
    %s75 = scalar_select %p72, %s73, %s74
    %p78 = pneg %p72
    %p79 = scmp.eq.s32.totalorder %s13, 3
    %p80 = por %p78, %p79
    %p81 = scmp.ne.s32.totalorder %s73, %s76
    %p82 = scmp.eq.s32.totalorder %s13, 0
    %p83 = por %p81, %p82
    %p84 = scmp.ne.s32.totalorder %s73, %s76
    %p85 = scmp.eq.s32.totalorder %s18, 3
    %p86 = por %p84, %p85
    %p87 = scmp.ne.s32.totalorder %s76, %s77
    %p88 = scmp.eq.s32.totalorder %s18, 0
    %p89 = por %p87, %p88
    %p90 = scmp.ne.s32.totalorder %s76, %s77
    %p91 = scmp.eq.s32.totalorder %s19, 3
    %p92 = por %p90, %p91
    %p94 = scmp.ne.s32.totalorder %s77, %s93
    %p95 = scmp.eq.s32.totalorder %s19, 0
    %p96 = por %p94, %p95
    %s97 = sadd.s32 %s21, 1
    %s98 = smul.u32 %s97, 4
    %p99 = scmp.lt.s32.totalorder %s98, 7
    %s100 = scalar_select %p99, %s98, 7
    %s101 = sadd.s32 %s28, 1
    %s102 = smul.u32 %s101, 4
    %p103 = scmp.lt.s32.totalorder %s102, 7
    %s104 = scalar_select %p103, %s102, 7
    %s105 = ssub.s32 %s20, %s32
    %s106 = ssub.s32 %s100, %s104
    %s107 = sor.u32 %s105, %s106
    %p108 = scmp.eq.s32.totalorder %s107, 0
    %s110 = sadd.s32 %s109, 1
    %s111 = scalar_select %p108, %s109, %s110
    %p114 = pneg %p108
    %p115 = scmp.eq.s32.totalorder %s13, 3
    %p116 = por %p114, %p115
    %p117 = scmp.ne.s32.totalorder %s109, %s112
    %p118 = scmp.eq.s32.totalorder %s13, 0
    %p119 = por %p117, %p118
    %p120 = scmp.ne.s32.totalorder %s109, %s112
    %p121 = scmp.eq.s32.totalorder %s18, 3
    %p122 = por %p120, %p121
    %p123 = scmp.ne.s32.totalorder %s112, %s113
    %p124 = scmp.eq.s32.totalorder %s18, 0
    %p125 = por %p123, %p124
    %p126 = scmp.ne.s32.totalorder %s112, %s113
    %p127 = scmp.eq.s32.totalorder %s19, 3
    %p128 = por %p126, %p127
    %p130 = scmp.ne.s32.totalorder %s113, %s129
    %p131 = scmp.eq.s32.totalorder %s19, 0
    %p132 = por %p130, %p131
    %s134 = sadd.s32 %s133, 1
    %p137 = scmp.eq.s32.totalorder %s13, 3
    %p138 = scmp.ne.s32.totalorder %s133, %s135
    %p139 = scmp.eq.s32.totalorder %s13, 0
    %p140 = por %p138, %p139
    %p141 = scmp.ne.s32.totalorder %s133, %s135
    %p142 = scmp.eq.s32.totalorder %s18, 3
    %p143 = por %p141, %p142
    %p144 = scmp.ne.s32.totalorder %s135, %s136
    %p145 = scmp.eq.s32.totalorder %s18, 0
    %p146 = por %p144, %p145
    %p147 = scmp.ne.s32.totalorder %s135, %s136
    %p148 = scmp.eq.s32.totalorder %s19, 3
    %p149 = por %p147, %p148
    %p151 = scmp.ne.s32.totalorder %s136, %s150
    %p152 = scmp.eq.s32.totalorder %s19, 0
    %p153 = por %p151, %p152
    %s155 = sadd.s32 %s154, 1
    %p158 = scmp.eq.s32.totalorder %s13, 3
    %p159 = scmp.ne.s32.totalorder %s154, %s156
    %p160 = scmp.eq.s32.totalorder %s13, 0
    %p161 = por %p159, %p160
    %p162 = scmp.ne.s32.totalorder %s154, %s156
    %p163 = scmp.eq.s32.totalorder %s18, 3
    %p164 = por %p162, %p163
    %p165 = scmp.ne.s32.totalorder %s156, %s157
    %p166 = scmp.eq.s32.totalorder %s18, 0
    %p167 = por %p165, %p166
    %p168 = scmp.ne.s32.totalorder %s156, %s157
    %p169 = scmp.eq.s32.totalorder %s19, 3
    %p170 = por %p168, %p169
    %p172 = scmp.ne.s32.totalorder %s157, %s171
    %p173 = scmp.eq.s32.totalorder %s19, 0
    %p174 = por %p172, %p173
    %s176 = sadd.s32 %s175, 1
    %p179 = scmp.eq.s32.totalorder %s13, 3
    %p180 = scmp.ne.s32.totalorder %s175, %s177
    %p181 = scmp.eq.s32.totalorder %s13, 0
    %p182 = por %p180, %p181
    %p183 = scmp.ne.s32.totalorder %s175, %s177
    %p184 = scmp.eq.s32.totalorder %s18, 3
    %p185 = por %p183, %p184
    %p186 = scmp.ne.s32.totalorder %s177, %s178
    %p187 = scmp.eq.s32.totalorder %s18, 0
    %p188 = por %p186, %p187
    %p189 = scmp.ne.s32.totalorder %s177, %s178
    %p190 = scmp.eq.s32.totalorder %s19, 3
    %p191 = por %p189, %p190
    %p193 = scmp.ne.s32.totalorder %s178, %s192
    %p194 = scmp.eq.s32.totalorder %s19, 0
    %p195 = por %p193, %p194
    %s197 = sadd.s32 %s196, 1
    %p200 = scmp.eq.s32.totalorder %s13, 3
    %p201 = scmp.ne.s32.totalorder %s196, %s198
    %p202 = scmp.eq.s32.totalorder %s13, 0
    %p203 = por %p201, %p202
    %p204 = scmp.ne.s32.totalorder %s196, %s198
    %p205 = scmp.eq.s32.totalorder %s18, 3
    %p206 = por %p204, %p205
    %p207 = scmp.ne.s32.totalorder %s198, %s199
    %p208 = scmp.eq.s32.totalorder %s18, 0
    %p209 = por %p207, %p208
    %p210 = scmp.ne.s32.totalorder %s198, %s199
    %p211 = scmp.eq.s32.totalorder %s19, 3
    %p212 = por %p210, %p211
    %p214 = scmp.ne.s32.totalorder %s199, %s213
    %p215 = scmp.eq.s32.totalorder %s19, 0
    %p216 = por %p214, %p215
    %s217 = ssub.s32 %s20, %s32
    %s218 = ssub.s32 %s21, %s28
    %s219 = sor.u32 %s217, %s218
    %p220 = scmp.eq.s32.totalorder %s219, 0
    %s222 = sadd.s32 %s221, 1
    %s223 = scalar_select %p220, %s221, %s222
    %p226 = pneg %p220
    %p227 = scmp.eq.s32.totalorder %s13, 3
    %p228 = por %p226, %p227
    %p229 = scmp.ne.s32.totalorder %s221, %s224
    %p230 = scmp.eq.s32.totalorder %s13, 0
    %p231 = por %p229, %p230
    %p232 = scmp.ne.s32.totalorder %s221, %s224
    %p233 = scmp.eq.s32.totalorder %s18, 3
    %p234 = por %p232, %p233
    %p235 = scmp.ne.s32.totalorder %s224, %s225
    %p236 = scmp.eq.s32.totalorder %s18, 0
    %p237 = por %p235, %p236
    %p238 = scmp.ne.s32.totalorder %s224, %s225
    %p239 = scmp.eq.s32.totalorder %s19, 3
    %p240 = por %p238, %p239
    %p242 = scmp.ne.s32.totalorder %s225, %s241
    %p243 = scmp.eq.s32.totalorder %s19, 0
    %p244 = por %p242, %p243
    %p245 = scmp.le.s32.totalorder 1, %s13
    %p246 = scmp.lt.s32.totalorder %s13, 5
    %p247 = pnand %p245, %p246
    %p248 = pneg %p247
    // Predicated region
    $region9: #{tpu_custom_call.1} parent=5 // pred_check
      _
    $region10: #{tpu_custom_call.1} parent=5 // pred_check_branch
      %250 = sbr.rel (%p247) target = $region12
    $region11: #{tpu_custom_call.1} parent=5 // pred_region
      %s251 = ssub.s32 %s13, 1
      // Predicated region
      $region13: #{tpu_custom_call.1} parent=11 // pred_check
        %p252 = pneg %p146
      $region14: #{tpu_custom_call.1} parent=11 // pred_check_branch
        %254 = sbr.rel (%p252) target = $region16
      $region15: #{tpu_custom_call.1} parent=11 // pred_region
        _
      $region16: #{tpu_custom_call.1} parent=11 // pred_fallthru
        _
      // Predicated region
      $region17: #{tpu_custom_call.1} parent=11 // pred_check
        %p255 = pneg %p167
      $region18: #{tpu_custom_call.1} parent=11 // pred_check_branch
        %257 = sbr.rel (%p255) target = $region20
      $region19: #{tpu_custom_call.1} parent=11 // pred_region
        _
      $region20: #{tpu_custom_call.1} parent=11 // pred_fallthru
        _
      // Predicated region
      $region21: #{tpu_custom_call.1} parent=11 // pred_check
        %p258 = pneg %p188
      $region22: #{tpu_custom_call.1} parent=11 // pred_check_branch
        %260 = sbr.rel (%p258) target = $region24
      $region23: #{tpu_custom_call.1} parent=11 // pred_region
        _
      $region24: #{tpu_custom_call.1} parent=11 // pred_fallthru
        _
      // Predicated region
      $region25: #{tpu_custom_call.1} parent=11 // pred_check
        %p261 = pneg %p209
      $region26: #{tpu_custom_call.1} parent=11 // pred_check_branch
        %263 = sbr.rel (%p261) target = $region28
      $region27: #{tpu_custom_call.1} parent=11 // pred_region
        _
      $region28: #{tpu_custom_call.1} parent=11 // pred_fallthru
        _
    $region12: #{tpu_custom_call.1} parent=5 // pred_fallthru
      _
    %p264 = scmp.lt.s32.totalorder %s13, 4
    // Predicated region
    $region29: #{tpu_custom_call.1} parent=5 // pred_check
      %p265 = pneg %p264
    $region30: #{tpu_custom_call.1} parent=5 // pred_check_branch
      %267 = sbr.rel (%p265) target = $region32
    $region31: #{tpu_custom_call.1} parent=5 // pred_region
      // Predicated region
      $region33: #{tpu_custom_call.1} parent=31 // pred_check
        %p268 = pneg %p47
      $region34: #{tpu_custom_call.1} parent=31 // pred_check_branch
        %270 = sbr.rel (%p268) target = $region36
      $region35: #{tpu_custom_call.1} parent=31 // pred_region
        %s271 = smul.u32 8, %s21
        %p272 = scmp.lt.s32.totalorder %s20, 1
        %s273 = scalar_select %p272, %s20, 1
        %p274 = scmp.lt.s32.totalorder %s271, 15
        %s275 = scalar_select %p274, %s271, 15
        %s276 = smul.addr %s275, 2
        %s277 = smul.addr %s273, 32
        %s278 = sadd.s32 %s276, %s277
        %s279 = smul.addr %s278, 8
        %s280 = scalar_lea.vmem %s0, %s279
        %s281 = smul.u32 8, %s21
      $region36: #{tpu_custom_call.1} parent=31 // pred_fallthru
        _
      // Predicated region
      $region37: #{tpu_custom_call.1} parent=31 // pred_check
        %p282 = pneg %p83
      $region38: #{tpu_custom_call.1} parent=31 // pred_check_branch
        %284 = sbr.rel (%p282) target = $region40
      $region39: #{tpu_custom_call.1} parent=31 // pred_region
        %s285 = smul.u32 %s21, 4
        %s286 = ssub.s32 %s285, 1
        %p287 = scmp.gt.s32.totalorder %s286, 0
        %s288 = scalar_select %p287, %s286, 0
        %s289 = smul.u32 2, %s288
        %p290 = scmp.lt.s32.totalorder %s20, 1
        %s291 = scalar_select %p290, %s20, 1
        %p292 = scmp.lt.s32.totalorder %s289, 15
        %s293 = scalar_select %p292, %s289, 15
        %s294 = smul.addr %s293, 2
        %s295 = smul.addr %s291, 32
        %s296 = sadd.s32 %s294, %s295
        %s297 = smul.addr %s296, 8
        %s298 = scalar_lea.vmem %s1, %s297
        %s299 = smul.u32 %s21, 4
        %s300 = ssub.s32 %s299, 1
        %p301 = scmp.gt.s32.totalorder %s300, 0
        %s302 = scalar_select %p301, %s300, 0
        %s303 = smul.u32 2, %s302
      $region40: #{tpu_custom_call.1} parent=31 // pred_fallthru
        _
      // Predicated region
      $region41: #{tpu_custom_call.1} parent=31 // pred_check
        %p304 = pneg %p119
      $region42: #{tpu_custom_call.1} parent=31 // pred_check_branch
        %306 = sbr.rel (%p304) target = $region44
      $region43: #{tpu_custom_call.1} parent=31 // pred_region
        %s307 = sadd.s32 %s21, 1
        %s308 = smul.u32 %s307, 4
        %p309 = scmp.lt.s32.totalorder %s308, 7
        %s310 = scalar_select %p309, %s308, 7
        %s311 = smul.u32 2, %s310
        %p312 = scmp.lt.s32.totalorder %s20, 1
        %s313 = scalar_select %p312, %s20, 1
        %p314 = scmp.lt.s32.totalorder %s311, 15
        %s315 = scalar_select %p314, %s311, 15
        %s316 = smul.addr %s315, 2
        %s317 = smul.addr %s313, 32
        %s318 = sadd.s32 %s316, %s317
        %s319 = smul.addr %s318, 8
        %s320 = scalar_lea.vmem %s2, %s319
        %s321 = sadd.s32 %s21, 1
        %s322 = smul.u32 %s321, 4
        %p323 = scmp.lt.s32.totalorder %s322, 7
        %s324 = scalar_select %p323, %s322, 7
        %s325 = smul.u32 2, %s324
      $region44: #{tpu_custom_call.1} parent=31 // pred_fallthru
        _
    $region32: #{tpu_custom_call.1} parent=5 // pred_fallthru
      _
    %p326 = scmp.le.s32.totalorder 1, %s13
    %p327 = scmp.lt.s32.totalorder %s13, 5
    %p328 = pnand %p326, %p327
    %p329 = pneg %p328
    // Predicated region
    $region45: #{tpu_custom_call.1} parent=5 // pred_check
      _
    $region46: #{tpu_custom_call.1} parent=5 // pred_check_branch
      %331 = sbr.rel (%p328) target = $region48
    $region47: #{tpu_custom_call.1} parent=5 // pred_region
      %s332 = ssub.s32 %s13, 1
      %s333 = smul.u32 8, %s23
      %p334 = scmp.lt.s32.totalorder %s22, 1
      %s335 = scalar_select %p334, %s22, 1
      %p336 = scmp.lt.s32.totalorder %s333, 15
      %s337 = scalar_select %p336, %s333, 15
      %s338 = smul.addr %s337, 2
      %s339 = smul.addr %s335, 32
      %s340 = sadd.s32 %s338, %s339
      %s341 = smul.addr %s340, 8
      %s342 = scalar_lea.vmem %s0, %s341
      %p343 = pneg %p53
      %p344 = pneg %p50
      %s345 = smul.u32 %s23, 4
      %s346 = ssub.s32 %s345, 1
      %p347 = scmp.gt.s32.totalorder %s346, 0
      %s348 = scalar_select %p347, %s346, 0
      %s349 = smul.u32 2, %s348
      %p350 = scmp.lt.s32.totalorder %s22, 1
      %s351 = scalar_select %p350, %s22, 1
      %p352 = scmp.lt.s32.totalorder %s349, 15
      %s353 = scalar_select %p352, %s349, 15
      %s354 = smul.addr %s353, 2
      %s355 = smul.addr %s351, 32
      %s356 = sadd.s32 %s354, %s355
      %s357 = smul.addr %s356, 8
      %s358 = scalar_lea.vmem %s1, %s357
      %p359 = pneg %p89
      %p360 = pneg %p86
      %s361 = sadd.s32 %s23, 1
      %s362 = smul.u32 %s361, 4
      %p363 = scmp.lt.s32.totalorder %s362, 7
      %s364 = scalar_select %p363, %s362, 7
      %s365 = smul.u32 2, %s364
      %p366 = scmp.lt.s32.totalorder %s22, 1
      %s367 = scalar_select %p366, %s22, 1
      %p368 = scmp.lt.s32.totalorder %s365, 15
      %s369 = scalar_select %p368, %s365, 15
      %s370 = smul.addr %s369, 2
      %s371 = smul.addr %s367, 32
      %s372 = sadd.s32 %s370, %s371
      %s373 = smul.addr %s372, 8
      %s374 = scalar_lea.vmem %s2, %s373
      %p375 = pneg %p125
      %p376 = pneg %p122
      %p377 = pneg %p146
      %p378 = pneg %p143
      %p379 = pneg %p167
      %p380 = pneg %p164
      %p381 = pneg %p188
      %p382 = pneg %p185
      %p383 = pneg %p209
      %p384 = pneg %p206
      %p385 = pneg %p237
      %p386 = pneg %p234
      %s387 = smul.u32 8, %s23
      %p388 = scmp.lt.s32.totalorder %s22, 1
      %s389 = scalar_select %p388, %s22, 1
      %p390 = scmp.lt.s32.totalorder %s387, 15
      %s391 = scalar_select %p390, %s387, 15
      %s392 = smul.addr %s391, 2
      %s393 = smul.addr %s389, 32
      %s394 = sadd.s32 %s392, %s393
      %s395 = smul.addr %s394, 8
      %s396 = scalar_lea.vmem %s7, %s395
      %s397 = smul.u32 8, %s23
      %p398 = scmp.lt.s32.totalorder %s22, 1
      %s399 = scalar_select %p398, %s22, 1
      %p400 = scmp.lt.s32.totalorder %s397, 15
      %s401 = scalar_select %p400, %s397, 15
      %s402 = smul.addr %s401, 2
      %s403 = smul.addr %s399, 32
      %s404 = sadd.s32 %s402, %s403
      %s405 = smul.addr %s404, 8
      %s406 = scalar_lea.vmem %s0, %s405
      %s407 = smul.u32 8, %s23
      %s408 = smul.u32 %s23, 4
      %s409 = ssub.s32 %s408, 1
      %p410 = scmp.gt.s32.totalorder %s409, 0
      %s411 = scalar_select %p410, %s409, 0
      %s412 = smul.u32 2, %s411
      %p413 = scmp.lt.s32.totalorder %s22, 1
      %s414 = scalar_select %p413, %s22, 1
      %p415 = scmp.lt.s32.totalorder %s412, 15
      %s416 = scalar_select %p415, %s412, 15
      %s417 = smul.addr %s416, 2
      %s418 = smul.addr %s414, 32
      %s419 = sadd.s32 %s417, %s418
      %s420 = smul.addr %s419, 8
      %s421 = scalar_lea.vmem %s1, %s420
      %s422 = smul.u32 %s23, 4
      %s423 = ssub.s32 %s422, 1
      %p424 = scmp.gt.s32.totalorder %s423, 0
      %s425 = scalar_select %p424, %s423, 0
      %s426 = smul.u32 2, %s425
      %s427 = sadd.s32 %s23, 1
      %s428 = smul.u32 %s427, 4
      %p429 = scmp.lt.s32.totalorder %s428, 7
      %s430 = scalar_select %p429, %s428, 7
      %s431 = smul.u32 2, %s430
      %p432 = scmp.lt.s32.totalorder %s22, 1
      %s433 = scalar_select %p432, %s22, 1
      %p434 = scmp.lt.s32.totalorder %s431, 15
      %s435 = scalar_select %p434, %s431, 15
      %s436 = smul.addr %s435, 2
      %s437 = smul.addr %s433, 32
      %s438 = sadd.s32 %s436, %s437
      %s439 = smul.addr %s438, 8
      %s440 = scalar_lea.vmem %s2, %s439
      %s441 = sadd.s32 %s23, 1
      %s442 = smul.u32 %s441, 4
      %p443 = scmp.lt.s32.totalorder %s442, 7
      %s444 = scalar_select %p443, %s442, 7
      %s445 = smul.u32 2, %s444
      %s446 = smul.u32 8, %s23
      %p447 = scmp.lt.s32.totalorder %s22, 1
      %s448 = scalar_select %p447, %s22, 1
      %p449 = scmp.lt.s32.totalorder %s446, 15
      %s450 = scalar_select %p449, %s446, 15
      %s451 = smul.addr %s450, 2
      %s452 = smul.addr %s448, 32
      %s453 = sadd.s32 %s451, %s452
      %s454 = smul.addr %s453, 8
      %s455 = scalar_lea.vmem %s7, %s454
      %s456 = smul.u32 8, %s23
      %vm457 = vcmask 25600
      %458 = vst.msk [vmem:[#allocation2] sm:$0x3] %vm457, 0.0
      %459 = vst.msk [vmem:[#allocation2 + $0x18] sm:$0x3] %vm457, 0.0
      %460 = vst.msk [vmem:[#allocation2 + $0x30] sm:$0x3] %vm457, 0.0
      %461 = vst.msk [vmem:[#allocation2 + $0x48] sm:$0x3] %vm457, 0.0
      %462 = vst.msk [vmem:[#allocation2 + $0x60] sm:$0x3] %vm457, 0.0
      %463 = vst.msk [vmem:[#allocation2 + $0x78] sm:$0x3] %vm457, 0.0
      %464 = vst.msk [vmem:[#allocation2 + $0x90] sm:$0x3] %vm457, 0.0
      %465 = vst.msk [vmem:[#allocation2 + $0xa8] sm:$0x3] %vm457, 0.0
      %466 = vst.msk [vmem:[#allocation2 + $0xc0] sm:$0x3] %vm457, 0.0
      %467 = vst.msk [vmem:[#allocation2 + $0xd8] sm:$0x3] %vm457, 0.0
      %468 = vst.msk [vmem:[#allocation2 + $0xf0] sm:$0x3] %vm457, 0.0
      %469 = vst.msk [vmem:[#allocation2 + $0x108] sm:$0x3] %vm457, 0.0
      %470 = vst.msk [vmem:[#allocation2 + $0x12] sm:$0x3] %vm457, 0.0
      %471 = vst.msk [vmem:[#allocation2 + $0x2a] sm:$0x3] %vm457, 0.0
      %472 = vst.msk [vmem:[#allocation2 + $0x42] sm:$0x3] %vm457, 0.0
      %473 = vst.msk [vmem:[#allocation2 + $0x5a] sm:$0x3] %vm457, 0.0
      %474 = vst.msk [vmem:[#allocation2 + $0x72] sm:$0x3] %vm457, 0.0
      %475 = vst.msk [vmem:[#allocation2 + $0x8a] sm:$0x3] %vm457, 0.0
      %476 = vst.msk [vmem:[#allocation2 + $0xa2] sm:$0x3] %vm457, 0.0
      %477 = vst.msk [vmem:[#allocation2 + $0xba] sm:$0x3] %vm457, 0.0
      %478 = vst.msk [vmem:[#allocation2 + $0xd2] sm:$0x3] %vm457, 0.0
      %479 = vst.msk [vmem:[#allocation2 + $0xea] sm:$0x3] %vm457, 0.0
      %480 = vst.msk [vmem:[#allocation2 + $0x102] sm:$0x3] %vm457, 0.0
      %481 = vst.msk [vmem:[#allocation2 + $0x11a] sm:$0x3] %vm457, 0.0
      %v482 = vld [vmem:[%s421] sm:$0xff]
      %v483 = vld [vmem:[%s421 + $0x8] sm:$0xff]
      %v484 = vld [vmem:[%s421 + $0x10] sm:$0xff]
      %v485 = vld [vmem:[%s421 + $0x18] sm:$0xff]
      %p486 = scmp.gt.s32.totalorder %s23, 0
      %s487 = scalar_select %p486, 1, 0
      %s488 = scvt.s32.f32 %s487
      %v489 = vstv %s488
      %v490 = vmul.f32 %v482, %v489
      %v491 = vmul.f32 %v483, %v489
      %v492 = vmul.f32 %v484, %v489
      %v493 = vmul.f32 %v485, %v489
      %v494 = vld [vmem:[%s440] sm:$0xff]
      %v495 = vld [vmem:[%s440 + $0x8] sm:$0xff]
      %v496 = vld [vmem:[%s440 + $0x10] sm:$0xff]
      %v497 = vld [vmem:[%s440 + $0x18] sm:$0xff]
      %p498 = scmp.lt.s32.totalorder %s23, 1
      %s499 = scalar_select %p498, 1, 0
      %s500 = scvt.s32.f32 %s499
      %v501 = vstv %s500
      %v502 = vmul.f32 %v494, %v501
      %v503 = vmul.f32 %v495, %v501
      %v504 = vmul.f32 %v496, %v501
      %v505 = vmul.f32 %v497, %v501
      %vm506 = vcmask 31744
      %507 = vst.msk [vmem:[#allocation2 + $0x2] sm:$0xff] %vm506, %v490
      %508 = vst.msk [vmem:[#allocation2 + $0xa] sm:$0xff] %vm506, %v491
      %509 = vst.msk [vmem:[#allocation2 + $0x1a] sm:$0xff] %vm506, %v492
      %510 = vst.msk [vmem:[#allocation2 + $0x22] sm:$0xff] %vm506, %v493
      %v511 = vld [vmem:[%s406] sm:$0xff]
      %v512 = vld [vmem:[%s406 + $0x8] sm:$0xff]
      %v513 = vld [vmem:[%s406 + $0x10] sm:$0xff]
      %v514 = vld [vmem:[%s406 + $0x18] sm:$0xff]
      %v515 = vld [vmem:[%s406 + $0x20] sm:$0xff]
      %v516 = vld [vmem:[%s406 + $0x28] sm:$0xff]
      %v517 = vld [vmem:[%s406 + $0x30] sm:$0xff]
      %v518 = vld [vmem:[%s406 + $0x38] sm:$0xff]
      %v519 = vld [vmem:[%s406 + $0x40] sm:$0xff]
      %v520 = vld [vmem:[%s406 + $0x48] sm:$0xff]
      %v521 = vld [vmem:[%s406 + $0x50] sm:$0xff]
      %v522 = vld [vmem:[%s406 + $0x58] sm:$0xff]
      %v523 = vld [vmem:[%s406 + $0x60] sm:$0xff]
      %v524 = vld [vmem:[%s406 + $0x68] sm:$0xff]
      %v525 = vld [vmem:[%s406 + $0x70] sm:$0xff]
      %v526 = vld [vmem:[%s406 + $0x78] sm:$0xff]
      %s527 = scalar_lea.vmem [#allocation2], 48
      %528 = vst.msk [vmem:[%s527 + $0x2] sm:$0xff] %vm506, %v511
      %529 = vst.msk [vmem:[%s527 + $0xa] sm:$0xff] %vm506, %v512
      %530 = vst.msk [vmem:[%s527 + $0x1a] sm:$0xff] %vm506, %v513
      %531 = vst.msk [vmem:[%s527 + $0x22] sm:$0xff] %vm506, %v514
      %532 = vst.msk [vmem:[%s527 + $0x32] sm:$0xff] %vm506, %v515
      %533 = vst.msk [vmem:[%s527 + $0x3a] sm:$0xff] %vm506, %v516
      %534 = vst.msk [vmem:[%s527 + $0x4a] sm:$0xff] %vm506, %v517
      %535 = vst.msk [vmem:[%s527 + $0x52] sm:$0xff] %vm506, %v518
      %536 = vst.msk [vmem:[%s527 + $0x62] sm:$0xff] %vm506, %v519
      %537 = vst.msk [vmem:[%s527 + $0x6a] sm:$0xff] %vm506, %v520
      %538 = vst.msk [vmem:[%s527 + $0x7a] sm:$0xff] %vm506, %v521
      %539 = vst.msk [vmem:[%s527 + $0x82] sm:$0xff] %vm506, %v522
      %540 = vst.msk [vmem:[%s527 + $0x92] sm:$0xff] %vm506, %v523
      %541 = vst.msk [vmem:[%s527 + $0x9a] sm:$0xff] %vm506, %v524
      %542 = vst.msk [vmem:[%s527 + $0xaa] sm:$0xff] %vm506, %v525
      %543 = vst.msk [vmem:[%s527 + $0xb2] sm:$0xff] %vm506, %v526
      %s544 = scalar_lea.vmem [#allocation2], 240
      %545 = vst.msk [vmem:[%s544 + $0x2] sm:$0xff] %vm506, %v502
      %546 = vst.msk [vmem:[%s544 + $0xa] sm:$0xff] %vm506, %v503
      %547 = vst.msk [vmem:[%s544 + $0x1a] sm:$0xff] %vm506, %v504
      %548 = vst.msk [vmem:[%s544 + $0x22] sm:$0xff] %vm506, %v505
      %v549 = vld [vmem:[#allocation2] sm:$0xff]
      %v550 = vld [vmem:[#allocation2 + $0x8] sm:$0xff]
      %v551 = vld [vmem:[#allocation2 + $0x10] sm:$0x3]
      %v552 = vld [vmem:[#allocation2 + $0x18] sm:$0xff]
      %v553 = vld [vmem:[#allocation2 + $0x20] sm:$0xff]
      %v554 = vld [vmem:[#allocation2 + $0x28] sm:$0x3]
      %v555 = vld [vmem:[#allocation2 + $0x30] sm:$0xff]
      %v556 = vld [vmem:[#allocation2 + $0x38] sm:$0xff]
      %v557 = vld [vmem:[#allocation2 + $0x40] sm:$0x3]
      %v558 = vld [vmem:[#allocation2 + $0x48] sm:$0xff]
      %v559 = vld [vmem:[#allocation2 + $0x50] sm:$0xff]
      %v560 = vld [vmem:[#allocation2 + $0x58] sm:$0x3]
      %v561 = vld [vmem:[#allocation2 + $0x60] sm:$0xff]
      %v562 = vld [vmem:[#allocation2 + $0x68] sm:$0xff]
      %v563 = vld [vmem:[#allocation2 + $0x70] sm:$0x3]
      %v564 = vld [vmem:[#allocation2 + $0x78] sm:$0xff]
      %v565 = vld [vmem:[#allocation2 + $0x80] sm:$0xff]
      %v566 = vld [vmem:[#allocation2 + $0x88] sm:$0x3]
      %v567 = vld [vmem:[#allocation2 + $0x90] sm:$0xff]
      %v568 = vld [vmem:[#allocation2 + $0x98] sm:$0xff]
      %v569 = vld [vmem:[#allocation2 + $0xa0] sm:$0x3]
      %v570 = vld [vmem:[#allocation2 + $0xa8] sm:$0xff]
      %v571 = vld [vmem:[#allocation2 + $0xb0] sm:$0xff]
      %v572 = vld [vmem:[#allocation2 + $0xb8] sm:$0x3]
      %v573 = vld [vmem:[#allocation2 + $0xc0] sm:$0xff]
      %v574 = vld [vmem:[#allocation2 + $0xc8] sm:$0xff]
      %v575 = vld [vmem:[#allocation2 + $0xd0] sm:$0x3]
      %v576 = vld [vmem:[#allocation2 + $0xd8] sm:$0xff]
      %v577 = vld [vmem:[#allocation2 + $0xe0] sm:$0xff]
      %v578 = vld [vmem:[#allocation2 + $0xe8] sm:$0x3]
      %v609 = vrot.slane %v549, 2
      %v610 = vrot.slane %v549, 4
      %v611 = vrot.slane %v549, 6
      %v612 = vrot.slane %v550, 2
      %v613 = vrot.slane %v550, 4
      %v614 = vrot.slane %v550, 6
      %v615 = vrot.slane %v552, 2
      %v616 = vrot.slane %v552, 4
      %v617 = vrot.slane %v552, 6
      %v618 = vrot.slane %v553, 2
      %v619 = vrot.slane %v553, 4
      %v620 = vrot.slane %v553, 6
      %v621 = vrot.slane %v555, 2
      %v622 = vrot.slane %v555, 4
      %v623 = vrot.slane %v555, 6
      %v624 = vrot.slane %v556, 2
      %v625 = vrot.slane %v556, 4
      %v626 = vrot.slane %v556, 6
      %v627 = vrot.slane %v558, 2
      %v628 = vrot.slane %v558, 4
      %v629 = vrot.slane %v558, 6
      %v630 = vrot.slane %v559, 2
      %v631 = vrot.slane %v559, 4
      %v632 = vrot.slane %v559, 6
      %v633 = vrot.slane %v561, 2
      %v634 = vrot.slane %v561, 4
      %v635 = vrot.slane %v561, 6
      %v636 = vrot.slane %v562, 2
      %v637 = vrot.slane %v562, 4
      %v638 = vrot.slane %v562, 6
      %v639 = vrot.slane %v564, 2
      %v640 = vrot.slane %v564, 4
      %v641 = vrot.slane %v564, 6
      %v642 = vrot.slane %v565, 2
      %v643 = vrot.slane %v565, 4
      %v644 = vrot.slane %v565, 6
      %v645 = vrot.slane %v567, 2
      %v646 = vrot.slane %v567, 4
      %v647 = vrot.slane %v567, 6
      %v648 = vrot.slane %v568, 2
      %v649 = vrot.slane %v568, 4
      %v650 = vrot.slane %v568, 6
      %v651 = vrot.slane %v570, 2
      %v652 = vrot.slane %v570, 4
      %v653 = vrot.slane %v570, 6
      %v654 = vrot.slane %v571, 2
      %v655 = vrot.slane %v571, 4
      %v656 = vrot.slane %v571, 6
      %v657 = vrot.slane %v573, 2
      %v658 = vrot.slane %v573, 4
      %v659 = vrot.slane %v573, 6
      %v660 = vrot.slane %v574, 2
      %v661 = vrot.slane %v574, 4
      %v662 = vrot.slane %v574, 6
      %v663 = vrot.slane %v576, 2
      %v664 = vrot.slane %v576, 4
      %v665 = vrot.slane %v576, 6
      %v666 = vrot.slane %v577, 2
      %v667 = vrot.slane %v577, 4
      %v668 = vrot.slane %v577, 6
      %v669 = vld [vmem:[%s3] sm:$0xf]
      %v670 = vld [vmem:[#allocation2 + $0x1] sm:$0xff]
      %v671 = vld [vmem:[#allocation2 + $0x9] sm:$0xff]
      %v672 = vld [vmem:[#allocation2 + $0x11] sm:$0x3]
      %v673 = vld [vmem:[#allocation2 + $0x19] sm:$0xff]
      %v674 = vld [vmem:[#allocation2 + $0x21] sm:$0xff]
      %v675 = vld [vmem:[#allocation2 + $0x29] sm:$0x3]
      %v676 = vld [vmem:[#allocation2 + $0x31] sm:$0xff]
      %v677 = vld [vmem:[#allocation2 + $0x39] sm:$0xff]
      %v678 = vld [vmem:[#allocation2 + $0x41] sm:$0x3]
      %v679 = vld [vmem:[#allocation2 + $0x49] sm:$0xff]
      %v680 = vld [vmem:[#allocation2 + $0x51] sm:$0xff]
      %v681 = vld [vmem:[#allocation2 + $0x59] sm:$0x3]
      %v682 = vld [vmem:[#allocation2 + $0x61] sm:$0xff]
      %v683 = vld [vmem:[#allocation2 + $0x69] sm:$0xff]
      %v684 = vld [vmem:[#allocation2 + $0x71] sm:$0x3]
      %v685 = vld [vmem:[#allocation2 + $0x79] sm:$0xff]
      %v686 = vld [vmem:[#allocation2 + $0x81] sm:$0xff]
      %v687 = vld [vmem:[#allocation2 + $0x89] sm:$0x3]
      %v688 = vld [vmem:[#allocation2 + $0x91] sm:$0xff]
      %v689 = vld [vmem:[#allocation2 + $0x99] sm:$0xff]
      %v690 = vld [vmem:[#allocation2 + $0xa1] sm:$0x3]
      %v691 = vld [vmem:[#allocation2 + $0xa9] sm:$0xff]
      %v692 = vld [vmem:[#allocation2 + $0xb1] sm:$0xff]
      %v693 = vld [vmem:[#allocation2 + $0xb9] sm:$0x3]
      %v694 = vld [vmem:[#allocation2 + $0xc1] sm:$0xff]
      %v695 = vld [vmem:[#allocation2 + $0xc9] sm:$0xff]
      %v696 = vld [vmem:[#allocation2 + $0xd1] sm:$0x3]
      %v697 = vld [vmem:[#allocation2 + $0xd9] sm:$0xff]
      %v698 = vld [vmem:[#allocation2 + $0xe1] sm:$0xff]
      %v699 = vld [vmem:[#allocation2 + $0xe9] sm:$0x3]
      %v730 = vrot.slane %v670, 2
      %v731 = vrot.slane %v670, 4
      %v732 = vrot.slane %v670, 6
      %v733 = vrot.slane %v671, 2
      %v734 = vrot.slane %v671, 4
      %v735 = vrot.slane %v671, 6
      %v736 = vrot.slane %v673, 2
      %v737 = vrot.slane %v673, 4
      %v738 = vrot.slane %v673, 6
      %v739 = vrot.slane %v674, 2
      %v740 = vrot.slane %v674, 4
      %v741 = vrot.slane %v674, 6
      %v742 = vrot.slane %v676, 2
      %v743 = vrot.slane %v676, 4
      %v744 = vrot.slane %v676, 6
      %v745 = vrot.slane %v677, 2
      %v746 = vrot.slane %v677, 4
      %v747 = vrot.slane %v677, 6
      %v748 = vrot.slane %v679, 2
      %v749 = vrot.slane %v679, 4
      %v750 = vrot.slane %v679, 6
      %v751 = vrot.slane %v680, 2
      %v752 = vrot.slane %v680, 4
      %v753 = vrot.slane %v680, 6
      %v754 = vrot.slane %v682, 2
      %v755 = vrot.slane %v682, 4
      %v756 = vrot.slane %v682, 6
      %v757 = vrot.slane %v683, 2
      %v758 = vrot.slane %v683, 4
      %v759 = vrot.slane %v683, 6
      %v760 = vrot.slane %v685, 2
      %v761 = vrot.slane %v685, 4
      %v762 = vrot.slane %v685, 6
      %v763 = vrot.slane %v686, 2
      %v764 = vrot.slane %v686, 4
      %v765 = vrot.slane %v686, 6
      %v766 = vrot.slane %v688, 2
      %v767 = vrot.slane %v688, 4
      %v768 = vrot.slane %v688, 6
      %v769 = vrot.slane %v689, 2
      %v770 = vrot.slane %v689, 4
      %v771 = vrot.slane %v689, 6
      %v772 = vrot.slane %v691, 2
      %v773 = vrot.slane %v691, 4
      %v774 = vrot.slane %v691, 6
      %v775 = vrot.slane %v692, 2
      %v776 = vrot.slane %v692, 4
      %v777 = vrot.slane %v692, 6
      %v778 = vrot.slane %v694, 2
      %v779 = vrot.slane %v694, 4
      %v780 = vrot.slane %v694, 6
      %v781 = vrot.slane %v695, 2
      %v782 = vrot.slane %v695, 4
      %v783 = vrot.slane %v695, 6
      %v784 = vrot.slane %v697, 2
      %v785 = vrot.slane %v697, 4
      %v786 = vrot.slane %v697, 6
      %v787 = vrot.slane %v698, 2
      %v788 = vrot.slane %v698, 4
      %v789 = vrot.slane %v698, 6
      %s790 = scalar_lea.vmem %s3, 4
      %v791 = vld [vmem:[%s790] sm:$0xf]
      %792 = vst [vmem:[#allocation1] ss:$4 sm:$0xff] %v670
      %s793 = scalar_lea.vmem [#allocation1], 1
      %794 = vst [vmem:[%s793] ss:$4 sm:$0xff] %v730
      %s795 = scalar_lea.vmem [#allocation1], 2
      %796 = vst [vmem:[%s795] ss:$4 sm:$0xff] %v731
      %s797 = scalar_lea.vmem [#allocation1], 3
      %798 = vst [vmem:[%s797] ss:$4 sm:$0xff] %v732
      %s799 = scalar_lea.vmem [#allocation1], 32
      %800 = vst [vmem:[%s799] ss:$4 sm:$0xff] %v671
      %s801 = scalar_lea.vmem [#allocation1], 33
      %802 = vst [vmem:[%s801] ss:$4 sm:$0xff] %v733
      %s803 = scalar_lea.vmem [#allocation1], 34
      %804 = vst [vmem:[%s803] ss:$4 sm:$0xff] %v734
      %s805 = scalar_lea.vmem [#allocation1], 35
      %806 = vst [vmem:[%s805] ss:$4 sm:$0xff] %v735
      %v807 = vld.sshfl [vmem:[#allocation1] sm:$0xff pattern:$0x73625140]
      %v808 = vld.sshfl [vmem:[#allocation1 + $0x20] sm:$0xff pattern:$0x73625140]
      %809 = vst [vmem:[#allocation1] ss:$4 sm:$0xff] %v672
      %810 = vst [vmem:[%s793] ss:$4 sm:$0xff] %v673
      %811 = vst [vmem:[%s795] ss:$4 sm:$0xff] %v736
      %812 = vst [vmem:[%s797] ss:$4 sm:$0xff] %v737
      %813 = vst [vmem:[%s799] ss:$4 sm:$0xff] %v738
      %814 = vst [vmem:[%s801] ss:$4 sm:$0xff] %v674
      %815 = vst [vmem:[%s803] ss:$4 sm:$0xff] %v739
      %816 = vst [vmem:[%s805] ss:$4 sm:$0xff] %v740
      %v817 = vld.sshfl [vmem:[#allocation1] sm:$0xff pattern:$0x73625140]
      %v818 = vld.sshfl [vmem:[#allocation1 + $0x20] sm:$0xff pattern:$0x73625140]
      %819 = vst [vmem:[#allocation1] ss:$4 sm:$0xff] %v741
      %820 = vst [vmem:[%s793] ss:$4 sm:$0xff] %v675
      %821 = vst [vmem:[%s795] ss:$4 sm:$0xff] %v676
      %822 = vst [vmem:[%s797] ss:$4 sm:$0xff] %v742
      %823 = vst [vmem:[%s799] ss:$4 sm:$0xff] %v743
      %824 = vst [vmem:[%s801] ss:$4 sm:$0xff] %v744
      %825 = vst [vmem:[%s803] ss:$4 sm:$0xff] %v677
      %826 = vst [vmem:[%s805] ss:$4 sm:$0xff] %v745
      %v827 = vld.sshfl [vmem:[#allocation1] sm:$0xff pattern:$0x73625140]
      %v828 = vld.sshfl [vmem:[#allocation1 + $0x20] sm:$0xff pattern:$0x73625140]
      %829 = vst [vmem:[#allocation1] ss:$4 sm:$0xff] %v746
      %830 = vst [vmem:[%s793] ss:$4 sm:$0xff] %v747
      %831 = vst [vmem:[%s795] ss:$4 sm:$0xff] %v678
      %832 = vst [vmem:[%s797] ss:$4 sm:$0xff] %v679
      %833 = vst [vmem:[%s799] ss:$4 sm:$0xff] %v748
      %834 = vst [vmem:[%s801] ss:$4 sm:$0xff] %v749
      %835 = vst [vmem:[%s803] ss:$4 sm:$0xff] %v750
      %836 = vst [vmem:[%s805] ss:$4 sm:$0xff] %v680
      %v837 = vld.sshfl [vmem:[#allocation1] sm:$0xff pattern:$0x73625140]
      %v838 = vld.sshfl [vmem:[#allocation1 + $0x20] sm:$0xff pattern:$0x73625140]
      %839 = vst [vmem:[#allocation1] ss:$4 sm:$0xff] %v751
      %840 = vst [vmem:[%s793] ss:$4 sm:$0xff] %v752
      %841 = vst [vmem:[%s795] ss:$4 sm:$0xff] %v753
      %842 = vst [vmem:[%s797] ss:$4 sm:$0xff] %v681
      %843 = vst [vmem:[%s799] ss:$4 sm:$0xff] %v682
      %844 = vst [vmem:[%s801] ss:$4 sm:$0xff] %v754
      %845 = vst [vmem:[%s803] ss:$4 sm:$0xff] %v755
      %846 = vst [vmem:[%s805] ss:$4 sm:$0xff] %v756
      %v847 = vld.sshfl [vmem:[#allocation1] sm:$0xff pattern:$0x73625140]
      %v848 = vld.sshfl [vmem:[#allocation1 + $0x20] sm:$0xff pattern:$0x73625140]
      %849 = vst [vmem:[#allocation1] ss:$4 sm:$0xff] %v683
      %850 = vst [vmem:[%s793] ss:$4 sm:$0xff] %v757
      %851 = vst [vmem:[%s795] ss:$4 sm:$0xff] %v758
      %852 = vst [vmem:[%s797] ss:$4 sm:$0xff] %v759
      %853 = vst [vmem:[%s799] ss:$4 sm:$0xff] %v684
      %854 = vst [vmem:[%s801] ss:$4 sm:$0xff] %v685
      %855 = vst [vmem:[%s803] ss:$4 sm:$0xff] %v760
      %856 = vst [vmem:[%s805] ss:$4 sm:$0xff] %v761
      %v857 = vld.sshfl [vmem:[#allocation1] sm:$0xff pattern:$0x73625140]
      %v858 = vld.sshfl [vmem:[#allocation1 + $0x20] sm:$0xff pattern:$0x73625140]
      %859 = vst [vmem:[#allocation1] ss:$4 sm:$0xff] %v762
      %860 = vst [vmem:[%s793] ss:$4 sm:$0xff] %v686
      %861 = vst [vmem:[%s795] ss:$4 sm:$0xff] %v763
      %862 = vst [vmem:[%s797] ss:$4 sm:$0xff] %v764
      %863 = vst [vmem:[%s799] ss:$4 sm:$0xff] %v765
      %864 = vst [vmem:[%s801] ss:$4 sm:$0xff] %v687
      %865 = vst [vmem:[%s803] ss:$4 sm:$0xff] %v688
      %866 = vst [vmem:[%s805] ss:$4 sm:$0xff] %v766
      %v867 = vld.sshfl [vmem:[#allocation1] sm:$0xff pattern:$0x73625140]
      %v868 = vld.sshfl [vmem:[#allocation1 + $0x20] sm:$0xff pattern:$0x73625140]
      %869 = vst [vmem:[#allocation1] ss:$4 sm:$0xff] %v767
      %870 = vst [vmem:[%s793] ss:$4 sm:$0xff] %v768
      %871 = vst [vmem:[%s795] ss:$4 sm:$0xff] %v689
      %872 = vst [vmem:[%s797] ss:$4 sm:$0xff] %v769
      %873 = vst [vmem:[%s799] ss:$4 sm:$0xff] %v770
      %874 = vst [vmem:[%s801] ss:$4 sm:$0xff] %v771
      %875 = vst [vmem:[%s803] ss:$4 sm:$0xff] %v690
      %876 = vst [vmem:[%s805] ss:$4 sm:$0xff] %v691
      %v877 = vld.sshfl [vmem:[#allocation1] sm:$0xff pattern:$0x73625140]
      %v878 = vld.sshfl [vmem:[#allocation1 + $0x20] sm:$0xff pattern:$0x73625140]
      %879 = vst [vmem:[#allocation1] ss:$4 sm:$0xff] %v772
      %880 = vst [vmem:[%s793] ss:$4 sm:$0xff] %v773
      %881 = vst [vmem:[%s795] ss:$4 sm:$0xff] %v774
      %882 = vst [vmem:[%s797] ss:$4 sm:$0xff] %v692
      %883 = vst [vmem:[%s799] ss:$4 sm:$0xff] %v775
      %884 = vst [vmem:[%s801] ss:$4 sm:$0xff] %v776
      %885 = vst [vmem:[%s803] ss:$4 sm:$0xff] %v777
      %886 = vst [vmem:[%s805] ss:$4 sm:$0xff] %v693
      %v887 = vld.sshfl [vmem:[#allocation1] sm:$0xff pattern:$0x73625140]
      %v888 = vld.sshfl [vmem:[#allocation1 + $0x20] sm:$0xff pattern:$0x73625140]
      %889 = vst [vmem:[#allocation1] ss:$4 sm:$0xff] %v694
      %890 = vst [vmem:[%s793] ss:$4 sm:$0xff] %v778
      %891 = vst [vmem:[%s795] ss:$4 sm:$0xff] %v779
      %892 = vst [vmem:[%s797] ss:$4 sm:$0xff] %v780
      %893 = vst [vmem:[%s799] ss:$4 sm:$0xff] %v695
      %894 = vst [vmem:[%s801] ss:$4 sm:$0xff] %v781
      %895 = vst [vmem:[%s803] ss:$4 sm:$0xff] %v782
      %896 = vst [vmem:[%s805] ss:$4 sm:$0xff] %v783
      %v897 = vld.sshfl [vmem:[#allocation1] sm:$0xff pattern:$0x73625140]
      %v898 = vld.sshfl [vmem:[#allocation1 + $0x20] sm:$0xff pattern:$0x73625140]
      %899 = vst [vmem:[#allocation1] ss:$4 sm:$0xff] %v696
      %900 = vst [vmem:[%s793] ss:$4 sm:$0xff] %v697
      %901 = vst [vmem:[%s795] ss:$4 sm:$0xff] %v784
      %902 = vst [vmem:[%s797] ss:$4 sm:$0xff] %v785
      %903 = vst [vmem:[%s799] ss:$4 sm:$0xff] %v786
      %904 = vst [vmem:[%s801] ss:$4 sm:$0xff] %v698
      %905 = vst [vmem:[%s803] ss:$4 sm:$0xff] %v787
      %906 = vst [vmem:[%s805] ss:$4 sm:$0xff] %v788
      %v907 = vld.sshfl [vmem:[#allocation1] sm:$0xff pattern:$0x73625140]
      %v908 = vld.sshfl [vmem:[#allocation1 + $0x20] sm:$0xff pattern:$0x73625140]
      %909 = vst [vmem:[#allocation1] ss:$4 sm:$0xff] %v789
      %910 = vst [vmem:[%s793] ss:$4 sm:$0xff] %v699
      %v911 = vld.sshfl [vmem:[#allocation1] sm:$0xff pattern:$0x73625140]
      %v912 = vsel %vm506, %v807, 0
      %v914 = vsel %vm506, %v808, 0
      %v916 = vsel %vm506, %v817, 0
      %v918 = vsel %vm506, %v818, 0
      %v920 = vsel %vm506, %v827, 0
      %v922 = vsel %vm506, %v828, 0
      %v924 = vsel %vm506, %v837, 0
      %v926 = vsel %vm506, %v838, 0
      %v928 = vsel %vm506, %v847, 0
      %v930 = vsel %vm506, %v848, 0
      %v932 = vsel %vm506, %v857, 0
      %v934 = vsel %vm506, %v858, 0
      %v936 = vsel %vm506, %v867, 0
      %v938 = vsel %vm506, %v868, 0
      %v940 = vsel %vm506, %v877, 0
      %v942 = vsel %vm506, %v878, 0
      %v944 = vsel %vm506, %v887, 0
      %v946 = vsel %vm506, %v888, 0
      %v948 = vsel %vm506, %v897, 0
      %v950 = vsel %vm506, %v898, 0
      %v952 = vsel %vm506, %v907, 0
      %v954 = vsel %vm506, %v908, 0
      %v956 = vsel %vm506, %v911, 0
      %vm958 = vcmask 1043456
      %v960 = vsel %vm958, %v791, 0
      %962 = vmatpush.msra.mxu0 0.0
      %963 = vmatpush.msra.mxu0 0.0
      %964 = vmatpush.msra.mxu0 0.0
      %965 = vmatpush.msra.mxu0 0.0
      %966 = vmatpush.msra.mxu0 0.0
      %967 = vmatpush.msra.mxu0 0.0
      %968 = vmatpush.msra.mxu0 0.0
      %969 = vmatpush.msra.mxu0 0.0
      %970 = vmatpush.msra.mxu0 0.0
      %971 = vmatpush.msra.mxu0 0.0
      %972 = vmatpush.msra.mxu0 0.0
      %973 = vmatpush.msra.mxu0 0.0
      %974 = vmatpush.msra.mxu0 0.0
      %975 = vmatpush.msra.mxu0 0.0
      %976 = vmatpush.msra.mxu0 0.0
      %977 = vmatpush.msra.mxu0 %v960
      %978 = vmatmul.f32.gmra.mxu0 %v912
      %v979 = vpop.f32.mrf.mxu0
      %v980 = vadd.f32 0.0, %v979
      %981 = vmatmul.f32.gmra.mxu0 %v914
      %v982 = vpop.f32.mrf.mxu0
      %v983 = vadd.f32 0.0, %v982
      %984 = vmatmul.f32.gmra.mxu0 %v916
      %v985 = vpop.f32.mrf.mxu0
      %v986 = vadd.f32 0.0, %v985
      %987 = vmatmul.f32.gmra.mxu0 %v918
      %v988 = vpop.f32.mrf.mxu0
      %v989 = vadd.f32 0.0, %v988
      %990 = vmatmul.f32.gmra.mxu0 %v920
      %v991 = vpop.f32.mrf.mxu0
      %v992 = vadd.f32 0.0, %v991
      %993 = vmatmul.f32.gmra.mxu0 %v922
      %v994 = vpop.f32.mrf.mxu0
      %v995 = vadd.f32 0.0, %v994
      %996 = vmatmul.f32.gmra.mxu0 %v924
      %v997 = vpop.f32.mrf.mxu0
      %v998 = vadd.f32 0.0, %v997
      %999 = vmatmul.f32.gmra.mxu0 %v926
      %v1000 = vpop.f32.mrf.mxu0
      %v1001 = vadd.f32 0.0, %v1000
      %1002 = vmatmul.f32.gmra.mxu0 %v928
      %v1003 = vpop.f32.mrf.mxu0
      %v1004 = vadd.f32 0.0, %v1003
      %1005 = vmatmul.f32.gmra.mxu0 %v930
      %v1006 = vpop.f32.mrf.mxu0
      %v1007 = vadd.f32 0.0, %v1006
      %1008 = vmatmul.f32.gmra.mxu0 %v932
      %v1009 = vpop.f32.mrf.mxu0
      %v1010 = vadd.f32 0.0, %v1009
      %1011 = vmatmul.f32.gmra.mxu0 %v934
      %v1012 = vpop.f32.mrf.mxu0
      %v1013 = vadd.f32 0.0, %v1012
      %1014 = vmatmul.f32.gmra.mxu0 %v936
      %v1015 = vpop.f32.mrf.mxu0
      %v1016 = vadd.f32 0.0, %v1015
      %1017 = vmatmul.f32.gmra.mxu0 %v938
      %v1018 = vpop.f32.mrf.mxu0
      %v1019 = vadd.f32 0.0, %v1018
      %1020 = vmatmul.f32.gmra.mxu0 %v940
      %v1021 = vpop.f32.mrf.mxu0
      %v1022 = vadd.f32 0.0, %v1021
      %1023 = vmatmul.f32.gmra.mxu0 %v942
      %v1024 = vpop.f32.mrf.mxu0
      %v1025 = vadd.f32 0.0, %v1024
      %1026 = vmatmul.f32.gmra.mxu0 %v944
      %v1027 = vpop.f32.mrf.mxu0
      %v1028 = vadd.f32 0.0, %v1027
      %1029 = vmatmul.f32.gmra.mxu0 %v946
      %v1030 = vpop.f32.mrf.mxu0
      %v1031 = vadd.f32 0.0, %v1030
      %1032 = vmatmul.f32.gmra.mxu0 %v948
      %v1033 = vpop.f32.mrf.mxu0
      %v1034 = vadd.f32 0.0, %v1033
      %1035 = vmatmul.f32.gmra.mxu0 %v950
      %v1036 = vpop.f32.mrf.mxu0
      %v1037 = vadd.f32 0.0, %v1036
      %1038 = vmatmul.f32.gmra.mxu0 %v952
      %v1039 = vpop.f32.mrf.mxu0
      %v1040 = vadd.f32 0.0, %v1039
      %1041 = vmatmul.f32.gmra.mxu0 %v954
      %v1042 = vpop.f32.mrf.mxu0
      %v1043 = vadd.f32 0.0, %v1042
      %1044 = vmatmul.f32.gmra.mxu0 %v956
      %v1045 = vpop.f32.mrf.mxu0
      %v1046 = vadd.f32 0.0, %v1045
      %1047 = vdwg.mxu0
      %1048 = vst [vmem:[#allocation1] ss:$4 sm:$0xff] %v549
      %s1049 = scalar_lea.vmem [#allocation1], 1
      %1050 = vst [vmem:[%s1049] ss:$4 sm:$0xff] %v609
      %s1051 = scalar_lea.vmem [#allocation1], 2
      %1052 = vst [vmem:[%s1051] ss:$4 sm:$0xff] %v610
      %s1053 = scalar_lea.vmem [#allocation1], 3
      %1054 = vst [vmem:[%s1053] ss:$4 sm:$0xff] %v611
      %s1055 = scalar_lea.vmem [#allocation1], 32
      %1056 = vst [vmem:[%s1055] ss:$4 sm:$0xff] %v550
      %s1057 = scalar_lea.vmem [#allocation1], 33
      %1058 = vst [vmem:[%s1057] ss:$4 sm:$0xff] %v612
      %s1059 = scalar_lea.vmem [#allocation1], 34
      %1060 = vst [vmem:[%s1059] ss:$4 sm:$0xff] %v613
      %s1061 = scalar_lea.vmem [#allocation1], 35
      %1062 = vst [vmem:[%s1061] ss:$4 sm:$0xff] %v614
      %v1063 = vld.sshfl [vmem:[#allocation1] sm:$0xff pattern:$0x73625140]
      %v1064 = vld.sshfl [vmem:[#allocation1 + $0x20] sm:$0xff pattern:$0x73625140]
      %1065 = vst [vmem:[#allocation1] ss:$4 sm:$0xff] %v551
      %1066 = vst [vmem:[%s1049] ss:$4 sm:$0xff] %v552
      %1067 = vst [vmem:[%s1051] ss:$4 sm:$0xff] %v615
      %1068 = vst [vmem:[%s1053] ss:$4 sm:$0xff] %v616
      %1069 = vst [vmem:[%s1055] ss:$4 sm:$0xff] %v617
      %1070 = vst [vmem:[%s1057] ss:$4 sm:$0xff] %v553
      %1071 = vst [vmem:[%s1059] ss:$4 sm:$0xff] %v618
      %1072 = vst [vmem:[%s1061] ss:$4 sm:$0xff] %v619
      %v1073 = vld.sshfl [vmem:[#allocation1] sm:$0xff pattern:$0x73625140]
      %v1074 = vld.sshfl [vmem:[#allocation1 + $0x20] sm:$0xff pattern:$0x73625140]
      %1075 = vst [vmem:[#allocation1] ss:$4 sm:$0xff] %v620
      %1076 = vst [vmem:[%s1049] ss:$4 sm:$0xff] %v554
      %1077 = vst [vmem:[%s1051] ss:$4 sm:$0xff] %v555
      %1078 = vst [vmem:[%s1053] ss:$4 sm:$0xff] %v621
      %1079 = vst [vmem:[%s1055] ss:$4 sm:$0xff] %v622
      %1080 = vst [vmem:[%s1057] ss:$4 sm:$0xff] %v623
      %1081 = vst [vmem:[%s1059] ss:$4 sm:$0xff] %v556
      %1082 = vst [vmem:[%s1061] ss:$4 sm:$0xff] %v624
      %v1083 = vld.sshfl [vmem:[#allocation1] sm:$0xff pattern:$0x73625140]
      %v1084 = vld.sshfl [vmem:[#allocation1 + $0x20] sm:$0xff pattern:$0x73625140]
      %1085 = vst [vmem:[#allocation1] ss:$4 sm:$0xff] %v625
      %1086 = vst [vmem:[%s1049] ss:$4 sm:$0xff] %v626
      %1087 = vst [vmem:[%s1051] ss:$4 sm:$0xff] %v557
      %1088 = vst [vmem:[%s1053] ss:$4 sm:$0xff] %v558
      %1089 = vst [vmem:[%s1055] ss:$4 sm:$0xff] %v627
      %1090 = vst [vmem:[%s1057] ss:$4 sm:$0xff] %v628
      %1091 = vst [vmem:[%s1059] ss:$4 sm:$0xff] %v629
      %1092 = vst [vmem:[%s1061] ss:$4 sm:$0xff] %v559
      %v1093 = vld.sshfl [vmem:[#allocation1] sm:$0xff pattern:$0x73625140]
      %v1094 = vld.sshfl [vmem:[#allocation1 + $0x20] sm:$0xff pattern:$0x73625140]
      %1095 = vst [vmem:[#allocation1] ss:$4 sm:$0xff] %v630
      %1096 = vst [vmem:[%s1049] ss:$4 sm:$0xff] %v631
      %1097 = vst [vmem:[%s1051] ss:$4 sm:$0xff] %v632
      %1098 = vst [vmem:[%s1053] ss:$4 sm:$0xff] %v560
      %1099 = vst [vmem:[%s1055] ss:$4 sm:$0xff] %v561
      %1100 = vst [vmem:[%s1057] ss:$4 sm:$0xff] %v633
      %1101 = vst [vmem:[%s1059] ss:$4 sm:$0xff] %v634
      %1102 = vst [vmem:[%s1061] ss:$4 sm:$0xff] %v635
      %v1103 = vld.sshfl [vmem:[#allocation1] sm:$0xff pattern:$0x73625140]
      %v1104 = vld.sshfl [vmem:[#allocation1 + $0x20] sm:$0xff pattern:$0x73625140]
      %1105 = vst [vmem:[#allocation1] ss:$4 sm:$0xff] %v562
      %1106 = vst [vmem:[%s1049] ss:$4 sm:$0xff] %v636
      %1107 = vst [vmem:[%s1051] ss:$4 sm:$0xff] %v637
      %1108 = vst [vmem:[%s1053] ss:$4 sm:$0xff] %v638
      %1109 = vst [vmem:[%s1055] ss:$4 sm:$0xff] %v563
      %1110 = vst [vmem:[%s1057] ss:$4 sm:$0xff] %v564
      %1111 = vst [vmem:[%s1059] ss:$4 sm:$0xff] %v639
      %1112 = vst [vmem:[%s1061] ss:$4 sm:$0xff] %v640
      %v1113 = vld.sshfl [vmem:[#allocation1] sm:$0xff pattern:$0x73625140]
      %v1114 = vld.sshfl [vmem:[#allocation1 + $0x20] sm:$0xff pattern:$0x73625140]
      %1115 = vst [vmem:[#allocation1] ss:$4 sm:$0xff] %v641
      %1116 = vst [vmem:[%s1049] ss:$4 sm:$0xff] %v565
      %1117 = vst [vmem:[%s1051] ss:$4 sm:$0xff] %v642
      %1118 = vst [vmem:[%s1053] ss:$4 sm:$0xff] %v643
      %1119 = vst [vmem:[%s1055] ss:$4 sm:$0xff] %v644
      %1120 = vst [vmem:[%s1057] ss:$4 sm:$0xff] %v566
      %1121 = vst [vmem:[%s1059] ss:$4 sm:$0xff] %v567
      %1122 = vst [vmem:[%s1061] ss:$4 sm:$0xff] %v645
      %v1123 = vld.sshfl [vmem:[#allocation1] sm:$0xff pattern:$0x73625140]
      %v1124 = vld.sshfl [vmem:[#allocation1 + $0x20] sm:$0xff pattern:$0x73625140]
      %1125 = vst [vmem:[#allocation1] ss:$4 sm:$0xff] %v646
      %1126 = vst [vmem:[%s1049] ss:$4 sm:$0xff] %v647
      %1127 = vst [vmem:[%s1051] ss:$4 sm:$0xff] %v568
      %1128 = vst [vmem:[%s1053] ss:$4 sm:$0xff] %v648
      %1129 = vst [vmem:[%s1055] ss:$4 sm:$0xff] %v649
      %1130 = vst [vmem:[%s1057] ss:$4 sm:$0xff] %v650
      %1131 = vst [vmem:[%s1059] ss:$4 sm:$0xff] %v569
      %1132 = vst [vmem:[%s1061] ss:$4 sm:$0xff] %v570
      %v1133 = vld.sshfl [vmem:[#allocation1] sm:$0xff pattern:$0x73625140]
      %v1134 = vld.sshfl [vmem:[#allocation1 + $0x20] sm:$0xff pattern:$0x73625140]
      %1135 = vst [vmem:[#allocation1] ss:$4 sm:$0xff] %v651
      %1136 = vst [vmem:[%s1049] ss:$4 sm:$0xff] %v652
      %1137 = vst [vmem:[%s1051] ss:$4 sm:$0xff] %v653
      %1138 = vst [vmem:[%s1053] ss:$4 sm:$0xff] %v571
      %1139 = vst [vmem:[%s1055] ss:$4 sm:$0xff] %v654
      %1140 = vst [vmem:[%s1057] ss:$4 sm:$0xff] %v655
      %1141 = vst [vmem:[%s1059] ss:$4 sm:$0xff] %v656
      %1142 = vst [vmem:[%s1061] ss:$4 sm:$0xff] %v572
      %v1143 = vld.sshfl [vmem:[#allocation1] sm:$0xff pattern:$0x73625140]
      %v1144 = vld.sshfl [vmem:[#allocation1 + $0x20] sm:$0xff pattern:$0x73625140]
      %1145 = vst [vmem:[#allocation1] ss:$4 sm:$0xff] %v573
      %1146 = vst [vmem:[%s1049] ss:$4 sm:$0xff] %v657
      %1147 = vst [vmem:[%s1051] ss:$4 sm:$0xff] %v658
      %1148 = vst [vmem:[%s1053] ss:$4 sm:$0xff] %v659
      %1149 = vst [vmem:[%s1055] ss:$4 sm:$0xff] %v574
      %1150 = vst [vmem:[%s1057] ss:$4 sm:$0xff] %v660
      %1151 = vst [vmem:[%s1059] ss:$4 sm:$0xff] %v661
      %1152 = vst [vmem:[%s1061] ss:$4 sm:$0xff] %v662
      %v1153 = vld.sshfl [vmem:[#allocation1] sm:$0xff pattern:$0x73625140]
      %v1154 = vld.sshfl [vmem:[#allocation1 + $0x20] sm:$0xff pattern:$0x73625140]
      %1155 = vst [vmem:[#allocation1] ss:$4 sm:$0xff] %v575
      %1156 = vst [vmem:[%s1049] ss:$4 sm:$0xff] %v576
      %1157 = vst [vmem:[%s1051] ss:$4 sm:$0xff] %v663
      %1158 = vst [vmem:[%s1053] ss:$4 sm:$0xff] %v664
      %1159 = vst [vmem:[%s1055] ss:$4 sm:$0xff] %v665
      %1160 = vst [vmem:[%s1057] ss:$4 sm:$0xff] %v577
      %1161 = vst [vmem:[%s1059] ss:$4 sm:$0xff] %v666
      %1162 = vst [vmem:[%s1061] ss:$4 sm:$0xff] %v667
      %v1163 = vld.sshfl [vmem:[#allocation1] sm:$0xff pattern:$0x73625140]
      %v1164 = vld.sshfl [vmem:[#allocation1 + $0x20] sm:$0xff pattern:$0x73625140]
      %1165 = vst [vmem:[#allocation1] ss:$4 sm:$0xff] %v668
      %1166 = vst [vmem:[%s1049] ss:$4 sm:$0xff] %v578
      %v1167 = vld.sshfl [vmem:[#allocation1] sm:$0xff pattern:$0x73625140]
      %v1168 = vsel %vm506, %v1063, 0
      %v1170 = vsel %vm506, %v1064, 0
      %v1172 = vsel %vm506, %v1073, 0
      %v1174 = vsel %vm506, %v1074, 0
      %v1176 = vsel %vm506, %v1083, 0
      %v1178 = vsel %vm506, %v1084, 0
      %v1180 = vsel %vm506, %v1093, 0
      %v1182 = vsel %vm506, %v1094, 0
      %v1184 = vsel %vm506, %v1103, 0
      %v1186 = vsel %vm506, %v1104, 0
      %v1188 = vsel %vm506, %v1113, 0
      %v1190 = vsel %vm506, %v1114, 0
      %v1192 = vsel %vm506, %v1123, 0
      %v1194 = vsel %vm506, %v1124, 0
      %v1196 = vsel %vm506, %v1133, 0
      %v1198 = vsel %vm506, %v1134, 0
      %v1200 = vsel %vm506, %v1143, 0
      %v1202 = vsel %vm506, %v1144, 0
      %v1204 = vsel %vm506, %v1153, 0
      %v1206 = vsel %vm506, %v1154, 0
      %v1208 = vsel %vm506, %v1163, 0
      %v1210 = vsel %vm506, %v1164, 0
      %v1212 = vsel %vm506, %v1167, 0
      %v1215 = vsel %vm958, %v669, 0
      %1217 = vmatpush.msra.mxu0 0.0
      %1218 = vmatpush.msra.mxu0 0.0
      %1219 = vmatpush.msra.mxu0 0.0
      %1220 = vmatpush.msra.mxu0 0.0
      %1221 = vmatpush.msra.mxu0 0.0
      %1222 = vmatpush.msra.mxu0 0.0
      %1223 = vmatpush.msra.mxu0 0.0
      %1224 = vmatpush.msra.mxu0 0.0
      %1225 = vmatpush.msra.mxu0 0.0
      %1226 = vmatpush.msra.mxu0 0.0
      %1227 = vmatpush.msra.mxu0 0.0
      %1228 = vmatpush.msra.mxu0 0.0
      %1229 = vmatpush.msra.mxu0 0.0
      %1230 = vmatpush.msra.mxu0 0.0
      %1231 = vmatpush.msra.mxu0 0.0
      %1232 = vmatpush.msra.mxu0 %v1215
      %1233 = vmatmul.f32.gmra.mxu0 %v1168
      %v1234 = vpop.f32.mrf.mxu0
      %v1235 = vadd.f32 %v980, %v1234
      %1236 = vmatmul.f32.gmra.mxu0 %v1170
      %v1237 = vpop.f32.mrf.mxu0
      %v1238 = vadd.f32 %v983, %v1237
      %1239 = vmatmul.f32.gmra.mxu0 %v1172
      %v1240 = vpop.f32.mrf.mxu0
      %v1241 = vadd.f32 %v986, %v1240
      %1242 = vmatmul.f32.gmra.mxu0 %v1174
      %v1243 = vpop.f32.mrf.mxu0
      %v1244 = vadd.f32 %v989, %v1243
      %1245 = vmatmul.f32.gmra.mxu0 %v1176
      %v1246 = vpop.f32.mrf.mxu0
      %v1247 = vadd.f32 %v992, %v1246
      %1248 = vmatmul.f32.gmra.mxu0 %v1178
      %v1249 = vpop.f32.mrf.mxu0
      %v1250 = vadd.f32 %v995, %v1249
      %1251 = vmatmul.f32.gmra.mxu0 %v1180
      %v1252 = vpop.f32.mrf.mxu0
      %v1253 = vadd.f32 %v998, %v1252
      %1254 = vmatmul.f32.gmra.mxu0 %v1182
      %v1255 = vpop.f32.mrf.mxu0
      %v1256 = vadd.f32 %v1001, %v1255
      %1257 = vmatmul.f32.gmra.mxu0 %v1184
      %v1258 = vpop.f32.mrf.mxu0
      %v1259 = vadd.f32 %v1004, %v1258
      %1260 = vmatmul.f32.gmra.mxu0 %v1186
      %v1261 = vpop.f32.mrf.mxu0
      %v1262 = vadd.f32 %v1007, %v1261
      %1263 = vmatmul.f32.gmra.mxu0 %v1188
      %v1264 = vpop.f32.mrf.mxu0
      %v1265 = vadd.f32 %v1010, %v1264
      %1266 = vmatmul.f32.gmra.mxu0 %v1190
      %v1267 = vpop.f32.mrf.mxu0
      %v1268 = vadd.f32 %v1013, %v1267
      %1269 = vmatmul.f32.gmra.mxu0 %v1192
      %v1270 = vpop.f32.mrf.mxu0
      %v1271 = vadd.f32 %v1016, %v1270
      %1272 = vmatmul.f32.gmra.mxu0 %v1194
      %v1273 = vpop.f32.mrf.mxu0
      %v1274 = vadd.f32 %v1019, %v1273
      %1275 = vmatmul.f32.gmra.mxu0 %v1196
      %v1276 = vpop.f32.mrf.mxu0
      %v1277 = vadd.f32 %v1022, %v1276
      %1278 = vmatmul.f32.gmra.mxu0 %v1198
      %v1279 = vpop.f32.mrf.mxu0
      %v1280 = vadd.f32 %v1025, %v1279
      %1281 = vmatmul.f32.gmra.mxu0 %v1200
      %v1282 = vpop.f32.mrf.mxu0
      %v1283 = vadd.f32 %v1028, %v1282
      %1284 = vmatmul.f32.gmra.mxu0 %v1202
      %v1285 = vpop.f32.mrf.mxu0
      %v1286 = vadd.f32 %v1031, %v1285
      %1287 = vmatmul.f32.gmra.mxu0 %v1204
      %v1288 = vpop.f32.mrf.mxu0
      %v1289 = vadd.f32 %v1034, %v1288
      %1290 = vmatmul.f32.gmra.mxu0 %v1206
      %v1291 = vpop.f32.mrf.mxu0
      %v1292 = vadd.f32 %v1037, %v1291
      %1293 = vmatmul.f32.gmra.mxu0 %v1208
      %v1294 = vpop.f32.mrf.mxu0
      %v1295 = vadd.f32 %v1040, %v1294
      %1296 = vmatmul.f32.gmra.mxu0 %v1210
      %v1297 = vpop.f32.mrf.mxu0
      %v1298 = vadd.f32 %v1043, %v1297
      %1299 = vmatmul.f32.gmra.mxu0 %v1212
      %v1300 = vpop.f32.mrf.mxu0
      %v1301 = vadd.f32 %v1046, %v1300
      %1302 = vdwg.mxu0
      %v1303 = vld [vmem:[#allocation2 + $0x2] sm:$0xff]
      %v1304 = vld [vmem:[#allocation2 + $0xa] sm:$0xff]
      %v1305 = vld [vmem:[#allocation2 + $0x12] sm:$0x3]
      %v1306 = vld [vmem:[#allocation2 + $0x1a] sm:$0xff]
      %v1307 = vld [vmem:[#allocation2 + $0x22] sm:$0xff]
      %v1308 = vld [vmem:[#allocation2 + $0x2a] sm:$0x3]
      %v1309 = vld [vmem:[#allocation2 + $0x32] sm:$0xff]
      %v1310 = vld [vmem:[#allocation2 + $0x3a] sm:$0xff]
      %v1311 = vld [vmem:[#allocation2 + $0x42] sm:$0x3]
      %v1312 = vld [vmem:[#allocation2 + $0x4a] sm:$0xff]
      %v1313 = vld [vmem:[#allocation2 + $0x52] sm:$0xff]
      %v1314 = vld [vmem:[#allocation2 + $0x5a] sm:$0x3]
      %v1315 = vld [vmem:[#allocation2 + $0x62] sm:$0xff]
      %v1316 = vld [vmem:[#allocation2 + $0x6a] sm:$0xff]
      %v1317 = vld [vmem:[#allocation2 + $0x72] sm:$0x3]
      %v1318 = vld [vmem:[#allocation2 + $0x7a] sm:$0xff]
      %v1319 = vld [vmem:[#allocation2 + $0x82] sm:$0xff]
      %v1320 = vld [vmem:[#allocation2 + $0x8a] sm:$0x3]
      %v1321 = vld [vmem:[#allocation2 + $0x92] sm:$0xff]
      %v1322 = vld [vmem:[#allocation2 + $0x9a] sm:$0xff]
      %v1323 = vld [vmem:[#allocation2 + $0xa2] sm:$0x3]
      %v1324 = vld [vmem:[#allocation2 + $0xaa] sm:$0xff]
      %v1325 = vld [vmem:[#allocation2 + $0xb2] sm:$0xff]
      %v1326 = vld [vmem:[#allocation2 + $0xba] sm:$0x3]
      %v1327 = vld [vmem:[#allocation2 + $0xc2] sm:$0xff]
      %v1328 = vld [vmem:[#allocation2 + $0xca] sm:$0xff]
      %v1329 = vld [vmem:[#allocation2 + $0xd2] sm:$0x3]
      %v1330 = vld [vmem:[#allocation2 + $0xda] sm:$0xff]
      %v1331 = vld [vmem:[#allocation2 + $0xe2] sm:$0xff]
      %v1332 = vld [vmem:[#allocation2 + $0xea] sm:$0x3]
      %v1363 = vrot.slane %v1303, 2
      %v1364 = vrot.slane %v1303, 4
      %v1365 = vrot.slane %v1303, 6
      %v1366 = vrot.slane %v1304, 2
      %v1367 = vrot.slane %v1304, 4
      %v1368 = vrot.slane %v1304, 6
      %v1369 = vrot.slane %v1306, 2
      %v1370 = vrot.slane %v1306, 4
      %v1371 = vrot.slane %v1306, 6
      %v1372 = vrot.slane %v1307, 2
      %v1373 = vrot.slane %v1307, 4
      %v1374 = vrot.slane %v1307, 6
      %v1375 = vrot.slane %v1309, 2
      %v1376 = vrot.slane %v1309, 4
      %v1377 = vrot.slane %v1309, 6
      %v1378 = vrot.slane %v1310, 2
      %v1379 = vrot.slane %v1310, 4
      %v1380 = vrot.slane %v1310, 6
      %v1381 = vrot.slane %v1312, 2
      %v1382 = vrot.slane %v1312, 4
      %v1383 = vrot.slane %v1312, 6
      %v1384 = vrot.slane %v1313, 2
      %v1385 = vrot.slane %v1313, 4
      %v1386 = vrot.slane %v1313, 6
      %v1387 = vrot.slane %v1315, 2
      %v1388 = vrot.slane %v1315, 4
      %v1389 = vrot.slane %v1315, 6
      %v1390 = vrot.slane %v1316, 2
      %v1391 = vrot.slane %v1316, 4
      %v1392 = vrot.slane %v1316, 6
      %v1393 = vrot.slane %v1318, 2
      %v1394 = vrot.slane %v1318, 4
      %v1395 = vrot.slane %v1318, 6
      %v1396 = vrot.slane %v1319, 2
      %v1397 = vrot.slane %v1319, 4
      %v1398 = vrot.slane %v1319, 6
      %v1399 = vrot.slane %v1321, 2
      %v1400 = vrot.slane %v1321, 4
      %v1401 = vrot.slane %v1321, 6
      %v1402 = vrot.slane %v1322, 2
      %v1403 = vrot.slane %v1322, 4
      %v1404 = vrot.slane %v1322, 6
      %v1405 = vrot.slane %v1324, 2
      %v1406 = vrot.slane %v1324, 4
      %v1407 = vrot.slane %v1324, 6
      %v1408 = vrot.slane %v1325, 2
      %v1409 = vrot.slane %v1325, 4
      %v1410 = vrot.slane %v1325, 6
      %v1411 = vrot.slane %v1327, 2
      %v1412 = vrot.slane %v1327, 4
      %v1413 = vrot.slane %v1327, 6
      %v1414 = vrot.slane %v1328, 2
      %v1415 = vrot.slane %v1328, 4
      %v1416 = vrot.slane %v1328, 6
      %v1417 = vrot.slane %v1330, 2
      %v1418 = vrot.slane %v1330, 4
      %v1419 = vrot.slane %v1330, 6
      %v1420 = vrot.slane %v1331, 2
      %v1421 = vrot.slane %v1331, 4
      %v1422 = vrot.slane %v1331, 6
      %s1423 = scalar_lea.vmem %s3, 8
      %v1424 = vld [vmem:[%s1423] sm:$0xf]
      %1425 = vst [vmem:[#allocation1] ss:$4 sm:$0xff] %v1303
      %s1426 = scalar_lea.vmem [#allocation1], 1
      %1427 = vst [vmem:[%s1426] ss:$4 sm:$0xff] %v1363
      %s1428 = scalar_lea.vmem [#allocation1], 2
      %1429 = vst [vmem:[%s1428] ss:$4 sm:$0xff] %v1364
      %s1430 = scalar_lea.vmem [#allocation1], 3
      %1431 = vst [vmem:[%s1430] ss:$4 sm:$0xff] %v1365
      %s1432 = scalar_lea.vmem [#allocation1], 32
      %1433 = vst [vmem:[%s1432] ss:$4 sm:$0xff] %v1304
      %s1434 = scalar_lea.vmem [#allocation1], 33
      %1435 = vst [vmem:[%s1434] ss:$4 sm:$0xff] %v1366
      %s1436 = scalar_lea.vmem [#allocation1], 34
      %1437 = vst [vmem:[%s1436] ss:$4 sm:$0xff] %v1367
      %s1438 = scalar_lea.vmem [#allocation1], 35
      %1439 = vst [vmem:[%s1438] ss:$4 sm:$0xff] %v1368
      %v1440 = vld.sshfl [vmem:[#allocation1] sm:$0xff pattern:$0x73625140]
      %v1441 = vld.sshfl [vmem:[#allocation1 + $0x20] sm:$0xff pattern:$0x73625140]
      %1442 = vst [vmem:[#allocation1] ss:$4 sm:$0xff] %v1305
      %1443 = vst [vmem:[%s1426] ss:$4 sm:$0xff] %v1306
      %1444 = vst [vmem:[%s1428] ss:$4 sm:$0xff] %v1369
      %1445 = vst [vmem:[%s1430] ss:$4 sm:$0xff] %v1370
      %1446 = vst [vmem:[%s1432] ss:$4 sm:$0xff] %v1371
      %1447 = vst [vmem:[%s1434] ss:$4 sm:$0xff] %v1307
      %1448 = vst [vmem:[%s1436] ss:$4 sm:$0xff] %v1372
      %1449 = vst [vmem:[%s1438] ss:$4 sm:$0xff] %v1373
      %v1450 = vld.sshfl [vmem:[#allocation1] sm:$0xff pattern:$0x73625140]
      %v1451 = vld.sshfl [vmem:[#allocation1 + $0x20] sm:$0xff pattern:$0x73625140]
      %1452 = vst [vmem:[#allocation1] ss:$4 sm:$0xff] %v1374
      %1453 = vst [vmem:[%s1426] ss:$4 sm:$0xff] %v1308
      %1454 = vst [vmem:[%s1428] ss:$4 sm:$0xff] %v1309
      %1455 = vst [vmem:[%s1430] ss:$4 sm:$0xff] %v1375
      %1456 = vst [vmem:[%s1432] ss:$4 sm:$0xff] %v1376
      %1457 = vst [vmem:[%s1434] ss:$4 sm:$0xff] %v1377
      %1458 = vst [vmem:[%s1436] ss:$4 sm:$0xff] %v1310
      %1459 = vst [vmem:[%s1438] ss:$4 sm:$0xff] %v1378
      %v1460 = vld.sshfl [vmem:[#allocation1] sm:$0xff pattern:$0x73625140]
      %v1461 = vld.sshfl [vmem:[#allocation1 + $0x20] sm:$0xff pattern:$0x73625140]
      %1462 = vst [vmem:[#allocation1] ss:$4 sm:$0xff] %v1379
      %1463 = vst [vmem:[%s1426] ss:$4 sm:$0xff] %v1380
      %1464 = vst [vmem:[%s1428] ss:$4 sm:$0xff] %v1311
      %1465 = vst [vmem:[%s1430] ss:$4 sm:$0xff] %v1312
      %1466 = vst [vmem:[%s1432] ss:$4 sm:$0xff] %v1381
      %1467 = vst [vmem:[%s1434] ss:$4 sm:$0xff] %v1382
      %1468 = vst [vmem:[%s1436] ss:$4 sm:$0xff] %v1383
      %1469 = vst [vmem:[%s1438] ss:$4 sm:$0xff] %v1313
      %v1470 = vld.sshfl [vmem:[#allocation1] sm:$0xff pattern:$0x73625140]
      %v1471 = vld.sshfl [vmem:[#allocation1 + $0x20] sm:$0xff pattern:$0x73625140]
      %1472 = vst [vmem:[#allocation1] ss:$4 sm:$0xff] %v1384
      %1473 = vst [vmem:[%s1426] ss:$4 sm:$0xff] %v1385
      %1474 = vst [vmem:[%s1428] ss:$4 sm:$0xff] %v1386
      %1475 = vst [vmem:[%s1430] ss:$4 sm:$0xff] %v1314
      %1476 = vst [vmem:[%s1432] ss:$4 sm:$0xff] %v1315
      %1477 = vst [vmem:[%s1434] ss:$4 sm:$0xff] %v1387
      %1478 = vst [vmem:[%s1436] ss:$4 sm:$0xff] %v1388
      %1479 = vst [vmem:[%s1438] ss:$4 sm:$0xff] %v1389
      %v1480 = vld.sshfl [vmem:[#allocation1] sm:$0xff pattern:$0x73625140]
      %v1481 = vld.sshfl [vmem:[#allocation1 + $0x20] sm:$0xff pattern:$0x73625140]
      %1482 = vst [vmem:[#allocation1] ss:$4 sm:$0xff] %v1316
      %1483 = vst [vmem:[%s1426] ss:$4 sm:$0xff] %v1390
      %1484 = vst [vmem:[%s1428] ss:$4 sm:$0xff] %v1391
      %1485 = vst [vmem:[%s1430] ss:$4 sm:$0xff] %v1392
      %1486 = vst [vmem:[%s1432] ss:$4 sm:$0xff] %v1317
      %1487 = vst [vmem:[%s1434] ss:$4 sm:$0xff] %v1318
      %1488 = vst [vmem:[%s1436] ss:$4 sm:$0xff] %v1393
      %1489 = vst [vmem:[%s1438] ss:$4 sm:$0xff] %v1394
      %v1490 = vld.sshfl [vmem:[#allocation1] sm:$0xff pattern:$0x73625140]
      %v1491 = vld.sshfl [vmem:[#allocation1 + $0x20] sm:$0xff pattern:$0x73625140]
      %1492 = vst [vmem:[#allocation1] ss:$4 sm:$0xff] %v1395
      %1493 = vst [vmem:[%s1426] ss:$4 sm:$0xff] %v1319
      %1494 = vst [vmem:[%s1428] ss:$4 sm:$0xff] %v1396
      %1495 = vst [vmem:[%s1430] ss:$4 sm:$0xff] %v1397
      %1496 = vst [vmem:[%s1432] ss:$4 sm:$0xff] %v1398
      %1497 = vst [vmem:[%s1434] ss:$4 sm:$0xff] %v1320
      %1498 = vst [vmem:[%s1436] ss:$4 sm:$0xff] %v1321
      %1499 = vst [vmem:[%s1438] ss:$4 sm:$0xff] %v1399
      %v1500 = vld.sshfl [vmem:[#allocation1] sm:$0xff pattern:$0x73625140]
      %v1501 = vld.sshfl [vmem:[#allocation1 + $0x20] sm:$0xff pattern:$0x73625140]
      %1502 = vst [vmem:[#allocation1] ss:$4 sm:$0xff] %v1400
      %1503 = vst [vmem:[%s1426] ss:$4 sm:$0xff] %v1401
      %1504 = vst [vmem:[%s1428] ss:$4 sm:$0xff] %v1322
      %1505 = vst [vmem:[%s1430] ss:$4 sm:$0xff] %v1402
      %1506 = vst [vmem:[%s1432] ss:$4 sm:$0xff] %v1403
      %1507 = vst [vmem:[%s1434] ss:$4 sm:$0xff] %v1404
      %1508 = vst [vmem:[%s1436] ss:$4 sm:$0xff] %v1323
      %1509 = vst [vmem:[%s1438] ss:$4 sm:$0xff] %v1324
      %v1510 = vld.sshfl [vmem:[#allocation1] sm:$0xff pattern:$0x73625140]
      %v1511 = vld.sshfl [vmem:[#allocation1 + $0x20] sm:$0xff pattern:$0x73625140]
      %1512 = vst [vmem:[#allocation1] ss:$4 sm:$0xff] %v1405
      %1513 = vst [vmem:[%s1426] ss:$4 sm:$0xff] %v1406
      %1514 = vst [vmem:[%s1428] ss:$4 sm:$0xff] %v1407
      %1515 = vst [vmem:[%s1430] ss:$4 sm:$0xff] %v1325
      %1516 = vst [vmem:[%s1432] ss:$4 sm:$0xff] %v1408
      %1517 = vst [vmem:[%s1434] ss:$4 sm:$0xff] %v1409
      %1518 = vst [vmem:[%s1436] ss:$4 sm:$0xff] %v1410
      %1519 = vst [vmem:[%s1438] ss:$4 sm:$0xff] %v1326
      %v1520 = vld.sshfl [vmem:[#allocation1] sm:$0xff pattern:$0x73625140]
      %v1521 = vld.sshfl [vmem:[#allocation1 + $0x20] sm:$0xff pattern:$0x73625140]
      %1522 = vst [vmem:[#allocation1] ss:$4 sm:$0xff] %v1327
      %1523 = vst [vmem:[%s1426] ss:$4 sm:$0xff] %v1411
      %1524 = vst [vmem:[%s1428] ss:$4 sm:$0xff] %v1412
      %1525 = vst [vmem:[%s1430] ss:$4 sm:$0xff] %v1413
      %1526 = vst [vmem:[%s1432] ss:$4 sm:$0xff] %v1328
      %1527 = vst [vmem:[%s1434] ss:$4 sm:$0xff] %v1414
      %1528 = vst [vmem:[%s1436] ss:$4 sm:$0xff] %v1415
      %1529 = vst [vmem:[%s1438] ss:$4 sm:$0xff] %v1416
      %v1530 = vld.sshfl [vmem:[#allocation1] sm:$0xff pattern:$0x73625140]
      %v1531 = vld.sshfl [vmem:[#allocation1 + $0x20] sm:$0xff pattern:$0x73625140]
      %1532 = vst [vmem:[#allocation1] ss:$4 sm:$0xff] %v1329
      %1533 = vst [vmem:[%s1426] ss:$4 sm:$0xff] %v1330
      %1534 = vst [vmem:[%s1428] ss:$4 sm:$0xff] %v1417
      %1535 = vst [vmem:[%s1430] ss:$4 sm:$0xff] %v1418
      %1536 = vst [vmem:[%s1432] ss:$4 sm:$0xff] %v1419
      %1537 = vst [vmem:[%s1434] ss:$4 sm:$0xff] %v1331
      %1538 = vst [vmem:[%s1436] ss:$4 sm:$0xff] %v1420
      %1539 = vst [vmem:[%s1438] ss:$4 sm:$0xff] %v1421
      %v1540 = vld.sshfl [vmem:[#allocation1] sm:$0xff pattern:$0x73625140]
      %v1541 = vld.sshfl [vmem:[#allocation1 + $0x20] sm:$0xff pattern:$0x73625140]
      %1542 = vst [vmem:[#allocation1] ss:$4 sm:$0xff] %v1422
      %1543 = vst [vmem:[%s1426] ss:$4 sm:$0xff] %v1332
      %v1544 = vld.sshfl [vmem:[#allocation1] sm:$0xff pattern:$0x73625140]
      %v1545 = vsel %vm506, %v1440, 0
      %v1547 = vsel %vm506, %v1441, 0
      %v1549 = vsel %vm506, %v1450, 0
      %v1551 = vsel %vm506, %v1451, 0
      %v1553 = vsel %vm506, %v1460, 0
      %v1555 = vsel %vm506, %v1461, 0
      %v1557 = vsel %vm506, %v1470, 0
      %v1559 = vsel %vm506, %v1471, 0
      %v1561 = vsel %vm506, %v1480, 0
      %v1563 = vsel %vm506, %v1481, 0
      %v1565 = vsel %vm506, %v1490, 0
      %v1567 = vsel %vm506, %v1491, 0
      %v1569 = vsel %vm506, %v1500, 0
      %v1571 = vsel %vm506, %v1501, 0
      %v1573 = vsel %vm506, %v1510, 0
      %v1575 = vsel %vm506, %v1511, 0
      %v1577 = vsel %vm506, %v1520, 0
      %v1579 = vsel %vm506, %v1521, 0
      %v1581 = vsel %vm506, %v1530, 0
      %v1583 = vsel %vm506, %v1531, 0
      %v1585 = vsel %vm506, %v1540, 0
      %v1587 = vsel %vm506, %v1541, 0
      %v1589 = vsel %vm506, %v1544, 0
      %v1592 = vsel %vm958, %v1424, 0
      %1594 = vmatpush.msra.mxu0 0.0
      %1595 = vmatpush.msra.mxu0 0.0
      %1596 = vmatpush.msra.mxu0 0.0
      %1597 = vmatpush.msra.mxu0 0.0
      %1598 = vmatpush.msra.mxu0 0.0
      %1599 = vmatpush.msra.mxu0 0.0
      %1600 = vmatpush.msra.mxu0 0.0
      %1601 = vmatpush.msra.mxu0 0.0
      %1602 = vmatpush.msra.mxu0 0.0
      %1603 = vmatpush.msra.mxu0 0.0
      %1604 = vmatpush.msra.mxu0 0.0
      %1605 = vmatpush.msra.mxu0 0.0
      %1606 = vmatpush.msra.mxu0 0.0
      %1607 = vmatpush.msra.mxu0 0.0
      %1608 = vmatpush.msra.mxu0 0.0
      %1609 = vmatpush.msra.mxu0 %v1592
      %1610 = vmatmul.f32.gmra.mxu0 %v1545
      %v1611 = vpop.f32.mrf.mxu0
      %v1612 = vadd.f32 0.0, %v1611
      %1613 = vmatmul.f32.gmra.mxu0 %v1547
      %v1614 = vpop.f32.mrf.mxu0
      %v1615 = vadd.f32 0.0, %v1614
      %1616 = vmatmul.f32.gmra.mxu0 %v1549
      %v1617 = vpop.f32.mrf.mxu0
      %v1618 = vadd.f32 0.0, %v1617
      %1619 = vmatmul.f32.gmra.mxu0 %v1551
      %v1620 = vpop.f32.mrf.mxu0
      %v1621 = vadd.f32 0.0, %v1620
      %1622 = vmatmul.f32.gmra.mxu0 %v1553
      %v1623 = vpop.f32.mrf.mxu0
      %v1624 = vadd.f32 0.0, %v1623
      %1625 = vmatmul.f32.gmra.mxu0 %v1555
      %v1626 = vpop.f32.mrf.mxu0
      %v1627 = vadd.f32 0.0, %v1626
      %1628 = vmatmul.f32.gmra.mxu0 %v1557
      %v1629 = vpop.f32.mrf.mxu0
      %v1630 = vadd.f32 0.0, %v1629
      %1631 = vmatmul.f32.gmra.mxu0 %v1559
      %v1632 = vpop.f32.mrf.mxu0
      %v1633 = vadd.f32 0.0, %v1632
      %1634 = vmatmul.f32.gmra.mxu0 %v1561
      %v1635 = vpop.f32.mrf.mxu0
      %v1636 = vadd.f32 0.0, %v1635
      %1637 = vmatmul.f32.gmra.mxu0 %v1563
      %v1638 = vpop.f32.mrf.mxu0
      %v1639 = vadd.f32 0.0, %v1638
      %1640 = vmatmul.f32.gmra.mxu0 %v1565
      %v1641 = vpop.f32.mrf.mxu0
      %v1642 = vadd.f32 0.0, %v1641
      %1643 = vmatmul.f32.gmra.mxu0 %v1567
      %v1644 = vpop.f32.mrf.mxu0
      %v1645 = vadd.f32 0.0, %v1644
      %1646 = vmatmul.f32.gmra.mxu0 %v1569
      %v1647 = vpop.f32.mrf.mxu0
      %v1648 = vadd.f32 0.0, %v1647
      %1649 = vmatmul.f32.gmra.mxu0 %v1571
      %v1650 = vpop.f32.mrf.mxu0
      %v1651 = vadd.f32 0.0, %v1650
      %1652 = vmatmul.f32.gmra.mxu0 %v1573
      %v1653 = vpop.f32.mrf.mxu0
      %v1654 = vadd.f32 0.0, %v1653
      %1655 = vmatmul.f32.gmra.mxu0 %v1575
      %v1656 = vpop.f32.mrf.mxu0
      %v1657 = vadd.f32 0.0, %v1656
      %1658 = vmatmul.f32.gmra.mxu0 %v1577
      %v1659 = vpop.f32.mrf.mxu0
      %v1660 = vadd.f32 0.0, %v1659
      %1661 = vmatmul.f32.gmra.mxu0 %v1579
      %v1662 = vpop.f32.mrf.mxu0
      %v1663 = vadd.f32 0.0, %v1662
      %1664 = vmatmul.f32.gmra.mxu0 %v1581
      %v1665 = vpop.f32.mrf.mxu0
      %v1666 = vadd.f32 0.0, %v1665
      %1667 = vmatmul.f32.gmra.mxu0 %v1583
      %v1668 = vpop.f32.mrf.mxu0
      %v1669 = vadd.f32 0.0, %v1668
      %1670 = vmatmul.f32.gmra.mxu0 %v1585
      %v1671 = vpop.f32.mrf.mxu0
      %v1672 = vadd.f32 0.0, %v1671
      %1673 = vmatmul.f32.gmra.mxu0 %v1587
      %v1674 = vpop.f32.mrf.mxu0
      %v1675 = vadd.f32 0.0, %v1674
      %1676 = vmatmul.f32.gmra.mxu0 %v1589
      %v1677 = vpop.f32.mrf.mxu0
      %v1678 = vadd.f32 0.0, %v1677
      %1679 = vdwg.mxu0
      %v1680 = vadd.f32 %v1235, %v1612
      %v1681 = vadd.f32 %v1238, %v1615
      %v1682 = vadd.f32 %v1241, %v1618
      %v1683 = vadd.f32 %v1244, %v1621
      %v1684 = vadd.f32 %v1247, %v1624
      %v1685 = vadd.f32 %v1250, %v1627
      %v1686 = vadd.f32 %v1253, %v1630
      %v1687 = vadd.f32 %v1256, %v1633
      %v1688 = vadd.f32 %v1259, %v1636
      %v1689 = vadd.f32 %v1262, %v1639
      %v1690 = vadd.f32 %v1265, %v1642
      %v1691 = vadd.f32 %v1268, %v1645
      %v1692 = vadd.f32 %v1271, %v1648
      %v1693 = vadd.f32 %v1274, %v1651
      %v1694 = vadd.f32 %v1277, %v1654
      %v1695 = vadd.f32 %v1280, %v1657
      %v1696 = vadd.f32 %v1283, %v1660
      %v1697 = vadd.f32 %v1286, %v1663
      %v1698 = vadd.f32 %v1289, %v1666
      %v1699 = vadd.f32 %v1292, %v1669
      %v1700 = vadd.f32 %v1295, %v1672
      %v1701 = vadd.f32 %v1298, %v1675
      %v1702 = vadd.f32 %v1301, %v1678
      %s1703 = scalar_lea.vmem [#allocation2], 24
      %v1704 = vld [vmem:[%s1703] sm:$0xff]
      %v1705 = vld [vmem:[%s1703 + $0x8] sm:$0xff]
      %v1706 = vld [vmem:[%s1703 + $0x10] sm:$0x3]
      %v1707 = vld [vmem:[%s1703 + $0x18] sm:$0xff]
      %v1708 = vld [vmem:[%s1703 + $0x20] sm:$0xff]
      %v1709 = vld [vmem:[%s1703 + $0x28] sm:$0x3]
      %v1710 = vld [vmem:[%s1703 + $0x30] sm:$0xff]
      %v1711 = vld [vmem:[%s1703 + $0x38] sm:$0xff]
      %v1712 = vld [vmem:[%s1703 + $0x40] sm:$0x3]
      %v1713 = vld [vmem:[%s1703 + $0x48] sm:$0xff]
      %v1714 = vld [vmem:[%s1703 + $0x50] sm:$0xff]
      %v1715 = vld [vmem:[%s1703 + $0x58] sm:$0x3]
      %v1716 = vld [vmem:[%s1703 + $0x60] sm:$0xff]
      %v1717 = vld [vmem:[%s1703 + $0x68] sm:$0xff]
      %v1718 = vld [vmem:[%s1703 + $0x70] sm:$0x3]
      %v1719 = vld [vmem:[%s1703 + $0x78] sm:$0xff]
      %v1720 = vld [vmem:[%s1703 + $0x80] sm:$0xff]
      %v1721 = vld [vmem:[%s1703 + $0x88] sm:$0x3]
      %v1722 = vld [vmem:[%s1703 + $0x90] sm:$0xff]
      %v1723 = vld [vmem:[%s1703 + $0x98] sm:$0xff]
      %v1724 = vld [vmem:[%s1703 + $0xa0] sm:$0x3]
      %v1725 = vld [vmem:[%s1703 + $0xa8] sm:$0xff]
      %v1726 = vld [vmem:[%s1703 + $0xb0] sm:$0xff]
      %v1727 = vld [vmem:[%s1703 + $0xb8] sm:$0x3]
      %v1728 = vld [vmem:[%s1703 + $0xc0] sm:$0xff]
      %v1729 = vld [vmem:[%s1703 + $0xc8] sm:$0xff]
      %v1730 = vld [vmem:[%s1703 + $0xd0] sm:$0x3]
      %v1731 = vld [vmem:[%s1703 + $0xd8] sm:$0xff]
      %v1732 = vld [vmem:[%s1703 + $0xe0] sm:$0xff]
      %v1733 = vld [vmem:[%s1703 + $0xe8] sm:$0x3]
      %v1764 = vrot.slane %v1704, 2
      %v1765 = vrot.slane %v1704, 4
      %v1766 = vrot.slane %v1704, 6
      %v1767 = vrot.slane %v1705, 2
      %v1768 = vrot.slane %v1705, 4
      %v1769 = vrot.slane %v1705, 6
      %v1770 = vrot.slane %v1707, 2
      %v1771 = vrot.slane %v1707, 4
      %v1772 = vrot.slane %v1707, 6
      %v1773 = vrot.slane %v1708, 2
      %v1774 = vrot.slane %v1708, 4
      %v1775 = vrot.slane %v1708, 6
      %v1776 = vrot.slane %v1710, 2
      %v1777 = vrot.slane %v1710, 4
      %v1778 = vrot.slane %v1710, 6
      %v1779 = vrot.slane %v1711, 2
      %v1780 = vrot.slane %v1711, 4
      %v1781 = vrot.slane %v1711, 6
      %v1782 = vrot.slane %v1713, 2
      %v1783 = vrot.slane %v1713, 4
      %v1784 = vrot.slane %v1713, 6
      %v1785 = vrot.slane %v1714, 2
      %v1786 = vrot.slane %v1714, 4
      %v1787 = vrot.slane %v1714, 6
      %v1788 = vrot.slane %v1716, 2
      %v1789 = vrot.slane %v1716, 4
      %v1790 = vrot.slane %v1716, 6
      %v1791 = vrot.slane %v1717, 2
      %v1792 = vrot.slane %v1717, 4
      %v1793 = vrot.slane %v1717, 6
      %v1794 = vrot.slane %v1719, 2
      %v1795 = vrot.slane %v1719, 4
      %v1796 = vrot.slane %v1719, 6
      %v1797 = vrot.slane %v1720, 2
      %v1798 = vrot.slane %v1720, 4
      %v1799 = vrot.slane %v1720, 6
      %v1800 = vrot.slane %v1722, 2
      %v1801 = vrot.slane %v1722, 4
      %v1802 = vrot.slane %v1722, 6
      %v1803 = vrot.slane %v1723, 2
      %v1804 = vrot.slane %v1723, 4
      %v1805 = vrot.slane %v1723, 6
      %v1806 = vrot.slane %v1725, 2
      %v1807 = vrot.slane %v1725, 4
      %v1808 = vrot.slane %v1725, 6
      %v1809 = vrot.slane %v1726, 2
      %v1810 = vrot.slane %v1726, 4
      %v1811 = vrot.slane %v1726, 6
      %v1812 = vrot.slane %v1728, 2
      %v1813 = vrot.slane %v1728, 4
      %v1814 = vrot.slane %v1728, 6
      %v1815 = vrot.slane %v1729, 2
      %v1816 = vrot.slane %v1729, 4
      %v1817 = vrot.slane %v1729, 6
      %v1818 = vrot.slane %v1731, 2
      %v1819 = vrot.slane %v1731, 4
      %v1820 = vrot.slane %v1731, 6
      %v1821 = vrot.slane %v1732, 2
      %v1822 = vrot.slane %v1732, 4
      %v1823 = vrot.slane %v1732, 6
      %s1824 = scalar_lea.vmem %s3, 12
      %v1825 = vld [vmem:[%s1824] sm:$0xf]
      %1826 = vst [vmem:[#allocation1] ss:$4 sm:$0xff] %v1704
      %s1827 = scalar_lea.vmem [#allocation1], 1
      %1828 = vst [vmem:[%s1827] ss:$4 sm:$0xff] %v1764
      %s1829 = scalar_lea.vmem [#allocation1], 2
      %1830 = vst [vmem:[%s1829] ss:$4 sm:$0xff] %v1765
      %s1831 = scalar_lea.vmem [#allocation1], 3
      %1832 = vst [vmem:[%s1831] ss:$4 sm:$0xff] %v1766
      %s1833 = scalar_lea.vmem [#allocation1], 32
      %1834 = vst [vmem:[%s1833] ss:$4 sm:$0xff] %v1705
      %s1835 = scalar_lea.vmem [#allocation1], 33
      %1836 = vst [vmem:[%s1835] ss:$4 sm:$0xff] %v1767
      %s1837 = scalar_lea.vmem [#allocation1], 34
      %1838 = vst [vmem:[%s1837] ss:$4 sm:$0xff] %v1768
      %s1839 = scalar_lea.vmem [#allocation1], 35
      %1840 = vst [vmem:[%s1839] ss:$4 sm:$0xff] %v1769
      %v1841 = vld.sshfl [vmem:[#allocation1] sm:$0xff pattern:$0x73625140]
      %v1842 = vld.sshfl [vmem:[#allocation1 + $0x20] sm:$0xff pattern:$0x73625140]
      %1843 = vst [vmem:[#allocation1] ss:$4 sm:$0xff] %v1706
      %1844 = vst [vmem:[%s1827] ss:$4 sm:$0xff] %v1707
      %1845 = vst [vmem:[%s1829] ss:$4 sm:$0xff] %v1770
      %1846 = vst [vmem:[%s1831] ss:$4 sm:$0xff] %v1771
      %1847 = vst [vmem:[%s1833] ss:$4 sm:$0xff] %v1772
      %1848 = vst [vmem:[%s1835] ss:$4 sm:$0xff] %v1708
      %1849 = vst [vmem:[%s1837] ss:$4 sm:$0xff] %v1773
      %1850 = vst [vmem:[%s1839] ss:$4 sm:$0xff] %v1774
      %v1851 = vld.sshfl [vmem:[#allocation1] sm:$0xff pattern:$0x73625140]
      %v1852 = vld.sshfl [vmem:[#allocation1 + $0x20] sm:$0xff pattern:$0x73625140]
      %1853 = vst [vmem:[#allocation1] ss:$4 sm:$0xff] %v1775
      %1854 = vst [vmem:[%s1827] ss:$4 sm:$0xff] %v1709
      %1855 = vst [vmem:[%s1829] ss:$4 sm:$0xff] %v1710
      %1856 = vst [vmem:[%s1831] ss:$4 sm:$0xff] %v1776
      %1857 = vst [vmem:[%s1833] ss:$4 sm:$0xff] %v1777
      %1858 = vst [vmem:[%s1835] ss:$4 sm:$0xff] %v1778
      %1859 = vst [vmem:[%s1837] ss:$4 sm:$0xff] %v1711
      %1860 = vst [vmem:[%s1839] ss:$4 sm:$0xff] %v1779
      %v1861 = vld.sshfl [vmem:[#allocation1] sm:$0xff pattern:$0x73625140]
      %v1862 = vld.sshfl [vmem:[#allocation1 + $0x20] sm:$0xff pattern:$0x73625140]
      %1863 = vst [vmem:[#allocation1] ss:$4 sm:$0xff] %v1780
      %1864 = vst [vmem:[%s1827] ss:$4 sm:$0xff] %v1781
      %1865 = vst [vmem:[%s1829] ss:$4 sm:$0xff] %v1712
      %1866 = vst [vmem:[%s1831] ss:$4 sm:$0xff] %v1713
      %1867 = vst [vmem:[%s1833] ss:$4 sm:$0xff] %v1782
      %1868 = vst [vmem:[%s1835] ss:$4 sm:$0xff] %v1783
      %1869 = vst [vmem:[%s1837] ss:$4 sm:$0xff] %v1784
      %1870 = vst [vmem:[%s1839] ss:$4 sm:$0xff] %v1714
      %v1871 = vld.sshfl [vmem:[#allocation1] sm:$0xff pattern:$0x73625140]
      %v1872 = vld.sshfl [vmem:[#allocation1 + $0x20] sm:$0xff pattern:$0x73625140]
      %1873 = vst [vmem:[#allocation1] ss:$4 sm:$0xff] %v1785
      %1874 = vst [vmem:[%s1827] ss:$4 sm:$0xff] %v1786
      %1875 = vst [vmem:[%s1829] ss:$4 sm:$0xff] %v1787
      %1876 = vst [vmem:[%s1831] ss:$4 sm:$0xff] %v1715
      %1877 = vst [vmem:[%s1833] ss:$4 sm:$0xff] %v1716
      %1878 = vst [vmem:[%s1835] ss:$4 sm:$0xff] %v1788
      %1879 = vst [vmem:[%s1837] ss:$4 sm:$0xff] %v1789
      %1880 = vst [vmem:[%s1839] ss:$4 sm:$0xff] %v1790
      %v1881 = vld.sshfl [vmem:[#allocation1] sm:$0xff pattern:$0x73625140]
      %v1882 = vld.sshfl [vmem:[#allocation1 + $0x20] sm:$0xff pattern:$0x73625140]
      %1883 = vst [vmem:[#allocation1] ss:$4 sm:$0xff] %v1717
      %1884 = vst [vmem:[%s1827] ss:$4 sm:$0xff] %v1791
      %1885 = vst [vmem:[%s1829] ss:$4 sm:$0xff] %v1792
      %1886 = vst [vmem:[%s1831] ss:$4 sm:$0xff] %v1793
      %1887 = vst [vmem:[%s1833] ss:$4 sm:$0xff] %v1718
      %1888 = vst [vmem:[%s1835] ss:$4 sm:$0xff] %v1719
      %1889 = vst [vmem:[%s1837] ss:$4 sm:$0xff] %v1794
      %1890 = vst [vmem:[%s1839] ss:$4 sm:$0xff] %v1795
      %v1891 = vld.sshfl [vmem:[#allocation1] sm:$0xff pattern:$0x73625140]
      %v1892 = vld.sshfl [vmem:[#allocation1 + $0x20] sm:$0xff pattern:$0x73625140]
      %1893 = vst [vmem:[#allocation1] ss:$4 sm:$0xff] %v1796
      %1894 = vst [vmem:[%s1827] ss:$4 sm:$0xff] %v1720
      %1895 = vst [vmem:[%s1829] ss:$4 sm:$0xff] %v1797
      %1896 = vst [vmem:[%s1831] ss:$4 sm:$0xff] %v1798
      %1897 = vst [vmem:[%s1833] ss:$4 sm:$0xff] %v1799
      %1898 = vst [vmem:[%s1835] ss:$4 sm:$0xff] %v1721
      %1899 = vst [vmem:[%s1837] ss:$4 sm:$0xff] %v1722
      %1900 = vst [vmem:[%s1839] ss:$4 sm:$0xff] %v1800
      %v1901 = vld.sshfl [vmem:[#allocation1] sm:$0xff pattern:$0x73625140]
      %v1902 = vld.sshfl [vmem:[#allocation1 + $0x20] sm:$0xff pattern:$0x73625140]
      %1903 = vst [vmem:[#allocation1] ss:$4 sm:$0xff] %v1801
      %1904 = vst [vmem:[%s1827] ss:$4 sm:$0xff] %v1802
      %1905 = vst [vmem:[%s1829] ss:$4 sm:$0xff] %v1723
      %1906 = vst [vmem:[%s1831] ss:$4 sm:$0xff] %v1803
      %1907 = vst [vmem:[%s1833] ss:$4 sm:$0xff] %v1804
      %1908 = vst [vmem:[%s1835] ss:$4 sm:$0xff] %v1805
      %1909 = vst [vmem:[%s1837] ss:$4 sm:$0xff] %v1724
      %1910 = vst [vmem:[%s1839] ss:$4 sm:$0xff] %v1725
      %v1911 = vld.sshfl [vmem:[#allocation1] sm:$0xff pattern:$0x73625140]
      %v1912 = vld.sshfl [vmem:[#allocation1 + $0x20] sm:$0xff pattern:$0x73625140]
      %1913 = vst [vmem:[#allocation1] ss:$4 sm:$0xff] %v1806
      %1914 = vst [vmem:[%s1827] ss:$4 sm:$0xff] %v1807
      %1915 = vst [vmem:[%s1829] ss:$4 sm:$0xff] %v1808
      %1916 = vst [vmem:[%s1831] ss:$4 sm:$0xff] %v1726
      %1917 = vst [vmem:[%s1833] ss:$4 sm:$0xff] %v1809
      %1918 = vst [vmem:[%s1835] ss:$4 sm:$0xff] %v1810
      %1919 = vst [vmem:[%s1837] ss:$4 sm:$0xff] %v1811
      %1920 = vst [vmem:[%s1839] ss:$4 sm:$0xff] %v1727
      %v1921 = vld.sshfl [vmem:[#allocation1] sm:$0xff pattern:$0x73625140]
      %v1922 = vld.sshfl [vmem:[#allocation1 + $0x20] sm:$0xff pattern:$0x73625140]
      %1923 = vst [vmem:[#allocation1] ss:$4 sm:$0xff] %v1728
      %1924 = vst [vmem:[%s1827] ss:$4 sm:$0xff] %v1812
      %1925 = vst [vmem:[%s1829] ss:$4 sm:$0xff] %v1813
      %1926 = vst [vmem:[%s1831] ss:$4 sm:$0xff] %v1814
      %1927 = vst [vmem:[%s1833] ss:$4 sm:$0xff] %v1729
      %1928 = vst [vmem:[%s1835] ss:$4 sm:$0xff] %v1815
      %1929 = vst [vmem:[%s1837] ss:$4 sm:$0xff] %v1816
      %1930 = vst [vmem:[%s1839] ss:$4 sm:$0xff] %v1817
      %v1931 = vld.sshfl [vmem:[#allocation1] sm:$0xff pattern:$0x73625140]
      %v1932 = vld.sshfl [vmem:[#allocation1 + $0x20] sm:$0xff pattern:$0x73625140]
      %1933 = vst [vmem:[#allocation1] ss:$4 sm:$0xff] %v1730
      %1934 = vst [vmem:[%s1827] ss:$4 sm:$0xff] %v1731
      %1935 = vst [vmem:[%s1829] ss:$4 sm:$0xff] %v1818
      %1936 = vst [vmem:[%s1831] ss:$4 sm:$0xff] %v1819
      %1937 = vst [vmem:[%s1833] ss:$4 sm:$0xff] %v1820
      %1938 = vst [vmem:[%s1835] ss:$4 sm:$0xff] %v1732
      %1939 = vst [vmem:[%s1837] ss:$4 sm:$0xff] %v1821
      %1940 = vst [vmem:[%s1839] ss:$4 sm:$0xff] %v1822
      %v1941 = vld.sshfl [vmem:[#allocation1] sm:$0xff pattern:$0x73625140]
      %v1942 = vld.sshfl [vmem:[#allocation1 + $0x20] sm:$0xff pattern:$0x73625140]
      %1943 = vst [vmem:[#allocation1] ss:$4 sm:$0xff] %v1823
      %1944 = vst [vmem:[%s1827] ss:$4 sm:$0xff] %v1733
      %v1945 = vld.sshfl [vmem:[#allocation1] sm:$0xff pattern:$0x73625140]
      %v1946 = vsel %vm506, %v1841, 0
      %v1948 = vsel %vm506, %v1842, 0
      %v1950 = vsel %vm506, %v1851, 0
      %v1952 = vsel %vm506, %v1852, 0
      %v1954 = vsel %vm506, %v1861, 0
      %v1956 = vsel %vm506, %v1862, 0
      %v1958 = vsel %vm506, %v1871, 0
      %v1960 = vsel %vm506, %v1872, 0
      %v1962 = vsel %vm506, %v1881, 0
      %v1964 = vsel %vm506, %v1882, 0
      %v1966 = vsel %vm506, %v1891, 0
      %v1968 = vsel %vm506, %v1892, 0
      %v1970 = vsel %vm506, %v1901, 0
      %v1972 = vsel %vm506, %v1902, 0
      %v1974 = vsel %vm506, %v1911, 0
      %v1976 = vsel %vm506, %v1912, 0
      %v1978 = vsel %vm506, %v1921, 0
      %v1980 = vsel %vm506, %v1922, 0
      %v1982 = vsel %vm506, %v1931, 0
      %v1984 = vsel %vm506, %v1932, 0
      %v1986 = vsel %vm506, %v1941, 0
      %v1988 = vsel %vm506, %v1942, 0
      %v1990 = vsel %vm506, %v1945, 0
      %v1993 = vsel %vm958, %v1825, 0
      %1995 = vmatpush.msra.mxu0 0.0
      %1996 = vmatpush.msra.mxu0 0.0
      %1997 = vmatpush.msra.mxu0 0.0
      %1998 = vmatpush.msra.mxu0 0.0
      %1999 = vmatpush.msra.mxu0 0.0
      %2000 = vmatpush.msra.mxu0 0.0
      %2001 = vmatpush.msra.mxu0 0.0
      %2002 = vmatpush.msra.mxu0 0.0
      %2003 = vmatpush.msra.mxu0 0.0
      %2004 = vmatpush.msra.mxu0 0.0
      %2005 = vmatpush.msra.mxu0 0.0
      %2006 = vmatpush.msra.mxu0 0.0
      %2007 = vmatpush.msra.mxu0 0.0
      %2008 = vmatpush.msra.mxu0 0.0
      %2009 = vmatpush.msra.mxu0 0.0
      %2010 = vmatpush.msra.mxu0 %v1993
      %2011 = vmatmul.f32.gmra.mxu0 %v1946
      %v2012 = vpop.f32.mrf.mxu0
      %v2013 = vadd.f32 0.0, %v2012
      %2014 = vmatmul.f32.gmra.mxu0 %v1948
      %v2015 = vpop.f32.mrf.mxu0
      %v2016 = vadd.f32 0.0, %v2015
      %2017 = vmatmul.f32.gmra.mxu0 %v1950
      %v2018 = vpop.f32.mrf.mxu0
      %v2019 = vadd.f32 0.0, %v2018
      %2020 = vmatmul.f32.gmra.mxu0 %v1952
      %v2021 = vpop.f32.mrf.mxu0
      %v2022 = vadd.f32 0.0, %v2021
      %2023 = vmatmul.f32.gmra.mxu0 %v1954
      %v2024 = vpop.f32.mrf.mxu0
      %v2025 = vadd.f32 0.0, %v2024
      %2026 = vmatmul.f32.gmra.mxu0 %v1956
      %v2027 = vpop.f32.mrf.mxu0
      %v2028 = vadd.f32 0.0, %v2027
      %2029 = vmatmul.f32.gmra.mxu0 %v1958
      %v2030 = vpop.f32.mrf.mxu0
      %v2031 = vadd.f32 0.0, %v2030
      %2032 = vmatmul.f32.gmra.mxu0 %v1960
      %v2033 = vpop.f32.mrf.mxu0
      %v2034 = vadd.f32 0.0, %v2033
      %2035 = vmatmul.f32.gmra.mxu0 %v1962
      %v2036 = vpop.f32.mrf.mxu0
      %v2037 = vadd.f32 0.0, %v2036
      %2038 = vmatmul.f32.gmra.mxu0 %v1964
      %v2039 = vpop.f32.mrf.mxu0
      %v2040 = vadd.f32 0.0, %v2039
      %2041 = vmatmul.f32.gmra.mxu0 %v1966
      %v2042 = vpop.f32.mrf.mxu0
      %v2043 = vadd.f32 0.0, %v2042
      %2044 = vmatmul.f32.gmra.mxu0 %v1968
      %v2045 = vpop.f32.mrf.mxu0
      %v2046 = vadd.f32 0.0, %v2045
      %2047 = vmatmul.f32.gmra.mxu0 %v1970
      %v2048 = vpop.f32.mrf.mxu0
      %v2049 = vadd.f32 0.0, %v2048
      %2050 = vmatmul.f32.gmra.mxu0 %v1972
      %v2051 = vpop.f32.mrf.mxu0
      %v2052 = vadd.f32 0.0, %v2051
      %2053 = vmatmul.f32.gmra.mxu0 %v1974
      %v2054 = vpop.f32.mrf.mxu0
      %v2055 = vadd.f32 0.0, %v2054
      %2056 = vmatmul.f32.gmra.mxu0 %v1976
      %v2057 = vpop.f32.mrf.mxu0
      %v2058 = vadd.f32 0.0, %v2057
      %2059 = vmatmul.f32.gmra.mxu0 %v1978
      %v2060 = vpop.f32.mrf.mxu0
      %v2061 = vadd.f32 0.0, %v2060
      %2062 = vmatmul.f32.gmra.mxu0 %v1980
      %v2063 = vpop.f32.mrf.mxu0
      %v2064 = vadd.f32 0.0, %v2063
      %2065 = vmatmul.f32.gmra.mxu0 %v1982
      %v2066 = vpop.f32.mrf.mxu0
      %v2067 = vadd.f32 0.0, %v2066
      %2068 = vmatmul.f32.gmra.mxu0 %v1984
      %v2069 = vpop.f32.mrf.mxu0
      %v2070 = vadd.f32 0.0, %v2069
      %2071 = vmatmul.f32.gmra.mxu0 %v1986
      %v2072 = vpop.f32.mrf.mxu0
      %v2073 = vadd.f32 0.0, %v2072
      %2074 = vmatmul.f32.gmra.mxu0 %v1988
      %v2075 = vpop.f32.mrf.mxu0
      %v2076 = vadd.f32 0.0, %v2075
      %2077 = vmatmul.f32.gmra.mxu0 %v1990
      %v2078 = vpop.f32.mrf.mxu0
      %v2079 = vadd.f32 0.0, %v2078
      %2080 = vdwg.mxu0
      %v2081 = vadd.f32 %v1680, %v2013
      %v2082 = vadd.f32 %v1681, %v2016
      %v2083 = vadd.f32 %v1682, %v2019
      %v2084 = vadd.f32 %v1683, %v2022
      %v2085 = vadd.f32 %v1684, %v2025
      %v2086 = vadd.f32 %v1685, %v2028
      %v2087 = vadd.f32 %v1686, %v2031
      %v2088 = vadd.f32 %v1687, %v2034
      %v2089 = vadd.f32 %v1688, %v2037
      %v2090 = vadd.f32 %v1689, %v2040
      %v2091 = vadd.f32 %v1690, %v2043
      %v2092 = vadd.f32 %v1691, %v2046
      %v2093 = vadd.f32 %v1692, %v2049
      %v2094 = vadd.f32 %v1693, %v2052
      %v2095 = vadd.f32 %v1694, %v2055
      %v2096 = vadd.f32 %v1695, %v2058
      %v2097 = vadd.f32 %v1696, %v2061
      %v2098 = vadd.f32 %v1697, %v2064
      %v2099 = vadd.f32 %v1698, %v2067
      %v2100 = vadd.f32 %v1699, %v2070
      %v2101 = vadd.f32 %v1700, %v2073
      %v2102 = vadd.f32 %v1701, %v2076
      %v2103 = vadd.f32 %v1702, %v2079
      %v2104 = vld [vmem:[%s1703 + $0x1] sm:$0xff]
      %v2105 = vld [vmem:[%s1703 + $0x9] sm:$0xff]
      %v2106 = vld [vmem:[%s1703 + $0x11] sm:$0x3]
      %v2107 = vld [vmem:[%s1703 + $0x19] sm:$0xff]
      %v2108 = vld [vmem:[%s1703 + $0x21] sm:$0xff]
      %v2109 = vld [vmem:[%s1703 + $0x29] sm:$0x3]
      %v2110 = vld [vmem:[%s1703 + $0x31] sm:$0xff]
      %v2111 = vld [vmem:[%s1703 + $0x39] sm:$0xff]
      %v2112 = vld [vmem:[%s1703 + $0x41] sm:$0x3]
      %v2113 = vld [vmem:[%s1703 + $0x49] sm:$0xff]
      %v2114 = vld [vmem:[%s1703 + $0x51] sm:$0xff]
      %v2115 = vld [vmem:[%s1703 + $0x59] sm:$0x3]
      %v2116 = vld [vmem:[%s1703 + $0x61] sm:$0xff]
      %v2117 = vld [vmem:[%s1703 + $0x69] sm:$0xff]
      %v2118 = vld [vmem:[%s1703 + $0x71] sm:$0x3]
      %v2119 = vld [vmem:[%s1703 + $0x79] sm:$0xff]
      %v2120 = vld [vmem:[%s1703 + $0x81] sm:$0xff]
      %v2121 = vld [vmem:[%s1703 + $0x89] sm:$0x3]
      %v2122 = vld [vmem:[%s1703 + $0x91] sm:$0xff]
      %v2123 = vld [vmem:[%s1703 + $0x99] sm:$0xff]
      %v2124 = vld [vmem:[%s1703 + $0xa1] sm:$0x3]
      %v2125 = vld [vmem:[%s1703 + $0xa9] sm:$0xff]
      %v2126 = vld [vmem:[%s1703 + $0xb1] sm:$0xff]
      %v2127 = vld [vmem:[%s1703 + $0xb9] sm:$0x3]
      %v2128 = vld [vmem:[%s1703 + $0xc1] sm:$0xff]
      %v2129 = vld [vmem:[%s1703 + $0xc9] sm:$0xff]
      %v2130 = vld [vmem:[%s1703 + $0xd1] sm:$0x3]
      %v2131 = vld [vmem:[%s1703 + $0xd9] sm:$0xff]
      %v2132 = vld [vmem:[%s1703 + $0xe1] sm:$0xff]
      %v2133 = vld [vmem:[%s1703 + $0xe9] sm:$0x3]
      %v2164 = vrot.slane %v2104, 2
      %v2165 = vrot.slane %v2104, 4
      %v2166 = vrot.slane %v2104, 6
      %v2167 = vrot.slane %v2105, 2
      %v2168 = vrot.slane %v2105, 4
      %v2169 = vrot.slane %v2105, 6
      %v2170 = vrot.slane %v2107, 2
      %v2171 = vrot.slane %v2107, 4
      %v2172 = vrot.slane %v2107, 6
      %v2173 = vrot.slane %v2108, 2
      %v2174 = vrot.slane %v2108, 4
      %v2175 = vrot.slane %v2108, 6
      %v2176 = vrot.slane %v2110, 2
      %v2177 = vrot.slane %v2110, 4
      %v2178 = vrot.slane %v2110, 6
      %v2179 = vrot.slane %v2111, 2
      %v2180 = vrot.slane %v2111, 4
      %v2181 = vrot.slane %v2111, 6
      %v2182 = vrot.slane %v2113, 2
      %v2183 = vrot.slane %v2113, 4
      %v2184 = vrot.slane %v2113, 6
      %v2185 = vrot.slane %v2114, 2
      %v2186 = vrot.slane %v2114, 4
      %v2187 = vrot.slane %v2114, 6
      %v2188 = vrot.slane %v2116, 2
      %v2189 = vrot.slane %v2116, 4
      %v2190 = vrot.slane %v2116, 6
      %v2191 = vrot.slane %v2117, 2
      %v2192 = vrot.slane %v2117, 4
      %v2193 = vrot.slane %v2117, 6
      %v2194 = vrot.slane %v2119, 2
      %v2195 = vrot.slane %v2119, 4
      %v2196 = vrot.slane %v2119, 6
      %v2197 = vrot.slane %v2120, 2
      %v2198 = vrot.slane %v2120, 4
      %v2199 = vrot.slane %v2120, 6
      %v2200 = vrot.slane %v2122, 2
      %v2201 = vrot.slane %v2122, 4
      %v2202 = vrot.slane %v2122, 6
      %v2203 = vrot.slane %v2123, 2
      %v2204 = vrot.slane %v2123, 4
      %v2205 = vrot.slane %v2123, 6
      %v2206 = vrot.slane %v2125, 2
      %v2207 = vrot.slane %v2125, 4
      %v2208 = vrot.slane %v2125, 6
      %v2209 = vrot.slane %v2126, 2
      %v2210 = vrot.slane %v2126, 4
      %v2211 = vrot.slane %v2126, 6
      %v2212 = vrot.slane %v2128, 2
      %v2213 = vrot.slane %v2128, 4
      %v2214 = vrot.slane %v2128, 6
      %v2215 = vrot.slane %v2129, 2
      %v2216 = vrot.slane %v2129, 4
      %v2217 = vrot.slane %v2129, 6
      %v2218 = vrot.slane %v2131, 2
      %v2219 = vrot.slane %v2131, 4
      %v2220 = vrot.slane %v2131, 6
      %v2221 = vrot.slane %v2132, 2
      %v2222 = vrot.slane %v2132, 4
      %v2223 = vrot.slane %v2132, 6
      %s2224 = scalar_lea.vmem %s3, 16
      %v2225 = vld [vmem:[%s2224] sm:$0xf]
      %2226 = vst [vmem:[#allocation1] ss:$4 sm:$0xff] %v2104
      %s2227 = scalar_lea.vmem [#allocation1], 1
      %2228 = vst [vmem:[%s2227] ss:$4 sm:$0xff] %v2164
      %s2229 = scalar_lea.vmem [#allocation1], 2
      %2230 = vst [vmem:[%s2229] ss:$4 sm:$0xff] %v2165
      %s2231 = scalar_lea.vmem [#allocation1], 3
      %2232 = vst [vmem:[%s2231] ss:$4 sm:$0xff] %v2166
      %s2233 = scalar_lea.vmem [#allocation1], 32
      %2234 = vst [vmem:[%s2233] ss:$4 sm:$0xff] %v2105
      %s2235 = scalar_lea.vmem [#allocation1], 33
      %2236 = vst [vmem:[%s2235] ss:$4 sm:$0xff] %v2167
      %s2237 = scalar_lea.vmem [#allocation1], 34
      %2238 = vst [vmem:[%s2237] ss:$4 sm:$0xff] %v2168
      %s2239 = scalar_lea.vmem [#allocation1], 35
      %2240 = vst [vmem:[%s2239] ss:$4 sm:$0xff] %v2169
      %v2241 = vld.sshfl [vmem:[#allocation1] sm:$0xff pattern:$0x73625140]
      %v2242 = vld.sshfl [vmem:[#allocation1 + $0x20] sm:$0xff pattern:$0x73625140]
      %2243 = vst [vmem:[#allocation1] ss:$4 sm:$0xff] %v2106
      %2244 = vst [vmem:[%s2227] ss:$4 sm:$0xff] %v2107
      %2245 = vst [vmem:[%s2229] ss:$4 sm:$0xff] %v2170
      %2246 = vst [vmem:[%s2231] ss:$4 sm:$0xff] %v2171
      %2247 = vst [vmem:[%s2233] ss:$4 sm:$0xff] %v2172
      %2248 = vst [vmem:[%s2235] ss:$4 sm:$0xff] %v2108
      %2249 = vst [vmem:[%s2237] ss:$4 sm:$0xff] %v2173
      %2250 = vst [vmem:[%s2239] ss:$4 sm:$0xff] %v2174
      %v2251 = vld.sshfl [vmem:[#allocation1] sm:$0xff pattern:$0x73625140]
      %v2252 = vld.sshfl [vmem:[#allocation1 + $0x20] sm:$0xff pattern:$0x73625140]
      %2253 = vst [vmem:[#allocation1] ss:$4 sm:$0xff] %v2175
      %2254 = vst [vmem:[%s2227] ss:$4 sm:$0xff] %v2109
      %2255 = vst [vmem:[%s2229] ss:$4 sm:$0xff] %v2110
      %2256 = vst [vmem:[%s2231] ss:$4 sm:$0xff] %v2176
      %2257 = vst [vmem:[%s2233] ss:$4 sm:$0xff] %v2177
      %2258 = vst [vmem:[%s2235] ss:$4 sm:$0xff] %v2178
      %2259 = vst [vmem:[%s2237] ss:$4 sm:$0xff] %v2111
      %2260 = vst [vmem:[%s2239] ss:$4 sm:$0xff] %v2179
      %v2261 = vld.sshfl [vmem:[#allocation1] sm:$0xff pattern:$0x73625140]
      %v2262 = vld.sshfl [vmem:[#allocation1 + $0x20] sm:$0xff pattern:$0x73625140]
      %2263 = vst [vmem:[#allocation1] ss:$4 sm:$0xff] %v2180
      %2264 = vst [vmem:[%s2227] ss:$4 sm:$0xff] %v2181
      %2265 = vst [vmem:[%s2229] ss:$4 sm:$0xff] %v2112
      %2266 = vst [vmem:[%s2231] ss:$4 sm:$0xff] %v2113
      %2267 = vst [vmem:[%s2233] ss:$4 sm:$0xff] %v2182
      %2268 = vst [vmem:[%s2235] ss:$4 sm:$0xff] %v2183
      %2269 = vst [vmem:[%s2237] ss:$4 sm:$0xff] %v2184
      %2270 = vst [vmem:[%s2239] ss:$4 sm:$0xff] %v2114
      %v2271 = vld.sshfl [vmem:[#allocation1] sm:$0xff pattern:$0x73625140]
      %v2272 = vld.sshfl [vmem:[#allocation1 + $0x20] sm:$0xff pattern:$0x73625140]
      %2273 = vst [vmem:[#allocation1] ss:$4 sm:$0xff] %v2185
      %2274 = vst [vmem:[%s2227] ss:$4 sm:$0xff] %v2186
      %2275 = vst [vmem:[%s2229] ss:$4 sm:$0xff] %v2187
      %2276 = vst [vmem:[%s2231] ss:$4 sm:$0xff] %v2115
      %2277 = vst [vmem:[%s2233] ss:$4 sm:$0xff] %v2116
      %2278 = vst [vmem:[%s2235] ss:$4 sm:$0xff] %v2188
      %2279 = vst [vmem:[%s2237] ss:$4 sm:$0xff] %v2189
      %2280 = vst [vmem:[%s2239] ss:$4 sm:$0xff] %v2190
      %v2281 = vld.sshfl [vmem:[#allocation1] sm:$0xff pattern:$0x73625140]
      %v2282 = vld.sshfl [vmem:[#allocation1 + $0x20] sm:$0xff pattern:$0x73625140]
      %2283 = vst [vmem:[#allocation1] ss:$4 sm:$0xff] %v2117
      %2284 = vst [vmem:[%s2227] ss:$4 sm:$0xff] %v2191
      %2285 = vst [vmem:[%s2229] ss:$4 sm:$0xff] %v2192
      %2286 = vst [vmem:[%s2231] ss:$4 sm:$0xff] %v2193
      %2287 = vst [vmem:[%s2233] ss:$4 sm:$0xff] %v2118
      %2288 = vst [vmem:[%s2235] ss:$4 sm:$0xff] %v2119
      %2289 = vst [vmem:[%s2237] ss:$4 sm:$0xff] %v2194
      %2290 = vst [vmem:[%s2239] ss:$4 sm:$0xff] %v2195
      %v2291 = vld.sshfl [vmem:[#allocation1] sm:$0xff pattern:$0x73625140]
      %v2292 = vld.sshfl [vmem:[#allocation1 + $0x20] sm:$0xff pattern:$0x73625140]
      %2293 = vst [vmem:[#allocation1] ss:$4 sm:$0xff] %v2196
      %2294 = vst [vmem:[%s2227] ss:$4 sm:$0xff] %v2120
      %2295 = vst [vmem:[%s2229] ss:$4 sm:$0xff] %v2197
      %2296 = vst [vmem:[%s2231] ss:$4 sm:$0xff] %v2198
      %2297 = vst [vmem:[%s2233] ss:$4 sm:$0xff] %v2199
      %2298 = vst [vmem:[%s2235] ss:$4 sm:$0xff] %v2121
      %2299 = vst [vmem:[%s2237] ss:$4 sm:$0xff] %v2122
      %2300 = vst [vmem:[%s2239] ss:$4 sm:$0xff] %v2200
      %v2301 = vld.sshfl [vmem:[#allocation1] sm:$0xff pattern:$0x73625140]
      %v2302 = vld.sshfl [vmem:[#allocation1 + $0x20] sm:$0xff pattern:$0x73625140]
      %2303 = vst [vmem:[#allocation1] ss:$4 sm:$0xff] %v2201
      %2304 = vst [vmem:[%s2227] ss:$4 sm:$0xff] %v2202
      %2305 = vst [vmem:[%s2229] ss:$4 sm:$0xff] %v2123
      %2306 = vst [vmem:[%s2231] ss:$4 sm:$0xff] %v2203
      %2307 = vst [vmem:[%s2233] ss:$4 sm:$0xff] %v2204
      %2308 = vst [vmem:[%s2235] ss:$4 sm:$0xff] %v2205
      %2309 = vst [vmem:[%s2237] ss:$4 sm:$0xff] %v2124
      %2310 = vst [vmem:[%s2239] ss:$4 sm:$0xff] %v2125
      %v2311 = vld.sshfl [vmem:[#allocation1] sm:$0xff pattern:$0x73625140]
      %v2312 = vld.sshfl [vmem:[#allocation1 + $0x20] sm:$0xff pattern:$0x73625140]
      %2313 = vst [vmem:[#allocation1] ss:$4 sm:$0xff] %v2206
      %2314 = vst [vmem:[%s2227] ss:$4 sm:$0xff] %v2207
      %2315 = vst [vmem:[%s2229] ss:$4 sm:$0xff] %v2208
      %2316 = vst [vmem:[%s2231] ss:$4 sm:$0xff] %v2126
      %2317 = vst [vmem:[%s2233] ss:$4 sm:$0xff] %v2209
      %2318 = vst [vmem:[%s2235] ss:$4 sm:$0xff] %v2210
      %2319 = vst [vmem:[%s2237] ss:$4 sm:$0xff] %v2211
      %2320 = vst [vmem:[%s2239] ss:$4 sm:$0xff] %v2127
      %v2321 = vld.sshfl [vmem:[#allocation1] sm:$0xff pattern:$0x73625140]
      %v2322 = vld.sshfl [vmem:[#allocation1 + $0x20] sm:$0xff pattern:$0x73625140]
      %2323 = vst [vmem:[#allocation1] ss:$4 sm:$0xff] %v2128
      %2324 = vst [vmem:[%s2227] ss:$4 sm:$0xff] %v2212
      %2325 = vst [vmem:[%s2229] ss:$4 sm:$0xff] %v2213
      %2326 = vst [vmem:[%s2231] ss:$4 sm:$0xff] %v2214
      %2327 = vst [vmem:[%s2233] ss:$4 sm:$0xff] %v2129
      %2328 = vst [vmem:[%s2235] ss:$4 sm:$0xff] %v2215
      %2329 = vst [vmem:[%s2237] ss:$4 sm:$0xff] %v2216
      %2330 = vst [vmem:[%s2239] ss:$4 sm:$0xff] %v2217
      %v2331 = vld.sshfl [vmem:[#allocation1] sm:$0xff pattern:$0x73625140]
      %v2332 = vld.sshfl [vmem:[#allocation1 + $0x20] sm:$0xff pattern:$0x73625140]
      %2333 = vst [vmem:[#allocation1] ss:$4 sm:$0xff] %v2130
      %2334 = vst [vmem:[%s2227] ss:$4 sm:$0xff] %v2131
      %2335 = vst [vmem:[%s2229] ss:$4 sm:$0xff] %v2218
      %2336 = vst [vmem:[%s2231] ss:$4 sm:$0xff] %v2219
      %2337 = vst [vmem:[%s2233] ss:$4 sm:$0xff] %v2220
      %2338 = vst [vmem:[%s2235] ss:$4 sm:$0xff] %v2132
      %2339 = vst [vmem:[%s2237] ss:$4 sm:$0xff] %v2221
      %2340 = vst [vmem:[%s2239] ss:$4 sm:$0xff] %v2222
      %v2341 = vld.sshfl [vmem:[#allocation1] sm:$0xff pattern:$0x73625140]
      %v2342 = vld.sshfl [vmem:[#allocation1 + $0x20] sm:$0xff pattern:$0x73625140]
      %2343 = vst [vmem:[#allocation1] ss:$4 sm:$0xff] %v2223
      %2344 = vst [vmem:[%s2227] ss:$4 sm:$0xff] %v2133
      %v2345 = vld.sshfl [vmem:[#allocation1] sm:$0xff pattern:$0x73625140]
      %v2346 = vsel %vm506, %v2241, 0
      %v2348 = vsel %vm506, %v2242, 0
      %v2350 = vsel %vm506, %v2251, 0
      %v2352 = vsel %vm506, %v2252, 0
      %v2354 = vsel %vm506, %v2261, 0
      %v2356 = vsel %vm506, %v2262, 0
      %v2358 = vsel %vm506, %v2271, 0
      %v2360 = vsel %vm506, %v2272, 0
      %v2362 = vsel %vm506, %v2281, 0
      %v2364 = vsel %vm506, %v2282, 0
      %v2366 = vsel %vm506, %v2291, 0
      %v2368 = vsel %vm506, %v2292, 0
      %v2370 = vsel %vm506, %v2301, 0
      %v2372 = vsel %vm506, %v2302, 0
      %v2374 = vsel %vm506, %v2311, 0
      %v2376 = vsel %vm506, %v2312, 0
      %v2378 = vsel %vm506, %v2321, 0
      %v2380 = vsel %vm506, %v2322, 0
      %v2382 = vsel %vm506, %v2331, 0
      %v2384 = vsel %vm506, %v2332, 0
      %v2386 = vsel %vm506, %v2341, 0
      %v2388 = vsel %vm506, %v2342, 0
      %v2390 = vsel %vm506, %v2345, 0
      %v2393 = vsel %vm958, %v2225, 0
      %2395 = vmatpush.msra.mxu0 0.0
      %2396 = vmatpush.msra.mxu0 0.0
      %2397 = vmatpush.msra.mxu0 0.0
      %2398 = vmatpush.msra.mxu0 0.0
      %2399 = vmatpush.msra.mxu0 0.0
      %2400 = vmatpush.msra.mxu0 0.0
      %2401 = vmatpush.msra.mxu0 0.0
      %2402 = vmatpush.msra.mxu0 0.0
      %2403 = vmatpush.msra.mxu0 0.0
      %2404 = vmatpush.msra.mxu0 0.0
      %2405 = vmatpush.msra.mxu0 0.0
      %2406 = vmatpush.msra.mxu0 0.0
      %2407 = vmatpush.msra.mxu0 0.0
      %2408 = vmatpush.msra.mxu0 0.0
      %2409 = vmatpush.msra.mxu0 0.0
      %2410 = vmatpush.msra.mxu0 %v2393
      %2411 = vmatmul.f32.gmra.mxu0 %v2346
      %v2412 = vpop.f32.mrf.mxu0
      %v2413 = vadd.f32 0.0, %v2412
      %2414 = vmatmul.f32.gmra.mxu0 %v2348
      %v2415 = vpop.f32.mrf.mxu0
      %v2416 = vadd.f32 0.0, %v2415
      %2417 = vmatmul.f32.gmra.mxu0 %v2350
      %v2418 = vpop.f32.mrf.mxu0
      %v2419 = vadd.f32 0.0, %v2418
      %2420 = vmatmul.f32.gmra.mxu0 %v2352
      %v2421 = vpop.f32.mrf.mxu0
      %v2422 = vadd.f32 0.0, %v2421
      %2423 = vmatmul.f32.gmra.mxu0 %v2354
      %v2424 = vpop.f32.mrf.mxu0
      %v2425 = vadd.f32 0.0, %v2424
      %2426 = vmatmul.f32.gmra.mxu0 %v2356
      %v2427 = vpop.f32.mrf.mxu0
      %v2428 = vadd.f32 0.0, %v2427
      %2429 = vmatmul.f32.gmra.mxu0 %v2358
      %v2430 = vpop.f32.mrf.mxu0
      %v2431 = vadd.f32 0.0, %v2430
      %2432 = vmatmul.f32.gmra.mxu0 %v2360
      %v2433 = vpop.f32.mrf.mxu0
      %v2434 = vadd.f32 0.0, %v2433
      %2435 = vmatmul.f32.gmra.mxu0 %v2362
      %v2436 = vpop.f32.mrf.mxu0
      %v2437 = vadd.f32 0.0, %v2436
      %2438 = vmatmul.f32.gmra.mxu0 %v2364
      %v2439 = vpop.f32.mrf.mxu0
      %v2440 = vadd.f32 0.0, %v2439
      %2441 = vmatmul.f32.gmra.mxu0 %v2366
      %v2442 = vpop.f32.mrf.mxu0
      %v2443 = vadd.f32 0.0, %v2442
      %2444 = vmatmul.f32.gmra.mxu0 %v2368
      %v2445 = vpop.f32.mrf.mxu0
      %v2446 = vadd.f32 0.0, %v2445
      %2447 = vmatmul.f32.gmra.mxu0 %v2370
      %v2448 = vpop.f32.mrf.mxu0
      %v2449 = vadd.f32 0.0, %v2448
      %2450 = vmatmul.f32.gmra.mxu0 %v2372
      %v2451 = vpop.f32.mrf.mxu0
      %v2452 = vadd.f32 0.0, %v2451
      %2453 = vmatmul.f32.gmra.mxu0 %v2374
      %v2454 = vpop.f32.mrf.mxu0
      %v2455 = vadd.f32 0.0, %v2454
      %2456 = vmatmul.f32.gmra.mxu0 %v2376
      %v2457 = vpop.f32.mrf.mxu0
      %v2458 = vadd.f32 0.0, %v2457
      %2459 = vmatmul.f32.gmra.mxu0 %v2378
      %v2460 = vpop.f32.mrf.mxu0
      %v2461 = vadd.f32 0.0, %v2460
      %2462 = vmatmul.f32.gmra.mxu0 %v2380
      %v2463 = vpop.f32.mrf.mxu0
      %v2464 = vadd.f32 0.0, %v2463
      %2465 = vmatmul.f32.gmra.mxu0 %v2382
      %v2466 = vpop.f32.mrf.mxu0
      %v2467 = vadd.f32 0.0, %v2466
      %2468 = vmatmul.f32.gmra.mxu0 %v2384
      %v2469 = vpop.f32.mrf.mxu0
      %v2470 = vadd.f32 0.0, %v2469
      %2471 = vmatmul.f32.gmra.mxu0 %v2386
      %v2472 = vpop.f32.mrf.mxu0
      %v2473 = vadd.f32 0.0, %v2472
      %2474 = vmatmul.f32.gmra.mxu0 %v2388
      %v2475 = vpop.f32.mrf.mxu0
      %v2476 = vadd.f32 0.0, %v2475
      %2477 = vmatmul.f32.gmra.mxu0 %v2390
      %v2478 = vpop.f32.mrf.mxu0
      %v2479 = vadd.f32 0.0, %v2478
      %2480 = vdwg.mxu0
      %v2481 = vadd.f32 %v2081, %v2413
      %v2482 = vadd.f32 %v2082, %v2416
      %v2483 = vadd.f32 %v2083, %v2419
      %v2484 = vadd.f32 %v2084, %v2422
      %v2485 = vadd.f32 %v2085, %v2425
      %v2486 = vadd.f32 %v2086, %v2428
      %v2487 = vadd.f32 %v2087, %v2431
      %v2488 = vadd.f32 %v2088, %v2434
      %v2489 = vadd.f32 %v2089, %v2437
      %v2490 = vadd.f32 %v2090, %v2440
      %v2491 = vadd.f32 %v2091, %v2443
      %v2492 = vadd.f32 %v2092, %v2446
      %v2493 = vadd.f32 %v2093, %v2449
      %v2494 = vadd.f32 %v2094, %v2452
      %v2495 = vadd.f32 %v2095, %v2455
      %v2496 = vadd.f32 %v2096, %v2458
      %v2497 = vadd.f32 %v2097, %v2461
      %v2498 = vadd.f32 %v2098, %v2464
      %v2499 = vadd.f32 %v2099, %v2467
      %v2500 = vadd.f32 %v2100, %v2470
      %v2501 = vadd.f32 %v2101, %v2473
      %v2502 = vadd.f32 %v2102, %v2476
      %v2503 = vadd.f32 %v2103, %v2479
      %v2504 = vld [vmem:[%s1703 + $0x2] sm:$0xff]
      %v2505 = vld [vmem:[%s1703 + $0xa] sm:$0xff]
      %v2506 = vld [vmem:[%s1703 + $0x12] sm:$0x3]
      %v2507 = vld [vmem:[%s1703 + $0x1a] sm:$0xff]
      %v2508 = vld [vmem:[%s1703 + $0x22] sm:$0xff]
      %v2509 = vld [vmem:[%s1703 + $0x2a] sm:$0x3]
      %v2510 = vld [vmem:[%s1703 + $0x32] sm:$0xff]
      %v2511 = vld [vmem:[%s1703 + $0x3a] sm:$0xff]
      %v2512 = vld [vmem:[%s1703 + $0x42] sm:$0x3]
      %v2513 = vld [vmem:[%s1703 + $0x4a] sm:$0xff]
      %v2514 = vld [vmem:[%s1703 + $0x52] sm:$0xff]
      %v2515 = vld [vmem:[%s1703 + $0x5a] sm:$0x3]
      %v2516 = vld [vmem:[%s1703 + $0x62] sm:$0xff]
      %v2517 = vld [vmem:[%s1703 + $0x6a] sm:$0xff]
      %v2518 = vld [vmem:[%s1703 + $0x72] sm:$0x3]
      %v2519 = vld [vmem:[%s1703 + $0x7a] sm:$0xff]
      %v2520 = vld [vmem:[%s1703 + $0x82] sm:$0xff]
      %v2521 = vld [vmem:[%s1703 + $0x8a] sm:$0x3]
      %v2522 = vld [vmem:[%s1703 + $0x92] sm:$0xff]
      %v2523 = vld [vmem:[%s1703 + $0x9a] sm:$0xff]
      %v2524 = vld [vmem:[%s1703 + $0xa2] sm:$0x3]
      %v2525 = vld [vmem:[%s1703 + $0xaa] sm:$0xff]
      %v2526 = vld [vmem:[%s1703 + $0xb2] sm:$0xff]
      %v2527 = vld [vmem:[%s1703 + $0xba] sm:$0x3]
      %v2528 = vld [vmem:[%s1703 + $0xc2] sm:$0xff]
      %v2529 = vld [vmem:[%s1703 + $0xca] sm:$0xff]
      %v2530 = vld [vmem:[%s1703 + $0xd2] sm:$0x3]
      %v2531 = vld [vmem:[%s1703 + $0xda] sm:$0xff]
      %v2532 = vld [vmem:[%s1703 + $0xe2] sm:$0xff]
      %v2533 = vld [vmem:[%s1703 + $0xea] sm:$0x3]
      %v2564 = vrot.slane %v2504, 2
      %v2565 = vrot.slane %v2504, 4
      %v2566 = vrot.slane %v2504, 6
      %v2567 = vrot.slane %v2505, 2
      %v2568 = vrot.slane %v2505, 4
      %v2569 = vrot.slane %v2505, 6
      %v2570 = vrot.slane %v2507, 2
      %v2571 = vrot.slane %v2507, 4
      %v2572 = vrot.slane %v2507, 6
      %v2573 = vrot.slane %v2508, 2
      %v2574 = vrot.slane %v2508, 4
      %v2575 = vrot.slane %v2508, 6
      %v2576 = vrot.slane %v2510, 2
      %v2577 = vrot.slane %v2510, 4
      %v2578 = vrot.slane %v2510, 6
      %v2579 = vrot.slane %v2511, 2
      %v2580 = vrot.slane %v2511, 4
      %v2581 = vrot.slane %v2511, 6
      %v2582 = vrot.slane %v2513, 2
      %v2583 = vrot.slane %v2513, 4
      %v2584 = vrot.slane %v2513, 6
      %v2585 = vrot.slane %v2514, 2
      %v2586 = vrot.slane %v2514, 4
      %v2587 = vrot.slane %v2514, 6
      %v2588 = vrot.slane %v2516, 2
      %v2589 = vrot.slane %v2516, 4
      %v2590 = vrot.slane %v2516, 6
      %v2591 = vrot.slane %v2517, 2
      %v2592 = vrot.slane %v2517, 4
      %v2593 = vrot.slane %v2517, 6
      %v2594 = vrot.slane %v2519, 2
      %v2595 = vrot.slane %v2519, 4
      %v2596 = vrot.slane %v2519, 6
      %v2597 = vrot.slane %v2520, 2
      %v2598 = vrot.slane %v2520, 4
      %v2599 = vrot.slane %v2520, 6
      %v2600 = vrot.slane %v2522, 2
      %v2601 = vrot.slane %v2522, 4
      %v2602 = vrot.slane %v2522, 6
      %v2603 = vrot.slane %v2523, 2
      %v2604 = vrot.slane %v2523, 4
      %v2605 = vrot.slane %v2523, 6
      %v2606 = vrot.slane %v2525, 2
      %v2607 = vrot.slane %v2525, 4
      %v2608 = vrot.slane %v2525, 6
      %v2609 = vrot.slane %v2526, 2
      %v2610 = vrot.slane %v2526, 4
      %v2611 = vrot.slane %v2526, 6
      %v2612 = vrot.slane %v2528, 2
      %v2613 = vrot.slane %v2528, 4
      %v2614 = vrot.slane %v2528, 6
      %v2615 = vrot.slane %v2529, 2
      %v2616 = vrot.slane %v2529, 4
      %v2617 = vrot.slane %v2529, 6
      %v2618 = vrot.slane %v2531, 2
      %v2619 = vrot.slane %v2531, 4
      %v2620 = vrot.slane %v2531, 6
      %v2621 = vrot.slane %v2532, 2
      %v2622 = vrot.slane %v2532, 4
      %v2623 = vrot.slane %v2532, 6
      %s2624 = scalar_lea.vmem %s3, 20
      %v2625 = vld [vmem:[%s2624] sm:$0xf]
      %2626 = vst [vmem:[#allocation1] ss:$4 sm:$0xff] %v2504
      %s2627 = scalar_lea.vmem [#allocation1], 1
      %2628 = vst [vmem:[%s2627] ss:$4 sm:$0xff] %v2564
      %s2629 = scalar_lea.vmem [#allocation1], 2
      %2630 = vst [vmem:[%s2629] ss:$4 sm:$0xff] %v2565
      %s2631 = scalar_lea.vmem [#allocation1], 3
      %2632 = vst [vmem:[%s2631] ss:$4 sm:$0xff] %v2566
      %s2633 = scalar_lea.vmem [#allocation1], 32
      %2634 = vst [vmem:[%s2633] ss:$4 sm:$0xff] %v2505
      %s2635 = scalar_lea.vmem [#allocation1], 33
      %2636 = vst [vmem:[%s2635] ss:$4 sm:$0xff] %v2567
      %s2637 = scalar_lea.vmem [#allocation1], 34
      %2638 = vst [vmem:[%s2637] ss:$4 sm:$0xff] %v2568
      %s2639 = scalar_lea.vmem [#allocation1], 35
      %2640 = vst [vmem:[%s2639] ss:$4 sm:$0xff] %v2569
      %v2641 = vld.sshfl [vmem:[#allocation1] sm:$0xff pattern:$0x73625140]
      %v2642 = vld.sshfl [vmem:[#allocation1 + $0x20] sm:$0xff pattern:$0x73625140]
      %2643 = vst [vmem:[#allocation1] ss:$4 sm:$0xff] %v2506
      %2644 = vst [vmem:[%s2627] ss:$4 sm:$0xff] %v2507
      %2645 = vst [vmem:[%s2629] ss:$4 sm:$0xff] %v2570
      %2646 = vst [vmem:[%s2631] ss:$4 sm:$0xff] %v2571
      %2647 = vst [vmem:[%s2633] ss:$4 sm:$0xff] %v2572
      %2648 = vst [vmem:[%s2635] ss:$4 sm:$0xff] %v2508
      %2649 = vst [vmem:[%s2637] ss:$4 sm:$0xff] %v2573
      %2650 = vst [vmem:[%s2639] ss:$4 sm:$0xff] %v2574
      %v2651 = vld.sshfl [vmem:[#allocation1] sm:$0xff pattern:$0x73625140]
      %v2652 = vld.sshfl [vmem:[#allocation1 + $0x20] sm:$0xff pattern:$0x73625140]
      %2653 = vst [vmem:[#allocation1] ss:$4 sm:$0xff] %v2575
      %2654 = vst [vmem:[%s2627] ss:$4 sm:$0xff] %v2509
      %2655 = vst [vmem:[%s2629] ss:$4 sm:$0xff] %v2510
      %2656 = vst [vmem:[%s2631] ss:$4 sm:$0xff] %v2576
      %2657 = vst [vmem:[%s2633] ss:$4 sm:$0xff] %v2577
      %2658 = vst [vmem:[%s2635] ss:$4 sm:$0xff] %v2578
      %2659 = vst [vmem:[%s2637] ss:$4 sm:$0xff] %v2511
      %2660 = vst [vmem:[%s2639] ss:$4 sm:$0xff] %v2579
      %v2661 = vld.sshfl [vmem:[#allocation1] sm:$0xff pattern:$0x73625140]
      %v2662 = vld.sshfl [vmem:[#allocation1 + $0x20] sm:$0xff pattern:$0x73625140]
      %2663 = vst [vmem:[#allocation1] ss:$4 sm:$0xff] %v2580
      %2664 = vst [vmem:[%s2627] ss:$4 sm:$0xff] %v2581
      %2665 = vst [vmem:[%s2629] ss:$4 sm:$0xff] %v2512
      %2666 = vst [vmem:[%s2631] ss:$4 sm:$0xff] %v2513
      %2667 = vst [vmem:[%s2633] ss:$4 sm:$0xff] %v2582
      %2668 = vst [vmem:[%s2635] ss:$4 sm:$0xff] %v2583
      %2669 = vst [vmem:[%s2637] ss:$4 sm:$0xff] %v2584
      %2670 = vst [vmem:[%s2639] ss:$4 sm:$0xff] %v2514
      %v2671 = vld.sshfl [vmem:[#allocation1] sm:$0xff pattern:$0x73625140]
      %v2672 = vld.sshfl [vmem:[#allocation1 + $0x20] sm:$0xff pattern:$0x73625140]
      %2673 = vst [vmem:[#allocation1] ss:$4 sm:$0xff] %v2585
      %2674 = vst [vmem:[%s2627] ss:$4 sm:$0xff] %v2586
      %2675 = vst [vmem:[%s2629] ss:$4 sm:$0xff] %v2587
      %2676 = vst [vmem:[%s2631] ss:$4 sm:$0xff] %v2515
      %2677 = vst [vmem:[%s2633] ss:$4 sm:$0xff] %v2516
      %2678 = vst [vmem:[%s2635] ss:$4 sm:$0xff] %v2588
      %2679 = vst [vmem:[%s2637] ss:$4 sm:$0xff] %v2589
      %2680 = vst [vmem:[%s2639] ss:$4 sm:$0xff] %v2590
      %v2681 = vld.sshfl [vmem:[#allocation1] sm:$0xff pattern:$0x73625140]
      %v2682 = vld.sshfl [vmem:[#allocation1 + $0x20] sm:$0xff pattern:$0x73625140]
      %2683 = vst [vmem:[#allocation1] ss:$4 sm:$0xff] %v2517
      %2684 = vst [vmem:[%s2627] ss:$4 sm:$0xff] %v2591
      %2685 = vst [vmem:[%s2629] ss:$4 sm:$0xff] %v2592
      %2686 = vst [vmem:[%s2631] ss:$4 sm:$0xff] %v2593
      %2687 = vst [vmem:[%s2633] ss:$4 sm:$0xff] %v2518
      %2688 = vst [vmem:[%s2635] ss:$4 sm:$0xff] %v2519
      %2689 = vst [vmem:[%s2637] ss:$4 sm:$0xff] %v2594
      %2690 = vst [vmem:[%s2639] ss:$4 sm:$0xff] %v2595
      %v2691 = vld.sshfl [vmem:[#allocation1] sm:$0xff pattern:$0x73625140]
      %v2692 = vld.sshfl [vmem:[#allocation1 + $0x20] sm:$0xff pattern:$0x73625140]
      %2693 = vst [vmem:[#allocation1] ss:$4 sm:$0xff] %v2596
      %2694 = vst [vmem:[%s2627] ss:$4 sm:$0xff] %v2520
      %2695 = vst [vmem:[%s2629] ss:$4 sm:$0xff] %v2597
      %2696 = vst [vmem:[%s2631] ss:$4 sm:$0xff] %v2598
      %2697 = vst [vmem:[%s2633] ss:$4 sm:$0xff] %v2599
      %2698 = vst [vmem:[%s2635] ss:$4 sm:$0xff] %v2521
      %2699 = vst [vmem:[%s2637] ss:$4 sm:$0xff] %v2522
      %2700 = vst [vmem:[%s2639] ss:$4 sm:$0xff] %v2600
      %v2701 = vld.sshfl [vmem:[#allocation1] sm:$0xff pattern:$0x73625140]
      %v2702 = vld.sshfl [vmem:[#allocation1 + $0x20] sm:$0xff pattern:$0x73625140]
      %2703 = vst [vmem:[#allocation1] ss:$4 sm:$0xff] %v2601
      %2704 = vst [vmem:[%s2627] ss:$4 sm:$0xff] %v2602
      %2705 = vst [vmem:[%s2629] ss:$4 sm:$0xff] %v2523
      %2706 = vst [vmem:[%s2631] ss:$4 sm:$0xff] %v2603
      %2707 = vst [vmem:[%s2633] ss:$4 sm:$0xff] %v2604
      %2708 = vst [vmem:[%s2635] ss:$4 sm:$0xff] %v2605
      %2709 = vst [vmem:[%s2637] ss:$4 sm:$0xff] %v2524
      %2710 = vst [vmem:[%s2639] ss:$4 sm:$0xff] %v2525
      %v2711 = vld.sshfl [vmem:[#allocation1] sm:$0xff pattern:$0x73625140]
      %v2712 = vld.sshfl [vmem:[#allocation1 + $0x20] sm:$0xff pattern:$0x73625140]
      %2713 = vst [vmem:[#allocation1] ss:$4 sm:$0xff] %v2606
      %2714 = vst [vmem:[%s2627] ss:$4 sm:$0xff] %v2607
      %2715 = vst [vmem:[%s2629] ss:$4 sm:$0xff] %v2608
      %2716 = vst [vmem:[%s2631] ss:$4 sm:$0xff] %v2526
      %2717 = vst [vmem:[%s2633] ss:$4 sm:$0xff] %v2609
      %2718 = vst [vmem:[%s2635] ss:$4 sm:$0xff] %v2610
      %2719 = vst [vmem:[%s2637] ss:$4 sm:$0xff] %v2611
      %2720 = vst [vmem:[%s2639] ss:$4 sm:$0xff] %v2527
      %v2721 = vld.sshfl [vmem:[#allocation1] sm:$0xff pattern:$0x73625140]
      %v2722 = vld.sshfl [vmem:[#allocation1 + $0x20] sm:$0xff pattern:$0x73625140]
      %2723 = vst [vmem:[#allocation1] ss:$4 sm:$0xff] %v2528
      %2724 = vst [vmem:[%s2627] ss:$4 sm:$0xff] %v2612
      %2725 = vst [vmem:[%s2629] ss:$4 sm:$0xff] %v2613
      %2726 = vst [vmem:[%s2631] ss:$4 sm:$0xff] %v2614
      %2727 = vst [vmem:[%s2633] ss:$4 sm:$0xff] %v2529
      %2728 = vst [vmem:[%s2635] ss:$4 sm:$0xff] %v2615
      %2729 = vst [vmem:[%s2637] ss:$4 sm:$0xff] %v2616
      %2730 = vst [vmem:[%s2639] ss:$4 sm:$0xff] %v2617
      %v2731 = vld.sshfl [vmem:[#allocation1] sm:$0xff pattern:$0x73625140]
      %v2732 = vld.sshfl [vmem:[#allocation1 + $0x20] sm:$0xff pattern:$0x73625140]
      %2733 = vst [vmem:[#allocation1] ss:$4 sm:$0xff] %v2530
      %2734 = vst [vmem:[%s2627] ss:$4 sm:$0xff] %v2531
      %2735 = vst [vmem:[%s2629] ss:$4 sm:$0xff] %v2618
      %2736 = vst [vmem:[%s2631] ss:$4 sm:$0xff] %v2619
      %2737 = vst [vmem:[%s2633] ss:$4 sm:$0xff] %v2620
      %2738 = vst [vmem:[%s2635] ss:$4 sm:$0xff] %v2532
      %2739 = vst [vmem:[%s2637] ss:$4 sm:$0xff] %v2621
      %2740 = vst [vmem:[%s2639] ss:$4 sm:$0xff] %v2622
      %v2741 = vld.sshfl [vmem:[#allocation1] sm:$0xff pattern:$0x73625140]
      %v2742 = vld.sshfl [vmem:[#allocation1 + $0x20] sm:$0xff pattern:$0x73625140]
      %2743 = vst [vmem:[#allocation1] ss:$4 sm:$0xff] %v2623
      %2744 = vst [vmem:[%s2627] ss:$4 sm:$0xff] %v2533
      %v2745 = vld.sshfl [vmem:[#allocation1] sm:$0xff pattern:$0x73625140]
      %v2746 = vsel %vm506, %v2641, 0
      %v2748 = vsel %vm506, %v2642, 0
      %v2750 = vsel %vm506, %v2651, 0
      %v2752 = vsel %vm506, %v2652, 0
      %v2754 = vsel %vm506, %v2661, 0
      %v2756 = vsel %vm506, %v2662, 0
      %v2758 = vsel %vm506, %v2671, 0
      %v2760 = vsel %vm506, %v2672, 0
      %v2762 = vsel %vm506, %v2681, 0
      %v2764 = vsel %vm506, %v2682, 0
      %v2766 = vsel %vm506, %v2691, 0
      %v2768 = vsel %vm506, %v2692, 0
      %v2770 = vsel %vm506, %v2701, 0
      %v2772 = vsel %vm506, %v2702, 0
      %v2774 = vsel %vm506, %v2711, 0
      %v2776 = vsel %vm506, %v2712, 0
      %v2778 = vsel %vm506, %v2721, 0
      %v2780 = vsel %vm506, %v2722, 0
      %v2782 = vsel %vm506, %v2731, 0
      %v2784 = vsel %vm506, %v2732, 0
      %v2786 = vsel %vm506, %v2741, 0
      %v2788 = vsel %vm506, %v2742, 0
      %v2790 = vsel %vm506, %v2745, 0
      %v2793 = vsel %vm958, %v2625, 0
      %2795 = vmatpush.msra.mxu0 0.0
      %2796 = vmatpush.msra.mxu0 0.0
      %2797 = vmatpush.msra.mxu0 0.0
      %2798 = vmatpush.msra.mxu0 0.0
      %2799 = vmatpush.msra.mxu0 0.0
      %2800 = vmatpush.msra.mxu0 0.0
      %2801 = vmatpush.msra.mxu0 0.0
      %2802 = vmatpush.msra.mxu0 0.0
      %2803 = vmatpush.msra.mxu0 0.0
      %2804 = vmatpush.msra.mxu0 0.0
      %2805 = vmatpush.msra.mxu0 0.0
      %2806 = vmatpush.msra.mxu0 0.0
      %2807 = vmatpush.msra.mxu0 0.0
      %2808 = vmatpush.msra.mxu0 0.0
      %2809 = vmatpush.msra.mxu0 0.0
      %2810 = vmatpush.msra.mxu0 %v2793
      %2811 = vmatmul.f32.gmra.mxu0 %v2746
      %v2812 = vpop.f32.mrf.mxu0
      %v2813 = vadd.f32 0.0, %v2812
      %2814 = vmatmul.f32.gmra.mxu0 %v2748
      %v2815 = vpop.f32.mrf.mxu0
      %v2816 = vadd.f32 0.0, %v2815
      %2817 = vmatmul.f32.gmra.mxu0 %v2750
      %v2818 = vpop.f32.mrf.mxu0
      %v2819 = vadd.f32 0.0, %v2818
      %2820 = vmatmul.f32.gmra.mxu0 %v2752
      %v2821 = vpop.f32.mrf.mxu0
      %v2822 = vadd.f32 0.0, %v2821
      %2823 = vmatmul.f32.gmra.mxu0 %v2754
      %v2824 = vpop.f32.mrf.mxu0
      %v2825 = vadd.f32 0.0, %v2824
      %2826 = vmatmul.f32.gmra.mxu0 %v2756
      %v2827 = vpop.f32.mrf.mxu0
      %v2828 = vadd.f32 0.0, %v2827
      %2829 = vmatmul.f32.gmra.mxu0 %v2758
      %v2830 = vpop.f32.mrf.mxu0
      %v2831 = vadd.f32 0.0, %v2830
      %2832 = vmatmul.f32.gmra.mxu0 %v2760
      %v2833 = vpop.f32.mrf.mxu0
      %v2834 = vadd.f32 0.0, %v2833
      %2835 = vmatmul.f32.gmra.mxu0 %v2762
      %v2836 = vpop.f32.mrf.mxu0
      %v2837 = vadd.f32 0.0, %v2836
      %2838 = vmatmul.f32.gmra.mxu0 %v2764
      %v2839 = vpop.f32.mrf.mxu0
      %v2840 = vadd.f32 0.0, %v2839
      %2841 = vmatmul.f32.gmra.mxu0 %v2766
      %v2842 = vpop.f32.mrf.mxu0
      %v2843 = vadd.f32 0.0, %v2842
      %2844 = vmatmul.f32.gmra.mxu0 %v2768
      %v2845 = vpop.f32.mrf.mxu0
      %v2846 = vadd.f32 0.0, %v2845
      %2847 = vmatmul.f32.gmra.mxu0 %v2770
      %v2848 = vpop.f32.mrf.mxu0
      %v2849 = vadd.f32 0.0, %v2848
      %2850 = vmatmul.f32.gmra.mxu0 %v2772
      %v2851 = vpop.f32.mrf.mxu0
      %v2852 = vadd.f32 0.0, %v2851
      %2853 = vmatmul.f32.gmra.mxu0 %v2774
      %v2854 = vpop.f32.mrf.mxu0
      %v2855 = vadd.f32 0.0, %v2854
      %2856 = vmatmul.f32.gmra.mxu0 %v2776
      %v2857 = vpop.f32.mrf.mxu0
      %v2858 = vadd.f32 0.0, %v2857
      %2859 = vmatmul.f32.gmra.mxu0 %v2778
      %v2860 = vpop.f32.mrf.mxu0
      %v2861 = vadd.f32 0.0, %v2860
      %2862 = vmatmul.f32.gmra.mxu0 %v2780
      %v2863 = vpop.f32.mrf.mxu0
      %v2864 = vadd.f32 0.0, %v2863
      %2865 = vmatmul.f32.gmra.mxu0 %v2782
      %v2866 = vpop.f32.mrf.mxu0
      %v2867 = vadd.f32 0.0, %v2866
      %2868 = vmatmul.f32.gmra.mxu0 %v2784
      %v2869 = vpop.f32.mrf.mxu0
      %v2870 = vadd.f32 0.0, %v2869
      %2871 = vmatmul.f32.gmra.mxu0 %v2786
      %v2872 = vpop.f32.mrf.mxu0
      %v2873 = vadd.f32 0.0, %v2872
      %2874 = vmatmul.f32.gmra.mxu0 %v2788
      %v2875 = vpop.f32.mrf.mxu0
      %v2876 = vadd.f32 0.0, %v2875
      %2877 = vmatmul.f32.gmra.mxu0 %v2790
      %v2878 = vpop.f32.mrf.mxu0
      %v2879 = vadd.f32 0.0, %v2878
      %2880 = vdwg.mxu0
      %v2881 = vadd.f32 %v2481, %v2813
      %v2882 = vadd.f32 %v2482, %v2816
      %v2883 = vadd.f32 %v2483, %v2819
      %v2884 = vadd.f32 %v2484, %v2822
      %v2885 = vadd.f32 %v2485, %v2825
      %v2886 = vadd.f32 %v2486, %v2828
      %v2887 = vadd.f32 %v2487, %v2831
      %v2888 = vadd.f32 %v2488, %v2834
      %v2889 = vadd.f32 %v2489, %v2837
      %v2890 = vadd.f32 %v2490, %v2840
      %v2891 = vadd.f32 %v2491, %v2843
      %v2892 = vadd.f32 %v2492, %v2846
      %v2893 = vadd.f32 %v2493, %v2849
      %v2894 = vadd.f32 %v2494, %v2852
      %v2895 = vadd.f32 %v2495, %v2855
      %v2896 = vadd.f32 %v2496, %v2858
      %v2897 = vadd.f32 %v2497, %v2861
      %v2898 = vadd.f32 %v2498, %v2864
      %v2899 = vadd.f32 %v2499, %v2867
      %v2900 = vadd.f32 %v2500, %v2870
      %v2901 = vadd.f32 %v2501, %v2873
      %v2902 = vadd.f32 %v2502, %v2876
      %v2903 = vadd.f32 %v2503, %v2879
      %v2904 = vld [vmem:[%s527] sm:$0xff]
      %v2905 = vld [vmem:[%s527 + $0x8] sm:$0xff]
      %v2906 = vld [vmem:[%s527 + $0x10] sm:$0x3]
      %v2907 = vld [vmem:[%s527 + $0x18] sm:$0xff]
      %v2908 = vld [vmem:[%s527 + $0x20] sm:$0xff]
      %v2909 = vld [vmem:[%s527 + $0x28] sm:$0x3]
      %v2910 = vld [vmem:[%s527 + $0x30] sm:$0xff]
      %v2911 = vld [vmem:[%s527 + $0x38] sm:$0xff]
      %v2912 = vld [vmem:[%s527 + $0x40] sm:$0x3]
      %v2913 = vld [vmem:[%s527 + $0x48] sm:$0xff]
      %v2914 = vld [vmem:[%s527 + $0x50] sm:$0xff]
      %v2915 = vld [vmem:[%s527 + $0x58] sm:$0x3]
      %v2916 = vld [vmem:[%s527 + $0x60] sm:$0xff]
      %v2917 = vld [vmem:[%s527 + $0x68] sm:$0xff]
      %v2918 = vld [vmem:[%s527 + $0x70] sm:$0x3]
      %v2919 = vld [vmem:[%s527 + $0x78] sm:$0xff]
      %v2920 = vld [vmem:[%s527 + $0x80] sm:$0xff]
      %v2921 = vld [vmem:[%s527 + $0x88] sm:$0x3]
      %v2922 = vld [vmem:[%s527 + $0x90] sm:$0xff]
      %v2923 = vld [vmem:[%s527 + $0x98] sm:$0xff]
      %v2924 = vld [vmem:[%s527 + $0xa0] sm:$0x3]
      %v2925 = vld [vmem:[%s527 + $0xa8] sm:$0xff]
      %v2926 = vld [vmem:[%s527 + $0xb0] sm:$0xff]
      %v2927 = vld [vmem:[%s527 + $0xb8] sm:$0x3]
      %v2928 = vld [vmem:[%s527 + $0xc0] sm:$0xff]
      %v2929 = vld [vmem:[%s527 + $0xc8] sm:$0xff]
      %v2930 = vld [vmem:[%s527 + $0xd0] sm:$0x3]
      %v2931 = vld [vmem:[%s527 + $0xd8] sm:$0xff]
      %v2932 = vld [vmem:[%s527 + $0xe0] sm:$0xff]
      %v2933 = vld [vmem:[%s527 + $0xe8] sm:$0x3]
      %v2964 = vrot.slane %v2904, 2
      %v2965 = vrot.slane %v2904, 4
      %v2966 = vrot.slane %v2904, 6
      %v2967 = vrot.slane %v2905, 2
      %v2968 = vrot.slane %v2905, 4
      %v2969 = vrot.slane %v2905, 6
      %v2970 = vrot.slane %v2907, 2
      %v2971 = vrot.slane %v2907, 4
      %v2972 = vrot.slane %v2907, 6
      %v2973 = vrot.slane %v2908, 2
      %v2974 = vrot.slane %v2908, 4
      %v2975 = vrot.slane %v2908, 6
      %v2976 = vrot.slane %v2910, 2
      %v2977 = vrot.slane %v2910, 4
      %v2978 = vrot.slane %v2910, 6
      %v2979 = vrot.slane %v2911, 2
      %v2980 = vrot.slane %v2911, 4
      %v2981 = vrot.slane %v2911, 6
      %v2982 = vrot.slane %v2913, 2
      %v2983 = vrot.slane %v2913, 4
      %v2984 = vrot.slane %v2913, 6
      %v2985 = vrot.slane %v2914, 2
      %v2986 = vrot.slane %v2914, 4
      %v2987 = vrot.slane %v2914, 6
      %v2988 = vrot.slane %v2916, 2
      %v2989 = vrot.slane %v2916, 4
      %v2990 = vrot.slane %v2916, 6
      %v2991 = vrot.slane %v2917, 2
      %v2992 = vrot.slane %v2917, 4
      %v2993 = vrot.slane %v2917, 6
      %v2994 = vrot.slane %v2919, 2
      %v2995 = vrot.slane %v2919, 4
      %v2996 = vrot.slane %v2919, 6
      %v2997 = vrot.slane %v2920, 2
      %v2998 = vrot.slane %v2920, 4
      %v2999 = vrot.slane %v2920, 6
      %v3000 = vrot.slane %v2922, 2
      %v3001 = vrot.slane %v2922, 4
      %v3002 = vrot.slane %v2922, 6
      %v3003 = vrot.slane %v2923, 2
      %v3004 = vrot.slane %v2923, 4
      %v3005 = vrot.slane %v2923, 6
      %v3006 = vrot.slane %v2925, 2
      %v3007 = vrot.slane %v2925, 4
      %v3008 = vrot.slane %v2925, 6
      %v3009 = vrot.slane %v2926, 2
      %v3010 = vrot.slane %v2926, 4
      %v3011 = vrot.slane %v2926, 6
      %v3012 = vrot.slane %v2928, 2
      %v3013 = vrot.slane %v2928, 4
      %v3014 = vrot.slane %v2928, 6
      %v3015 = vrot.slane %v2929, 2
      %v3016 = vrot.slane %v2929, 4
      %v3017 = vrot.slane %v2929, 6
      %v3018 = vrot.slane %v2931, 2
      %v3019 = vrot.slane %v2931, 4
      %v3020 = vrot.slane %v2931, 6
      %v3021 = vrot.slane %v2932, 2
      %v3022 = vrot.slane %v2932, 4
      %v3023 = vrot.slane %v2932, 6
      %s3024 = scalar_lea.vmem %s3, 24
      %v3025 = vld [vmem:[%s3024] sm:$0xf]
      %3026 = vst [vmem:[#allocation1] ss:$4 sm:$0xff] %v2904
      %s3027 = scalar_lea.vmem [#allocation1], 1
      %3028 = vst [vmem:[%s3027] ss:$4 sm:$0xff] %v2964
      %s3029 = scalar_lea.vmem [#allocation1], 2
      %3030 = vst [vmem:[%s3029] ss:$4 sm:$0xff] %v2965
      %s3031 = scalar_lea.vmem [#allocation1], 3
      %3032 = vst [vmem:[%s3031] ss:$4 sm:$0xff] %v2966
      %s3033 = scalar_lea.vmem [#allocation1], 32
      %3034 = vst [vmem:[%s3033] ss:$4 sm:$0xff] %v2905
      %s3035 = scalar_lea.vmem [#allocation1], 33
      %3036 = vst [vmem:[%s3035] ss:$4 sm:$0xff] %v2967
      %s3037 = scalar_lea.vmem [#allocation1], 34
      %3038 = vst [vmem:[%s3037] ss:$4 sm:$0xff] %v2968
      %s3039 = scalar_lea.vmem [#allocation1], 35
      %3040 = vst [vmem:[%s3039] ss:$4 sm:$0xff] %v2969
      %v3041 = vld.sshfl [vmem:[#allocation1] sm:$0xff pattern:$0x73625140]
      %v3042 = vld.sshfl [vmem:[#allocation1 + $0x20] sm:$0xff pattern:$0x73625140]
      %3043 = vst [vmem:[#allocation1] ss:$4 sm:$0xff] %v2906
      %3044 = vst [vmem:[%s3027] ss:$4 sm:$0xff] %v2907
      %3045 = vst [vmem:[%s3029] ss:$4 sm:$0xff] %v2970
      %3046 = vst [vmem:[%s3031] ss:$4 sm:$0xff] %v2971
      %3047 = vst [vmem:[%s3033] ss:$4 sm:$0xff] %v2972
      %3048 = vst [vmem:[%s3035] ss:$4 sm:$0xff] %v2908
      %3049 = vst [vmem:[%s3037] ss:$4 sm:$0xff] %v2973
      %3050 = vst [vmem:[%s3039] ss:$4 sm:$0xff] %v2974
      %v3051 = vld.sshfl [vmem:[#allocation1] sm:$0xff pattern:$0x73625140]
      %v3052 = vld.sshfl [vmem:[#allocation1 + $0x20] sm:$0xff pattern:$0x73625140]
      %3053 = vst [vmem:[#allocation1] ss:$4 sm:$0xff] %v2975
      %3054 = vst [vmem:[%s3027] ss:$4 sm:$0xff] %v2909
      %3055 = vst [vmem:[%s3029] ss:$4 sm:$0xff] %v2910
      %3056 = vst [vmem:[%s3031] ss:$4 sm:$0xff] %v2976
      %3057 = vst [vmem:[%s3033] ss:$4 sm:$0xff] %v2977
      %3058 = vst [vmem:[%s3035] ss:$4 sm:$0xff] %v2978
      %3059 = vst [vmem:[%s3037] ss:$4 sm:$0xff] %v2911
      %3060 = vst [vmem:[%s3039] ss:$4 sm:$0xff] %v2979
      %v3061 = vld.sshfl [vmem:[#allocation1] sm:$0xff pattern:$0x73625140]
      %v3062 = vld.sshfl [vmem:[#allocation1 + $0x20] sm:$0xff pattern:$0x73625140]
      %3063 = vst [vmem:[#allocation1] ss:$4 sm:$0xff] %v2980
      %3064 = vst [vmem:[%s3027] ss:$4 sm:$0xff] %v2981
      %3065 = vst [vmem:[%s3029] ss:$4 sm:$0xff] %v2912
      %3066 = vst [vmem:[%s3031] ss:$4 sm:$0xff] %v2913
      %3067 = vst [vmem:[%s3033] ss:$4 sm:$0xff] %v2982
      %3068 = vst [vmem:[%s3035] ss:$4 sm:$0xff] %v2983
      %3069 = vst [vmem:[%s3037] ss:$4 sm:$0xff] %v2984
      %3070 = vst [vmem:[%s3039] ss:$4 sm:$0xff] %v2914
      %v3071 = vld.sshfl [vmem:[#allocation1] sm:$0xff pattern:$0x73625140]
      %v3072 = vld.sshfl [vmem:[#allocation1 + $0x20] sm:$0xff pattern:$0x73625140]
      %3073 = vst [vmem:[#allocation1] ss:$4 sm:$0xff] %v2985
      %3074 = vst [vmem:[%s3027] ss:$4 sm:$0xff] %v2986
      %3075 = vst [vmem:[%s3029] ss:$4 sm:$0xff] %v2987
      %3076 = vst [vmem:[%s3031] ss:$4 sm:$0xff] %v2915
      %3077 = vst [vmem:[%s3033] ss:$4 sm:$0xff] %v2916
      %3078 = vst [vmem:[%s3035] ss:$4 sm:$0xff] %v2988
      %3079 = vst [vmem:[%s3037] ss:$4 sm:$0xff] %v2989
      %3080 = vst [vmem:[%s3039] ss:$4 sm:$0xff] %v2990
      %v3081 = vld.sshfl [vmem:[#allocation1] sm:$0xff pattern:$0x73625140]
      %v3082 = vld.sshfl [vmem:[#allocation1 + $0x20] sm:$0xff pattern:$0x73625140]
      %3083 = vst [vmem:[#allocation1] ss:$4 sm:$0xff] %v2917
      %3084 = vst [vmem:[%s3027] ss:$4 sm:$0xff] %v2991
      %3085 = vst [vmem:[%s3029] ss:$4 sm:$0xff] %v2992
      %3086 = vst [vmem:[%s3031] ss:$4 sm:$0xff] %v2993
      %3087 = vst [vmem:[%s3033] ss:$4 sm:$0xff] %v2918
      %3088 = vst [vmem:[%s3035] ss:$4 sm:$0xff] %v2919
      %3089 = vst [vmem:[%s3037] ss:$4 sm:$0xff] %v2994
      %3090 = vst [vmem:[%s3039] ss:$4 sm:$0xff] %v2995
      %v3091 = vld.sshfl [vmem:[#allocation1] sm:$0xff pattern:$0x73625140]
      %v3092 = vld.sshfl [vmem:[#allocation1 + $0x20] sm:$0xff pattern:$0x73625140]
      %3093 = vst [vmem:[#allocation1] ss:$4 sm:$0xff] %v2996
      %3094 = vst [vmem:[%s3027] ss:$4 sm:$0xff] %v2920
      %3095 = vst [vmem:[%s3029] ss:$4 sm:$0xff] %v2997
      %3096 = vst [vmem:[%s3031] ss:$4 sm:$0xff] %v2998
      %3097 = vst [vmem:[%s3033] ss:$4 sm:$0xff] %v2999
      %3098 = vst [vmem:[%s3035] ss:$4 sm:$0xff] %v2921
      %3099 = vst [vmem:[%s3037] ss:$4 sm:$0xff] %v2922
      %3100 = vst [vmem:[%s3039] ss:$4 sm:$0xff] %v3000
      %v3101 = vld.sshfl [vmem:[#allocation1] sm:$0xff pattern:$0x73625140]
      %v3102 = vld.sshfl [vmem:[#allocation1 + $0x20] sm:$0xff pattern:$0x73625140]
      %3103 = vst [vmem:[#allocation1] ss:$4 sm:$0xff] %v3001
      %3104 = vst [vmem:[%s3027] ss:$4 sm:$0xff] %v3002
      %3105 = vst [vmem:[%s3029] ss:$4 sm:$0xff] %v2923
      %3106 = vst [vmem:[%s3031] ss:$4 sm:$0xff] %v3003
      %3107 = vst [vmem:[%s3033] ss:$4 sm:$0xff] %v3004
      %3108 = vst [vmem:[%s3035] ss:$4 sm:$0xff] %v3005
      %3109 = vst [vmem:[%s3037] ss:$4 sm:$0xff] %v2924
      %3110 = vst [vmem:[%s3039] ss:$4 sm:$0xff] %v2925
      %v3111 = vld.sshfl [vmem:[#allocation1] sm:$0xff pattern:$0x73625140]
      %v3112 = vld.sshfl [vmem:[#allocation1 + $0x20] sm:$0xff pattern:$0x73625140]
      %3113 = vst [vmem:[#allocation1] ss:$4 sm:$0xff] %v3006
      %3114 = vst [vmem:[%s3027] ss:$4 sm:$0xff] %v3007
      %3115 = vst [vmem:[%s3029] ss:$4 sm:$0xff] %v3008
      %3116 = vst [vmem:[%s3031] ss:$4 sm:$0xff] %v2926
      %3117 = vst [vmem:[%s3033] ss:$4 sm:$0xff] %v3009
      %3118 = vst [vmem:[%s3035] ss:$4 sm:$0xff] %v3010
      %3119 = vst [vmem:[%s3037] ss:$4 sm:$0xff] %v3011
      %3120 = vst [vmem:[%s3039] ss:$4 sm:$0xff] %v2927
      %v3121 = vld.sshfl [vmem:[#allocation1] sm:$0xff pattern:$0x73625140]
      %v3122 = vld.sshfl [vmem:[#allocation1 + $0x20] sm:$0xff pattern:$0x73625140]
      %3123 = vst [vmem:[#allocation1] ss:$4 sm:$0xff] %v2928
      %3124 = vst [vmem:[%s3027] ss:$4 sm:$0xff] %v3012
      %3125 = vst [vmem:[%s3029] ss:$4 sm:$0xff] %v3013
      %3126 = vst [vmem:[%s3031] ss:$4 sm:$0xff] %v3014
      %3127 = vst [vmem:[%s3033] ss:$4 sm:$0xff] %v2929
      %3128 = vst [vmem:[%s3035] ss:$4 sm:$0xff] %v3015
      %3129 = vst [vmem:[%s3037] ss:$4 sm:$0xff] %v3016
      %3130 = vst [vmem:[%s3039] ss:$4 sm:$0xff] %v3017
      %v3131 = vld.sshfl [vmem:[#allocation1] sm:$0xff pattern:$0x73625140]
      %v3132 = vld.sshfl [vmem:[#allocation1 + $0x20] sm:$0xff pattern:$0x73625140]
      %3133 = vst [vmem:[#allocation1] ss:$4 sm:$0xff] %v2930
      %3134 = vst [vmem:[%s3027] ss:$4 sm:$0xff] %v2931
      %3135 = vst [vmem:[%s3029] ss:$4 sm:$0xff] %v3018
      %3136 = vst [vmem:[%s3031] ss:$4 sm:$0xff] %v3019
      %3137 = vst [vmem:[%s3033] ss:$4 sm:$0xff] %v3020
      %3138 = vst [vmem:[%s3035] ss:$4 sm:$0xff] %v2932
      %3139 = vst [vmem:[%s3037] ss:$4 sm:$0xff] %v3021
      %3140 = vst [vmem:[%s3039] ss:$4 sm:$0xff] %v3022
      %v3141 = vld.sshfl [vmem:[#allocation1] sm:$0xff pattern:$0x73625140]
      %v3142 = vld.sshfl [vmem:[#allocation1 + $0x20] sm:$0xff pattern:$0x73625140]
      %3143 = vst [vmem:[#allocation1] ss:$4 sm:$0xff] %v3023
      %3144 = vst [vmem:[%s3027] ss:$4 sm:$0xff] %v2933
      %v3145 = vld.sshfl [vmem:[#allocation1] sm:$0xff pattern:$0x73625140]
      %v3146 = vsel %vm506, %v3041, 0
      %v3148 = vsel %vm506, %v3042, 0
      %v3150 = vsel %vm506, %v3051, 0
      %v3152 = vsel %vm506, %v3052, 0
      %v3154 = vsel %vm506, %v3061, 0
      %v3156 = vsel %vm506, %v3062, 0
      %v3158 = vsel %vm506, %v3071, 0
      %v3160 = vsel %vm506, %v3072, 0
      %v3162 = vsel %vm506, %v3081, 0
      %v3164 = vsel %vm506, %v3082, 0
      %v3166 = vsel %vm506, %v3091, 0
      %v3168 = vsel %vm506, %v3092, 0
      %v3170 = vsel %vm506, %v3101, 0
      %v3172 = vsel %vm506, %v3102, 0
      %v3174 = vsel %vm506, %v3111, 0
      %v3176 = vsel %vm506, %v3112, 0
      %v3178 = vsel %vm506, %v3121, 0
      %v3180 = vsel %vm506, %v3122, 0
      %v3182 = vsel %vm506, %v3131, 0
      %v3184 = vsel %vm506, %v3132, 0
      %v3186 = vsel %vm506, %v3141, 0
      %v3188 = vsel %vm506, %v3142, 0
      %v3190 = vsel %vm506, %v3145, 0
      %v3193 = vsel %vm958, %v3025, 0
      %3195 = vmatpush.msra.mxu0 0.0
      %3196 = vmatpush.msra.mxu0 0.0
      %3197 = vmatpush.msra.mxu0 0.0
      %3198 = vmatpush.msra.mxu0 0.0
      %3199 = vmatpush.msra.mxu0 0.0
      %3200 = vmatpush.msra.mxu0 0.0
      %3201 = vmatpush.msra.mxu0 0.0
      %3202 = vmatpush.msra.mxu0 0.0
      %3203 = vmatpush.msra.mxu0 0.0
      %3204 = vmatpush.msra.mxu0 0.0
      %3205 = vmatpush.msra.mxu0 0.0
      %3206 = vmatpush.msra.mxu0 0.0
      %3207 = vmatpush.msra.mxu0 0.0
      %3208 = vmatpush.msra.mxu0 0.0
      %3209 = vmatpush.msra.mxu0 0.0
      %3210 = vmatpush.msra.mxu0 %v3193
      %3211 = vmatmul.f32.gmra.mxu0 %v3146
      %v3212 = vpop.f32.mrf.mxu0
      %v3213 = vadd.f32 0.0, %v3212
      %3214 = vmatmul.f32.gmra.mxu0 %v3148
      %v3215 = vpop.f32.mrf.mxu0
      %v3216 = vadd.f32 0.0, %v3215
      %3217 = vmatmul.f32.gmra.mxu0 %v3150
      %v3218 = vpop.f32.mrf.mxu0
      %v3219 = vadd.f32 0.0, %v3218
      %3220 = vmatmul.f32.gmra.mxu0 %v3152
      %v3221 = vpop.f32.mrf.mxu0
      %v3222 = vadd.f32 0.0, %v3221
      %3223 = vmatmul.f32.gmra.mxu0 %v3154
      %v3224 = vpop.f32.mrf.mxu0
      %v3225 = vadd.f32 0.0, %v3224
      %3226 = vmatmul.f32.gmra.mxu0 %v3156
      %v3227 = vpop.f32.mrf.mxu0
      %v3228 = vadd.f32 0.0, %v3227
      %3229 = vmatmul.f32.gmra.mxu0 %v3158
      %v3230 = vpop.f32.mrf.mxu0
      %v3231 = vadd.f32 0.0, %v3230
      %3232 = vmatmul.f32.gmra.mxu0 %v3160
      %v3233 = vpop.f32.mrf.mxu0
      %v3234 = vadd.f32 0.0, %v3233
      %3235 = vmatmul.f32.gmra.mxu0 %v3162
      %v3236 = vpop.f32.mrf.mxu0
      %v3237 = vadd.f32 0.0, %v3236
      %3238 = vmatmul.f32.gmra.mxu0 %v3164
      %v3239 = vpop.f32.mrf.mxu0
      %v3240 = vadd.f32 0.0, %v3239
      %3241 = vmatmul.f32.gmra.mxu0 %v3166
      %v3242 = vpop.f32.mrf.mxu0
      %v3243 = vadd.f32 0.0, %v3242
      %3244 = vmatmul.f32.gmra.mxu0 %v3168
      %v3245 = vpop.f32.mrf.mxu0
      %v3246 = vadd.f32 0.0, %v3245
      %3247 = vmatmul.f32.gmra.mxu0 %v3170
      %v3248 = vpop.f32.mrf.mxu0
      %v3249 = vadd.f32 0.0, %v3248
      %3250 = vmatmul.f32.gmra.mxu0 %v3172
      %v3251 = vpop.f32.mrf.mxu0
      %v3252 = vadd.f32 0.0, %v3251
      %3253 = vmatmul.f32.gmra.mxu0 %v3174
      %v3254 = vpop.f32.mrf.mxu0
      %v3255 = vadd.f32 0.0, %v3254
      %3256 = vmatmul.f32.gmra.mxu0 %v3176
      %v3257 = vpop.f32.mrf.mxu0
      %v3258 = vadd.f32 0.0, %v3257
      %3259 = vmatmul.f32.gmra.mxu0 %v3178
      %v3260 = vpop.f32.mrf.mxu0
      %v3261 = vadd.f32 0.0, %v3260
      %3262 = vmatmul.f32.gmra.mxu0 %v3180
      %v3263 = vpop.f32.mrf.mxu0
      %v3264 = vadd.f32 0.0, %v3263
      %3265 = vmatmul.f32.gmra.mxu0 %v3182
      %v3266 = vpop.f32.mrf.mxu0
      %v3267 = vadd.f32 0.0, %v3266
      %3268 = vmatmul.f32.gmra.mxu0 %v3184
      %v3269 = vpop.f32.mrf.mxu0
      %v3270 = vadd.f32 0.0, %v3269
      %3271 = vmatmul.f32.gmra.mxu0 %v3186
      %v3272 = vpop.f32.mrf.mxu0
      %v3273 = vadd.f32 0.0, %v3272
      %3274 = vmatmul.f32.gmra.mxu0 %v3188
      %v3275 = vpop.f32.mrf.mxu0
      %v3276 = vadd.f32 0.0, %v3275
      %3277 = vmatmul.f32.gmra.mxu0 %v3190
      %v3278 = vpop.f32.mrf.mxu0
      %v3279 = vadd.f32 0.0, %v3278
      %3280 = vdwg.mxu0
      %v3281 = vadd.f32 %v2881, %v3213
      %v3282 = vadd.f32 %v2882, %v3216
      %v3283 = vadd.f32 %v2883, %v3219
      %v3284 = vadd.f32 %v2884, %v3222
      %v3285 = vadd.f32 %v2885, %v3225
      %v3286 = vadd.f32 %v2886, %v3228
      %v3287 = vadd.f32 %v2887, %v3231
      %v3288 = vadd.f32 %v2888, %v3234
      %v3289 = vadd.f32 %v2889, %v3237
      %v3290 = vadd.f32 %v2890, %v3240
      %v3291 = vadd.f32 %v2891, %v3243
      %v3292 = vadd.f32 %v2892, %v3246
      %v3293 = vadd.f32 %v2893, %v3249
      %v3294 = vadd.f32 %v2894, %v3252
      %v3295 = vadd.f32 %v2895, %v3255
      %v3296 = vadd.f32 %v2896, %v3258
      %v3297 = vadd.f32 %v2897, %v3261
      %v3298 = vadd.f32 %v2898, %v3264
      %v3299 = vadd.f32 %v2899, %v3267
      %v3300 = vadd.f32 %v2900, %v3270
      %v3301 = vadd.f32 %v2901, %v3273
      %v3302 = vadd.f32 %v2902, %v3276
      %v3303 = vadd.f32 %v2903, %v3279
      %v3304 = vld [vmem:[%s527 + $0x1] sm:$0xff]
      %v3305 = vld [vmem:[%s527 + $0x9] sm:$0xff]
      %v3306 = vld [vmem:[%s527 + $0x11] sm:$0x3]
      %v3307 = vld [vmem:[%s527 + $0x19] sm:$0xff]
      %v3308 = vld [vmem:[%s527 + $0x21] sm:$0xff]
      %v3309 = vld [vmem:[%s527 + $0x29] sm:$0x3]
      %v3310 = vld [vmem:[%s527 + $0x31] sm:$0xff]
      %v3311 = vld [vmem:[%s527 + $0x39] sm:$0xff]
      %v3312 = vld [vmem:[%s527 + $0x41] sm:$0x3]
      %v3313 = vld [vmem:[%s527 + $0x49] sm:$0xff]
      %v3314 = vld [vmem:[%s527 + $0x51] sm:$0xff]
      %v3315 = vld [vmem:[%s527 + $0x59] sm:$0x3]
      %v3316 = vld [vmem:[%s527 + $0x61] sm:$0xff]
      %v3317 = vld [vmem:[%s527 + $0x69] sm:$0xff]
      %v3318 = vld [vmem:[%s527 + $0x71] sm:$0x3]
      %v3319 = vld [vmem:[%s527 + $0x79] sm:$0xff]
      %v3320 = vld [vmem:[%s527 + $0x81] sm:$0xff]
      %v3321 = vld [vmem:[%s527 + $0x89] sm:$0x3]
      %v3322 = vld [vmem:[%s527 + $0x91] sm:$0xff]
      %v3323 = vld [vmem:[%s527 + $0x99] sm:$0xff]
      %v3324 = vld [vmem:[%s527 + $0xa1] sm:$0x3]
      %v3325 = vld [vmem:[%s527 + $0xa9] sm:$0xff]
      %v3326 = vld [vmem:[%s527 + $0xb1] sm:$0xff]
      %v3327 = vld [vmem:[%s527 + $0xb9] sm:$0x3]
      %v3328 = vld [vmem:[%s527 + $0xc1] sm:$0xff]
      %v3329 = vld [vmem:[%s527 + $0xc9] sm:$0xff]
      %v3330 = vld [vmem:[%s527 + $0xd1] sm:$0x3]
      %v3331 = vld [vmem:[%s527 + $0xd9] sm:$0xff]
      %v3332 = vld [vmem:[%s527 + $0xe1] sm:$0xff]
      %v3333 = vld [vmem:[%s527 + $0xe9] sm:$0x3]
      %v3364 = vrot.slane %v3304, 2
      %v3365 = vrot.slane %v3304, 4
      %v3366 = vrot.slane %v3304, 6
      %v3367 = vrot.slane %v3305, 2
      %v3368 = vrot.slane %v3305, 4
      %v3369 = vrot.slane %v3305, 6
      %v3370 = vrot.slane %v3307, 2
      %v3371 = vrot.slane %v3307, 4
      %v3372 = vrot.slane %v3307, 6
      %v3373 = vrot.slane %v3308, 2
      %v3374 = vrot.slane %v3308, 4
      %v3375 = vrot.slane %v3308, 6
      %v3376 = vrot.slane %v3310, 2
      %v3377 = vrot.slane %v3310, 4
      %v3378 = vrot.slane %v3310, 6
      %v3379 = vrot.slane %v3311, 2
      %v3380 = vrot.slane %v3311, 4
      %v3381 = vrot.slane %v3311, 6
      %v3382 = vrot.slane %v3313, 2
      %v3383 = vrot.slane %v3313, 4
      %v3384 = vrot.slane %v3313, 6
      %v3385 = vrot.slane %v3314, 2
      %v3386 = vrot.slane %v3314, 4
      %v3387 = vrot.slane %v3314, 6
      %v3388 = vrot.slane %v3316, 2
      %v3389 = vrot.slane %v3316, 4
      %v3390 = vrot.slane %v3316, 6
      %v3391 = vrot.slane %v3317, 2
      %v3392 = vrot.slane %v3317, 4
      %v3393 = vrot.slane %v3317, 6
      %v3394 = vrot.slane %v3319, 2
      %v3395 = vrot.slane %v3319, 4
      %v3396 = vrot.slane %v3319, 6
      %v3397 = vrot.slane %v3320, 2
      %v3398 = vrot.slane %v3320, 4
      %v3399 = vrot.slane %v3320, 6
      %v3400 = vrot.slane %v3322, 2
      %v3401 = vrot.slane %v3322, 4
      %v3402 = vrot.slane %v3322, 6
      %v3403 = vrot.slane %v3323, 2
      %v3404 = vrot.slane %v3323, 4
      %v3405 = vrot.slane %v3323, 6
      %v3406 = vrot.slane %v3325, 2
      %v3407 = vrot.slane %v3325, 4
      %v3408 = vrot.slane %v3325, 6
      %v3409 = vrot.slane %v3326, 2
      %v3410 = vrot.slane %v3326, 4
      %v3411 = vrot.slane %v3326, 6
      %v3412 = vrot.slane %v3328, 2
      %v3413 = vrot.slane %v3328, 4
      %v3414 = vrot.slane %v3328, 6
      %v3415 = vrot.slane %v3329, 2
      %v3416 = vrot.slane %v3329, 4
      %v3417 = vrot.slane %v3329, 6
      %v3418 = vrot.slane %v3331, 2
      %v3419 = vrot.slane %v3331, 4
      %v3420 = vrot.slane %v3331, 6
      %v3421 = vrot.slane %v3332, 2
      %v3422 = vrot.slane %v3332, 4
      %v3423 = vrot.slane %v3332, 6
      %s3424 = scalar_lea.vmem %s3, 28
      %v3425 = vld [vmem:[%s3424] sm:$0xf]
      %3426 = vst [vmem:[#allocation1] ss:$4 sm:$0xff] %v3304
      %s3427 = scalar_lea.vmem [#allocation1], 1
      %3428 = vst [vmem:[%s3427] ss:$4 sm:$0xff] %v3364
      %s3429 = scalar_lea.vmem [#allocation1], 2
      %3430 = vst [vmem:[%s3429] ss:$4 sm:$0xff] %v3365
      %s3431 = scalar_lea.vmem [#allocation1], 3
      %3432 = vst [vmem:[%s3431] ss:$4 sm:$0xff] %v3366
      %s3433 = scalar_lea.vmem [#allocation1], 32
      %3434 = vst [vmem:[%s3433] ss:$4 sm:$0xff] %v3305
      %s3435 = scalar_lea.vmem [#allocation1], 33
      %3436 = vst [vmem:[%s3435] ss:$4 sm:$0xff] %v3367
      %s3437 = scalar_lea.vmem [#allocation1], 34
      %3438 = vst [vmem:[%s3437] ss:$4 sm:$0xff] %v3368
      %s3439 = scalar_lea.vmem [#allocation1], 35
      %3440 = vst [vmem:[%s3439] ss:$4 sm:$0xff] %v3369
      %v3441 = vld.sshfl [vmem:[#allocation1] sm:$0xff pattern:$0x73625140]
      %v3442 = vld.sshfl [vmem:[#allocation1 + $0x20] sm:$0xff pattern:$0x73625140]
      %3443 = vst [vmem:[#allocation1] ss:$4 sm:$0xff] %v3306
      %3444 = vst [vmem:[%s3427] ss:$4 sm:$0xff] %v3307
      %3445 = vst [vmem:[%s3429] ss:$4 sm:$0xff] %v3370
      %3446 = vst [vmem:[%s3431] ss:$4 sm:$0xff] %v3371
      %3447 = vst [vmem:[%s3433] ss:$4 sm:$0xff] %v3372
      %3448 = vst [vmem:[%s3435] ss:$4 sm:$0xff] %v3308
      %3449 = vst [vmem:[%s3437] ss:$4 sm:$0xff] %v3373
      %3450 = vst [vmem:[%s3439] ss:$4 sm:$0xff] %v3374
      %v3451 = vld.sshfl [vmem:[#allocation1] sm:$0xff pattern:$0x73625140]
      %v3452 = vld.sshfl [vmem:[#allocation1 + $0x20] sm:$0xff pattern:$0x73625140]
      %3453 = vst [vmem:[#allocation1] ss:$4 sm:$0xff] %v3375
      %3454 = vst [vmem:[%s3427] ss:$4 sm:$0xff] %v3309
      %3455 = vst [vmem:[%s3429] ss:$4 sm:$0xff] %v3310
      %3456 = vst [vmem:[%s3431] ss:$4 sm:$0xff] %v3376
      %3457 = vst [vmem:[%s3433] ss:$4 sm:$0xff] %v3377
      %3458 = vst [vmem:[%s3435] ss:$4 sm:$0xff] %v3378
      %3459 = vst [vmem:[%s3437] ss:$4 sm:$0xff] %v3311
      %3460 = vst [vmem:[%s3439] ss:$4 sm:$0xff] %v3379
      %v3461 = vld.sshfl [vmem:[#allocation1] sm:$0xff pattern:$0x73625140]
      %v3462 = vld.sshfl [vmem:[#allocation1 + $0x20] sm:$0xff pattern:$0x73625140]
      %3463 = vst [vmem:[#allocation1] ss:$4 sm:$0xff] %v3380
      %3464 = vst [vmem:[%s3427] ss:$4 sm:$0xff] %v3381
      %3465 = vst [vmem:[%s3429] ss:$4 sm:$0xff] %v3312
      %3466 = vst [vmem:[%s3431] ss:$4 sm:$0xff] %v3313
      %3467 = vst [vmem:[%s3433] ss:$4 sm:$0xff] %v3382
      %3468 = vst [vmem:[%s3435] ss:$4 sm:$0xff] %v3383
      %3469 = vst [vmem:[%s3437] ss:$4 sm:$0xff] %v3384
      %3470 = vst [vmem:[%s3439] ss:$4 sm:$0xff] %v3314
      %v3471 = vld.sshfl [vmem:[#allocation1] sm:$0xff pattern:$0x73625140]
      %v3472 = vld.sshfl [vmem:[#allocation1 + $0x20] sm:$0xff pattern:$0x73625140]
      %3473 = vst [vmem:[#allocation1] ss:$4 sm:$0xff] %v3385
      %3474 = vst [vmem:[%s3427] ss:$4 sm:$0xff] %v3386
      %3475 = vst [vmem:[%s3429] ss:$4 sm:$0xff] %v3387
      %3476 = vst [vmem:[%s3431] ss:$4 sm:$0xff] %v3315
      %3477 = vst [vmem:[%s3433] ss:$4 sm:$0xff] %v3316
      %3478 = vst [vmem:[%s3435] ss:$4 sm:$0xff] %v3388
      %3479 = vst [vmem:[%s3437] ss:$4 sm:$0xff] %v3389
      %3480 = vst [vmem:[%s3439] ss:$4 sm:$0xff] %v3390
      %v3481 = vld.sshfl [vmem:[#allocation1] sm:$0xff pattern:$0x73625140]
      %v3482 = vld.sshfl [vmem:[#allocation1 + $0x20] sm:$0xff pattern:$0x73625140]
      %3483 = vst [vmem:[#allocation1] ss:$4 sm:$0xff] %v3317
      %3484 = vst [vmem:[%s3427] ss:$4 sm:$0xff] %v3391
      %3485 = vst [vmem:[%s3429] ss:$4 sm:$0xff] %v3392
      %3486 = vst [vmem:[%s3431] ss:$4 sm:$0xff] %v3393
      %3487 = vst [vmem:[%s3433] ss:$4 sm:$0xff] %v3318
      %3488 = vst [vmem:[%s3435] ss:$4 sm:$0xff] %v3319
      %3489 = vst [vmem:[%s3437] ss:$4 sm:$0xff] %v3394
      %3490 = vst [vmem:[%s3439] ss:$4 sm:$0xff] %v3395
      %v3491 = vld.sshfl [vmem:[#allocation1] sm:$0xff pattern:$0x73625140]
      %v3492 = vld.sshfl [vmem:[#allocation1 + $0x20] sm:$0xff pattern:$0x73625140]
      %3493 = vst [vmem:[#allocation1] ss:$4 sm:$0xff] %v3396
      %3494 = vst [vmem:[%s3427] ss:$4 sm:$0xff] %v3320
      %3495 = vst [vmem:[%s3429] ss:$4 sm:$0xff] %v3397
      %3496 = vst [vmem:[%s3431] ss:$4 sm:$0xff] %v3398
      %3497 = vst [vmem:[%s3433] ss:$4 sm:$0xff] %v3399
      %3498 = vst [vmem:[%s3435] ss:$4 sm:$0xff] %v3321
      %3499 = vst [vmem:[%s3437] ss:$4 sm:$0xff] %v3322
      %3500 = vst [vmem:[%s3439] ss:$4 sm:$0xff] %v3400
      %v3501 = vld.sshfl [vmem:[#allocation1] sm:$0xff pattern:$0x73625140]
      %v3502 = vld.sshfl [vmem:[#allocation1 + $0x20] sm:$0xff pattern:$0x73625140]
      %3503 = vst [vmem:[#allocation1] ss:$4 sm:$0xff] %v3401
      %3504 = vst [vmem:[%s3427] ss:$4 sm:$0xff] %v3402
      %3505 = vst [vmem:[%s3429] ss:$4 sm:$0xff] %v3323
      %3506 = vst [vmem:[%s3431] ss:$4 sm:$0xff] %v3403
      %3507 = vst [vmem:[%s3433] ss:$4 sm:$0xff] %v3404
      %3508 = vst [vmem:[%s3435] ss:$4 sm:$0xff] %v3405
      %3509 = vst [vmem:[%s3437] ss:$4 sm:$0xff] %v3324
      %3510 = vst [vmem:[%s3439] ss:$4 sm:$0xff] %v3325
      %v3511 = vld.sshfl [vmem:[#allocation1] sm:$0xff pattern:$0x73625140]
      %v3512 = vld.sshfl [vmem:[#allocation1 + $0x20] sm:$0xff pattern:$0x73625140]
      %3513 = vst [vmem:[#allocation1] ss:$4 sm:$0xff] %v3406
      %3514 = vst [vmem:[%s3427] ss:$4 sm:$0xff] %v3407
      %3515 = vst [vmem:[%s3429] ss:$4 sm:$0xff] %v3408
      %3516 = vst [vmem:[%s3431] ss:$4 sm:$0xff] %v3326
      %3517 = vst [vmem:[%s3433] ss:$4 sm:$0xff] %v3409
      %3518 = vst [vmem:[%s3435] ss:$4 sm:$0xff] %v3410
      %3519 = vst [vmem:[%s3437] ss:$4 sm:$0xff] %v3411
      %3520 = vst [vmem:[%s3439] ss:$4 sm:$0xff] %v3327
      %v3521 = vld.sshfl [vmem:[#allocation1] sm:$0xff pattern:$0x73625140]
      %v3522 = vld.sshfl [vmem:[#allocation1 + $0x20] sm:$0xff pattern:$0x73625140]
      %3523 = vst [vmem:[#allocation1] ss:$4 sm:$0xff] %v3328
      %3524 = vst [vmem:[%s3427] ss:$4 sm:$0xff] %v3412
      %3525 = vst [vmem:[%s3429] ss:$4 sm:$0xff] %v3413
      %3526 = vst [vmem:[%s3431] ss:$4 sm:$0xff] %v3414
      %3527 = vst [vmem:[%s3433] ss:$4 sm:$0xff] %v3329
      %3528 = vst [vmem:[%s3435] ss:$4 sm:$0xff] %v3415
      %3529 = vst [vmem:[%s3437] ss:$4 sm:$0xff] %v3416
      %3530 = vst [vmem:[%s3439] ss:$4 sm:$0xff] %v3417
      %v3531 = vld.sshfl [vmem:[#allocation1] sm:$0xff pattern:$0x73625140]
      %v3532 = vld.sshfl [vmem:[#allocation1 + $0x20] sm:$0xff pattern:$0x73625140]
      %3533 = vst [vmem:[#allocation1] ss:$4 sm:$0xff] %v3330
      %3534 = vst [vmem:[%s3427] ss:$4 sm:$0xff] %v3331
      %3535 = vst [vmem:[%s3429] ss:$4 sm:$0xff] %v3418
      %3536 = vst [vmem:[%s3431] ss:$4 sm:$0xff] %v3419
      %3537 = vst [vmem:[%s3433] ss:$4 sm:$0xff] %v3420
      %3538 = vst [vmem:[%s3435] ss:$4 sm:$0xff] %v3332
      %3539 = vst [vmem:[%s3437] ss:$4 sm:$0xff] %v3421
      %3540 = vst [vmem:[%s3439] ss:$4 sm:$0xff] %v3422
      %v3541 = vld.sshfl [vmem:[#allocation1] sm:$0xff pattern:$0x73625140]
      %v3542 = vld.sshfl [vmem:[#allocation1 + $0x20] sm:$0xff pattern:$0x73625140]
      %3543 = vst [vmem:[#allocation1] ss:$4 sm:$0xff] %v3423
      %3544 = vst [vmem:[%s3427] ss:$4 sm:$0xff] %v3333
      %v3545 = vld.sshfl [vmem:[#allocation1] sm:$0xff pattern:$0x73625140]
      %v3546 = vsel %vm506, %v3441, 0
      %v3548 = vsel %vm506, %v3442, 0
      %v3550 = vsel %vm506, %v3451, 0
      %v3552 = vsel %vm506, %v3452, 0
      %v3554 = vsel %vm506, %v3461, 0
      %v3556 = vsel %vm506, %v3462, 0
      %v3558 = vsel %vm506, %v3471, 0
      %v3560 = vsel %vm506, %v3472, 0
      %v3562 = vsel %vm506, %v3481, 0
      %v3564 = vsel %vm506, %v3482, 0
      %v3566 = vsel %vm506, %v3491, 0
      %v3568 = vsel %vm506, %v3492, 0
      %v3570 = vsel %vm506, %v3501, 0
      %v3572 = vsel %vm506, %v3502, 0
      %v3574 = vsel %vm506, %v3511, 0
      %v3576 = vsel %vm506, %v3512, 0
      %v3578 = vsel %vm506, %v3521, 0
      %v3580 = vsel %vm506, %v3522, 0
      %v3582 = vsel %vm506, %v3531, 0
      %v3584 = vsel %vm506, %v3532, 0
      %v3586 = vsel %vm506, %v3541, 0
      %v3588 = vsel %vm506, %v3542, 0
      %v3590 = vsel %vm506, %v3545, 0
      %v3593 = vsel %vm958, %v3425, 0
      %3595 = vmatpush.msra.mxu0 0.0
      %3596 = vmatpush.msra.mxu0 0.0
      %3597 = vmatpush.msra.mxu0 0.0
      %3598 = vmatpush.msra.mxu0 0.0
      %3599 = vmatpush.msra.mxu0 0.0
      %3600 = vmatpush.msra.mxu0 0.0
      %3601 = vmatpush.msra.mxu0 0.0
      %3602 = vmatpush.msra.mxu0 0.0
      %3603 = vmatpush.msra.mxu0 0.0
      %3604 = vmatpush.msra.mxu0 0.0
      %3605 = vmatpush.msra.mxu0 0.0
      %3606 = vmatpush.msra.mxu0 0.0
      %3607 = vmatpush.msra.mxu0 0.0
      %3608 = vmatpush.msra.mxu0 0.0
      %3609 = vmatpush.msra.mxu0 0.0
      %3610 = vmatpush.msra.mxu0 %v3593
      %3611 = vmatmul.f32.gmra.mxu0 %v3546
      %v3612 = vpop.f32.mrf.mxu0
      %v3613 = vadd.f32 0.0, %v3612
      %3614 = vmatmul.f32.gmra.mxu0 %v3548
      %v3615 = vpop.f32.mrf.mxu0
      %v3616 = vadd.f32 0.0, %v3615
      %3617 = vmatmul.f32.gmra.mxu0 %v3550
      %v3618 = vpop.f32.mrf.mxu0
      %v3619 = vadd.f32 0.0, %v3618
      %3620 = vmatmul.f32.gmra.mxu0 %v3552
      %v3621 = vpop.f32.mrf.mxu0
      %v3622 = vadd.f32 0.0, %v3621
      %3623 = vmatmul.f32.gmra.mxu0 %v3554
      %v3624 = vpop.f32.mrf.mxu0
      %v3625 = vadd.f32 0.0, %v3624
      %3626 = vmatmul.f32.gmra.mxu0 %v3556
      %v3627 = vpop.f32.mrf.mxu0
      %v3628 = vadd.f32 0.0, %v3627
      %3629 = vmatmul.f32.gmra.mxu0 %v3558
      %v3630 = vpop.f32.mrf.mxu0
      %v3631 = vadd.f32 0.0, %v3630
      %3632 = vmatmul.f32.gmra.mxu0 %v3560
      %v3633 = vpop.f32.mrf.mxu0
      %v3634 = vadd.f32 0.0, %v3633
      %3635 = vmatmul.f32.gmra.mxu0 %v3562
      %v3636 = vpop.f32.mrf.mxu0
      %v3637 = vadd.f32 0.0, %v3636
      %3638 = vmatmul.f32.gmra.mxu0 %v3564
      %v3639 = vpop.f32.mrf.mxu0
      %v3640 = vadd.f32 0.0, %v3639
      %3641 = vmatmul.f32.gmra.mxu0 %v3566
      %v3642 = vpop.f32.mrf.mxu0
      %v3643 = vadd.f32 0.0, %v3642
      %3644 = vmatmul.f32.gmra.mxu0 %v3568
      %v3645 = vpop.f32.mrf.mxu0
      %v3646 = vadd.f32 0.0, %v3645
      %3647 = vmatmul.f32.gmra.mxu0 %v3570
      %v3648 = vpop.f32.mrf.mxu0
      %v3649 = vadd.f32 0.0, %v3648
      %3650 = vmatmul.f32.gmra.mxu0 %v3572
      %v3651 = vpop.f32.mrf.mxu0
      %v3652 = vadd.f32 0.0, %v3651
      %3653 = vmatmul.f32.gmra.mxu0 %v3574
      %v3654 = vpop.f32.mrf.mxu0
      %v3655 = vadd.f32 0.0, %v3654
      %3656 = vmatmul.f32.gmra.mxu0 %v3576
      %v3657 = vpop.f32.mrf.mxu0
      %v3658 = vadd.f32 0.0, %v3657
      %3659 = vmatmul.f32.gmra.mxu0 %v3578
      %v3660 = vpop.f32.mrf.mxu0
      %v3661 = vadd.f32 0.0, %v3660
      %3662 = vmatmul.f32.gmra.mxu0 %v3580
      %v3663 = vpop.f32.mrf.mxu0
      %v3664 = vadd.f32 0.0, %v3663
      %3665 = vmatmul.f32.gmra.mxu0 %v3582
      %v3666 = vpop.f32.mrf.mxu0
      %v3667 = vadd.f32 0.0, %v3666
      %3668 = vmatmul.f32.gmra.mxu0 %v3584
      %v3669 = vpop.f32.mrf.mxu0
      %v3670 = vadd.f32 0.0, %v3669
      %3671 = vmatmul.f32.gmra.mxu0 %v3586
      %v3672 = vpop.f32.mrf.mxu0
      %v3673 = vadd.f32 0.0, %v3672
      %3674 = vmatmul.f32.gmra.mxu0 %v3588
      %v3675 = vpop.f32.mrf.mxu0
      %v3676 = vadd.f32 0.0, %v3675
      %3677 = vmatmul.f32.gmra.mxu0 %v3590
      %v3678 = vpop.f32.mrf.mxu0
      %v3679 = vadd.f32 0.0, %v3678
      %3680 = vdwg.mxu0
      %v3681 = vadd.f32 %v3281, %v3613
      %v3682 = vadd.f32 %v3282, %v3616
      %v3683 = vadd.f32 %v3283, %v3619
      %v3684 = vadd.f32 %v3284, %v3622
      %v3685 = vadd.f32 %v3285, %v3625
      %v3686 = vadd.f32 %v3286, %v3628
      %v3687 = vadd.f32 %v3287, %v3631
      %v3688 = vadd.f32 %v3288, %v3634
      %v3689 = vadd.f32 %v3289, %v3637
      %v3690 = vadd.f32 %v3290, %v3640
      %v3691 = vadd.f32 %v3291, %v3643
      %v3692 = vadd.f32 %v3292, %v3646
      %v3693 = vadd.f32 %v3293, %v3649
      %v3694 = vadd.f32 %v3294, %v3652
      %v3695 = vadd.f32 %v3295, %v3655
      %v3696 = vadd.f32 %v3296, %v3658
      %v3697 = vadd.f32 %v3297, %v3661
      %v3698 = vadd.f32 %v3298, %v3664
      %v3699 = vadd.f32 %v3299, %v3667
      %v3700 = vadd.f32 %v3300, %v3670
      %v3701 = vadd.f32 %v3301, %v3673
      %v3702 = vadd.f32 %v3302, %v3676
      %v3703 = vadd.f32 %v3303, %v3679
      %v3704 = vld [vmem:[%s527 + $0x2] sm:$0xff]
      %v3705 = vld [vmem:[%s527 + $0xa] sm:$0xff]
      %v3706 = vld [vmem:[%s527 + $0x12] sm:$0x3]
      %v3707 = vld [vmem:[%s527 + $0x1a] sm:$0xff]
      %v3708 = vld [vmem:[%s527 + $0x22] sm:$0xff]
      %v3709 = vld [vmem:[%s527 + $0x2a] sm:$0x3]
      %v3710 = vld [vmem:[%s527 + $0x32] sm:$0xff]
      %v3711 = vld [vmem:[%s527 + $0x3a] sm:$0xff]
      %v3712 = vld [vmem:[%s527 + $0x42] sm:$0x3]
      %v3713 = vld [vmem:[%s527 + $0x4a] sm:$0xff]
      %v3714 = vld [vmem:[%s527 + $0x52] sm:$0xff]
      %v3715 = vld [vmem:[%s527 + $0x5a] sm:$0x3]
      %v3716 = vld [vmem:[%s527 + $0x62] sm:$0xff]
      %v3717 = vld [vmem:[%s527 + $0x6a] sm:$0xff]
      %v3718 = vld [vmem:[%s527 + $0x72] sm:$0x3]
      %v3719 = vld [vmem:[%s527 + $0x7a] sm:$0xff]
      %v3720 = vld [vmem:[%s527 + $0x82] sm:$0xff]
      %v3721 = vld [vmem:[%s527 + $0x8a] sm:$0x3]
      %v3722 = vld [vmem:[%s527 + $0x92] sm:$0xff]
      %v3723 = vld [vmem:[%s527 + $0x9a] sm:$0xff]
      %v3724 = vld [vmem:[%s527 + $0xa2] sm:$0x3]
      %v3725 = vld [vmem:[%s527 + $0xaa] sm:$0xff]
      %v3726 = vld [vmem:[%s527 + $0xb2] sm:$0xff]
      %v3727 = vld [vmem:[%s527 + $0xba] sm:$0x3]
      %v3728 = vld [vmem:[%s527 + $0xc2] sm:$0xff]
      %v3729 = vld [vmem:[%s527 + $0xca] sm:$0xff]
      %v3730 = vld [vmem:[%s527 + $0xd2] sm:$0x3]
      %v3731 = vld [vmem:[%s527 + $0xda] sm:$0xff]
      %v3732 = vld [vmem:[%s527 + $0xe2] sm:$0xff]
      %v3733 = vld [vmem:[%s527 + $0xea] sm:$0x3]
      %v3764 = vrot.slane %v3704, 2
      %v3765 = vrot.slane %v3704, 4
      %v3766 = vrot.slane %v3704, 6
      %v3767 = vrot.slane %v3705, 2
      %v3768 = vrot.slane %v3705, 4
      %v3769 = vrot.slane %v3705, 6
      %v3770 = vrot.slane %v3707, 2
      %v3771 = vrot.slane %v3707, 4
      %v3772 = vrot.slane %v3707, 6
      %v3773 = vrot.slane %v3708, 2
      %v3774 = vrot.slane %v3708, 4
      %v3775 = vrot.slane %v3708, 6
      %v3776 = vrot.slane %v3710, 2
      %v3777 = vrot.slane %v3710, 4
      %v3778 = vrot.slane %v3710, 6
      %v3779 = vrot.slane %v3711, 2
      %v3780 = vrot.slane %v3711, 4
      %v3781 = vrot.slane %v3711, 6
      %v3782 = vrot.slane %v3713, 2
      %v3783 = vrot.slane %v3713, 4
      %v3784 = vrot.slane %v3713, 6
      %v3785 = vrot.slane %v3714, 2
      %v3786 = vrot.slane %v3714, 4
      %v3787 = vrot.slane %v3714, 6
      %v3788 = vrot.slane %v3716, 2
      %v3789 = vrot.slane %v3716, 4
      %v3790 = vrot.slane %v3716, 6
      %v3791 = vrot.slane %v3717, 2
      %v3792 = vrot.slane %v3717, 4
      %v3793 = vrot.slane %v3717, 6
      %v3794 = vrot.slane %v3719, 2
      %v3795 = vrot.slane %v3719, 4
      %v3796 = vrot.slane %v3719, 6
      %v3797 = vrot.slane %v3720, 2
      %v3798 = vrot.slane %v3720, 4
      %v3799 = vrot.slane %v3720, 6
      %v3800 = vrot.slane %v3722, 2
      %v3801 = vrot.slane %v3722, 4
      %v3802 = vrot.slane %v3722, 6
      %v3803 = vrot.slane %v3723, 2
      %v3804 = vrot.slane %v3723, 4
      %v3805 = vrot.slane %v3723, 6
      %v3806 = vrot.slane %v3725, 2
      %v3807 = vrot.slane %v3725, 4
      %v3808 = vrot.slane %v3725, 6
      %v3809 = vrot.slane %v3726, 2
      %v3810 = vrot.slane %v3726, 4
      %v3811 = vrot.slane %v3726, 6
      %v3812 = vrot.slane %v3728, 2
      %v3813 = vrot.slane %v3728, 4
      %v3814 = vrot.slane %v3728, 6
      %v3815 = vrot.slane %v3729, 2
      %v3816 = vrot.slane %v3729, 4
      %v3817 = vrot.slane %v3729, 6
      %v3818 = vrot.slane %v3731, 2
      %v3819 = vrot.slane %v3731, 4
      %v3820 = vrot.slane %v3731, 6
      %v3821 = vrot.slane %v3732, 2
      %v3822 = vrot.slane %v3732, 4
      %v3823 = vrot.slane %v3732, 6
      %s3824 = scalar_lea.vmem %s3, 32
      %v3825 = vld [vmem:[%s3824] sm:$0xf]
      %3826 = vst [vmem:[#allocation1] ss:$4 sm:$0xff] %v3704
      %s3827 = scalar_lea.vmem [#allocation1], 1
      %3828 = vst [vmem:[%s3827] ss:$4 sm:$0xff] %v3764
      %s3829 = scalar_lea.vmem [#allocation1], 2
      %3830 = vst [vmem:[%s3829] ss:$4 sm:$0xff] %v3765
      %s3831 = scalar_lea.vmem [#allocation1], 3
      %3832 = vst [vmem:[%s3831] ss:$4 sm:$0xff] %v3766
      %s3833 = scalar_lea.vmem [#allocation1], 32
      %3834 = vst [vmem:[%s3833] ss:$4 sm:$0xff] %v3705
      %s3835 = scalar_lea.vmem [#allocation1], 33
      %3836 = vst [vmem:[%s3835] ss:$4 sm:$0xff] %v3767
      %s3837 = scalar_lea.vmem [#allocation1], 34
      %3838 = vst [vmem:[%s3837] ss:$4 sm:$0xff] %v3768
      %s3839 = scalar_lea.vmem [#allocation1], 35
      %3840 = vst [vmem:[%s3839] ss:$4 sm:$0xff] %v3769
      %v3841 = vld.sshfl [vmem:[#allocation1] sm:$0xff pattern:$0x73625140]
      %v3842 = vld.sshfl [vmem:[#allocation1 + $0x20] sm:$0xff pattern:$0x73625140]
      %3843 = vst [vmem:[#allocation1] ss:$4 sm:$0xff] %v3706
      %3844 = vst [vmem:[%s3827] ss:$4 sm:$0xff] %v3707
      %3845 = vst [vmem:[%s3829] ss:$4 sm:$0xff] %v3770
      %3846 = vst [vmem:[%s3831] ss:$4 sm:$0xff] %v3771
      %3847 = vst [vmem:[%s3833] ss:$4 sm:$0xff] %v3772
      %3848 = vst [vmem:[%s3835] ss:$4 sm:$0xff] %v3708
      %3849 = vst [vmem:[%s3837] ss:$4 sm:$0xff] %v3773
      %3850 = vst [vmem:[%s3839] ss:$4 sm:$0xff] %v3774
      %v3851 = vld.sshfl [vmem:[#allocation1] sm:$0xff pattern:$0x73625140]
      %v3852 = vld.sshfl [vmem:[#allocation1 + $0x20] sm:$0xff pattern:$0x73625140]
      %3853 = vst [vmem:[#allocation1] ss:$4 sm:$0xff] %v3775
      %3854 = vst [vmem:[%s3827] ss:$4 sm:$0xff] %v3709
      %3855 = vst [vmem:[%s3829] ss:$4 sm:$0xff] %v3710
      %3856 = vst [vmem:[%s3831] ss:$4 sm:$0xff] %v3776
      %3857 = vst [vmem:[%s3833] ss:$4 sm:$0xff] %v3777
      %3858 = vst [vmem:[%s3835] ss:$4 sm:$0xff] %v3778
      %3859 = vst [vmem:[%s3837] ss:$4 sm:$0xff] %v3711
      %3860 = vst [vmem:[%s3839] ss:$4 sm:$0xff] %v3779
      %v3861 = vld.sshfl [vmem:[#allocation1] sm:$0xff pattern:$0x73625140]
      %v3862 = vld.sshfl [vmem:[#allocation1 + $0x20] sm:$0xff pattern:$0x73625140]
      %3863 = vst [vmem:[#allocation1] ss:$4 sm:$0xff] %v3780
      %3864 = vst [vmem:[%s3827] ss:$4 sm:$0xff] %v3781
      %3865 = vst [vmem:[%s3829] ss:$4 sm:$0xff] %v3712
      %3866 = vst [vmem:[%s3831] ss:$4 sm:$0xff] %v3713
      %3867 = vst [vmem:[%s3833] ss:$4 sm:$0xff] %v3782
      %3868 = vst [vmem:[%s3835] ss:$4 sm:$0xff] %v3783
      %3869 = vst [vmem:[%s3837] ss:$4 sm:$0xff] %v3784
      %3870 = vst [vmem:[%s3839] ss:$4 sm:$0xff] %v3714
      %v3871 = vld.sshfl [vmem:[#allocation1] sm:$0xff pattern:$0x73625140]
      %v3872 = vld.sshfl [vmem:[#allocation1 + $0x20] sm:$0xff pattern:$0x73625140]
      %3873 = vst [vmem:[#allocation1] ss:$4 sm:$0xff] %v3785
      %3874 = vst [vmem:[%s3827] ss:$4 sm:$0xff] %v3786
      %3875 = vst [vmem:[%s3829] ss:$4 sm:$0xff] %v3787
      %3876 = vst [vmem:[%s3831] ss:$4 sm:$0xff] %v3715
      %3877 = vst [vmem:[%s3833] ss:$4 sm:$0xff] %v3716
      %3878 = vst [vmem:[%s3835] ss:$4 sm:$0xff] %v3788
      %3879 = vst [vmem:[%s3837] ss:$4 sm:$0xff] %v3789
      %3880 = vst [vmem:[%s3839] ss:$4 sm:$0xff] %v3790
      %v3881 = vld.sshfl [vmem:[#allocation1] sm:$0xff pattern:$0x73625140]
      %v3882 = vld.sshfl [vmem:[#allocation1 + $0x20] sm:$0xff pattern:$0x73625140]
      %3883 = vst [vmem:[#allocation1] ss:$4 sm:$0xff] %v3717
      %3884 = vst [vmem:[%s3827] ss:$4 sm:$0xff] %v3791
      %3885 = vst [vmem:[%s3829] ss:$4 sm:$0xff] %v3792
      %3886 = vst [vmem:[%s3831] ss:$4 sm:$0xff] %v3793
      %3887 = vst [vmem:[%s3833] ss:$4 sm:$0xff] %v3718
      %3888 = vst [vmem:[%s3835] ss:$4 sm:$0xff] %v3719
      %3889 = vst [vmem:[%s3837] ss:$4 sm:$0xff] %v3794
      %3890 = vst [vmem:[%s3839] ss:$4 sm:$0xff] %v3795
      %v3891 = vld.sshfl [vmem:[#allocation1] sm:$0xff pattern:$0x73625140]
      %v3892 = vld.sshfl [vmem:[#allocation1 + $0x20] sm:$0xff pattern:$0x73625140]
      %3893 = vst [vmem:[#allocation1] ss:$4 sm:$0xff] %v3796
      %3894 = vst [vmem:[%s3827] ss:$4 sm:$0xff] %v3720
      %3895 = vst [vmem:[%s3829] ss:$4 sm:$0xff] %v3797
      %3896 = vst [vmem:[%s3831] ss:$4 sm:$0xff] %v3798
      %3897 = vst [vmem:[%s3833] ss:$4 sm:$0xff] %v3799
      %3898 = vst [vmem:[%s3835] ss:$4 sm:$0xff] %v3721
      %3899 = vst [vmem:[%s3837] ss:$4 sm:$0xff] %v3722
      %3900 = vst [vmem:[%s3839] ss:$4 sm:$0xff] %v3800
      %v3901 = vld.sshfl [vmem:[#allocation1] sm:$0xff pattern:$0x73625140]
      %v3902 = vld.sshfl [vmem:[#allocation1 + $0x20] sm:$0xff pattern:$0x73625140]
      %3903 = vst [vmem:[#allocation1] ss:$4 sm:$0xff] %v3801
      %3904 = vst [vmem:[%s3827] ss:$4 sm:$0xff] %v3802
      %3905 = vst [vmem:[%s3829] ss:$4 sm:$0xff] %v3723
      %3906 = vst [vmem:[%s3831] ss:$4 sm:$0xff] %v3803
      %3907 = vst [vmem:[%s3833] ss:$4 sm:$0xff] %v3804
      %3908 = vst [vmem:[%s3835] ss:$4 sm:$0xff] %v3805
      %3909 = vst [vmem:[%s3837] ss:$4 sm:$0xff] %v3724
      %3910 = vst [vmem:[%s3839] ss:$4 sm:$0xff] %v3725
      %v3911 = vld.sshfl [vmem:[#allocation1] sm:$0xff pattern:$0x73625140]
      %v3912 = vld.sshfl [vmem:[#allocation1 + $0x20] sm:$0xff pattern:$0x73625140]
      %3913 = vst [vmem:[#allocation1] ss:$4 sm:$0xff] %v3806
      %3914 = vst [vmem:[%s3827] ss:$4 sm:$0xff] %v3807
      %3915 = vst [vmem:[%s3829] ss:$4 sm:$0xff] %v3808
      %3916 = vst [vmem:[%s3831] ss:$4 sm:$0xff] %v3726
      %3917 = vst [vmem:[%s3833] ss:$4 sm:$0xff] %v3809
      %3918 = vst [vmem:[%s3835] ss:$4 sm:$0xff] %v3810
      %3919 = vst [vmem:[%s3837] ss:$4 sm:$0xff] %v3811
      %3920 = vst [vmem:[%s3839] ss:$4 sm:$0xff] %v3727
      %v3921 = vld.sshfl [vmem:[#allocation1] sm:$0xff pattern:$0x73625140]
      %v3922 = vld.sshfl [vmem:[#allocation1 + $0x20] sm:$0xff pattern:$0x73625140]
      %3923 = vst [vmem:[#allocation1] ss:$4 sm:$0xff] %v3728
      %3924 = vst [vmem:[%s3827] ss:$4 sm:$0xff] %v3812
      %3925 = vst [vmem:[%s3829] ss:$4 sm:$0xff] %v3813
      %3926 = vst [vmem:[%s3831] ss:$4 sm:$0xff] %v3814
      %3927 = vst [vmem:[%s3833] ss:$4 sm:$0xff] %v3729
      %3928 = vst [vmem:[%s3835] ss:$4 sm:$0xff] %v3815
      %3929 = vst [vmem:[%s3837] ss:$4 sm:$0xff] %v3816
      %3930 = vst [vmem:[%s3839] ss:$4 sm:$0xff] %v3817
      %v3931 = vld.sshfl [vmem:[#allocation1] sm:$0xff pattern:$0x73625140]
      %v3932 = vld.sshfl [vmem:[#allocation1 + $0x20] sm:$0xff pattern:$0x73625140]
      %3933 = vst [vmem:[#allocation1] ss:$4 sm:$0xff] %v3730
      %3934 = vst [vmem:[%s3827] ss:$4 sm:$0xff] %v3731
      %3935 = vst [vmem:[%s3829] ss:$4 sm:$0xff] %v3818
      %3936 = vst [vmem:[%s3831] ss:$4 sm:$0xff] %v3819
      %3937 = vst [vmem:[%s3833] ss:$4 sm:$0xff] %v3820
      %3938 = vst [vmem:[%s3835] ss:$4 sm:$0xff] %v3732
      %3939 = vst [vmem:[%s3837] ss:$4 sm:$0xff] %v3821
      %3940 = vst [vmem:[%s3839] ss:$4 sm:$0xff] %v3822
      %v3941 = vld.sshfl [vmem:[#allocation1] sm:$0xff pattern:$0x73625140]
      %v3942 = vld.sshfl [vmem:[#allocation1 + $0x20] sm:$0xff pattern:$0x73625140]
      %3943 = vst [vmem:[#allocation1] ss:$4 sm:$0xff] %v3823
      %3944 = vst [vmem:[%s3827] ss:$4 sm:$0xff] %v3733
      %v3945 = vld.sshfl [vmem:[#allocation1] sm:$0xff pattern:$0x73625140]
      %v3946 = vsel %vm506, %v3841, 0
      %v3948 = vsel %vm506, %v3842, 0
      %v3950 = vsel %vm506, %v3851, 0
      %v3952 = vsel %vm506, %v3852, 0
      %v3954 = vsel %vm506, %v3861, 0
      %v3956 = vsel %vm506, %v3862, 0
      %v3958 = vsel %vm506, %v3871, 0
      %v3960 = vsel %vm506, %v3872, 0
      %v3962 = vsel %vm506, %v3881, 0
      %v3964 = vsel %vm506, %v3882, 0
      %v3966 = vsel %vm506, %v3891, 0
      %v3968 = vsel %vm506, %v3892, 0
      %v3970 = vsel %vm506, %v3901, 0
      %v3972 = vsel %vm506, %v3902, 0
      %v3974 = vsel %vm506, %v3911, 0
      %v3976 = vsel %vm506, %v3912, 0
      %v3978 = vsel %vm506, %v3921, 0
      %v3980 = vsel %vm506, %v3922, 0
      %v3982 = vsel %vm506, %v3931, 0
      %v3984 = vsel %vm506, %v3932, 0
      %v3986 = vsel %vm506, %v3941, 0
      %v3988 = vsel %vm506, %v3942, 0
      %v3990 = vsel %vm506, %v3945, 0
      %v3993 = vsel %vm958, %v3825, 0
      %3995 = vmatpush.msra.mxu0 0.0
      %3996 = vmatpush.msra.mxu0 0.0
      %3997 = vmatpush.msra.mxu0 0.0
      %3998 = vmatpush.msra.mxu0 0.0
      %3999 = vmatpush.msra.mxu0 0.0
      %4000 = vmatpush.msra.mxu0 0.0
      %4001 = vmatpush.msra.mxu0 0.0
      %4002 = vmatpush.msra.mxu0 0.0
      %4003 = vmatpush.msra.mxu0 0.0
      %4004 = vmatpush.msra.mxu0 0.0
      %4005 = vmatpush.msra.mxu0 0.0
      %4006 = vmatpush.msra.mxu0 0.0
      %4007 = vmatpush.msra.mxu0 0.0
      %4008 = vmatpush.msra.mxu0 0.0
      %4009 = vmatpush.msra.mxu0 0.0
      %4010 = vmatpush.msra.mxu0 %v3993
      %4011 = vmatmul.f32.gmra.mxu0 %v3946
      %v4012 = vpop.f32.mrf.mxu0
      %v4013 = vadd.f32 0.0, %v4012
      %4014 = vmatmul.f32.gmra.mxu0 %v3948
      %v4015 = vpop.f32.mrf.mxu0
      %v4016 = vadd.f32 0.0, %v4015
      %4017 = vmatmul.f32.gmra.mxu0 %v3950
      %v4018 = vpop.f32.mrf.mxu0
      %v4019 = vadd.f32 0.0, %v4018
      %4020 = vmatmul.f32.gmra.mxu0 %v3952
      %v4021 = vpop.f32.mrf.mxu0
      %v4022 = vadd.f32 0.0, %v4021
      %4023 = vmatmul.f32.gmra.mxu0 %v3954
      %v4024 = vpop.f32.mrf.mxu0
      %v4025 = vadd.f32 0.0, %v4024
      %4026 = vmatmul.f32.gmra.mxu0 %v3956
      %v4027 = vpop.f32.mrf.mxu0
      %v4028 = vadd.f32 0.0, %v4027
      %4029 = vmatmul.f32.gmra.mxu0 %v3958
      %v4030 = vpop.f32.mrf.mxu0
      %v4031 = vadd.f32 0.0, %v4030
      %4032 = vmatmul.f32.gmra.mxu0 %v3960
      %v4033 = vpop.f32.mrf.mxu0
      %v4034 = vadd.f32 0.0, %v4033
      %4035 = vmatmul.f32.gmra.mxu0 %v3962
      %v4036 = vpop.f32.mrf.mxu0
      %v4037 = vadd.f32 0.0, %v4036
      %4038 = vmatmul.f32.gmra.mxu0 %v3964
      %v4039 = vpop.f32.mrf.mxu0
      %v4040 = vadd.f32 0.0, %v4039
      %4041 = vmatmul.f32.gmra.mxu0 %v3966
      %v4042 = vpop.f32.mrf.mxu0
      %v4043 = vadd.f32 0.0, %v4042
      %4044 = vmatmul.f32.gmra.mxu0 %v3968
      %v4045 = vpop.f32.mrf.mxu0
      %v4046 = vadd.f32 0.0, %v4045
      %4047 = vmatmul.f32.gmra.mxu0 %v3970
      %v4048 = vpop.f32.mrf.mxu0
      %v4049 = vadd.f32 0.0, %v4048
      %4050 = vmatmul.f32.gmra.mxu0 %v3972
      %v4051 = vpop.f32.mrf.mxu0
      %v4052 = vadd.f32 0.0, %v4051
      %4053 = vmatmul.f32.gmra.mxu0 %v3974
      %v4054 = vpop.f32.mrf.mxu0
      %v4055 = vadd.f32 0.0, %v4054
      %4056 = vmatmul.f32.gmra.mxu0 %v3976
      %v4057 = vpop.f32.mrf.mxu0
      %v4058 = vadd.f32 0.0, %v4057
      %4059 = vmatmul.f32.gmra.mxu0 %v3978
      %v4060 = vpop.f32.mrf.mxu0
      %v4061 = vadd.f32 0.0, %v4060
      %4062 = vmatmul.f32.gmra.mxu0 %v3980
      %v4063 = vpop.f32.mrf.mxu0
      %v4064 = vadd.f32 0.0, %v4063
      %4065 = vmatmul.f32.gmra.mxu0 %v3982
      %v4066 = vpop.f32.mrf.mxu0
      %v4067 = vadd.f32 0.0, %v4066
      %4068 = vmatmul.f32.gmra.mxu0 %v3984
      %v4069 = vpop.f32.mrf.mxu0
      %v4070 = vadd.f32 0.0, %v4069
      %4071 = vmatmul.f32.gmra.mxu0 %v3986
      %v4072 = vpop.f32.mrf.mxu0
      %v4073 = vadd.f32 0.0, %v4072
      %4074 = vmatmul.f32.gmra.mxu0 %v3988
      %v4075 = vpop.f32.mrf.mxu0
      %v4076 = vadd.f32 0.0, %v4075
      %4077 = vmatmul.f32.gmra.mxu0 %v3990
      %v4078 = vpop.f32.mrf.mxu0
      %v4079 = vadd.f32 0.0, %v4078
      %4080 = vdwg.mxu0
      %v4081 = vadd.f32 %v3681, %v4013
      %v4082 = vadd.f32 %v3682, %v4016
      %v4083 = vadd.f32 %v3683, %v4019
      %v4084 = vadd.f32 %v3684, %v4022
      %v4085 = vadd.f32 %v3685, %v4025
      %v4086 = vadd.f32 %v3686, %v4028
      %v4087 = vadd.f32 %v3687, %v4031
      %v4088 = vadd.f32 %v3688, %v4034
      %v4089 = vadd.f32 %v3689, %v4037
      %v4090 = vadd.f32 %v3690, %v4040
      %v4091 = vadd.f32 %v3691, %v4043
      %v4092 = vadd.f32 %v3692, %v4046
      %v4093 = vadd.f32 %v3693, %v4049
      %v4094 = vadd.f32 %v3694, %v4052
      %v4095 = vadd.f32 %v3695, %v4055
      %v4096 = vadd.f32 %v3696, %v4058
      %v4097 = vadd.f32 %v3697, %v4061
      %v4098 = vadd.f32 %v3698, %v4064
      %v4099 = vadd.f32 %v3699, %v4067
      %v4100 = vadd.f32 %v3700, %v4070
      %v4101 = vadd.f32 %v3701, %v4073
      %v4102 = vadd.f32 %v3702, %v4076
      %v4103 = vadd.f32 %v3703, %v4079
      %v4104 = vld [vmem:[%s5] sm:$0x1]
      %v4106 = vperm.slane %v4104, 0
      %v4108 = vadd.f32 %v4081, %v4106
      %v4109 = vadd.f32 %v4082, %v4106
      %v4110 = vadd.f32 %v4083, %v4106
      %v4111 = vadd.f32 %v4084, %v4106
      %v4112 = vadd.f32 %v4085, %v4106
      %v4113 = vadd.f32 %v4086, %v4106
      %v4114 = vadd.f32 %v4087, %v4106
      %v4115 = vadd.f32 %v4088, %v4106
      %v4116 = vadd.f32 %v4089, %v4106
      %v4117 = vadd.f32 %v4090, %v4106
      %v4118 = vadd.f32 %v4091, %v4106
      %v4119 = vadd.f32 %v4092, %v4106
      %v4120 = vadd.f32 %v4093, %v4106
      %v4121 = vadd.f32 %v4094, %v4106
      %v4122 = vadd.f32 %v4095, %v4106
      %v4123 = vadd.f32 %v4096, %v4106
      %v4124 = vadd.f32 %v4097, %v4106
      %v4125 = vadd.f32 %v4098, %v4106
      %v4126 = vadd.f32 %v4099, %v4106
      %v4127 = vadd.f32 %v4100, %v4106
      %v4128 = vadd.f32 %v4101, %v4106
      %v4129 = vadd.f32 %v4102, %v4106
      %v4130 = vadd.f32 %v4103, %v4106
      %vm4131 = vcmp.gt.f32.partialorder %v4108, 0.0
      %vm4132 = vcmp.gt.f32.partialorder %v4109, 0.0
      %vm4133 = vcmp.gt.f32.partialorder %v4110, 0.0
      %vm4134 = vcmp.gt.f32.partialorder %v4111, 0.0
      %vm4135 = vcmp.gt.f32.partialorder %v4112, 0.0
      %vm4136 = vcmp.gt.f32.partialorder %v4113, 0.0
      %vm4137 = vcmp.gt.f32.partialorder %v4114, 0.0
      %vm4138 = vcmp.gt.f32.partialorder %v4115, 0.0
      %vm4139 = vcmp.gt.f32.partialorder %v4116, 0.0
      %vm4140 = vcmp.gt.f32.partialorder %v4117, 0.0
      %vm4141 = vcmp.gt.f32.partialorder %v4118, 0.0
      %vm4142 = vcmp.gt.f32.partialorder %v4119, 0.0
      %vm4143 = vcmp.gt.f32.partialorder %v4120, 0.0
      %vm4144 = vcmp.gt.f32.partialorder %v4121, 0.0
      %vm4145 = vcmp.gt.f32.partialorder %v4122, 0.0
      %vm4146 = vcmp.gt.f32.partialorder %v4123, 0.0
      %vm4147 = vcmp.gt.f32.partialorder %v4124, 0.0
      %vm4148 = vcmp.gt.f32.partialorder %v4125, 0.0
      %vm4149 = vcmp.gt.f32.partialorder %v4126, 0.0
      %vm4150 = vcmp.gt.f32.partialorder %v4127, 0.0
      %vm4151 = vcmp.gt.f32.partialorder %v4128, 0.0
      %vm4152 = vcmp.gt.f32.partialorder %v4129, 0.0
      %vm4153 = vcmp.gt.f32.partialorder %v4130, 0.0
      %v4154 = vmul.f32 %v4108, 0.1
      %v4155 = vmul.f32 %v4109, 0.1
      %v4156 = vmul.f32 %v4110, 0.1
      %v4157 = vmul.f32 %v4111, 0.1
      %v4158 = vmul.f32 %v4112, 0.1
      %v4159 = vmul.f32 %v4113, 0.1
      %v4160 = vmul.f32 %v4114, 0.1
      %v4161 = vmul.f32 %v4115, 0.1
      %v4162 = vmul.f32 %v4116, 0.1
      %v4163 = vmul.f32 %v4117, 0.1
      %v4164 = vmul.f32 %v4118, 0.1
      %v4165 = vmul.f32 %v4119, 0.1
      %v4166 = vmul.f32 %v4120, 0.1
      %v4167 = vmul.f32 %v4121, 0.1
      %v4168 = vmul.f32 %v4122, 0.1
      %v4169 = vmul.f32 %v4123, 0.1
      %v4170 = vmul.f32 %v4124, 0.1
      %v4171 = vmul.f32 %v4125, 0.1
      %v4172 = vmul.f32 %v4126, 0.1
      %v4173 = vmul.f32 %v4127, 0.1
      %v4174 = vmul.f32 %v4128, 0.1
      %v4175 = vmul.f32 %v4129, 0.1
      %v4176 = vmul.f32 %v4130, 0.1
      %v4177 = vsel %vm4131, %v4108, %v4154
      %v4178 = vsel %vm4132, %v4109, %v4155
      %v4179 = vsel %vm4133, %v4110, %v4156
      %v4180 = vsel %vm4134, %v4111, %v4157
      %v4181 = vsel %vm4135, %v4112, %v4158
      %v4182 = vsel %vm4136, %v4113, %v4159
      %v4183 = vsel %vm4137, %v4114, %v4160
      %v4184 = vsel %vm4138, %v4115, %v4161
      %v4185 = vsel %vm4139, %v4116, %v4162
      %v4186 = vsel %vm4140, %v4117, %v4163
      %v4187 = vsel %vm4141, %v4118, %v4164
      %v4188 = vsel %vm4142, %v4119, %v4165
      %v4189 = vsel %vm4143, %v4120, %v4166
      %v4190 = vsel %vm4144, %v4121, %v4167
      %v4191 = vsel %vm4145, %v4122, %v4168
      %v4192 = vsel %vm4146, %v4123, %v4169
      %v4193 = vsel %vm4147, %v4124, %v4170
      %v4194 = vsel %vm4148, %v4125, %v4171
      %v4195 = vsel %vm4149, %v4126, %v4172
      %v4196 = vsel %vm4150, %v4127, %v4173
      %v4197 = vsel %vm4151, %v4128, %v4174
      %v4198 = vsel %vm4152, %v4129, %v4175
      %v4199 = vsel %vm4153, %v4130, %v4176
      %v4223 = vrot.slane %v4177, 2
      %v4224 = vrot.slane %v4177, 4
      %v4225 = vrot.slane %v4177, 6
      %v4226 = vrot.slane %v4178, 2
      %v4227 = vrot.slane %v4178, 4
      %v4228 = vrot.slane %v4178, 6
      %v4229 = vrot.slane %v4179, 2
      %v4230 = vrot.slane %v4179, 4
      %v4231 = vrot.slane %v4179, 6
      %v4232 = vrot.slane %v4180, 2
      %v4233 = vrot.slane %v4180, 4
      %v4234 = vrot.slane %v4180, 6
      %v4235 = vrot.slane %v4181, 2
      %v4236 = vrot.slane %v4181, 4
      %v4237 = vrot.slane %v4181, 6
      %v4238 = vrot.slane %v4182, 2
      %v4239 = vrot.slane %v4182, 4
      %v4240 = vrot.slane %v4182, 6
      %v4241 = vrot.slane %v4183, 2
      %v4242 = vrot.slane %v4183, 4
      %v4243 = vrot.slane %v4183, 6
      %v4244 = vrot.slane %v4184, 2
      %v4245 = vrot.slane %v4184, 4
      %v4246 = vrot.slane %v4184, 6
      %v4247 = vrot.slane %v4185, 2
      %v4248 = vrot.slane %v4185, 4
      %v4249 = vrot.slane %v4185, 6
      %v4250 = vrot.slane %v4186, 2
      %v4251 = vrot.slane %v4186, 4
      %v4252 = vrot.slane %v4186, 6
      %v4253 = vrot.slane %v4187, 2
      %v4254 = vrot.slane %v4187, 4
      %v4255 = vrot.slane %v4187, 6
      %v4256 = vrot.slane %v4188, 2
      %v4257 = vrot.slane %v4188, 4
      %v4258 = vrot.slane %v4188, 6
      %v4259 = vrot.slane %v4189, 2
      %v4260 = vrot.slane %v4189, 4
      %v4261 = vrot.slane %v4189, 6
      %v4262 = vrot.slane %v4190, 2
      %v4263 = vrot.slane %v4190, 4
      %v4264 = vrot.slane %v4190, 6
      %v4265 = vrot.slane %v4191, 2
      %v4266 = vrot.slane %v4191, 4
      %v4267 = vrot.slane %v4191, 6
      %v4268 = vrot.slane %v4192, 2
      %v4269 = vrot.slane %v4192, 4
      %v4270 = vrot.slane %v4192, 6
      %v4271 = vrot.slane %v4193, 2
      %v4272 = vrot.slane %v4193, 4
      %v4273 = vrot.slane %v4193, 6
      %v4274 = vrot.slane %v4194, 2
      %v4275 = vrot.slane %v4194, 4
      %v4276 = vrot.slane %v4194, 6
      %v4277 = vrot.slane %v4195, 2
      %v4278 = vrot.slane %v4195, 4
      %v4279 = vrot.slane %v4195, 6
      %v4280 = vrot.slane %v4196, 2
      %v4281 = vrot.slane %v4196, 4
      %v4282 = vrot.slane %v4196, 6
      %v4283 = vrot.slane %v4197, 2
      %v4284 = vrot.slane %v4197, 4
      %v4285 = vrot.slane %v4197, 6
      %v4286 = vrot.slane %v4198, 2
      %v4287 = vrot.slane %v4198, 4
      %v4288 = vrot.slane %v4198, 6
      %v4289 = vrot.slane %v4199, 2
      %s4290 = smul.u32 %s23, 8
      %s4291 = ssub.s32 %s4290, 1
      %v4292 = vstv %s4291
      %v4293 = vadd.s32 %v4292, 1
      %v4294 = vadd.s32 %v4292, 2
      %v4295 = vadd.s32 %v4292, 3
      %v4296 = vadd.s32 %v4292, 4
      %v4297 = vadd.s32 %v4292, 5
      %v4298 = vadd.s32 %v4292, 6
      %v4299 = vadd.s32 %v4292, 7
      %v4300 = vadd.s32 %v4292, 8
      %v4301 = vadd.s32 %v4292, 9
      %v4302 = vlaneseq
      %v4303 = vshrl.u32 %v4302, 7
      %v4304 = vadd.s32 %v4303, 8
      %v4305 = vadd.s32 %v4303, 16
      %vm4306 = vcmp.ge.s32.totalorder %v4292, 0
      %vm4307 = vcmp.ge.s32.totalorder %v4293, 0
      %vm4308 = vcmp.ge.s32.totalorder %v4294, 0
      %vm4309 = vcmp.ge.s32.totalorder %v4295, 0
      %vm4310 = vcmp.ge.s32.totalorder %v4296, 0
      %vm4311 = vcmp.ge.s32.totalorder %v4297, 0
      %vm4312 = vcmp.ge.s32.totalorder %v4298, 0
      %vm4313 = vcmp.ge.s32.totalorder %v4299, 0
      %vm4314 = vcmp.ge.s32.totalorder %v4300, 0
      %vm4315 = vcmp.ge.s32.totalorder %v4301, 0
      %vm4316 = vcmp.lt.s32.totalorder %v4292, 16
      %vm4317 = vcmp.lt.s32.totalorder %v4293, 16
      %vm4318 = vcmp.lt.s32.totalorder %v4294, 16
      %vm4319 = vcmp.lt.s32.totalorder %v4295, 16
      %vm4320 = vcmp.lt.s32.totalorder %v4296, 16
      %vm4321 = vcmp.lt.s32.totalorder %v4297, 16
      %vm4322 = vcmp.lt.s32.totalorder %v4298, 16
      %vm4323 = vcmp.lt.s32.totalorder %v4299, 16
      %vm4324 = vcmp.lt.s32.totalorder %v4300, 16
      %vm4325 = vcmp.lt.s32.totalorder %v4301, 16
      %vm4326 = vmand %vm4306, %vm4316
      %vm4327 = vmand %vm4307, %vm4317
      %vm4328 = vmand %vm4308, %vm4318
      %vm4329 = vmand %vm4309, %vm4319
      %vm4330 = vmand %vm4310, %vm4320
      %vm4331 = vmand %vm4311, %vm4321
      %vm4332 = vmand %vm4312, %vm4322
      %vm4333 = vmand %vm4313, %vm4323
      %vm4334 = vmand %vm4314, %vm4324
      %vm4335 = vmand %vm4315, %vm4325
      %vm4336 = vcmp.ge.s32.totalorder %v4303, 1
      %vm4337 = vcmp.ge.s32.totalorder %v4304, 1
      %vm4338 = vcmp.ge.s32.totalorder %v4305, 1
      %v4339 = vsel %vm4326, 1, 0
      %v4340 = vsel %vm4327, 1, 0
      %v4341 = vsel %vm4328, 1, 0
      %v4342 = vsel %vm4329, 1, 0
      %v4343 = vsel %vm4330, 1, 0
      %v4344 = vsel %vm4331, 1, 0
      %v4345 = vsel %vm4332, 1, 0
      %v4346 = vsel %vm4333, 1, 0
      %v4347 = vsel %vm4334, 1, 0
      %v4348 = vsel %vm4335, 1, 0
      %vm4349 = vcmp.eq.s32.totalorder %v4339, 1
      %vm4350 = vcmp.eq.s32.totalorder %v4340, 1
      %vm4351 = vcmp.eq.s32.totalorder %v4341, 1
      %vm4352 = vcmp.eq.s32.totalorder %v4342, 1
      %vm4353 = vcmp.eq.s32.totalorder %v4343, 1
      %vm4354 = vcmp.eq.s32.totalorder %v4344, 1
      %vm4355 = vcmp.eq.s32.totalorder %v4345, 1
      %vm4356 = vcmp.eq.s32.totalorder %v4346, 1
      %vm4357 = vcmp.eq.s32.totalorder %v4347, 1
      %vm4358 = vcmp.eq.s32.totalorder %v4348, 1
      %v4359 = vsel %vm4336, 1, 0
      %v4360 = vsel %vm4337, 1, 0
      %v4361 = vsel %vm4338, 1, 0
      %vm4362 = vcmp.eq.s32.totalorder %v4359, 1
      %vm4363 = vcmp.eq.s32.totalorder %v4360, 1
      %vm4364 = vcmp.eq.s32.totalorder %v4361, 1
      %vm4365 = vmand %vm4349, %vm4362
      %vm4366 = vmand %vm4349, %vm4363
      %vm4367 = vmand %vm4349, %vm4364
      %vm4368 = vmand %vm4350, %vm4362
      %vm4369 = vmand %vm4350, %vm4363
      %vm4370 = vmand %vm4350, %vm4364
      %vm4371 = vmand %vm4351, %vm4362
      %vm4372 = vmand %vm4351, %vm4363
      %vm4373 = vmand %vm4351, %vm4364
      %vm4374 = vmand %vm4352, %vm4362
      %vm4375 = vmand %vm4352, %vm4363
      %vm4376 = vmand %vm4352, %vm4364
      %vm4377 = vmand %vm4353, %vm4362
      %vm4378 = vmand %vm4353, %vm4363
      %vm4379 = vmand %vm4353, %vm4364
      %vm4380 = vmand %vm4354, %vm4362
      %vm4381 = vmand %vm4354, %vm4363
      %vm4382 = vmand %vm4354, %vm4364
      %vm4383 = vmand %vm4355, %vm4362
      %vm4384 = vmand %vm4355, %vm4363
      %vm4385 = vmand %vm4355, %vm4364
      %vm4386 = vmand %vm4356, %vm4362
      %vm4387 = vmand %vm4356, %vm4363
      %vm4388 = vmand %vm4356, %vm4364
      %vm4389 = vmand %vm4357, %vm4362
      %vm4390 = vmand %vm4357, %vm4363
      %vm4391 = vmand %vm4357, %vm4364
      %vm4392 = vmand %vm4358, %vm4362
      %vm4393 = vmand %vm4358, %vm4363
      %vm4394 = vmand %vm4358, %vm4364
      %vm4395 = vcmp.le.s32.totalorder %v4303, 16
      %vm4396 = vcmp.le.s32.totalorder %v4304, 16
      %vm4397 = vcmp.le.s32.totalorder %v4305, 16
      %v4398 = vsel %vm4395, 1, 0
      %v4399 = vsel %vm4396, 1, 0
      %v4400 = vsel %vm4397, 1, 0
      %vm4401 = vcmp.eq.s32.totalorder %v4398, 1
      %vm4402 = vcmp.eq.s32.totalorder %v4399, 1
      %vm4403 = vcmp.eq.s32.totalorder %v4400, 1
      %vm4404 = vmand %vm4365, %vm4401
      %vm4405 = vmand %vm4366, %vm4402
      %vm4406 = vmand %vm4367, %vm4403
      %vm4407 = vmand %vm4368, %vm4401
      %vm4408 = vmand %vm4369, %vm4402
      %vm4409 = vmand %vm4370, %vm4403
      %vm4410 = vmand %vm4371, %vm4401
      %vm4411 = vmand %vm4372, %vm4402
      %vm4412 = vmand %vm4373, %vm4403
      %vm4413 = vmand %vm4374, %vm4401
      %vm4414 = vmand %vm4375, %vm4402
      %vm4415 = vmand %vm4376, %vm4403
      %vm4416 = vmand %vm4377, %vm4401
      %vm4417 = vmand %vm4378, %vm4402
      %vm4418 = vmand %vm4379, %vm4403
      %vm4419 = vmand %vm4380, %vm4401
      %vm4420 = vmand %vm4381, %vm4402
      %vm4421 = vmand %vm4382, %vm4403
      %vm4422 = vmand %vm4383, %vm4401
      %vm4423 = vmand %vm4384, %vm4402
      %vm4424 = vmand %vm4385, %vm4403
      %vm4425 = vmand %vm4386, %vm4401
      %vm4426 = vmand %vm4387, %vm4402
      %vm4427 = vmand %vm4388, %vm4403
      %vm4428 = vmand %vm4389, %vm4401
      %vm4429 = vmand %vm4390, %vm4402
      %vm4430 = vmand %vm4391, %vm4403
      %vm4431 = vmand %vm4392, %vm4401
      %vm4432 = vmand %vm4393, %vm4402
      %vm4433 = vmand %vm4394, %vm4403
      %v4434 = vsel %vm4404, 1, 0
      %v4435 = vsel %vm4405, 1, 0
      %v4436 = vsel %vm4406, 1, 0
      %v4437 = vsel %vm4407, 1, 0
      %v4438 = vsel %vm4408, 1, 0
      %v4439 = vsel %vm4409, 1, 0
      %v4440 = vsel %vm4410, 1, 0
      %v4441 = vsel %vm4411, 1, 0
      %v4442 = vsel %vm4412, 1, 0
      %v4443 = vsel %vm4413, 1, 0
      %v4444 = vsel %vm4414, 1, 0
      %v4445 = vsel %vm4415, 1, 0
      %v4446 = vsel %vm4416, 1, 0
      %v4447 = vsel %vm4417, 1, 0
      %v4448 = vsel %vm4418, 1, 0
      %v4449 = vsel %vm4419, 1, 0
      %v4450 = vsel %vm4420, 1, 0
      %v4451 = vsel %vm4421, 1, 0
      %v4452 = vsel %vm4422, 1, 0
      %v4453 = vsel %vm4423, 1, 0
      %v4454 = vsel %vm4424, 1, 0
      %v4455 = vsel %vm4425, 1, 0
      %v4456 = vsel %vm4426, 1, 0
      %v4457 = vsel %vm4427, 1, 0
      %v4458 = vsel %vm4428, 1, 0
      %v4459 = vsel %vm4429, 1, 0
      %v4460 = vsel %vm4430, 1, 0
      %v4461 = vsel %vm4431, 1, 0
      %v4462 = vsel %vm4432, 1, 0
      %v4463 = vsel %vm4433, 1, 0
      %vm4464 = vcmp.eq.s32.totalorder %v4434, 1
      %vm4465 = vcmp.eq.s32.totalorder %v4435, 1
      %vm4466 = vcmp.eq.s32.totalorder %v4436, 1
      %vm4467 = vcmp.eq.s32.totalorder %v4437, 1
      %vm4468 = vcmp.eq.s32.totalorder %v4438, 1
      %vm4469 = vcmp.eq.s32.totalorder %v4439, 1
      %vm4470 = vcmp.eq.s32.totalorder %v4440, 1
      %vm4471 = vcmp.eq.s32.totalorder %v4441, 1
      %vm4472 = vcmp.eq.s32.totalorder %v4442, 1
      %vm4473 = vcmp.eq.s32.totalorder %v4443, 1
      %vm4474 = vcmp.eq.s32.totalorder %v4444, 1
      %vm4475 = vcmp.eq.s32.totalorder %v4445, 1
      %vm4476 = vcmp.eq.s32.totalorder %v4446, 1
      %vm4477 = vcmp.eq.s32.totalorder %v4447, 1
      %vm4478 = vcmp.eq.s32.totalorder %v4448, 1
      %vm4479 = vcmp.eq.s32.totalorder %v4449, 1
      %vm4480 = vcmp.eq.s32.totalorder %v4450, 1
      %vm4481 = vcmp.eq.s32.totalorder %v4451, 1
      %vm4482 = vcmp.eq.s32.totalorder %v4452, 1
      %vm4483 = vcmp.eq.s32.totalorder %v4453, 1
      %vm4484 = vcmp.eq.s32.totalorder %v4454, 1
      %vm4485 = vcmp.eq.s32.totalorder %v4455, 1
      %vm4486 = vcmp.eq.s32.totalorder %v4456, 1
      %vm4487 = vcmp.eq.s32.totalorder %v4457, 1
      %vm4488 = vcmp.eq.s32.totalorder %v4458, 1
      %vm4489 = vcmp.eq.s32.totalorder %v4459, 1
      %vm4490 = vcmp.eq.s32.totalorder %v4460, 1
      %vm4491 = vcmp.eq.s32.totalorder %v4461, 1
      %vm4492 = vcmp.eq.s32.totalorder %v4462, 1
      %vm4493 = vcmp.eq.s32.totalorder %v4463, 1
      %4494 = vst [vmem:[#allocation1] ss:$4 sm:$0xff] %v4177
      %s4495 = scalar_lea.vmem [#allocation1], 1
      %4496 = vst [vmem:[%s4495] ss:$4 sm:$0xff] %v4223
      %s4497 = scalar_lea.vmem [#allocation1], 2
      %4498 = vst [vmem:[%s4497] ss:$4 sm:$0xff] %v4224
      %s4499 = scalar_lea.vmem [#allocation1], 3
      %4500 = vst [vmem:[%s4499] ss:$4 sm:$0xff] %v4225
      %s4501 = scalar_lea.vmem [#allocation1], 32
      %4502 = vst [vmem:[%s4501] ss:$4 sm:$0xff] %v4178
      %s4503 = scalar_lea.vmem [#allocation1], 33
      %4504 = vst [vmem:[%s4503] ss:$4 sm:$0xff] %v4226
      %s4505 = scalar_lea.vmem [#allocation1], 34
      %4506 = vst [vmem:[%s4505] ss:$4 sm:$0xff] %v4227
      %s4507 = scalar_lea.vmem [#allocation1], 35
      %4508 = vst [vmem:[%s4507] ss:$4 sm:$0xff] %v4228
      %v4509 = vld.sshfl [vmem:[#allocation1] sm:$0xff pattern:$0x73625140]
      %v4510 = vld.sshfl [vmem:[#allocation1 + $0x20] sm:$0xff pattern:$0x73625140]
      %4511 = vst [vmem:[#allocation1] ss:$4 sm:$0xff] %v4179
      %v4512 = vld.sshfl [vmem:[#allocation1] sm:$0xff pattern:$0x73625140]
      %4513 = vst [vmem:[%s4501] ss:$4 sm:$0xff] %v4229
      %4514 = vst [vmem:[%s4503] ss:$4 sm:$0xff] %v4230
      %4515 = vst [vmem:[%s4505] ss:$4 sm:$0xff] %v4231
      %4516 = vst [vmem:[%s4507] ss:$4 sm:$0xff] %v4180
      %v4517 = vld.sshfl [vmem:[#allocation1 + $0x20] sm:$0xff pattern:$0x73625140]
      %4518 = vst [vmem:[#allocation1] ss:$4 sm:$0xff] %v4232
      %4519 = vst [vmem:[%s4495] ss:$4 sm:$0xff] %v4233
      %4520 = vst [vmem:[%s4497] ss:$4 sm:$0xff] %v4234
      %4521 = vst [vmem:[%s4499] ss:$4 sm:$0xff] %v4181
      %4522 = vst [vmem:[%s4501] ss:$4 sm:$0xff] %v4235
      %v4523 = vld.sshfl [vmem:[#allocation1] sm:$0xff pattern:$0x73625140]
      %v4524 = vld.sshfl [vmem:[#allocation1 + $0x20] sm:$0xff pattern:$0x73625140]
      %4525 = vst [vmem:[#allocation1] ss:$4 sm:$0xff] %v4236
      %4526 = vst [vmem:[%s4495] ss:$4 sm:$0xff] %v4237
      %4527 = vst [vmem:[%s4497] ss:$4 sm:$0xff] %v4182
      %4528 = vst [vmem:[%s4499] ss:$4 sm:$0xff] %v4238
      %4529 = vst [vmem:[%s4501] ss:$4 sm:$0xff] %v4239
      %4530 = vst [vmem:[%s4503] ss:$4 sm:$0xff] %v4240
      %4531 = vst [vmem:[%s4505] ss:$4 sm:$0xff] %v4183
      %4532 = vst [vmem:[%s4507] ss:$4 sm:$0xff] %v4241
      %v4533 = vld.sshfl [vmem:[#allocation1] sm:$0xff pattern:$0x73625140]
      %v4534 = vld.sshfl [vmem:[#allocation1 + $0x20] sm:$0xff pattern:$0x73625140]
      %4535 = vst [vmem:[#allocation1] ss:$4 sm:$0xff] %v4242
      %v4536 = vld.sshfl [vmem:[#allocation1] sm:$0xff pattern:$0x73625140]
      %4537 = vst [vmem:[%s4501] ss:$4 sm:$0xff] %v4243
      %4538 = vst [vmem:[%s4503] ss:$4 sm:$0xff] %v4184
      %4539 = vst [vmem:[%s4505] ss:$4 sm:$0xff] %v4244
      %4540 = vst [vmem:[%s4507] ss:$4 sm:$0xff] %v4245
      %v4541 = vld.sshfl [vmem:[#allocation1 + $0x20] sm:$0xff pattern:$0x73625140]
      %4542 = vst [vmem:[#allocation1] ss:$4 sm:$0xff] %v4246
      %4543 = vst [vmem:[%s4495] ss:$4 sm:$0xff] %v4185
      %4544 = vst [vmem:[%s4497] ss:$4 sm:$0xff] %v4247
      %4545 = vst [vmem:[%s4499] ss:$4 sm:$0xff] %v4248
      %4546 = vst [vmem:[%s4501] ss:$4 sm:$0xff] %v4249
      %v4547 = vld.sshfl [vmem:[#allocation1] sm:$0xff pattern:$0x73625140]
      %v4548 = vld.sshfl [vmem:[#allocation1 + $0x20] sm:$0xff pattern:$0x73625140]
      %4549 = vst [vmem:[#allocation1] ss:$4 sm:$0xff] %v4186
      %4550 = vst [vmem:[%s4495] ss:$4 sm:$0xff] %v4250
      %4551 = vst [vmem:[%s4497] ss:$4 sm:$0xff] %v4251
      %4552 = vst [vmem:[%s4499] ss:$4 sm:$0xff] %v4252
      %4553 = vst [vmem:[%s4501] ss:$4 sm:$0xff] %v4187
      %4554 = vst [vmem:[%s4503] ss:$4 sm:$0xff] %v4253
      %4555 = vst [vmem:[%s4505] ss:$4 sm:$0xff] %v4254
      %4556 = vst [vmem:[%s4507] ss:$4 sm:$0xff] %v4255
      %v4557 = vld.sshfl [vmem:[#allocation1] sm:$0xff pattern:$0x73625140]
      %v4558 = vld.sshfl [vmem:[#allocation1 + $0x20] sm:$0xff pattern:$0x73625140]
      %4559 = vst [vmem:[#allocation1] ss:$4 sm:$0xff] %v4188
      %v4560 = vld.sshfl [vmem:[#allocation1] sm:$0xff pattern:$0x73625140]
      %4561 = vst [vmem:[%s4501] ss:$4 sm:$0xff] %v4256
      %4562 = vst [vmem:[%s4503] ss:$4 sm:$0xff] %v4257
      %4563 = vst [vmem:[%s4505] ss:$4 sm:$0xff] %v4258
      %4564 = vst [vmem:[%s4507] ss:$4 sm:$0xff] %v4189
      %v4565 = vld.sshfl [vmem:[#allocation1 + $0x20] sm:$0xff pattern:$0x73625140]
      %4566 = vst [vmem:[#allocation1] ss:$4 sm:$0xff] %v4259
      %4567 = vst [vmem:[%s4495] ss:$4 sm:$0xff] %v4260
      %4568 = vst [vmem:[%s4497] ss:$4 sm:$0xff] %v4261
      %4569 = vst [vmem:[%s4499] ss:$4 sm:$0xff] %v4190
      %4570 = vst [vmem:[%s4501] ss:$4 sm:$0xff] %v4262
      %v4571 = vld.sshfl [vmem:[#allocation1] sm:$0xff pattern:$0x73625140]
      %v4572 = vld.sshfl [vmem:[#allocation1 + $0x20] sm:$0xff pattern:$0x73625140]
      %4573 = vst [vmem:[#allocation1] ss:$4 sm:$0xff] %v4263
      %4574 = vst [vmem:[%s4495] ss:$4 sm:$0xff] %v4264
      %4575 = vst [vmem:[%s4497] ss:$4 sm:$0xff] %v4191
      %4576 = vst [vmem:[%s4499] ss:$4 sm:$0xff] %v4265
      %4577 = vst [vmem:[%s4501] ss:$4 sm:$0xff] %v4266
      %4578 = vst [vmem:[%s4503] ss:$4 sm:$0xff] %v4267
      %4579 = vst [vmem:[%s4505] ss:$4 sm:$0xff] %v4192
      %4580 = vst [vmem:[%s4507] ss:$4 sm:$0xff] %v4268
      %v4581 = vld.sshfl [vmem:[#allocation1] sm:$0xff pattern:$0x73625140]
      %v4582 = vld.sshfl [vmem:[#allocation1 + $0x20] sm:$0xff pattern:$0x73625140]
      %4583 = vst [vmem:[#allocation1] ss:$4 sm:$0xff] %v4269
      %v4584 = vld.sshfl [vmem:[#allocation1] sm:$0xff pattern:$0x73625140]
      %4585 = vst [vmem:[%s4501] ss:$4 sm:$0xff] %v4270
      %4586 = vst [vmem:[%s4503] ss:$4 sm:$0xff] %v4193
      %4587 = vst [vmem:[%s4505] ss:$4 sm:$0xff] %v4271
      %4588 = vst [vmem:[%s4507] ss:$4 sm:$0xff] %v4272
      %v4589 = vld.sshfl [vmem:[#allocation1 + $0x20] sm:$0xff pattern:$0x73625140]
      %4590 = vst [vmem:[#allocation1] ss:$4 sm:$0xff] %v4273
      %4591 = vst [vmem:[%s4495] ss:$4 sm:$0xff] %v4194
      %4592 = vst [vmem:[%s4497] ss:$4 sm:$0xff] %v4274
      %4593 = vst [vmem:[%s4499] ss:$4 sm:$0xff] %v4275
      %4594 = vst [vmem:[%s4501] ss:$4 sm:$0xff] %v4276
      %v4595 = vld.sshfl [vmem:[#allocation1] sm:$0xff pattern:$0x73625140]
      %v4596 = vld.sshfl [vmem:[#allocation1 + $0x20] sm:$0xff pattern:$0x73625140]
      %4597 = vst [vmem:[#allocation1] ss:$4 sm:$0xff] %v4195
      %4598 = vst [vmem:[%s4495] ss:$4 sm:$0xff] %v4277
      %4599 = vst [vmem:[%s4497] ss:$4 sm:$0xff] %v4278
      %4600 = vst [vmem:[%s4499] ss:$4 sm:$0xff] %v4279
      %4601 = vst [vmem:[%s4501] ss:$4 sm:$0xff] %v4196
      %4602 = vst [vmem:[%s4503] ss:$4 sm:$0xff] %v4280
      %4603 = vst [vmem:[%s4505] ss:$4 sm:$0xff] %v4281
      %4604 = vst [vmem:[%s4507] ss:$4 sm:$0xff] %v4282
      %v4605 = vld.sshfl [vmem:[#allocation1] sm:$0xff pattern:$0x73625140]
      %v4606 = vld.sshfl [vmem:[#allocation1 + $0x20] sm:$0xff pattern:$0x73625140]
      %4607 = vst [vmem:[#allocation1] ss:$4 sm:$0xff] %v4197
      %v4608 = vld.sshfl [vmem:[#allocation1] sm:$0xff pattern:$0x73625140]
      %4609 = vst [vmem:[%s4501] ss:$4 sm:$0xff] %v4283
      %4610 = vst [vmem:[%s4503] ss:$4 sm:$0xff] %v4284
      %4611 = vst [vmem:[%s4505] ss:$4 sm:$0xff] %v4285
      %4612 = vst [vmem:[%s4507] ss:$4 sm:$0xff] %v4198
      %v4613 = vld.sshfl [vmem:[#allocation1 + $0x20] sm:$0xff pattern:$0x73625140]
      %4614 = vst [vmem:[#allocation1] ss:$4 sm:$0xff] %v4286
      %4615 = vst [vmem:[%s4495] ss:$4 sm:$0xff] %v4287
      %4616 = vst [vmem:[%s4497] ss:$4 sm:$0xff] %v4288
      %4617 = vst [vmem:[%s4499] ss:$4 sm:$0xff] %v4199
      %4618 = vst [vmem:[%s4501] ss:$4 sm:$0xff] %v4289
      %v4619 = vld.sshfl [vmem:[#allocation1] sm:$0xff pattern:$0x73625140]
      %v4620 = vld.sshfl [vmem:[#allocation1 + $0x20] sm:$0xff pattern:$0x73625140]
      %v4651 = vsel %vm4464, %v4509, 0.0
      %v4652 = vsel %vm4465, %v4510, 0.0
      %v4653 = vsel %vm4466, %v4512, 0.0
      %v4654 = vsel %vm4467, %v4517, 0.0
      %v4655 = vsel %vm4468, %v4523, 0.0
      %v4656 = vsel %vm4469, %v4524, 0.0
      %v4657 = vsel %vm4470, %v4533, 0.0
      %v4658 = vsel %vm4471, %v4534, 0.0
      %v4659 = vsel %vm4472, %v4536, 0.0
      %v4660 = vsel %vm4473, %v4541, 0.0
      %v4661 = vsel %vm4474, %v4547, 0.0
      %v4662 = vsel %vm4475, %v4548, 0.0
      %v4663 = vsel %vm4476, %v4557, 0.0
      %v4664 = vsel %vm4477, %v4558, 0.0
      %v4665 = vsel %vm4478, %v4560, 0.0
      %v4666 = vsel %vm4479, %v4565, 0.0
      %v4667 = vsel %vm4480, %v4571, 0.0
      %v4668 = vsel %vm4481, %v4572, 0.0
      %v4669 = vsel %vm4482, %v4581, 0.0
      %v4670 = vsel %vm4483, %v4582, 0.0
      %v4671 = vsel %vm4484, %v4584, 0.0
      %v4672 = vsel %vm4485, %v4589, 0.0
      %v4673 = vsel %vm4486, %v4595, 0.0
      %v4674 = vsel %vm4487, %v4596, 0.0
      %v4675 = vsel %vm4488, %v4605, 0.0
      %v4676 = vsel %vm4489, %v4606, 0.0
      %v4677 = vsel %vm4490, %v4608, 0.0
      %v4678 = vsel %vm4491, %v4613, 0.0
      %v4679 = vsel %vm4492, %v4619, 0.0
      %v4680 = vsel %vm4493, %v4620, 0.0
      %4681 = vst.msk [vmem:[#allocation3] sm:$0xff] %vm506, %v4651
      %4682 = vst.msk [vmem:[#allocation3 + $0x8] sm:$0xff] %vm506, %v4652
      %4683 = vst.msk [vmem:[#allocation3 + $0x10] sm:$0x3] %vm457, %v4653
      %4684 = vst.msk [vmem:[#allocation3 + $0x18] sm:$0xff] %vm506, %v4654
      %4685 = vst.msk [vmem:[#allocation3 + $0x20] sm:$0xff] %vm506, %v4655
      %4686 = vst.msk [vmem:[#allocation3 + $0x28] sm:$0x3] %vm457, %v4656
      %4687 = vst.msk [vmem:[#allocation3 + $0x30] sm:$0xff] %vm506, %v4657
      %4688 = vst.msk [vmem:[#allocation3 + $0x38] sm:$0xff] %vm506, %v4658
      %4689 = vst.msk [vmem:[#allocation3 + $0x40] sm:$0x3] %vm457, %v4659
      %4690 = vst.msk [vmem:[#allocation3 + $0x48] sm:$0xff] %vm506, %v4660
      %4691 = vst.msk [vmem:[#allocation3 + $0x50] sm:$0xff] %vm506, %v4661
      %4692 = vst.msk [vmem:[#allocation3 + $0x58] sm:$0x3] %vm457, %v4662
      %4693 = vst.msk [vmem:[#allocation3 + $0x60] sm:$0xff] %vm506, %v4663
      %4694 = vst.msk [vmem:[#allocation3 + $0x68] sm:$0xff] %vm506, %v4664
      %4695 = vst.msk [vmem:[#allocation3 + $0x70] sm:$0x3] %vm457, %v4665
      %4696 = vst.msk [vmem:[#allocation3 + $0x78] sm:$0xff] %vm506, %v4666
      %4697 = vst.msk [vmem:[#allocation3 + $0x80] sm:$0xff] %vm506, %v4667
      %4698 = vst.msk [vmem:[#allocation3 + $0x88] sm:$0x3] %vm457, %v4668
      %4699 = vst.msk [vmem:[#allocation3 + $0x90] sm:$0xff] %vm506, %v4669
      %4700 = vst.msk [vmem:[#allocation3 + $0x98] sm:$0xff] %vm506, %v4670
      %4701 = vst.msk [vmem:[#allocation3 + $0xa0] sm:$0x3] %vm457, %v4671
      %4702 = vst.msk [vmem:[#allocation3 + $0xa8] sm:$0xff] %vm506, %v4672
      %4703 = vst.msk [vmem:[#allocation3 + $0xb0] sm:$0xff] %vm506, %v4673
      %4704 = vst.msk [vmem:[#allocation3 + $0xb8] sm:$0x3] %vm457, %v4674
      %4705 = vst.msk [vmem:[#allocation3 + $0xc0] sm:$0xff] %vm506, %v4675
      %4706 = vst.msk [vmem:[#allocation3 + $0xc8] sm:$0xff] %vm506, %v4676
      %4707 = vst.msk [vmem:[#allocation3 + $0xd0] sm:$0x3] %vm457, %v4677
      %4708 = vst.msk [vmem:[#allocation3 + $0xd8] sm:$0xff] %vm506, %v4678
      %4709 = vst.msk [vmem:[#allocation3 + $0xe0] sm:$0xff] %vm506, %v4679
      %4710 = vst.msk [vmem:[#allocation3 + $0xe8] sm:$0x3] %vm457, %v4680
      %v4711 = vld [vmem:[#allocation3] sm:$0xff]
      %v4712 = vld [vmem:[#allocation3 + $0x8] sm:$0xff]
      %v4713 = vld [vmem:[#allocation3 + $0x18] sm:$0xff]
      %v4714 = vld [vmem:[#allocation3 + $0x20] sm:$0xff]
      %v4715 = vld [vmem:[#allocation3 + $0x30] sm:$0xff]
      %v4716 = vld [vmem:[#allocation3 + $0x38] sm:$0xff]
      %v4717 = vld [vmem:[#allocation3 + $0x48] sm:$0xff]
      %v4718 = vld [vmem:[#allocation3 + $0x50] sm:$0xff]
      %v4719 = vld [vmem:[#allocation3 + $0x60] sm:$0xff]
      %v4720 = vld [vmem:[#allocation3 + $0x68] sm:$0xff]
      %v4721 = vld [vmem:[#allocation3 + $0x78] sm:$0xff]
      %v4722 = vld [vmem:[#allocation3 + $0x80] sm:$0xff]
      %v4723 = vld [vmem:[#allocation3 + $0x90] sm:$0xff]
      %v4724 = vld [vmem:[#allocation3 + $0x98] sm:$0xff]
      %v4725 = vld [vmem:[#allocation3 + $0xa8] sm:$0xff]
      %v4726 = vld [vmem:[#allocation3 + $0xb0] sm:$0xff]
      %v4727 = vld [vmem:[%s4] sm:$0xf]
      %v4728 = vld [vmem:[#allocation3 + $0x1] sm:$0xff]
      %v4729 = vld [vmem:[#allocation3 + $0x9] sm:$0xff]
      %v4730 = vld [vmem:[#allocation3 + $0x19] sm:$0xff]
      %v4731 = vld [vmem:[#allocation3 + $0x21] sm:$0xff]
      %v4732 = vld [vmem:[#allocation3 + $0x31] sm:$0xff]
      %v4733 = vld [vmem:[#allocation3 + $0x39] sm:$0xff]
      %v4734 = vld [vmem:[#allocation3 + $0x49] sm:$0xff]
      %v4735 = vld [vmem:[#allocation3 + $0x51] sm:$0xff]
      %v4736 = vld [vmem:[#allocation3 + $0x61] sm:$0xff]
      %v4737 = vld [vmem:[#allocation3 + $0x69] sm:$0xff]
      %v4738 = vld [vmem:[#allocation3 + $0x79] sm:$0xff]
      %v4739 = vld [vmem:[#allocation3 + $0x81] sm:$0xff]
      %v4740 = vld [vmem:[#allocation3 + $0x91] sm:$0xff]
      %v4741 = vld [vmem:[#allocation3 + $0x99] sm:$0xff]
      %v4742 = vld [vmem:[#allocation3 + $0xa9] sm:$0xff]
      %v4743 = vld [vmem:[#allocation3 + $0xb1] sm:$0xff]
      %s4744 = scalar_lea.vmem %s4, 4
      %v4745 = vld [vmem:[%s4744] sm:$0xf]
      %v4747 = vsel %vm506, %v4728, 0
      %v4750 = vsel %vm506, %v4729, 0
      %v4753 = vsel %vm506, %v4730, 0
      %v4756 = vsel %vm506, %v4731, 0
      %v4759 = vsel %vm506, %v4732, 0
      %v4762 = vsel %vm506, %v4733, 0
      %v4765 = vsel %vm506, %v4734, 0
      %v4768 = vsel %vm506, %v4735, 0
      %v4771 = vsel %vm506, %v4736, 0
      %v4774 = vsel %vm506, %v4737, 0
      %v4777 = vsel %vm506, %v4738, 0
      %v4780 = vsel %vm506, %v4739, 0
      %v4783 = vsel %vm506, %v4740, 0
      %v4786 = vsel %vm506, %v4741, 0
      %v4789 = vsel %vm506, %v4742, 0
      %v4792 = vsel %vm506, %v4743, 0
      %v4795 = vsel %vm958, %v4745, 0
      %4797 = vmatpush.msra.mxu0 0.0
      %4798 = vmatpush.msra.mxu0 0.0
      %4799 = vmatpush.msra.mxu0 0.0
      %4800 = vmatpush.msra.mxu0 0.0
      %4801 = vmatpush.msra.mxu0 0.0
      %4802 = vmatpush.msra.mxu0 0.0
      %4803 = vmatpush.msra.mxu0 0.0
      %4804 = vmatpush.msra.mxu0 0.0
      %4805 = vmatpush.msra.mxu0 0.0
      %4806 = vmatpush.msra.mxu0 0.0
      %4807 = vmatpush.msra.mxu0 0.0
      %4808 = vmatpush.msra.mxu0 0.0
      %4809 = vmatpush.msra.mxu0 0.0
      %4810 = vmatpush.msra.mxu0 0.0
      %4811 = vmatpush.msra.mxu0 0.0
      %4812 = vmatpush.msra.mxu0 %v4795
      %4813 = vmatmul.f32.gmra.mxu0 %v4747
      %v4814 = vpop.f32.mrf.mxu0
      %v4815 = vadd.f32 0.0, %v4814
      %4816 = vmatmul.f32.gmra.mxu0 %v4750
      %v4817 = vpop.f32.mrf.mxu0
      %v4818 = vadd.f32 0.0, %v4817
      %4819 = vmatmul.f32.gmra.mxu0 %v4753
      %v4820 = vpop.f32.mrf.mxu0
      %v4821 = vadd.f32 0.0, %v4820
      %4822 = vmatmul.f32.gmra.mxu0 %v4756
      %v4823 = vpop.f32.mrf.mxu0
      %v4824 = vadd.f32 0.0, %v4823
      %4825 = vmatmul.f32.gmra.mxu0 %v4759
      %v4826 = vpop.f32.mrf.mxu0
      %v4827 = vadd.f32 0.0, %v4826
      %4828 = vmatmul.f32.gmra.mxu0 %v4762
      %v4829 = vpop.f32.mrf.mxu0
      %v4830 = vadd.f32 0.0, %v4829
      %4831 = vmatmul.f32.gmra.mxu0 %v4765
      %v4832 = vpop.f32.mrf.mxu0
      %v4833 = vadd.f32 0.0, %v4832
      %4834 = vmatmul.f32.gmra.mxu0 %v4768
      %v4835 = vpop.f32.mrf.mxu0
      %v4836 = vadd.f32 0.0, %v4835
      %4837 = vmatmul.f32.gmra.mxu0 %v4771
      %v4838 = vpop.f32.mrf.mxu0
      %v4839 = vadd.f32 0.0, %v4838
      %4840 = vmatmul.f32.gmra.mxu0 %v4774
      %v4841 = vpop.f32.mrf.mxu0
      %v4842 = vadd.f32 0.0, %v4841
      %4843 = vmatmul.f32.gmra.mxu0 %v4777
      %v4844 = vpop.f32.mrf.mxu0
      %v4845 = vadd.f32 0.0, %v4844
      %4846 = vmatmul.f32.gmra.mxu0 %v4780
      %v4847 = vpop.f32.mrf.mxu0
      %v4848 = vadd.f32 0.0, %v4847
      %4849 = vmatmul.f32.gmra.mxu0 %v4783
      %v4850 = vpop.f32.mrf.mxu0
      %v4851 = vadd.f32 0.0, %v4850
      %4852 = vmatmul.f32.gmra.mxu0 %v4786
      %v4853 = vpop.f32.mrf.mxu0
      %v4854 = vadd.f32 0.0, %v4853
      %4855 = vmatmul.f32.gmra.mxu0 %v4789
      %v4856 = vpop.f32.mrf.mxu0
      %v4857 = vadd.f32 0.0, %v4856
      %4858 = vmatmul.f32.gmra.mxu0 %v4792
      %v4859 = vpop.f32.mrf.mxu0
      %v4860 = vadd.f32 0.0, %v4859
      %4861 = vdwg.mxu0
      %v4863 = vsel %vm506, %v4711, 0
      %v4866 = vsel %vm506, %v4712, 0
      %v4869 = vsel %vm506, %v4713, 0
      %v4872 = vsel %vm506, %v4714, 0
      %v4875 = vsel %vm506, %v4715, 0
      %v4878 = vsel %vm506, %v4716, 0
      %v4881 = vsel %vm506, %v4717, 0
      %v4884 = vsel %vm506, %v4718, 0
      %v4887 = vsel %vm506, %v4719, 0
      %v4890 = vsel %vm506, %v4720, 0
      %v4893 = vsel %vm506, %v4721, 0
      %v4896 = vsel %vm506, %v4722, 0
      %v4899 = vsel %vm506, %v4723, 0
      %v4902 = vsel %vm506, %v4724, 0
      %v4905 = vsel %vm506, %v4725, 0
      %v4908 = vsel %vm506, %v4726, 0
      %v4911 = vsel %vm958, %v4727, 0
      %4913 = vmatpush.msra.mxu0 0.0
      %4914 = vmatpush.msra.mxu0 0.0
      %4915 = vmatpush.msra.mxu0 0.0
      %4916 = vmatpush.msra.mxu0 0.0
      %4917 = vmatpush.msra.mxu0 0.0
      %4918 = vmatpush.msra.mxu0 0.0
      %4919 = vmatpush.msra.mxu0 0.0
      %4920 = vmatpush.msra.mxu0 0.0
      %4921 = vmatpush.msra.mxu0 0.0
      %4922 = vmatpush.msra.mxu0 0.0
      %4923 = vmatpush.msra.mxu0 0.0
      %4924 = vmatpush.msra.mxu0 0.0
      %4925 = vmatpush.msra.mxu0 0.0
      %4926 = vmatpush.msra.mxu0 0.0
      %4927 = vmatpush.msra.mxu0 0.0
      %4928 = vmatpush.msra.mxu0 %v4911
      %4929 = vmatmul.f32.gmra.mxu0 %v4863
      %v4930 = vpop.f32.mrf.mxu0
      %v4931 = vadd.f32 %v4815, %v4930
      %4932 = vmatmul.f32.gmra.mxu0 %v4866
      %v4933 = vpop.f32.mrf.mxu0
      %v4934 = vadd.f32 %v4818, %v4933
      %4935 = vmatmul.f32.gmra.mxu0 %v4869
      %v4936 = vpop.f32.mrf.mxu0
      %v4937 = vadd.f32 %v4821, %v4936
      %4938 = vmatmul.f32.gmra.mxu0 %v4872
      %v4939 = vpop.f32.mrf.mxu0
      %v4940 = vadd.f32 %v4824, %v4939
      %4941 = vmatmul.f32.gmra.mxu0 %v4875
      %v4942 = vpop.f32.mrf.mxu0
      %v4943 = vadd.f32 %v4827, %v4942
      %4944 = vmatmul.f32.gmra.mxu0 %v4878
      %v4945 = vpop.f32.mrf.mxu0
      %v4946 = vadd.f32 %v4830, %v4945
      %4947 = vmatmul.f32.gmra.mxu0 %v4881
      %v4948 = vpop.f32.mrf.mxu0
      %v4949 = vadd.f32 %v4833, %v4948
      %4950 = vmatmul.f32.gmra.mxu0 %v4884
      %v4951 = vpop.f32.mrf.mxu0
      %v4952 = vadd.f32 %v4836, %v4951
      %4953 = vmatmul.f32.gmra.mxu0 %v4887
      %v4954 = vpop.f32.mrf.mxu0
      %v4955 = vadd.f32 %v4839, %v4954
      %4956 = vmatmul.f32.gmra.mxu0 %v4890
      %v4957 = vpop.f32.mrf.mxu0
      %v4958 = vadd.f32 %v4842, %v4957
      %4959 = vmatmul.f32.gmra.mxu0 %v4893
      %v4960 = vpop.f32.mrf.mxu0
      %v4961 = vadd.f32 %v4845, %v4960
      %4962 = vmatmul.f32.gmra.mxu0 %v4896
      %v4963 = vpop.f32.mrf.mxu0
      %v4964 = vadd.f32 %v4848, %v4963
      %4965 = vmatmul.f32.gmra.mxu0 %v4899
      %v4966 = vpop.f32.mrf.mxu0
      %v4967 = vadd.f32 %v4851, %v4966
      %4968 = vmatmul.f32.gmra.mxu0 %v4902
      %v4969 = vpop.f32.mrf.mxu0
      %v4970 = vadd.f32 %v4854, %v4969
      %4971 = vmatmul.f32.gmra.mxu0 %v4905
      %v4972 = vpop.f32.mrf.mxu0
      %v4973 = vadd.f32 %v4857, %v4972
      %4974 = vmatmul.f32.gmra.mxu0 %v4908
      %v4975 = vpop.f32.mrf.mxu0
      %v4976 = vadd.f32 %v4860, %v4975
      %4977 = vdwg.mxu0
      %v4978 = vld [vmem:[#allocation3 + $0x2] sm:$0xff]
      %v4979 = vld [vmem:[#allocation3 + $0xa] sm:$0xff]
      %v4980 = vld [vmem:[#allocation3 + $0x1a] sm:$0xff]
      %v4981 = vld [vmem:[#allocation3 + $0x22] sm:$0xff]
      %v4982 = vld [vmem:[#allocation3 + $0x32] sm:$0xff]
      %v4983 = vld [vmem:[#allocation3 + $0x3a] sm:$0xff]
      %v4984 = vld [vmem:[#allocation3 + $0x4a] sm:$0xff]
      %v4985 = vld [vmem:[#allocation3 + $0x52] sm:$0xff]
      %v4986 = vld [vmem:[#allocation3 + $0x62] sm:$0xff]
      %v4987 = vld [vmem:[#allocation3 + $0x6a] sm:$0xff]
      %v4988 = vld [vmem:[#allocation3 + $0x7a] sm:$0xff]
      %v4989 = vld [vmem:[#allocation3 + $0x82] sm:$0xff]
      %v4990 = vld [vmem:[#allocation3 + $0x92] sm:$0xff]
      %v4991 = vld [vmem:[#allocation3 + $0x9a] sm:$0xff]
      %v4992 = vld [vmem:[#allocation3 + $0xaa] sm:$0xff]
      %v4993 = vld [vmem:[#allocation3 + $0xb2] sm:$0xff]
      %s4994 = scalar_lea.vmem %s4, 8
      %v4995 = vld [vmem:[%s4994] sm:$0xf]
      %v4997 = vsel %vm506, %v4978, 0
      %v5000 = vsel %vm506, %v4979, 0
      %v5003 = vsel %vm506, %v4980, 0
      %v5006 = vsel %vm506, %v4981, 0
      %v5009 = vsel %vm506, %v4982, 0
      %v5012 = vsel %vm506, %v4983, 0
      %v5015 = vsel %vm506, %v4984, 0
      %v5018 = vsel %vm506, %v4985, 0
      %v5021 = vsel %vm506, %v4986, 0
      %v5024 = vsel %vm506, %v4987, 0
      %v5027 = vsel %vm506, %v4988, 0
      %v5030 = vsel %vm506, %v4989, 0
      %v5033 = vsel %vm506, %v4990, 0
      %v5036 = vsel %vm506, %v4991, 0
      %v5039 = vsel %vm506, %v4992, 0
      %v5042 = vsel %vm506, %v4993, 0
      %v5045 = vsel %vm958, %v4995, 0
      %5047 = vmatpush.msra.mxu0 0.0
      %5048 = vmatpush.msra.mxu0 0.0
      %5049 = vmatpush.msra.mxu0 0.0
      %5050 = vmatpush.msra.mxu0 0.0
      %5051 = vmatpush.msra.mxu0 0.0
      %5052 = vmatpush.msra.mxu0 0.0
      %5053 = vmatpush.msra.mxu0 0.0
      %5054 = vmatpush.msra.mxu0 0.0
      %5055 = vmatpush.msra.mxu0 0.0
      %5056 = vmatpush.msra.mxu0 0.0
      %5057 = vmatpush.msra.mxu0 0.0
      %5058 = vmatpush.msra.mxu0 0.0
      %5059 = vmatpush.msra.mxu0 0.0
      %5060 = vmatpush.msra.mxu0 0.0
      %5061 = vmatpush.msra.mxu0 0.0
      %5062 = vmatpush.msra.mxu0 %v5045
      %5063 = vmatmul.f32.gmra.mxu0 %v4997
      %v5064 = vpop.f32.mrf.mxu0
      %v5065 = vadd.f32 0.0, %v5064
      %5066 = vmatmul.f32.gmra.mxu0 %v5000
      %v5067 = vpop.f32.mrf.mxu0
      %v5068 = vadd.f32 0.0, %v5067
      %5069 = vmatmul.f32.gmra.mxu0 %v5003
      %v5070 = vpop.f32.mrf.mxu0
      %v5071 = vadd.f32 0.0, %v5070
      %5072 = vmatmul.f32.gmra.mxu0 %v5006
      %v5073 = vpop.f32.mrf.mxu0
      %v5074 = vadd.f32 0.0, %v5073
      %5075 = vmatmul.f32.gmra.mxu0 %v5009
      %v5076 = vpop.f32.mrf.mxu0
      %v5077 = vadd.f32 0.0, %v5076
      %5078 = vmatmul.f32.gmra.mxu0 %v5012
      %v5079 = vpop.f32.mrf.mxu0
      %v5080 = vadd.f32 0.0, %v5079
      %5081 = vmatmul.f32.gmra.mxu0 %v5015
      %v5082 = vpop.f32.mrf.mxu0
      %v5083 = vadd.f32 0.0, %v5082
      %5084 = vmatmul.f32.gmra.mxu0 %v5018
      %v5085 = vpop.f32.mrf.mxu0
      %v5086 = vadd.f32 0.0, %v5085
      %5087 = vmatmul.f32.gmra.mxu0 %v5021
      %v5088 = vpop.f32.mrf.mxu0
      %v5089 = vadd.f32 0.0, %v5088
      %5090 = vmatmul.f32.gmra.mxu0 %v5024
      %v5091 = vpop.f32.mrf.mxu0
      %v5092 = vadd.f32 0.0, %v5091
      %5093 = vmatmul.f32.gmra.mxu0 %v5027
      %v5094 = vpop.f32.mrf.mxu0
      %v5095 = vadd.f32 0.0, %v5094
      %5096 = vmatmul.f32.gmra.mxu0 %v5030
      %v5097 = vpop.f32.mrf.mxu0
      %v5098 = vadd.f32 0.0, %v5097
      %5099 = vmatmul.f32.gmra.mxu0 %v5033
      %v5100 = vpop.f32.mrf.mxu0
      %v5101 = vadd.f32 0.0, %v5100
      %5102 = vmatmul.f32.gmra.mxu0 %v5036
      %v5103 = vpop.f32.mrf.mxu0
      %v5104 = vadd.f32 0.0, %v5103
      %5105 = vmatmul.f32.gmra.mxu0 %v5039
      %v5106 = vpop.f32.mrf.mxu0
      %v5107 = vadd.f32 0.0, %v5106
      %5108 = vmatmul.f32.gmra.mxu0 %v5042
      %v5109 = vpop.f32.mrf.mxu0
      %v5110 = vadd.f32 0.0, %v5109
      %5111 = vdwg.mxu0
      %v5112 = vadd.f32 %v4931, %v5065
      %v5113 = vadd.f32 %v4934, %v5068
      %v5114 = vadd.f32 %v4937, %v5071
      %v5115 = vadd.f32 %v4940, %v5074
      %v5116 = vadd.f32 %v4943, %v5077
      %v5117 = vadd.f32 %v4946, %v5080
      %v5118 = vadd.f32 %v4949, %v5083
      %v5119 = vadd.f32 %v4952, %v5086
      %v5120 = vadd.f32 %v4955, %v5089
      %v5121 = vadd.f32 %v4958, %v5092
      %v5122 = vadd.f32 %v4961, %v5095
      %v5123 = vadd.f32 %v4964, %v5098
      %v5124 = vadd.f32 %v4967, %v5101
      %v5125 = vadd.f32 %v4970, %v5104
      %v5126 = vadd.f32 %v4973, %v5107
      %v5127 = vadd.f32 %v4976, %v5110
      %s5128 = scalar_lea.vmem [#allocation3], 24
      %v5129 = vld [vmem:[%s5128] sm:$0xff]
      %v5130 = vld [vmem:[%s5128 + $0x8] sm:$0xff]
      %v5131 = vld [vmem:[%s5128 + $0x18] sm:$0xff]
      %v5132 = vld [vmem:[%s5128 + $0x20] sm:$0xff]
      %v5133 = vld [vmem:[%s5128 + $0x30] sm:$0xff]
      %v5134 = vld [vmem:[%s5128 + $0x38] sm:$0xff]
      %v5135 = vld [vmem:[%s5128 + $0x48] sm:$0xff]
      %v5136 = vld [vmem:[%s5128 + $0x50] sm:$0xff]
      %v5137 = vld [vmem:[%s5128 + $0x60] sm:$0xff]
      %v5138 = vld [vmem:[%s5128 + $0x68] sm:$0xff]
      %v5139 = vld [vmem:[%s5128 + $0x78] sm:$0xff]
      %v5140 = vld [vmem:[%s5128 + $0x80] sm:$0xff]
      %v5141 = vld [vmem:[%s5128 + $0x90] sm:$0xff]
      %v5142 = vld [vmem:[%s5128 + $0x98] sm:$0xff]
      %v5143 = vld [vmem:[%s5128 + $0xa8] sm:$0xff]
      %v5144 = vld [vmem:[%s5128 + $0xb0] sm:$0xff]
      %s5145 = scalar_lea.vmem %s4, 12
      %v5146 = vld [vmem:[%s5145] sm:$0xf]
      %v5148 = vsel %vm506, %v5129, 0
      %v5151 = vsel %vm506, %v5130, 0
      %v5154 = vsel %vm506, %v5131, 0
      %v5157 = vsel %vm506, %v5132, 0
      %v5160 = vsel %vm506, %v5133, 0
      %v5163 = vsel %vm506, %v5134, 0
      %v5166 = vsel %vm506, %v5135, 0
      %v5169 = vsel %vm506, %v5136, 0
      %v5172 = vsel %vm506, %v5137, 0
      %v5175 = vsel %vm506, %v5138, 0
      %v5178 = vsel %vm506, %v5139, 0
      %v5181 = vsel %vm506, %v5140, 0
      %v5184 = vsel %vm506, %v5141, 0
      %v5187 = vsel %vm506, %v5142, 0
      %v5190 = vsel %vm506, %v5143, 0
      %v5193 = vsel %vm506, %v5144, 0
      %v5196 = vsel %vm958, %v5146, 0
      %5198 = vmatpush.msra.mxu0 0.0
      %5199 = vmatpush.msra.mxu0 0.0
      %5200 = vmatpush.msra.mxu0 0.0
      %5201 = vmatpush.msra.mxu0 0.0
      %5202 = vmatpush.msra.mxu0 0.0
      %5203 = vmatpush.msra.mxu0 0.0
      %5204 = vmatpush.msra.mxu0 0.0
      %5205 = vmatpush.msra.mxu0 0.0
      %5206 = vmatpush.msra.mxu0 0.0
      %5207 = vmatpush.msra.mxu0 0.0
      %5208 = vmatpush.msra.mxu0 0.0
      %5209 = vmatpush.msra.mxu0 0.0
      %5210 = vmatpush.msra.mxu0 0.0
      %5211 = vmatpush.msra.mxu0 0.0
      %5212 = vmatpush.msra.mxu0 0.0
      %5213 = vmatpush.msra.mxu0 %v5196
      %5214 = vmatmul.f32.gmra.mxu0 %v5148
      %v5215 = vpop.f32.mrf.mxu0
      %v5216 = vadd.f32 0.0, %v5215
      %5217 = vmatmul.f32.gmra.mxu0 %v5151
      %v5218 = vpop.f32.mrf.mxu0
      %v5219 = vadd.f32 0.0, %v5218
      %5220 = vmatmul.f32.gmra.mxu0 %v5154
      %v5221 = vpop.f32.mrf.mxu0
      %v5222 = vadd.f32 0.0, %v5221
      %5223 = vmatmul.f32.gmra.mxu0 %v5157
      %v5224 = vpop.f32.mrf.mxu0
      %v5225 = vadd.f32 0.0, %v5224
      %5226 = vmatmul.f32.gmra.mxu0 %v5160
      %v5227 = vpop.f32.mrf.mxu0
      %v5228 = vadd.f32 0.0, %v5227
      %5229 = vmatmul.f32.gmra.mxu0 %v5163
      %v5230 = vpop.f32.mrf.mxu0
      %v5231 = vadd.f32 0.0, %v5230
      %5232 = vmatmul.f32.gmra.mxu0 %v5166
      %v5233 = vpop.f32.mrf.mxu0
      %v5234 = vadd.f32 0.0, %v5233
      %5235 = vmatmul.f32.gmra.mxu0 %v5169
      %v5236 = vpop.f32.mrf.mxu0
      %v5237 = vadd.f32 0.0, %v5236
      %5238 = vmatmul.f32.gmra.mxu0 %v5172
      %v5239 = vpop.f32.mrf.mxu0
      %v5240 = vadd.f32 0.0, %v5239
      %5241 = vmatmul.f32.gmra.mxu0 %v5175
      %v5242 = vpop.f32.mrf.mxu0
      %v5243 = vadd.f32 0.0, %v5242
      %5244 = vmatmul.f32.gmra.mxu0 %v5178
      %v5245 = vpop.f32.mrf.mxu0
      %v5246 = vadd.f32 0.0, %v5245
      %5247 = vmatmul.f32.gmra.mxu0 %v5181
      %v5248 = vpop.f32.mrf.mxu0
      %v5249 = vadd.f32 0.0, %v5248
      %5250 = vmatmul.f32.gmra.mxu0 %v5184
      %v5251 = vpop.f32.mrf.mxu0
      %v5252 = vadd.f32 0.0, %v5251
      %5253 = vmatmul.f32.gmra.mxu0 %v5187
      %v5254 = vpop.f32.mrf.mxu0
      %v5255 = vadd.f32 0.0, %v5254
      %5256 = vmatmul.f32.gmra.mxu0 %v5190
      %v5257 = vpop.f32.mrf.mxu0
      %v5258 = vadd.f32 0.0, %v5257
      %5259 = vmatmul.f32.gmra.mxu0 %v5193
      %v5260 = vpop.f32.mrf.mxu0
      %v5261 = vadd.f32 0.0, %v5260
      %5262 = vdwg.mxu0
      %v5263 = vadd.f32 %v5112, %v5216
      %v5264 = vadd.f32 %v5113, %v5219
      %v5265 = vadd.f32 %v5114, %v5222
      %v5266 = vadd.f32 %v5115, %v5225
      %v5267 = vadd.f32 %v5116, %v5228
      %v5268 = vadd.f32 %v5117, %v5231
      %v5269 = vadd.f32 %v5118, %v5234
      %v5270 = vadd.f32 %v5119, %v5237
      %v5271 = vadd.f32 %v5120, %v5240
      %v5272 = vadd.f32 %v5121, %v5243
      %v5273 = vadd.f32 %v5122, %v5246
      %v5274 = vadd.f32 %v5123, %v5249
      %v5275 = vadd.f32 %v5124, %v5252
      %v5276 = vadd.f32 %v5125, %v5255
      %v5277 = vadd.f32 %v5126, %v5258
      %v5278 = vadd.f32 %v5127, %v5261
      %v5279 = vld [vmem:[%s5128 + $0x1] sm:$0xff]
      %v5280 = vld [vmem:[%s5128 + $0x9] sm:$0xff]
      %v5281 = vld [vmem:[%s5128 + $0x19] sm:$0xff]
      %v5282 = vld [vmem:[%s5128 + $0x21] sm:$0xff]
      %v5283 = vld [vmem:[%s5128 + $0x31] sm:$0xff]
      %v5284 = vld [vmem:[%s5128 + $0x39] sm:$0xff]
      %v5285 = vld [vmem:[%s5128 + $0x49] sm:$0xff]
      %v5286 = vld [vmem:[%s5128 + $0x51] sm:$0xff]
      %v5287 = vld [vmem:[%s5128 + $0x61] sm:$0xff]
      %v5288 = vld [vmem:[%s5128 + $0x69] sm:$0xff]
      %v5289 = vld [vmem:[%s5128 + $0x79] sm:$0xff]
      %v5290 = vld [vmem:[%s5128 + $0x81] sm:$0xff]
      %v5291 = vld [vmem:[%s5128 + $0x91] sm:$0xff]
      %v5292 = vld [vmem:[%s5128 + $0x99] sm:$0xff]
      %v5293 = vld [vmem:[%s5128 + $0xa9] sm:$0xff]
      %v5294 = vld [vmem:[%s5128 + $0xb1] sm:$0xff]
      %s5295 = scalar_lea.vmem %s4, 16
      %v5296 = vld [vmem:[%s5295] sm:$0xf]
      %v5298 = vsel %vm506, %v5279, 0
      %v5301 = vsel %vm506, %v5280, 0
      %v5304 = vsel %vm506, %v5281, 0
      %v5307 = vsel %vm506, %v5282, 0
      %v5310 = vsel %vm506, %v5283, 0
      %v5313 = vsel %vm506, %v5284, 0
      %v5316 = vsel %vm506, %v5285, 0
      %v5319 = vsel %vm506, %v5286, 0
      %v5322 = vsel %vm506, %v5287, 0
      %v5325 = vsel %vm506, %v5288, 0
      %v5328 = vsel %vm506, %v5289, 0
      %v5331 = vsel %vm506, %v5290, 0
      %v5334 = vsel %vm506, %v5291, 0
      %v5337 = vsel %vm506, %v5292, 0
      %v5340 = vsel %vm506, %v5293, 0
      %v5343 = vsel %vm506, %v5294, 0
      %v5346 = vsel %vm958, %v5296, 0
      %5348 = vmatpush.msra.mxu0 0.0
      %5349 = vmatpush.msra.mxu0 0.0
      %5350 = vmatpush.msra.mxu0 0.0
      %5351 = vmatpush.msra.mxu0 0.0
      %5352 = vmatpush.msra.mxu0 0.0
      %5353 = vmatpush.msra.mxu0 0.0
      %5354 = vmatpush.msra.mxu0 0.0
      %5355 = vmatpush.msra.mxu0 0.0
      %5356 = vmatpush.msra.mxu0 0.0
      %5357 = vmatpush.msra.mxu0 0.0
      %5358 = vmatpush.msra.mxu0 0.0
      %5359 = vmatpush.msra.mxu0 0.0
      %5360 = vmatpush.msra.mxu0 0.0
      %5361 = vmatpush.msra.mxu0 0.0
      %5362 = vmatpush.msra.mxu0 0.0
      %5363 = vmatpush.msra.mxu0 %v5346
      %5364 = vmatmul.f32.gmra.mxu0 %v5298
      %v5365 = vpop.f32.mrf.mxu0
      %v5366 = vadd.f32 0.0, %v5365
      %5367 = vmatmul.f32.gmra.mxu0 %v5301
      %v5368 = vpop.f32.mrf.mxu0
      %v5369 = vadd.f32 0.0, %v5368
      %5370 = vmatmul.f32.gmra.mxu0 %v5304
      %v5371 = vpop.f32.mrf.mxu0
      %v5372 = vadd.f32 0.0, %v5371
      %5373 = vmatmul.f32.gmra.mxu0 %v5307
      %v5374 = vpop.f32.mrf.mxu0
      %v5375 = vadd.f32 0.0, %v5374
      %5376 = vmatmul.f32.gmra.mxu0 %v5310
      %v5377 = vpop.f32.mrf.mxu0
      %v5378 = vadd.f32 0.0, %v5377
      %5379 = vmatmul.f32.gmra.mxu0 %v5313
      %v5380 = vpop.f32.mrf.mxu0
      %v5381 = vadd.f32 0.0, %v5380
      %5382 = vmatmul.f32.gmra.mxu0 %v5316
      %v5383 = vpop.f32.mrf.mxu0
      %v5384 = vadd.f32 0.0, %v5383
      %5385 = vmatmul.f32.gmra.mxu0 %v5319
      %v5386 = vpop.f32.mrf.mxu0
      %v5387 = vadd.f32 0.0, %v5386
      %5388 = vmatmul.f32.gmra.mxu0 %v5322
      %v5389 = vpop.f32.mrf.mxu0
      %v5390 = vadd.f32 0.0, %v5389
      %5391 = vmatmul.f32.gmra.mxu0 %v5325
      %v5392 = vpop.f32.mrf.mxu0
      %v5393 = vadd.f32 0.0, %v5392
      %5394 = vmatmul.f32.gmra.mxu0 %v5328
      %v5395 = vpop.f32.mrf.mxu0
      %v5396 = vadd.f32 0.0, %v5395
      %5397 = vmatmul.f32.gmra.mxu0 %v5331
      %v5398 = vpop.f32.mrf.mxu0
      %v5399 = vadd.f32 0.0, %v5398
      %5400 = vmatmul.f32.gmra.mxu0 %v5334
      %v5401 = vpop.f32.mrf.mxu0
      %v5402 = vadd.f32 0.0, %v5401
      %5403 = vmatmul.f32.gmra.mxu0 %v5337
      %v5404 = vpop.f32.mrf.mxu0
      %v5405 = vadd.f32 0.0, %v5404
      %5406 = vmatmul.f32.gmra.mxu0 %v5340
      %v5407 = vpop.f32.mrf.mxu0
      %v5408 = vadd.f32 0.0, %v5407
      %5409 = vmatmul.f32.gmra.mxu0 %v5343
      %v5410 = vpop.f32.mrf.mxu0
      %v5411 = vadd.f32 0.0, %v5410
      %5412 = vdwg.mxu0
      %v5413 = vadd.f32 %v5263, %v5366
      %v5414 = vadd.f32 %v5264, %v5369
      %v5415 = vadd.f32 %v5265, %v5372
      %v5416 = vadd.f32 %v5266, %v5375
      %v5417 = vadd.f32 %v5267, %v5378
      %v5418 = vadd.f32 %v5268, %v5381
      %v5419 = vadd.f32 %v5269, %v5384
      %v5420 = vadd.f32 %v5270, %v5387
      %v5421 = vadd.f32 %v5271, %v5390
      %v5422 = vadd.f32 %v5272, %v5393
      %v5423 = vadd.f32 %v5273, %v5396
      %v5424 = vadd.f32 %v5274, %v5399
      %v5425 = vadd.f32 %v5275, %v5402
      %v5426 = vadd.f32 %v5276, %v5405
      %v5427 = vadd.f32 %v5277, %v5408
      %v5428 = vadd.f32 %v5278, %v5411
      %v5429 = vld [vmem:[%s5128 + $0x2] sm:$0xff]
      %v5430 = vld [vmem:[%s5128 + $0xa] sm:$0xff]
      %v5431 = vld [vmem:[%s5128 + $0x1a] sm:$0xff]
      %v5432 = vld [vmem:[%s5128 + $0x22] sm:$0xff]
      %v5433 = vld [vmem:[%s5128 + $0x32] sm:$0xff]
      %v5434 = vld [vmem:[%s5128 + $0x3a] sm:$0xff]
      %v5435 = vld [vmem:[%s5128 + $0x4a] sm:$0xff]
      %v5436 = vld [vmem:[%s5128 + $0x52] sm:$0xff]
      %v5437 = vld [vmem:[%s5128 + $0x62] sm:$0xff]
      %v5438 = vld [vmem:[%s5128 + $0x6a] sm:$0xff]
      %v5439 = vld [vmem:[%s5128 + $0x7a] sm:$0xff]
      %v5440 = vld [vmem:[%s5128 + $0x82] sm:$0xff]
      %v5441 = vld [vmem:[%s5128 + $0x92] sm:$0xff]
      %v5442 = vld [vmem:[%s5128 + $0x9a] sm:$0xff]
      %v5443 = vld [vmem:[%s5128 + $0xaa] sm:$0xff]
      %v5444 = vld [vmem:[%s5128 + $0xb2] sm:$0xff]
      %s5445 = scalar_lea.vmem %s4, 20
      %v5446 = vld [vmem:[%s5445] sm:$0xf]
      %v5448 = vsel %vm506, %v5429, 0
      %v5451 = vsel %vm506, %v5430, 0
      %v5454 = vsel %vm506, %v5431, 0
      %v5457 = vsel %vm506, %v5432, 0
      %v5460 = vsel %vm506, %v5433, 0
      %v5463 = vsel %vm506, %v5434, 0
      %v5466 = vsel %vm506, %v5435, 0
      %v5469 = vsel %vm506, %v5436, 0
      %v5472 = vsel %vm506, %v5437, 0
      %v5475 = vsel %vm506, %v5438, 0
      %v5478 = vsel %vm506, %v5439, 0
      %v5481 = vsel %vm506, %v5440, 0
      %v5484 = vsel %vm506, %v5441, 0
      %v5487 = vsel %vm506, %v5442, 0
      %v5490 = vsel %vm506, %v5443, 0
      %v5493 = vsel %vm506, %v5444, 0
      %v5496 = vsel %vm958, %v5446, 0
      %5498 = vmatpush.msra.mxu0 0.0
      %5499 = vmatpush.msra.mxu0 0.0
      %5500 = vmatpush.msra.mxu0 0.0
      %5501 = vmatpush.msra.mxu0 0.0
      %5502 = vmatpush.msra.mxu0 0.0
      %5503 = vmatpush.msra.mxu0 0.0
      %5504 = vmatpush.msra.mxu0 0.0
      %5505 = vmatpush.msra.mxu0 0.0
      %5506 = vmatpush.msra.mxu0 0.0
      %5507 = vmatpush.msra.mxu0 0.0
      %5508 = vmatpush.msra.mxu0 0.0
      %5509 = vmatpush.msra.mxu0 0.0
      %5510 = vmatpush.msra.mxu0 0.0
      %5511 = vmatpush.msra.mxu0 0.0
      %5512 = vmatpush.msra.mxu0 0.0
      %5513 = vmatpush.msra.mxu0 %v5496
      %5514 = vmatmul.f32.gmra.mxu0 %v5448
      %v5515 = vpop.f32.mrf.mxu0
      %v5516 = vadd.f32 0.0, %v5515
      %5517 = vmatmul.f32.gmra.mxu0 %v5451
      %v5518 = vpop.f32.mrf.mxu0
      %v5519 = vadd.f32 0.0, %v5518
      %5520 = vmatmul.f32.gmra.mxu0 %v5454
      %v5521 = vpop.f32.mrf.mxu0
      %v5522 = vadd.f32 0.0, %v5521
      %5523 = vmatmul.f32.gmra.mxu0 %v5457
      %v5524 = vpop.f32.mrf.mxu0
      %v5525 = vadd.f32 0.0, %v5524
      %5526 = vmatmul.f32.gmra.mxu0 %v5460
      %v5527 = vpop.f32.mrf.mxu0
      %v5528 = vadd.f32 0.0, %v5527
      %5529 = vmatmul.f32.gmra.mxu0 %v5463
      %v5530 = vpop.f32.mrf.mxu0
      %v5531 = vadd.f32 0.0, %v5530
      %5532 = vmatmul.f32.gmra.mxu0 %v5466
      %v5533 = vpop.f32.mrf.mxu0
      %v5534 = vadd.f32 0.0, %v5533
      %5535 = vmatmul.f32.gmra.mxu0 %v5469
      %v5536 = vpop.f32.mrf.mxu0
      %v5537 = vadd.f32 0.0, %v5536
      %5538 = vmatmul.f32.gmra.mxu0 %v5472
      %v5539 = vpop.f32.mrf.mxu0
      %v5540 = vadd.f32 0.0, %v5539
      %5541 = vmatmul.f32.gmra.mxu0 %v5475
      %v5542 = vpop.f32.mrf.mxu0
      %v5543 = vadd.f32 0.0, %v5542
      %5544 = vmatmul.f32.gmra.mxu0 %v5478
      %v5545 = vpop.f32.mrf.mxu0
      %v5546 = vadd.f32 0.0, %v5545
      %5547 = vmatmul.f32.gmra.mxu0 %v5481
      %v5548 = vpop.f32.mrf.mxu0
      %v5549 = vadd.f32 0.0, %v5548
      %5550 = vmatmul.f32.gmra.mxu0 %v5484
      %v5551 = vpop.f32.mrf.mxu0
      %v5552 = vadd.f32 0.0, %v5551
      %5553 = vmatmul.f32.gmra.mxu0 %v5487
      %v5554 = vpop.f32.mrf.mxu0
      %v5555 = vadd.f32 0.0, %v5554
      %5556 = vmatmul.f32.gmra.mxu0 %v5490
      %v5557 = vpop.f32.mrf.mxu0
      %v5558 = vadd.f32 0.0, %v5557
      %5559 = vmatmul.f32.gmra.mxu0 %v5493
      %v5560 = vpop.f32.mrf.mxu0
      %v5561 = vadd.f32 0.0, %v5560
      %5562 = vdwg.mxu0
      %v5563 = vadd.f32 %v5413, %v5516
      %v5564 = vadd.f32 %v5414, %v5519
      %v5565 = vadd.f32 %v5415, %v5522
      %v5566 = vadd.f32 %v5416, %v5525
      %v5567 = vadd.f32 %v5417, %v5528
      %v5568 = vadd.f32 %v5418, %v5531
      %v5569 = vadd.f32 %v5419, %v5534
      %v5570 = vadd.f32 %v5420, %v5537
      %v5571 = vadd.f32 %v5421, %v5540
      %v5572 = vadd.f32 %v5422, %v5543
      %v5573 = vadd.f32 %v5423, %v5546
      %v5574 = vadd.f32 %v5424, %v5549
      %v5575 = vadd.f32 %v5425, %v5552
      %v5576 = vadd.f32 %v5426, %v5555
      %v5577 = vadd.f32 %v5427, %v5558
      %v5578 = vadd.f32 %v5428, %v5561
      %s5579 = scalar_lea.vmem [#allocation3], 48
      %v5580 = vld [vmem:[%s5579] sm:$0xff]
      %v5581 = vld [vmem:[%s5579 + $0x8] sm:$0xff]
      %v5582 = vld [vmem:[%s5579 + $0x18] sm:$0xff]
      %v5583 = vld [vmem:[%s5579 + $0x20] sm:$0xff]
      %v5584 = vld [vmem:[%s5579 + $0x30] sm:$0xff]
      %v5585 = vld [vmem:[%s5579 + $0x38] sm:$0xff]
      %v5586 = vld [vmem:[%s5579 + $0x48] sm:$0xff]
      %v5587 = vld [vmem:[%s5579 + $0x50] sm:$0xff]
      %v5588 = vld [vmem:[%s5579 + $0x60] sm:$0xff]
      %v5589 = vld [vmem:[%s5579 + $0x68] sm:$0xff]
      %v5590 = vld [vmem:[%s5579 + $0x78] sm:$0xff]
      %v5591 = vld [vmem:[%s5579 + $0x80] sm:$0xff]
      %v5592 = vld [vmem:[%s5579 + $0x90] sm:$0xff]
      %v5593 = vld [vmem:[%s5579 + $0x98] sm:$0xff]
      %v5594 = vld [vmem:[%s5579 + $0xa8] sm:$0xff]
      %v5595 = vld [vmem:[%s5579 + $0xb0] sm:$0xff]
      %s5596 = scalar_lea.vmem %s4, 24
      %v5597 = vld [vmem:[%s5596] sm:$0xf]
      %v5599 = vsel %vm506, %v5580, 0
      %v5602 = vsel %vm506, %v5581, 0
      %v5605 = vsel %vm506, %v5582, 0
      %v5608 = vsel %vm506, %v5583, 0
      %v5611 = vsel %vm506, %v5584, 0
      %v5614 = vsel %vm506, %v5585, 0
      %v5617 = vsel %vm506, %v5586, 0
      %v5620 = vsel %vm506, %v5587, 0
      %v5623 = vsel %vm506, %v5588, 0
      %v5626 = vsel %vm506, %v5589, 0
      %v5629 = vsel %vm506, %v5590, 0
      %v5632 = vsel %vm506, %v5591, 0
      %v5635 = vsel %vm506, %v5592, 0
      %v5638 = vsel %vm506, %v5593, 0
      %v5641 = vsel %vm506, %v5594, 0
      %v5644 = vsel %vm506, %v5595, 0
      %v5647 = vsel %vm958, %v5597, 0
      %5649 = vmatpush.msra.mxu0 0.0
      %5650 = vmatpush.msra.mxu0 0.0
      %5651 = vmatpush.msra.mxu0 0.0
      %5652 = vmatpush.msra.mxu0 0.0
      %5653 = vmatpush.msra.mxu0 0.0
      %5654 = vmatpush.msra.mxu0 0.0
      %5655 = vmatpush.msra.mxu0 0.0
      %5656 = vmatpush.msra.mxu0 0.0
      %5657 = vmatpush.msra.mxu0 0.0
      %5658 = vmatpush.msra.mxu0 0.0
      %5659 = vmatpush.msra.mxu0 0.0
      %5660 = vmatpush.msra.mxu0 0.0
      %5661 = vmatpush.msra.mxu0 0.0
      %5662 = vmatpush.msra.mxu0 0.0
      %5663 = vmatpush.msra.mxu0 0.0
      %5664 = vmatpush.msra.mxu0 %v5647
      %5665 = vmatmul.f32.gmra.mxu0 %v5599
      %v5666 = vpop.f32.mrf.mxu0
      %v5667 = vadd.f32 0.0, %v5666
      %5668 = vmatmul.f32.gmra.mxu0 %v5602
      %v5669 = vpop.f32.mrf.mxu0
      %v5670 = vadd.f32 0.0, %v5669
      %5671 = vmatmul.f32.gmra.mxu0 %v5605
      %v5672 = vpop.f32.mrf.mxu0
      %v5673 = vadd.f32 0.0, %v5672
      %5674 = vmatmul.f32.gmra.mxu0 %v5608
      %v5675 = vpop.f32.mrf.mxu0
      %v5676 = vadd.f32 0.0, %v5675
      %5677 = vmatmul.f32.gmra.mxu0 %v5611
      %v5678 = vpop.f32.mrf.mxu0
      %v5679 = vadd.f32 0.0, %v5678
      %5680 = vmatmul.f32.gmra.mxu0 %v5614
      %v5681 = vpop.f32.mrf.mxu0
      %v5682 = vadd.f32 0.0, %v5681
      %5683 = vmatmul.f32.gmra.mxu0 %v5617
      %v5684 = vpop.f32.mrf.mxu0
      %v5685 = vadd.f32 0.0, %v5684
      %5686 = vmatmul.f32.gmra.mxu0 %v5620
      %v5687 = vpop.f32.mrf.mxu0
      %v5688 = vadd.f32 0.0, %v5687
      %5689 = vmatmul.f32.gmra.mxu0 %v5623
      %v5690 = vpop.f32.mrf.mxu0
      %v5691 = vadd.f32 0.0, %v5690
      %5692 = vmatmul.f32.gmra.mxu0 %v5626
      %v5693 = vpop.f32.mrf.mxu0
      %v5694 = vadd.f32 0.0, %v5693
      %5695 = vmatmul.f32.gmra.mxu0 %v5629
      %v5696 = vpop.f32.mrf.mxu0
      %v5697 = vadd.f32 0.0, %v5696
      %5698 = vmatmul.f32.gmra.mxu0 %v5632
      %v5699 = vpop.f32.mrf.mxu0
      %v5700 = vadd.f32 0.0, %v5699
      %5701 = vmatmul.f32.gmra.mxu0 %v5635
      %v5702 = vpop.f32.mrf.mxu0
      %v5703 = vadd.f32 0.0, %v5702
      %5704 = vmatmul.f32.gmra.mxu0 %v5638
      %v5705 = vpop.f32.mrf.mxu0
      %v5706 = vadd.f32 0.0, %v5705
      %5707 = vmatmul.f32.gmra.mxu0 %v5641
      %v5708 = vpop.f32.mrf.mxu0
      %v5709 = vadd.f32 0.0, %v5708
      %5710 = vmatmul.f32.gmra.mxu0 %v5644
      %v5711 = vpop.f32.mrf.mxu0
      %v5712 = vadd.f32 0.0, %v5711
      %5713 = vdwg.mxu0
      %v5714 = vadd.f32 %v5563, %v5667
      %v5715 = vadd.f32 %v5564, %v5670
      %v5716 = vadd.f32 %v5565, %v5673
      %v5717 = vadd.f32 %v5566, %v5676
      %v5718 = vadd.f32 %v5567, %v5679
      %v5719 = vadd.f32 %v5568, %v5682
      %v5720 = vadd.f32 %v5569, %v5685
      %v5721 = vadd.f32 %v5570, %v5688
      %v5722 = vadd.f32 %v5571, %v5691
      %v5723 = vadd.f32 %v5572, %v5694
      %v5724 = vadd.f32 %v5573, %v5697
      %v5725 = vadd.f32 %v5574, %v5700
      %v5726 = vadd.f32 %v5575, %v5703
      %v5727 = vadd.f32 %v5576, %v5706
      %v5728 = vadd.f32 %v5577, %v5709
      %v5729 = vadd.f32 %v5578, %v5712
      %v5730 = vld [vmem:[%s5579 + $0x1] sm:$0xff]
      %v5731 = vld [vmem:[%s5579 + $0x9] sm:$0xff]
      %v5732 = vld [vmem:[%s5579 + $0x19] sm:$0xff]
      %v5733 = vld [vmem:[%s5579 + $0x21] sm:$0xff]
      %v5734 = vld [vmem:[%s5579 + $0x31] sm:$0xff]
      %v5735 = vld [vmem:[%s5579 + $0x39] sm:$0xff]
      %v5736 = vld [vmem:[%s5579 + $0x49] sm:$0xff]
      %v5737 = vld [vmem:[%s5579 + $0x51] sm:$0xff]
      %v5738 = vld [vmem:[%s5579 + $0x61] sm:$0xff]
      %v5739 = vld [vmem:[%s5579 + $0x69] sm:$0xff]
      %v5740 = vld [vmem:[%s5579 + $0x79] sm:$0xff]
      %v5741 = vld [vmem:[%s5579 + $0x81] sm:$0xff]
      %v5742 = vld [vmem:[%s5579 + $0x91] sm:$0xff]
      %v5743 = vld [vmem:[%s5579 + $0x99] sm:$0xff]
      %v5744 = vld [vmem:[%s5579 + $0xa9] sm:$0xff]
      %v5745 = vld [vmem:[%s5579 + $0xb1] sm:$0xff]
      %s5746 = scalar_lea.vmem %s4, 28
      %v5747 = vld [vmem:[%s5746] sm:$0xf]
      %v5749 = vsel %vm506, %v5730, 0
      %v5752 = vsel %vm506, %v5731, 0
      %v5755 = vsel %vm506, %v5732, 0
      %v5758 = vsel %vm506, %v5733, 0
      %v5761 = vsel %vm506, %v5734, 0
      %v5764 = vsel %vm506, %v5735, 0
      %v5767 = vsel %vm506, %v5736, 0
      %v5770 = vsel %vm506, %v5737, 0
      %v5773 = vsel %vm506, %v5738, 0
      %v5776 = vsel %vm506, %v5739, 0
      %v5779 = vsel %vm506, %v5740, 0
      %v5782 = vsel %vm506, %v5741, 0
      %v5785 = vsel %vm506, %v5742, 0
      %v5788 = vsel %vm506, %v5743, 0
      %v5791 = vsel %vm506, %v5744, 0
      %v5794 = vsel %vm506, %v5745, 0
      %v5797 = vsel %vm958, %v5747, 0
      %5799 = vmatpush.msra.mxu0 0.0
      %5800 = vmatpush.msra.mxu0 0.0
      %5801 = vmatpush.msra.mxu0 0.0
      %5802 = vmatpush.msra.mxu0 0.0
      %5803 = vmatpush.msra.mxu0 0.0
      %5804 = vmatpush.msra.mxu0 0.0
      %5805 = vmatpush.msra.mxu0 0.0
      %5806 = vmatpush.msra.mxu0 0.0
      %5807 = vmatpush.msra.mxu0 0.0
      %5808 = vmatpush.msra.mxu0 0.0
      %5809 = vmatpush.msra.mxu0 0.0
      %5810 = vmatpush.msra.mxu0 0.0
      %5811 = vmatpush.msra.mxu0 0.0
      %5812 = vmatpush.msra.mxu0 0.0
      %5813 = vmatpush.msra.mxu0 0.0
      %5814 = vmatpush.msra.mxu0 %v5797
      %5815 = vmatmul.f32.gmra.mxu0 %v5749
      %v5816 = vpop.f32.mrf.mxu0
      %v5817 = vadd.f32 0.0, %v5816
      %5818 = vmatmul.f32.gmra.mxu0 %v5752
      %v5819 = vpop.f32.mrf.mxu0
      %v5820 = vadd.f32 0.0, %v5819
      %5821 = vmatmul.f32.gmra.mxu0 %v5755
      %v5822 = vpop.f32.mrf.mxu0
      %v5823 = vadd.f32 0.0, %v5822
      %5824 = vmatmul.f32.gmra.mxu0 %v5758
      %v5825 = vpop.f32.mrf.mxu0
      %v5826 = vadd.f32 0.0, %v5825
      %5827 = vmatmul.f32.gmra.mxu0 %v5761
      %v5828 = vpop.f32.mrf.mxu0
      %v5829 = vadd.f32 0.0, %v5828
      %5830 = vmatmul.f32.gmra.mxu0 %v5764
      %v5831 = vpop.f32.mrf.mxu0
      %v5832 = vadd.f32 0.0, %v5831
      %5833 = vmatmul.f32.gmra.mxu0 %v5767
      %v5834 = vpop.f32.mrf.mxu0
      %v5835 = vadd.f32 0.0, %v5834
      %5836 = vmatmul.f32.gmra.mxu0 %v5770
      %v5837 = vpop.f32.mrf.mxu0
      %v5838 = vadd.f32 0.0, %v5837
      %5839 = vmatmul.f32.gmra.mxu0 %v5773
      %v5840 = vpop.f32.mrf.mxu0
      %v5841 = vadd.f32 0.0, %v5840
      %5842 = vmatmul.f32.gmra.mxu0 %v5776
      %v5843 = vpop.f32.mrf.mxu0
      %v5844 = vadd.f32 0.0, %v5843
      %5845 = vmatmul.f32.gmra.mxu0 %v5779
      %v5846 = vpop.f32.mrf.mxu0
      %v5847 = vadd.f32 0.0, %v5846
      %5848 = vmatmul.f32.gmra.mxu0 %v5782
      %v5849 = vpop.f32.mrf.mxu0
      %v5850 = vadd.f32 0.0, %v5849
      %5851 = vmatmul.f32.gmra.mxu0 %v5785
      %v5852 = vpop.f32.mrf.mxu0
      %v5853 = vadd.f32 0.0, %v5852
      %5854 = vmatmul.f32.gmra.mxu0 %v5788
      %v5855 = vpop.f32.mrf.mxu0
      %v5856 = vadd.f32 0.0, %v5855
      %5857 = vmatmul.f32.gmra.mxu0 %v5791
      %v5858 = vpop.f32.mrf.mxu0
      %v5859 = vadd.f32 0.0, %v5858
      %5860 = vmatmul.f32.gmra.mxu0 %v5794
      %v5861 = vpop.f32.mrf.mxu0
      %v5862 = vadd.f32 0.0, %v5861
      %5863 = vdwg.mxu0
      %v5864 = vadd.f32 %v5714, %v5817
      %v5865 = vadd.f32 %v5715, %v5820
      %v5866 = vadd.f32 %v5716, %v5823
      %v5867 = vadd.f32 %v5717, %v5826
      %v5868 = vadd.f32 %v5718, %v5829
      %v5869 = vadd.f32 %v5719, %v5832
      %v5870 = vadd.f32 %v5720, %v5835
      %v5871 = vadd.f32 %v5721, %v5838
      %v5872 = vadd.f32 %v5722, %v5841
      %v5873 = vadd.f32 %v5723, %v5844
      %v5874 = vadd.f32 %v5724, %v5847
      %v5875 = vadd.f32 %v5725, %v5850
      %v5876 = vadd.f32 %v5726, %v5853
      %v5877 = vadd.f32 %v5727, %v5856
      %v5878 = vadd.f32 %v5728, %v5859
      %v5879 = vadd.f32 %v5729, %v5862
      %v5880 = vld [vmem:[%s5579 + $0x2] sm:$0xff]
      %v5881 = vld [vmem:[%s5579 + $0xa] sm:$0xff]
      %v5882 = vld [vmem:[%s5579 + $0x1a] sm:$0xff]
      %v5883 = vld [vmem:[%s5579 + $0x22] sm:$0xff]
      %v5884 = vld [vmem:[%s5579 + $0x32] sm:$0xff]
      %v5885 = vld [vmem:[%s5579 + $0x3a] sm:$0xff]
      %v5886 = vld [vmem:[%s5579 + $0x4a] sm:$0xff]
      %v5887 = vld [vmem:[%s5579 + $0x52] sm:$0xff]
      %v5888 = vld [vmem:[%s5579 + $0x62] sm:$0xff]
      %v5889 = vld [vmem:[%s5579 + $0x6a] sm:$0xff]
      %v5890 = vld [vmem:[%s5579 + $0x7a] sm:$0xff]
      %v5891 = vld [vmem:[%s5579 + $0x82] sm:$0xff]
      %v5892 = vld [vmem:[%s5579 + $0x92] sm:$0xff]
      %v5893 = vld [vmem:[%s5579 + $0x9a] sm:$0xff]
      %v5894 = vld [vmem:[%s5579 + $0xaa] sm:$0xff]
      %v5895 = vld [vmem:[%s5579 + $0xb2] sm:$0xff]
      %s5896 = scalar_lea.vmem %s4, 32
      %v5897 = vld [vmem:[%s5896] sm:$0xf]
      %v5899 = vsel %vm506, %v5880, 0
      %v5902 = vsel %vm506, %v5881, 0
      %v5905 = vsel %vm506, %v5882, 0
      %v5908 = vsel %vm506, %v5883, 0
      %v5911 = vsel %vm506, %v5884, 0
      %v5914 = vsel %vm506, %v5885, 0
      %v5917 = vsel %vm506, %v5886, 0
      %v5920 = vsel %vm506, %v5887, 0
      %v5923 = vsel %vm506, %v5888, 0
      %v5926 = vsel %vm506, %v5889, 0
      %v5929 = vsel %vm506, %v5890, 0
      %v5932 = vsel %vm506, %v5891, 0
      %v5935 = vsel %vm506, %v5892, 0
      %v5938 = vsel %vm506, %v5893, 0
      %v5941 = vsel %vm506, %v5894, 0
      %v5944 = vsel %vm506, %v5895, 0
      %v5947 = vsel %vm958, %v5897, 0
      %5949 = vmatpush.msra.mxu0 0.0
      %5950 = vmatpush.msra.mxu0 0.0
      %5951 = vmatpush.msra.mxu0 0.0
      %5952 = vmatpush.msra.mxu0 0.0
      %5953 = vmatpush.msra.mxu0 0.0
      %5954 = vmatpush.msra.mxu0 0.0
      %5955 = vmatpush.msra.mxu0 0.0
      %5956 = vmatpush.msra.mxu0 0.0
      %5957 = vmatpush.msra.mxu0 0.0
      %5958 = vmatpush.msra.mxu0 0.0
      %5959 = vmatpush.msra.mxu0 0.0
      %5960 = vmatpush.msra.mxu0 0.0
      %5961 = vmatpush.msra.mxu0 0.0
      %5962 = vmatpush.msra.mxu0 0.0
      %5963 = vmatpush.msra.mxu0 0.0
      %5964 = vmatpush.msra.mxu0 %v5947
      %5965 = vmatmul.f32.gmra.mxu0 %v5899
      %v5966 = vpop.f32.mrf.mxu0
      %v5967 = vadd.f32 0.0, %v5966
      %5968 = vmatmul.f32.gmra.mxu0 %v5902
      %v5969 = vpop.f32.mrf.mxu0
      %v5970 = vadd.f32 0.0, %v5969
      %5971 = vmatmul.f32.gmra.mxu0 %v5905
      %v5972 = vpop.f32.mrf.mxu0
      %v5973 = vadd.f32 0.0, %v5972
      %5974 = vmatmul.f32.gmra.mxu0 %v5908
      %v5975 = vpop.f32.mrf.mxu0
      %v5976 = vadd.f32 0.0, %v5975
      %5977 = vmatmul.f32.gmra.mxu0 %v5911
      %v5978 = vpop.f32.mrf.mxu0
      %v5979 = vadd.f32 0.0, %v5978
      %5980 = vmatmul.f32.gmra.mxu0 %v5914
      %v5981 = vpop.f32.mrf.mxu0
      %v5982 = vadd.f32 0.0, %v5981
      %5983 = vmatmul.f32.gmra.mxu0 %v5917
      %v5984 = vpop.f32.mrf.mxu0
      %v5985 = vadd.f32 0.0, %v5984
      %5986 = vmatmul.f32.gmra.mxu0 %v5920
      %v5987 = vpop.f32.mrf.mxu0
      %v5988 = vadd.f32 0.0, %v5987
      %5989 = vmatmul.f32.gmra.mxu0 %v5923
      %v5990 = vpop.f32.mrf.mxu0
      %v5991 = vadd.f32 0.0, %v5990
      %5992 = vmatmul.f32.gmra.mxu0 %v5926
      %v5993 = vpop.f32.mrf.mxu0
      %v5994 = vadd.f32 0.0, %v5993
      %5995 = vmatmul.f32.gmra.mxu0 %v5929
      %v5996 = vpop.f32.mrf.mxu0
      %v5997 = vadd.f32 0.0, %v5996
      %5998 = vmatmul.f32.gmra.mxu0 %v5932
      %v5999 = vpop.f32.mrf.mxu0
      %v6000 = vadd.f32 0.0, %v5999
      %6001 = vmatmul.f32.gmra.mxu0 %v5935
      %v6002 = vpop.f32.mrf.mxu0
      %v6003 = vadd.f32 0.0, %v6002
      %6004 = vmatmul.f32.gmra.mxu0 %v5938
      %v6005 = vpop.f32.mrf.mxu0
      %v6006 = vadd.f32 0.0, %v6005
      %6007 = vmatmul.f32.gmra.mxu0 %v5941
      %v6008 = vpop.f32.mrf.mxu0
      %v6009 = vadd.f32 0.0, %v6008
      %6010 = vmatmul.f32.gmra.mxu0 %v5944
      %v6011 = vpop.f32.mrf.mxu0
      %v6012 = vadd.f32 0.0, %v6011
      %6013 = vdwg.mxu0
      %v6014 = vadd.f32 %v5864, %v5967
      %v6015 = vadd.f32 %v5865, %v5970
      %v6016 = vadd.f32 %v5866, %v5973
      %v6017 = vadd.f32 %v5867, %v5976
      %v6018 = vadd.f32 %v5868, %v5979
      %v6019 = vadd.f32 %v5869, %v5982
      %v6020 = vadd.f32 %v5870, %v5985
      %v6021 = vadd.f32 %v5871, %v5988
      %v6022 = vadd.f32 %v5872, %v5991
      %v6023 = vadd.f32 %v5873, %v5994
      %v6024 = vadd.f32 %v5874, %v5997
      %v6025 = vadd.f32 %v5875, %v6000
      %v6026 = vadd.f32 %v5876, %v6003
      %v6027 = vadd.f32 %v5877, %v6006
      %v6028 = vadd.f32 %v5878, %v6009
      %v6029 = vadd.f32 %v5879, %v6012
      %v6030 = vld [vmem:[%s6] sm:$0x1]
      %v6032 = vperm.slane %v6030, 0
      %v6034 = vadd.f32 %v6014, %v6032
      %v6035 = vadd.f32 %v6015, %v6032
      %v6036 = vadd.f32 %v6016, %v6032
      %v6037 = vadd.f32 %v6017, %v6032
      %v6038 = vadd.f32 %v6018, %v6032
      %v6039 = vadd.f32 %v6019, %v6032
      %v6040 = vadd.f32 %v6020, %v6032
      %v6041 = vadd.f32 %v6021, %v6032
      %v6042 = vadd.f32 %v6022, %v6032
      %v6043 = vadd.f32 %v6023, %v6032
      %v6044 = vadd.f32 %v6024, %v6032
      %v6045 = vadd.f32 %v6025, %v6032
      %v6046 = vadd.f32 %v6026, %v6032
      %v6047 = vadd.f32 %v6027, %v6032
      %v6048 = vadd.f32 %v6028, %v6032
      %v6049 = vadd.f32 %v6029, %v6032
      %v6050 = vld [vmem:[%s406] sm:$0xff]
      %v6051 = vld [vmem:[%s406 + $0x8] sm:$0xff]
      %v6052 = vld [vmem:[%s406 + $0x10] sm:$0xff]
      %v6053 = vld [vmem:[%s406 + $0x18] sm:$0xff]
      %v6054 = vld [vmem:[%s406 + $0x20] sm:$0xff]
      %v6055 = vld [vmem:[%s406 + $0x28] sm:$0xff]
      %v6056 = vld [vmem:[%s406 + $0x30] sm:$0xff]
      %v6057 = vld [vmem:[%s406 + $0x38] sm:$0xff]
      %v6058 = vld [vmem:[%s406 + $0x40] sm:$0xff]
      %v6059 = vld [vmem:[%s406 + $0x48] sm:$0xff]
      %v6060 = vld [vmem:[%s406 + $0x50] sm:$0xff]
      %v6061 = vld [vmem:[%s406 + $0x58] sm:$0xff]
      %v6062 = vld [vmem:[%s406 + $0x60] sm:$0xff]
      %v6063 = vld [vmem:[%s406 + $0x68] sm:$0xff]
      %v6064 = vld [vmem:[%s406 + $0x70] sm:$0xff]
      %v6065 = vld [vmem:[%s406 + $0x78] sm:$0xff]
      %v6066 = vadd.f32 %v6034, %v6050
      %v6067 = vadd.f32 %v6035, %v6051
      %v6068 = vadd.f32 %v6036, %v6052
      %v6069 = vadd.f32 %v6037, %v6053
      %v6070 = vadd.f32 %v6038, %v6054
      %v6071 = vadd.f32 %v6039, %v6055
      %v6072 = vadd.f32 %v6040, %v6056
      %v6073 = vadd.f32 %v6041, %v6057
      %v6074 = vadd.f32 %v6042, %v6058
      %v6075 = vadd.f32 %v6043, %v6059
      %v6076 = vadd.f32 %v6044, %v6060
      %v6077 = vadd.f32 %v6045, %v6061
      %v6078 = vadd.f32 %v6046, %v6062
      %v6079 = vadd.f32 %v6047, %v6063
      %v6080 = vadd.f32 %v6048, %v6064
      %v6081 = vadd.f32 %v6049, %v6065
      %6082 = vst.msk [vmem:[%s455] sm:$0xff] %vm506, %v6066
      %6083 = vst.msk [vmem:[%s455 + $0x8] sm:$0xff] %vm506, %v6067
      %6084 = vst.msk [vmem:[%s455 + $0x10] sm:$0xff] %vm506, %v6068
      %6085 = vst.msk [vmem:[%s455 + $0x18] sm:$0xff] %vm506, %v6069
      %6086 = vst.msk [vmem:[%s455 + $0x20] sm:$0xff] %vm506, %v6070
      %6087 = vst.msk [vmem:[%s455 + $0x28] sm:$0xff] %vm506, %v6071
      %6088 = vst.msk [vmem:[%s455 + $0x30] sm:$0xff] %vm506, %v6072
      %6089 = vst.msk [vmem:[%s455 + $0x38] sm:$0xff] %vm506, %v6073
      %6090 = vst.msk [vmem:[%s455 + $0x40] sm:$0xff] %vm506, %v6074
      %6091 = vst.msk [vmem:[%s455 + $0x48] sm:$0xff] %vm506, %v6075
      %6092 = vst.msk [vmem:[%s455 + $0x50] sm:$0xff] %vm506, %v6076
      %6093 = vst.msk [vmem:[%s455 + $0x58] sm:$0xff] %vm506, %v6077
      %6094 = vst.msk [vmem:[%s455 + $0x60] sm:$0xff] %vm506, %v6078
      %6095 = vst.msk [vmem:[%s455 + $0x68] sm:$0xff] %vm506, %v6079
      %6096 = vst.msk [vmem:[%s455 + $0x70] sm:$0xff] %vm506, %v6080
      %6097 = vst.msk [vmem:[%s455 + $0x78] sm:$0xff] %vm506, %v6081
      %s6098 = smul.u32 8, %s23
      %p6099 = scmp.lt.s32.totalorder %s22, 1
      %s6100 = scalar_select %p6099, %s22, 1
      %p6101 = scmp.lt.s32.totalorder %s6098, 15
      %s6102 = scalar_select %p6101, %s6098, 15
      %s6103 = smul.addr %s6102, 2
      %s6104 = smul.addr %s6100, 32
      %s6105 = sadd.s32 %s6103, %s6104
      %s6106 = smul.addr %s6105, 8
      %s6107 = scalar_lea.vmem %s7, %s6106
      // Predicated region
      $region49: #{tpu_custom_call.1} parent=47 // pred_check
        %p6108 = pneg %p234
      $region50: #{tpu_custom_call.1} parent=47 // pred_check_branch
        %6110 = sbr.rel (%p6108) target = $region52
      $region51: #{tpu_custom_call.1} parent=47 // pred_region
        %s6111 = smul.u32 8, %s23
      $region52: #{tpu_custom_call.1} parent=47 // pred_fallthru
        _
    $region48: #{tpu_custom_call.1} parent=5 // pred_fallthru
      _
    %p6112 = scmp.le.s32.totalorder 2, %s13
    // Predicated region
    $region53: #{tpu_custom_call.1} parent=5 // pred_check
      %p6113 = pneg %p6112
    $region54: #{tpu_custom_call.1} parent=5 // pred_check_branch
      %6115 = sbr.rel (%p6113) target = $region56
    $region55: #{tpu_custom_call.1} parent=5 // pred_region
      %s6116 = ssub.s32 %s13, 2
      // Predicated region
      $region57: #{tpu_custom_call.1} parent=55 // pred_check
        %p6117 = pneg %p240
      $region58: #{tpu_custom_call.1} parent=55 // pred_check_branch
        %6119 = sbr.rel (%p6117) target = $region60
      $region59: #{tpu_custom_call.1} parent=55 // pred_region
        %s6120 = smul.u32 8, %s25
        %p6121 = scmp.lt.s32.totalorder %s24, 1
        %s6122 = scalar_select %p6121, %s24, 1
        %p6123 = scmp.lt.s32.totalorder %s6120, 15
        %s6124 = scalar_select %p6123, %s6120, 15
        %s6125 = smul.addr %s6124, 2
        %s6126 = smul.addr %s6122, 32
        %s6127 = sadd.s32 %s6125, %s6126
        %s6128 = smul.addr %s6127, 8
        %s6129 = scalar_lea.vmem %s7, %s6128
      $region60: #{tpu_custom_call.1} parent=55 // pred_fallthru
        _
    $region56: #{tpu_custom_call.1} parent=5 // pred_fallthru
      _
  $region6: #{tpu_custom_call.1} parent=0 // loop_footer
    %s17 = sadd.s32 1, %s13
  $region7: #{tpu_custom_call.1} parent=0 // loop_footer_branch
    %12 = sbr.rel target = $region3
  $region8: #{tpu_custom_call.1} parent=0 // loop_exit
    _

</llo_original>
